<compile_context>
chip_gen: v5e
topology: v5e:2x2
jax: 0.10.0
libtpu: 0.0.40
codegen_flags: <defaults>
</compile_context>

<pallas_src>
import jax
import jax.numpy as jnp
from jax.experimental import pallas as pl
from jax.experimental.pallas import tpu as pltpu

NOISE_DIM = 100
NUM_CLASSES = 10
IN_DIM = NOISE_DIM + NUM_CLASSES          # 110
IN_DIM_PAD = 128                          # zero-pad feature dim to lane width
H1, H2, H3 = 256, 512, 1024
OUT_DIM = 3 * 32 * 32                     # 3072
N_CHUNKS = 2                              # one chunk per v7x TensorCore
TN = OUT_DIM // N_CHUNKS                  # 1536 (lane-dense, 12 * 128)


def _generator_mlp_kernel(x_ref,
                          w1_ref, b1_ref,
                          w2_ref, b2_ref,
                          w3_ref, b3_ref,
                          w4_ref, s4_ref, b4_ref,
                          o_ref):
    # x_ref: (B, IN_DIM_PAD) f32; w1-3 bf16; w4 int8 chunk (H3, TN);
    # s4/b4: (1, TN) f32.  Layers 1-3 are recomputed per output chunk so each
    # grid step is independent ("parallel"); redundant FLOPs are negligible.
    x = x_ref[...].astype(jnp.bfloat16)
    h = jnp.maximum(
        jnp.dot(x, w1_ref[...], preferred_element_type=jnp.float32)
        + b1_ref[...], 0.0)
    h = jnp.maximum(
        jnp.dot(h.astype(jnp.bfloat16), w2_ref[...],
                preferred_element_type=jnp.float32) + b2_ref[...], 0.0)
    h = jnp.maximum(
        jnp.dot(h.astype(jnp.bfloat16), w3_ref[...],
                preferred_element_type=jnp.float32) + b3_ref[...], 0.0)
    # int8 values are exactly representable in bf16; MXU runs bf16 on every
    # TPU generation (v7x has no int MXU path, so this stays portable).
    w4 = w4_ref[...].astype(jnp.bfloat16)
    y = jnp.dot(h.astype(jnp.bfloat16), w4, preferred_element_type=jnp.float32)
    y = y * s4_ref[...] + b4_ref[...]     # per-column dequant scale, then bias
    o_ref[...] = jnp.tanh(y)


def _resident(shape):
    # Block index constant across the grid -> DMA'd once, stays in VMEM.
    return pl.BlockSpec(shape, lambda j: (0, 0))


@jax.jit
def cifar_generator_forward(noise, labels, params):
    """Equivalent of CIFARGenerator.forward.

    noise:  (B, NOISE_DIM) float32
    labels: (B,) int32 in [0, NUM_CLASSES)
    returns (B, 3, 32, 32) float32
    """
    B = noise.shape[0]
    emb = params["label_emb"][labels]                     # (B, 10) tiny gather
    pad = jnp.zeros((B, IN_DIM_PAD - IN_DIM), jnp.float32)
    x = jnp.concatenate([noise, emb, pad], axis=1)        # (B, 128), one fused op

    # Advisory cost: layers 1-3 are recomputed once per chunk.
    small_mm = IN_DIM_PAD * H1 + H1 * H2 + H2 * H3
    mm_flops = 2 * B * (N_CHUNKS * small_mm + H3 * OUT_DIM)
    w_bytes = 2 * small_mm + H3 * OUT_DIM                 # bf16 w1-3, int8 w4
    bs_bytes = 4 * (H1 + H2 + H3 + 2 * OUT_DIM)           # biases + w4 scales
    cost = pl.CostEstimate(
        flops=mm_flops,
        transcendentals=B * OUT_DIM,
        bytes_accessed=w_bytes + bs_bytes + 4 * B * IN_DIM_PAD + 4 * B * OUT_DIM)

    out_flat = pl.pallas_call(
        _generator_mlp_kernel,
        out_shape=jax.ShapeDtypeStruct((B, OUT_DIM), jnp.float32),
        grid=(N_CHUNKS,),
        in_specs=[
            _resident((B, IN_DIM_PAD)),
            _resident((IN_DIM_PAD, H1)), _resident((1, H1)),
            _resident((H1, H2)),         _resident((1, H2)),
            _resident((H2, H3)),         _resident((1, H3)),
            # w4 is pre-chunked (N_CHUNKS, H3, TN) -> one contiguous slab per
            # step; leading dim squeezed out of the kernel ref.
            pl.BlockSpec((None, H3, TN), lambda j: (j, 0, 0)),
            pl.BlockSpec((1, TN), lambda j: (0, j)),    # w4 per-column scales
            pl.BlockSpec((1, TN), lambda j: (0, j)),    # b4 chunk
        ],
        out_specs=pl.BlockSpec((B, TN), lambda j: (0, j)),  # lane-dense output
        compiler_params=pltpu.CompilerParams(
            dimension_semantics=("parallel",),          # megacore on v7x
            vmem_limit_bytes=32 << 20),
        cost_estimate=cost,
    )(x,
      params["w1"], params["b1"],
      params["w2"], params["b2"],
      params["w3"], params["b3"],
      params["w4q"], params["s4"], params["b4"])

    return out_flat.reshape(B, 3, 32, 32)


def init_params(key):
    """Deterministic synthetic parameters, PyTorch-default-like uniform init.

    w1-3 stored bf16; w4 stored int8 (symmetric, per-output-column f32 scale)
    and pre-chunked to (N_CHUNKS, H3, TN) so each chunk is HBM-contiguous.
    w1 is zero-row-padded 110 -> 128 so math is identical to the unpadded op.
    """
    ks = jax.random.split(key, 9)

    def lin_f32(kw, kb, fan_in, fan_out, pad_in=None):
        bound = 1.0 / jnp.sqrt(jnp.float32(fan_in))
        w = jax.random.uniform(kw, (fan_in, fan_out), jnp.float32, -bound, bound)
        b = jax.random.uniform(kb, (1, fan_out), jnp.float32, -bound, bound)
        if pad_in is not None and pad_in > fan_in:
            w = jnp.pad(w, ((0, pad_in - fan_in), (0, 0)))  # zero rows = no-op
        return w, b

    emb = jax.random.normal(ks[0], (NUM_CLASSES, NUM_CLASSES), jnp.float32)
    w1, b1 = lin_f32(ks[1], ks[2], IN_DIM, H1, pad_in=IN_DIM_PAD)
    w2, b2 = lin_f32(ks[3], ks[4], H1, H2)
    w3, b3 = lin_f32(ks[5], ks[6], H2, H3)
    w4, b4 = lin_f32(ks[7], ks[8], H3, OUT_DIM)

    # int8 symmetric per-output-column quantization of w4.
    s4 = jnp.max(jnp.abs(w4), axis=0, keepdims=True) / 127.0        # (1, OUT_DIM)
    w4q = jnp.clip(jnp.round(w4 / s4), -127, 127).astype(jnp.int8)  # (H3, OUT_DIM)
    # Pre-chunk along the output dim: chunk j = columns [j*TN, (j+1)*TN).
    w4q = w4q.reshape(H3, N_CHUNKS, TN).transpose(1, 0, 2)          # (N_CHUNKS, H3, TN)

    return {"label_emb": emb,
            "w1": w1.astype(jnp.bfloat16), "b1": b1,
            "w2": w2.astype(jnp.bfloat16), "b2": b2,
            "w3": w3.astype(jnp.bfloat16), "b3": b3,
            "w4q": w4q, "s4": s4, "b4": b4}


def _reference_forward(noise, labels, params):
    """Pure-JAX f32 reference using the exact stored (bf16 / int8) weights."""
    emb = params["label_emb"][labels]
    x = jnp.concatenate([noise, emb], axis=1)
    x = jnp.pad(x, ((0, 0), (0, IN_DIM_PAD - IN_DIM)))

    def lin(h, w, b):
        return jnp.dot(h, w.astype(jnp.float32)) + b

    h = jnp.maximum(lin(x, params["w1"], params["b1"]), 0.0)
    h = jnp.maximum(lin(h, params["w2"], params["b2"]), 0.0)
    h = jnp.maximum(lin(h, params["w3"], params["b3"]), 0.0)
    w4 = (params["w4q"].transpose(1, 0, 2).reshape(H3, OUT_DIM).astype(jnp.float32)
          * params["s4"])
    y = jnp.tanh(jnp.dot(h, w4) + params["b4"])
    return y.reshape(noise.shape[0], 3, 32, 32)


if __name__ == "__main__":
    key = jax.random.PRNGKey(0)
    k_p, k_n, k_l = jax.random.split(key, 3)

    B = 8
    params = init_params(k_p)
    noise = jax.random.normal(k_n, (B, NOISE_DIM), jnp.float32)
    labels = jax.random.randint(k_l, (B,), 0, NUM_CLASSES, jnp.int32)

    out = cifar_generator_forward(noise, labels, params)
    out = jax.block_until_ready(out)

    assert out.shape == (B, 3, 32, 32), out.shape
    ref = _reference_forward(noise, labels, params)
    max_err = float(jnp.max(jnp.abs(out - ref)))
    # bf16 activation casts inside the kernel vs f32 reference -> loose tol.
    assert max_err < 2e-2, f"mismatch vs JAX reference, max abs err {max_err}"

    print("KERNEL_OK")
</pallas_src>

<mosaic_0001>
module attributes {stable_mosaic.version = 11 : i64} {
  func.func @_generator_mlp_kernel(%arg0: i32, %arg1: memref<8x128xf32, #tpu.memory_space<vmem>>, %arg2: memref<128x256xbf16, #tpu.memory_space<vmem>>, %arg3: memref<1x256xf32, #tpu.memory_space<vmem>>, %arg4: memref<256x512xbf16, #tpu.memory_space<vmem>>, %arg5: memref<1x512xf32, #tpu.memory_space<vmem>>, %arg6: memref<512x1024xbf16, #tpu.memory_space<vmem>>, %arg7: memref<1x1024xf32, #tpu.memory_space<vmem>>, %arg8: memref<1x1024x1536xi8, #tpu.memory_space<vmem>>, %arg9: memref<1x1536xf32, #tpu.memory_space<vmem>>, %arg10: memref<1x1536xf32, #tpu.memory_space<vmem>>, %arg11: memref<8x1536xf32, #tpu.memory_space<vmem>>) attributes {dimension_semantics = [#tpu.dimension_semantics<parallel>], iteration_bounds = array<i64: 2>, scalar_prefetch = 0 : i64, scratch_operands = 0 : i64, tpu.core_type = #tpu.core_type<tc>, window_params = [{pipeline_mode = #tpu.pipeline_mode<synchronous>, transform_indices = @transform_0, window_bounds = array<i64: 8, 128>}, {pipeline_mode = #tpu.pipeline_mode<synchronous>, transform_indices = @transform_1, window_bounds = array<i64: 128, 256>}, {pipeline_mode = #tpu.pipeline_mode<synchronous>, transform_indices = @transform_2, window_bounds = array<i64: 1, 256>}, {pipeline_mode = #tpu.pipeline_mode<synchronous>, transform_indices = @transform_3, window_bounds = array<i64: 256, 512>}, {pipeline_mode = #tpu.pipeline_mode<synchronous>, transform_indices = @transform_4, window_bounds = array<i64: 1, 512>}, {pipeline_mode = #tpu.pipeline_mode<synchronous>, transform_indices = @transform_5, window_bounds = array<i64: 512, 1024>}, {pipeline_mode = #tpu.pipeline_mode<synchronous>, transform_indices = @transform_6, window_bounds = array<i64: 1, 1024>}, {transform_indices = @transform_7, window_bounds = array<i64: 1, 1024, 1536>}, {transform_indices = @transform_8, window_bounds = array<i64: 1, 1536>}, {transform_indices = @transform_9, window_bounds = array<i64: 1, 1536>}, {transform_indices = @transform_10, window_bounds = array<i64: 8, 1536>}]} {
    %c0 = arith.constant 0 : index
    %c0_0 = arith.constant 0 : index
    %0 = vector.load %arg1[%c0, %c0_0] : memref<8x128xf32, #tpu.memory_space<vmem>>, vector<8x128xf32>
    %1 = arith.truncf %0 : vector<8x128xf32> to vector<8x128xbf16>
    %c0_1 = arith.constant 0 : index
    %c0_2 = arith.constant 0 : index
    %2 = vector.load %arg2[%c0_1, %c0_2] : memref<128x256xbf16, #tpu.memory_space<vmem>>, vector<128x256xbf16>
    %cst = arith.constant dense<0.000000e+00> : vector<8x256xf32>
    %3 = tpu.matmul %1, %2, %cst {dimension_numbers = #tpu.dot_dimension_numbers<[1], [0], [0], [1], [0, 0, 1, 1], [], []>} : vector<8x128xbf16>, vector<128x256xbf16>, vector<8x256xf32> -> vector<8x256xf32>
    %c0_3 = arith.constant 0 : index
    %c0_4 = arith.constant 0 : index
    %4 = vector.load %arg3[%c0_3, %c0_4] : memref<1x256xf32, #tpu.memory_space<vmem>>, vector<1x256xf32>
    %5 = vector.broadcast %4 : vector<1x256xf32> to vector<8x256xf32>
    %6 = arith.addf %3, %5 : vector<8x256xf32>
    %cst_5 = arith.constant 0.000000e+00 : f32
    %7 = vector.broadcast %cst_5 : f32 to vector<8x256xf32>
    %8 = arith.maximumf %6, %7 : vector<8x256xf32>
    %9 = arith.truncf %8 : vector<8x256xf32> to vector<8x256xbf16>
    %c0_6 = arith.constant 0 : index
    %c0_7 = arith.constant 0 : index
    %10 = vector.load %arg4[%c0_6, %c0_7] : memref<256x512xbf16, #tpu.memory_space<vmem>>, vector<256x512xbf16>
    %cst_8 = arith.constant dense<0.000000e+00> : vector<8x512xf32>
    %11 = tpu.matmul %9, %10, %cst_8 {dimension_numbers = #tpu.dot_dimension_numbers<[1], [0], [0], [1], [0, 0, 1, 1], [], []>} : vector<8x256xbf16>, vector<256x512xbf16>, vector<8x512xf32> -> vector<8x512xf32>
    %c0_9 = arith.constant 0 : index
    %c0_10 = arith.constant 0 : index
    %12 = vector.load %arg5[%c0_9, %c0_10] : memref<1x512xf32, #tpu.memory_space<vmem>>, vector<1x512xf32>
    %13 = vector.broadcast %12 : vector<1x512xf32> to vector<8x512xf32>
    %14 = arith.addf %11, %13 : vector<8x512xf32>
    %cst_11 = arith.constant 0.000000e+00 : f32
    %15 = vector.broadcast %cst_11 : f32 to vector<8x512xf32>
    %16 = arith.maximumf %14, %15 : vector<8x512xf32>
    %17 = arith.truncf %16 : vector<8x512xf32> to vector<8x512xbf16>
    %c0_12 = arith.constant 0 : index
    %c0_13 = arith.constant 0 : index
    %18 = vector.load %arg6[%c0_12, %c0_13] : memref<512x1024xbf16, #tpu.memory_space<vmem>>, vector<512x1024xbf16>
    %cst_14 = arith.constant dense<0.000000e+00> : vector<8x1024xf32>
    %19 = tpu.matmul %17, %18, %cst_14 {dimension_numbers = #tpu.dot_dimension_numbers<[1], [0], [0], [1], [0, 0, 1, 1], [], []>} : vector<8x512xbf16>, vector<512x1024xbf16>, vector<8x1024xf32> -> vector<8x1024xf32>
    %c0_15 = arith.constant 0 : index
    %c0_16 = arith.constant 0 : index
    %20 = vector.load %arg7[%c0_15, %c0_16] : memref<1x1024xf32, #tpu.memory_space<vmem>>, vector<1x1024xf32>
    %21 = vector.broadcast %20 : vector<1x1024xf32> to vector<8x1024xf32>
    %22 = arith.addf %19, %21 : vector<8x1024xf32>
    %cst_17 = arith.constant 0.000000e+00 : f32
    %23 = vector.broadcast %cst_17 : f32 to vector<8x1024xf32>
    %24 = arith.maximumf %22, %23 : vector<8x1024xf32>
    %c0_18 = arith.constant 0 : index
    %c0_19 = arith.constant 0 : index
    %c0_20 = arith.constant 0 : index
    %25 = vector.load %arg8[%c0_18, %c0_19, %c0_20] : memref<1x1024x1536xi8, #tpu.memory_space<vmem>>, vector<1x1024x1536xi8>
    %26 = vector.shape_cast %25 : vector<1x1024x1536xi8> to vector<1024x1536xi8>
    %27 = arith.sitofp %26 : vector<1024x1536xi8> to vector<1024x1536xbf16>
    %28 = arith.truncf %24 : vector<8x1024xf32> to vector<8x1024xbf16>
    %cst_21 = arith.constant dense<0.000000e+00> : vector<8x1536xf32>
    %29 = tpu.matmul %28, %27, %cst_21 {dimension_numbers = #tpu.dot_dimension_numbers<[1], [0], [0], [1], [0, 0, 1, 1], [], []>} : vector<8x1024xbf16>, vector<1024x1536xbf16>, vector<8x1536xf32> -> vector<8x1536xf32>
    %c0_22 = arith.constant 0 : index
    %c0_23 = arith.constant 0 : index
    %30 = vector.load %arg9[%c0_22, %c0_23] : memref<1x1536xf32, #tpu.memory_space<vmem>>, vector<1x1536xf32>
    %31 = vector.broadcast %30 : vector<1x1536xf32> to vector<8x1536xf32>
    %32 = arith.mulf %29, %31 : vector<8x1536xf32>
    %c0_24 = arith.constant 0 : index
    %c0_25 = arith.constant 0 : index
    %33 = vector.load %arg10[%c0_24, %c0_25] : memref<1x1536xf32, #tpu.memory_space<vmem>>, vector<1x1536xf32>
    %34 = vector.broadcast %33 : vector<1x1536xf32> to vector<8x1536xf32>
    %35 = arith.addf %32, %34 : vector<8x1536xf32>
    %36 = math.tanh %35 : vector<8x1536xf32>
    %c0_26 = arith.constant 0 : index
    %c0_27 = arith.constant 0 : index
    %37 = vector.load %arg11[%c0_26, %c0_27] : memref<8x1536xf32, #tpu.memory_space<vmem>>, vector<8x1536xf32>
    tpu.vector_store %arg11[%c0_26, %c0_27], %36 {strides = array<i32>} : memref<8x1536xf32, #tpu.memory_space<vmem>>, vector<8x1536xf32>,
    return
  }
  func.func @transform_0(%arg0: i32) -> (i32, i32) {
    %c0_i32 = arith.constant 0 : i32
    %c0_i32_0 = arith.constant 0 : i32
    %c0_i32_1 = arith.constant 0 : i32
    return %c0_i32, %c0_i32_0 : i32, i32
  }
  func.func @transform_1(%arg0: i32) -> (i32, i32) {
    %c0_i32 = arith.constant 0 : i32
    %c0_i32_0 = arith.constant 0 : i32
    %c0_i32_1 = arith.constant 0 : i32
    return %c0_i32, %c0_i32_0 : i32, i32
  }
  func.func @transform_2(%arg0: i32) -> (i32, i32) {
    %c0_i32 = arith.constant 0 : i32
    %c0_i32_0 = arith.constant 0 : i32
    %c0_i32_1 = arith.constant 0 : i32
    return %c0_i32, %c0_i32_0 : i32, i32
  }
  func.func @transform_3(%arg0: i32) -> (i32, i32) {
    %c0_i32 = arith.constant 0 : i32
    %c0_i32_0 = arith.constant 0 : i32
    %c0_i32_1 = arith.constant 0 : i32
    return %c0_i32, %c0_i32_0 : i32, i32
  }
  func.func @transform_4(%arg0: i32) -> (i32, i32) {
    %c0_i32 = arith.constant 0 : i32
    %c0_i32_0 = arith.constant 0 : i32
    %c0_i32_1 = arith.constant 0 : i32
    return %c0_i32, %c0_i32_0 : i32, i32
  }
  func.func @transform_5(%arg0: i32) -> (i32, i32) {
    %c0_i32 = arith.constant 0 : i32
    %c0_i32_0 = arith.constant 0 : i32
    %c0_i32_1 = arith.constant 0 : i32
    return %c0_i32, %c0_i32_0 : i32, i32
  }
  func.func @transform_6(%arg0: i32) -> (i32, i32) {
    %c0_i32 = arith.constant 0 : i32
    %c0_i32_0 = arith.constant 0 : i32
    %c0_i32_1 = arith.constant 0 : i32
    return %c0_i32, %c0_i32_0 : i32, i32
  }
  func.func @transform_7(%arg0: i32) -> (i32, i32, i32) {
    %c0_i32 = arith.constant 0 : i32
    %c0_i32_0 = arith.constant 0 : i32
    %c0_i32_1 = arith.constant 0 : i32
    return %arg0, %c0_i32, %c0_i32_0 : i32, i32, i32
  }
  func.func @transform_8(%arg0: i32) -> (i32, i32) {
    %c0_i32 = arith.constant 0 : i32
    %c0_i32_0 = arith.constant 0 : i32
    return %c0_i32, %arg0 : i32, i32
  }
  func.func @transform_9(%arg0: i32) -> (i32, i32) {
    %c0_i32 = arith.constant 0 : i32
    %c0_i32_0 = arith.constant 0 : i32
    return %c0_i32, %arg0 : i32, i32
  }
  func.func @transform_10(%arg0: i32) -> (i32, i32) {
    %c0_i32 = arith.constant 0 : i32
    %c0_i32_0 = arith.constant 0 : i32
    return %c0_i32, %arg0 : i32, i32
  }
}

</mosaic_0001>

<llo_original>
// kernel: cifar_generator_forward.1
$region0: #{cifar_generator_forward.1}
  #allocation0 [shape = 'u32[]', space=smem, size = 0x4, offset = 0x4, fixed_abs, tag = 'smem constant byte address 0x4 - core index']
  #allocation1 [shape = 'u32[72,128]{1,0:T(1,128)}', space=vmem, size = 0x9000, scoped, tag = 'internal scratch']
  %s0 = inlined_call_operand.vmem [shape: f32[8,128], index: 0, kind: input, shape index: {}]
  %s1 = inlined_call_operand.hbm [shape: bf16[128,256], index: 1, kind: input, shape index: {}]
  %s2 = inlined_call_operand.hbm [shape: f32[1,256], index: 2, kind: input, shape index: {}]
  %s3 = inlined_call_operand.hbm [shape: bf16[256,512], index: 3, kind: input, shape index: {}]
  %s4 = inlined_call_operand.hbm [shape: f32[1,512], index: 4, kind: input, shape index: {}]
  %s5 = inlined_call_operand.hbm [shape: bf16[512,1024], index: 5, kind: input, shape index: {}]
  %s6 = inlined_call_operand.hbm [shape: f32[1,1024], index: 6, kind: input, shape index: {}]
  %s7 = inlined_call_operand.hbm [shape: s8[2,1024,1536], index: 7, kind: input, shape index: {}]
  %s8 = inlined_call_operand.hbm [shape: f32[1,3072], index: 8, kind: input, shape index: {}]
  %s9 = inlined_call_operand.hbm [shape: f32[1,3072], index: 9, kind: input, shape index: {}]
  %s10 = inlined_call_operand.vmem [shape: f32[8,3072], index: 10, kind: output, shape index: {}]
  %s11 = sld [smem:[#allocation0]]
  $region109: #{cifar_generator_forward.1} parent=0
    _
  %s13 = ssub.s32 1, %s11
  %s14 = scalar_select 0, %s13, %s11
  $region1: #{cifar_generator_forward.1} parent=0
    #allocation2 [shape = 'u8[65536]{0}', space=vmem, size = 0x10000, scoped, tag = 'input window, operand 1, single buffered']
    #allocation3 [shape = 's32[2]{0}', space=sflag, size = 0x8, scoped, tag = 'scoped memory for cifar_generator_forward.1']
    #allocation4 [shape = 'u8[1024]{0}', space=vmem, size = 0x400, scoped, tag = 'input window, operand 2, single buffered']
    #allocation5 [shape = 's32[1]{0}', space=sflag, size = 0x4, scoped, tag = 'scoped memory for cifar_generator_forward.1']
    #allocation6 [shape = 'u8[262144]{0}', space=vmem, size = 0x40000, scoped, tag = 'input window, operand 3, single buffered']
    #allocation7 [shape = 'u8[2048]{0}', space=vmem, size = 0x800, scoped, tag = 'input window, operand 4, single buffered']
    #allocation8 [shape = 's32[1]{0}', space=sflag, size = 0x4, scoped, tag = 'scoped memory for cifar_generator_forward.1']
    #allocation9 [shape = 'u8[1048576]{0}', space=vmem, size = 0x100000, scoped, tag = 'input window, operand 5, single buffered']
    #allocation10 [shape = 'u8[4096]{0}', space=vmem, size = 0x1000, scoped, tag = 'input window, operand 6, single buffered']
    #allocation11 [shape = 's32[1]{0}', space=sflag, size = 0x4, scoped, tag = 'scoped memory for cifar_generator_forward.1']
    #allocation12 [shape = 'u8[3145728]{0}', space=vmem, size = 0x300000, scoped, tag = 'input window, operand 7']
    #allocation13 [shape = 'u8[12288]{0}', space=vmem, size = 0x3000, scoped, tag = 'input window, operand 8']
    #allocation14 [shape = 'u8[12288]{0}', space=vmem, size = 0x3000, scoped, tag = 'input window, operand 9']
    %15 = vsyncpa [#allocation3], 0
    %16 = vsyncpa [#allocation5], 0
    %17 = vsyncpa [#allocation8], 0
    %18 = vsyncpa [#allocation11], 0
    loop: start=0, step=1, limit=4
    $region2: #{cifar_generator_forward.1} parent=1 // loop_pre_header
      _
    $region3: #{cifar_generator_forward.1} parent=1 // loop_header
      %s20 = sphi 0, %s24
      %p21 = scmp.ge.s32.totalorder %s20, 4
      %s28 = sphi 0, %s28
      %s30 = sphi 0, %s28
      %s31 = sphi 0, %s30
      %s45 = sphi 0, %s31
      %s49 = sphi 0, %s49
      %s51 = sphi 0, %s49
      %s52 = sphi 0, %s51
      %s66 = sphi 0, %s52
      %s70 = sphi 0, %s70
      %s72 = sphi 0, %s70
      %s73 = sphi 0, %s72
      %s87 = sphi 0, %s73
      %s91 = sphi 0, %s91
      %s93 = sphi 0, %s91
      %s94 = sphi 0, %s93
      %s108 = sphi 0, %s94
      %s112 = sphi 0, %s112
      %s114 = sphi 0, %s112
      %s115 = sphi 0, %s114
      %s129 = sphi 0, %s115
      %s133 = sphi 0, %s133
      %s135 = sphi 0, %s133
      %s136 = sphi 0, %s135
      %s150 = sphi 0, %s136
      %s154 = sphi 0, %s154
      %s156 = sphi 0, %s154
      %s157 = sphi 0, %s156
      %s171 = sphi 0, %s157
      %s177 = sphi 0, %s179
      %s180 = sphi 0, %s177
      %s181 = sphi 0, %s180
      %s197 = sphi 0, %s181
      %s203 = sphi 0, %s205
      %s206 = sphi 0, %s203
      %s207 = sphi 0, %s206
      %s223 = sphi 0, %s207
      %s229 = sphi 0, %s231
      %s232 = sphi 0, %s229
      %s233 = sphi 0, %s232
      %s249 = sphi 0, %s233
      %s255 = sphi 0, %s257
      %s258 = sphi 0, %s255
      %s259 = sphi 0, %s258
      %s275 = sphi 0, %s259
    $region4: #{cifar_generator_forward.1} parent=1 // loop_header_branch
      %23 = sbr.rel (%p21) target = $region8
    $region5: #{cifar_generator_forward.1} parent=1 // loop_body
      %s25 = ssub.s32 %s20, 1
      %s26 = ssub.s32 %s20, 2
      %s27 = sadd.s32 %s20, 1
      %s29 = sadd.s32 %s28, 1
      %p32 = scmp.eq.s32.totalorder %s20, 1
      %p33 = scmp.ne.s32.totalorder %s28, %s30
      %p34 = scmp.eq.s32.totalorder %s20, 0
      %p35 = por %p33, %p34
      %p36 = scmp.ne.s32.totalorder %s28, %s30
      %p37 = scmp.eq.s32.totalorder %s25, 1
      %p38 = por %p36, %p37
      %p39 = scmp.ne.s32.totalorder %s30, %s31
      %p40 = scmp.eq.s32.totalorder %s25, 0
      %p41 = por %p39, %p40
      %p42 = scmp.ne.s32.totalorder %s30, %s31
      %p43 = scmp.eq.s32.totalorder %s26, 1
      %p44 = por %p42, %p43
      %p46 = scmp.ne.s32.totalorder %s31, %s45
      %p47 = scmp.eq.s32.totalorder %s26, 0
      %p48 = por %p46, %p47
      %s50 = sadd.s32 %s49, 1
      %p53 = scmp.eq.s32.totalorder %s20, 1
      %p54 = scmp.ne.s32.totalorder %s49, %s51
      %p55 = scmp.eq.s32.totalorder %s20, 0
      %p56 = por %p54, %p55
      %p57 = scmp.ne.s32.totalorder %s49, %s51
      %p58 = scmp.eq.s32.totalorder %s25, 1
      %p59 = por %p57, %p58
      %p60 = scmp.ne.s32.totalorder %s51, %s52
      %p61 = scmp.eq.s32.totalorder %s25, 0
      %p62 = por %p60, %p61
      %p63 = scmp.ne.s32.totalorder %s51, %s52
      %p64 = scmp.eq.s32.totalorder %s26, 1
      %p65 = por %p63, %p64
      %p67 = scmp.ne.s32.totalorder %s52, %s66
      %p68 = scmp.eq.s32.totalorder %s26, 0
      %p69 = por %p67, %p68
      %s71 = sadd.s32 %s70, 1
      %p74 = scmp.eq.s32.totalorder %s20, 1
      %p75 = scmp.ne.s32.totalorder %s70, %s72
      %p76 = scmp.eq.s32.totalorder %s20, 0
      %p77 = por %p75, %p76
      %p78 = scmp.ne.s32.totalorder %s70, %s72
      %p79 = scmp.eq.s32.totalorder %s25, 1
      %p80 = por %p78, %p79
      %p81 = scmp.ne.s32.totalorder %s72, %s73
      %p82 = scmp.eq.s32.totalorder %s25, 0
      %p83 = por %p81, %p82
      %p84 = scmp.ne.s32.totalorder %s72, %s73
      %p85 = scmp.eq.s32.totalorder %s26, 1
      %p86 = por %p84, %p85
      %p88 = scmp.ne.s32.totalorder %s73, %s87
      %p89 = scmp.eq.s32.totalorder %s26, 0
      %p90 = por %p88, %p89
      %s92 = sadd.s32 %s91, 1
      %p95 = scmp.eq.s32.totalorder %s20, 1
      %p96 = scmp.ne.s32.totalorder %s91, %s93
      %p97 = scmp.eq.s32.totalorder %s20, 0
      %p98 = por %p96, %p97
      %p99 = scmp.ne.s32.totalorder %s91, %s93
      %p100 = scmp.eq.s32.totalorder %s25, 1
      %p101 = por %p99, %p100
      %p102 = scmp.ne.s32.totalorder %s93, %s94
      %p103 = scmp.eq.s32.totalorder %s25, 0
      %p104 = por %p102, %p103
      %p105 = scmp.ne.s32.totalorder %s93, %s94
      %p106 = scmp.eq.s32.totalorder %s26, 1
      %p107 = por %p105, %p106
      %p109 = scmp.ne.s32.totalorder %s94, %s108
      %p110 = scmp.eq.s32.totalorder %s26, 0
      %p111 = por %p109, %p110
      %s113 = sadd.s32 %s112, 1
      %p116 = scmp.eq.s32.totalorder %s20, 1
      %p117 = scmp.ne.s32.totalorder %s112, %s114
      %p118 = scmp.eq.s32.totalorder %s20, 0
      %p119 = por %p117, %p118
      %p120 = scmp.ne.s32.totalorder %s112, %s114
      %p121 = scmp.eq.s32.totalorder %s25, 1
      %p122 = por %p120, %p121
      %p123 = scmp.ne.s32.totalorder %s114, %s115
      %p124 = scmp.eq.s32.totalorder %s25, 0
      %p125 = por %p123, %p124
      %p126 = scmp.ne.s32.totalorder %s114, %s115
      %p127 = scmp.eq.s32.totalorder %s26, 1
      %p128 = por %p126, %p127
      %p130 = scmp.ne.s32.totalorder %s115, %s129
      %p131 = scmp.eq.s32.totalorder %s26, 0
      %p132 = por %p130, %p131
      %s134 = sadd.s32 %s133, 1
      %p137 = scmp.eq.s32.totalorder %s20, 1
      %p138 = scmp.ne.s32.totalorder %s133, %s135
      %p139 = scmp.eq.s32.totalorder %s20, 0
      %p140 = por %p138, %p139
      %p141 = scmp.ne.s32.totalorder %s133, %s135
      %p142 = scmp.eq.s32.totalorder %s25, 1
      %p143 = por %p141, %p142
      %p144 = scmp.ne.s32.totalorder %s135, %s136
      %p145 = scmp.eq.s32.totalorder %s25, 0
      %p146 = por %p144, %p145
      %p147 = scmp.ne.s32.totalorder %s135, %s136
      %p148 = scmp.eq.s32.totalorder %s26, 1
      %p149 = por %p147, %p148
      %p151 = scmp.ne.s32.totalorder %s136, %s150
      %p152 = scmp.eq.s32.totalorder %s26, 0
      %p153 = por %p151, %p152
      %s155 = sadd.s32 %s154, 1
      %p158 = scmp.eq.s32.totalorder %s20, 1
      %p159 = scmp.ne.s32.totalorder %s154, %s156
      %p160 = scmp.eq.s32.totalorder %s20, 0
      %p161 = por %p159, %p160
      %p162 = scmp.ne.s32.totalorder %s154, %s156
      %p163 = scmp.eq.s32.totalorder %s25, 1
      %p164 = por %p162, %p163
      %p165 = scmp.ne.s32.totalorder %s156, %s157
      %p166 = scmp.eq.s32.totalorder %s25, 0
      %p167 = por %p165, %p166
      %p168 = scmp.ne.s32.totalorder %s156, %s157
      %p169 = scmp.eq.s32.totalorder %s26, 1
      %p170 = por %p168, %p169
      %p172 = scmp.ne.s32.totalorder %s157, %s171
      %p173 = scmp.eq.s32.totalorder %s26, 0
      %p174 = por %p172, %p173
      %s175 = ssub.s32 %s20, %s27
      %p176 = scmp.eq.s32.totalorder %s175, 0
      %s178 = sadd.s32 %s177, 1
      %s179 = scalar_select %p176, %s177, %s178
      %p182 = pneg %p176
      %p183 = scmp.eq.s32.totalorder %s20, 1
      %p184 = por %p182, %p183
      %p185 = scmp.ne.s32.totalorder %s177, %s180
      %p186 = scmp.eq.s32.totalorder %s20, 0
      %p187 = por %p185, %p186
      %p188 = scmp.ne.s32.totalorder %s177, %s180
      %p189 = scmp.eq.s32.totalorder %s25, 1
      %p190 = por %p188, %p189
      %p191 = scmp.ne.s32.totalorder %s180, %s181
      %p192 = scmp.eq.s32.totalorder %s25, 0
      %p193 = por %p191, %p192
      %p194 = scmp.ne.s32.totalorder %s180, %s181
      %p195 = scmp.eq.s32.totalorder %s26, 1
      %p196 = por %p194, %p195
      %p198 = scmp.ne.s32.totalorder %s181, %s197
      %p199 = scmp.eq.s32.totalorder %s26, 0
      %p200 = por %p198, %p199
      %s201 = ssub.s32 %s20, %s27
      %p202 = scmp.eq.s32.totalorder %s201, 0
      %s204 = sadd.s32 %s203, 1
      %s205 = scalar_select %p202, %s203, %s204
      %p208 = pneg %p202
      %p209 = scmp.eq.s32.totalorder %s20, 1
      %p210 = por %p208, %p209
      %p211 = scmp.ne.s32.totalorder %s203, %s206
      %p212 = scmp.eq.s32.totalorder %s20, 0
      %p213 = por %p211, %p212
      %p214 = scmp.ne.s32.totalorder %s203, %s206
      %p215 = scmp.eq.s32.totalorder %s25, 1
      %p216 = por %p214, %p215
      %p217 = scmp.ne.s32.totalorder %s206, %s207
      %p218 = scmp.eq.s32.totalorder %s25, 0
      %p219 = por %p217, %p218
      %p220 = scmp.ne.s32.totalorder %s206, %s207
      %p221 = scmp.eq.s32.totalorder %s26, 1
      %p222 = por %p220, %p221
      %p224 = scmp.ne.s32.totalorder %s207, %s223
      %p225 = scmp.eq.s32.totalorder %s26, 0
      %p226 = por %p224, %p225
      %s227 = ssub.s32 %s20, %s27
      %p228 = scmp.eq.s32.totalorder %s227, 0
      %s230 = sadd.s32 %s229, 1
      %s231 = scalar_select %p228, %s229, %s230
      %p234 = pneg %p228
      %p235 = scmp.eq.s32.totalorder %s20, 1
      %p236 = por %p234, %p235
      %p237 = scmp.ne.s32.totalorder %s229, %s232
      %p238 = scmp.eq.s32.totalorder %s20, 0
      %p239 = por %p237, %p238
      %p240 = scmp.ne.s32.totalorder %s229, %s232
      %p241 = scmp.eq.s32.totalorder %s25, 1
      %p242 = por %p240, %p241
      %p243 = scmp.ne.s32.totalorder %s232, %s233
      %p244 = scmp.eq.s32.totalorder %s25, 0
      %p245 = por %p243, %p244
      %p246 = scmp.ne.s32.totalorder %s232, %s233
      %p247 = scmp.eq.s32.totalorder %s26, 1
      %p248 = por %p246, %p247
      %p250 = scmp.ne.s32.totalorder %s233, %s249
      %p251 = scmp.eq.s32.totalorder %s26, 0
      %p252 = por %p250, %p251
      %s253 = ssub.s32 %s20, %s27
      %p254 = scmp.eq.s32.totalorder %s253, 0
      %s256 = sadd.s32 %s255, 1
      %s257 = scalar_select %p254, %s255, %s256
      %p260 = pneg %p254
      %p261 = scmp.eq.s32.totalorder %s20, 1
      %p262 = por %p260, %p261
      %p263 = scmp.ne.s32.totalorder %s255, %s258
      %p264 = scmp.eq.s32.totalorder %s20, 0
      %p265 = por %p263, %p264
      %p266 = scmp.ne.s32.totalorder %s255, %s258
      %p267 = scmp.eq.s32.totalorder %s25, 1
      %p268 = por %p266, %p267
      %p269 = scmp.ne.s32.totalorder %s258, %s259
      %p270 = scmp.eq.s32.totalorder %s25, 0
      %p271 = por %p269, %p270
      %p272 = scmp.ne.s32.totalorder %s258, %s259
      %p273 = scmp.eq.s32.totalorder %s26, 1
      %p274 = por %p272, %p273
      %p276 = scmp.ne.s32.totalorder %s259, %s275
      %p277 = scmp.eq.s32.totalorder %s26, 0
      %p278 = por %p276, %p277
      %p279 = scmp.le.s32.totalorder 1, %s20
      %p280 = scmp.lt.s32.totalorder %s20, 3
      %p281 = pnand %p279, %p280
      %p282 = pneg %p281
      // Predicated region
      $region9: #{cifar_generator_forward.1} parent=5 // pred_check
        _
      $region10: #{cifar_generator_forward.1} parent=5 // pred_check_branch
        %284 = sbr.rel (%p281) target = $region12
      $region11: #{cifar_generator_forward.1} parent=5 // pred_region
        %s285 = ssub.s32 %s20, 1
        // Predicated region
        $region13: #{cifar_generator_forward.1} parent=11 // pred_check
          %p286 = pneg %p41
        $region14: #{cifar_generator_forward.1} parent=11 // pred_check_branch
          %288 = sbr.rel (%p286) target = $region16
        $region15: #{cifar_generator_forward.1} parent=11 // pred_region
          _
        $region16: #{cifar_generator_forward.1} parent=11 // pred_fallthru
          _
        // Predicated region
        $region17: #{cifar_generator_forward.1} parent=11 // pred_check
          %p289 = pneg %p62
        $region18: #{cifar_generator_forward.1} parent=11 // pred_check_branch
          %291 = sbr.rel (%p289) target = $region20
        $region19: #{cifar_generator_forward.1} parent=11 // pred_region
          %293 = vsyncadd [#allocation3], 0
          %s294 = sshll.u32 %s1, 4
          %s295 = int_to_ptr.hbm [resolvable:$true] %s294
          %s296 = sshll.u32 [#allocation2], 4
          %s297 = int_to_ptr.vmem [resolvable:$true] %s296
          %302 = dma.hbm_to_vmem [thread:$0]  %s295, 2048, %s297, [#allocation3], 128, 128, 8
        $region20: #{cifar_generator_forward.1} parent=11 // pred_fallthru
          _
        // Predicated region
        $region21: #{cifar_generator_forward.1} parent=11 // pred_check
          %p303 = pneg %p83
        $region22: #{cifar_generator_forward.1} parent=11 // pred_check_branch
          %305 = sbr.rel (%p303) target = $region24
        $region23: #{cifar_generator_forward.1} parent=11 // pred_region
          %307 = vsyncadd [#allocation5], 0
          %s309 = sshll.u32 %s2, 4
          %s310 = int_to_ptr.hbm [resolvable:$true] %s309
          %s311 = sshll.u32 [#allocation4], 4
          %s312 = int_to_ptr.vmem [resolvable:$true] %s311
          %314 = dma.hbm_to_vmem [thread:$0]  %s310, 32, %s312, [#allocation5]
        $region24: #{cifar_generator_forward.1} parent=11 // pred_fallthru
          _
        // Predicated region
        $region25: #{cifar_generator_forward.1} parent=11 // pred_check
          %p315 = pneg %p104
        $region26: #{cifar_generator_forward.1} parent=11 // pred_check_branch
          %317 = sbr.rel (%p315) target = $region28
        $region27: #{cifar_generator_forward.1} parent=11 // pred_region
          %319 = vsyncadd [#allocation5], 0
          %s320 = sshll.u32 %s3, 4
          %s321 = int_to_ptr.hbm [resolvable:$true] %s320
          %s322 = sshll.u32 [#allocation6], 4
          %s323 = int_to_ptr.vmem [resolvable:$true] %s322
          %328 = dma.hbm_to_vmem [thread:$0]  %s321, 8192, %s323, [#allocation5], 256, 256, 16
        $region28: #{cifar_generator_forward.1} parent=11 // pred_fallthru
          _
        // Predicated region
        $region29: #{cifar_generator_forward.1} parent=11 // pred_check
          %p329 = pneg %p125
        $region30: #{cifar_generator_forward.1} parent=11 // pred_check_branch
          %331 = sbr.rel (%p329) target = $region32
        $region31: #{cifar_generator_forward.1} parent=11 // pred_region
          %333 = vsyncadd [#allocation8], 0
          %s335 = sshll.u32 %s4, 4
          %s336 = int_to_ptr.hbm [resolvable:$true] %s335
          %s337 = sshll.u32 [#allocation7], 4
          %s338 = int_to_ptr.vmem [resolvable:$true] %s337
          %340 = dma.hbm_to_vmem [thread:$0]  %s336, 64, %s338, [#allocation8]
        $region32: #{cifar_generator_forward.1} parent=11 // pred_fallthru
          _
        // Predicated region
        $region33: #{cifar_generator_forward.1} parent=11 // pred_check
          %p341 = pneg %p146
        $region34: #{cifar_generator_forward.1} parent=11 // pred_check_branch
          %343 = sbr.rel (%p341) target = $region36
        $region35: #{cifar_generator_forward.1} parent=11 // pred_region
          %345 = vsyncadd [#allocation8], 0
          %s346 = sshll.u32 %s5, 4
          %s347 = int_to_ptr.hbm [resolvable:$true] %s346
          %s348 = sshll.u32 [#allocation9], 4
          %s349 = int_to_ptr.vmem [resolvable:$true] %s348
          %354 = dma.hbm_to_vmem [thread:$0]  %s347, 32768, %s349, [#allocation8], 512, 512, 32
        $region36: #{cifar_generator_forward.1} parent=11 // pred_fallthru
          _
        // Predicated region
        $region37: #{cifar_generator_forward.1} parent=11 // pred_check
          %p355 = pneg %p167
        $region38: #{cifar_generator_forward.1} parent=11 // pred_check_branch
          %357 = sbr.rel (%p355) target = $region40
        $region39: #{cifar_generator_forward.1} parent=11 // pred_region
          %359 = vsyncadd [#allocation11], 0
          %s361 = sshll.u32 %s6, 4
          %s362 = int_to_ptr.hbm [resolvable:$true] %s361
          %s363 = sshll.u32 [#allocation10], 4
          %s364 = int_to_ptr.vmem [resolvable:$true] %s363
          %366 = dma.hbm_to_vmem [thread:$0]  %s362, 128, %s364, [#allocation11]
        $region40: #{cifar_generator_forward.1} parent=11 // pred_fallthru
          _
      $region12: #{cifar_generator_forward.1} parent=5 // pred_fallthru
        _
      %p367 = scmp.lt.s32.totalorder %s20, 2
      // Predicated region
      $region41: #{cifar_generator_forward.1} parent=5 // pred_check
        %p368 = pneg %p367
      $region42: #{cifar_generator_forward.1} parent=5 // pred_check_branch
        %370 = sbr.rel (%p368) target = $region44
      $region43: #{cifar_generator_forward.1} parent=5 // pred_region
        // Predicated region
        $region45: #{cifar_generator_forward.1} parent=43 // pred_check
          %p371 = pneg %p187
        $region46: #{cifar_generator_forward.1} parent=43 // pred_check_branch
          %373 = sbr.rel (%p371) target = $region48
        $region47: #{cifar_generator_forward.1} parent=43 // pred_region
          %s374 = sand.u32 %s20, 1
          %s375 = scalar_lea.sflag [#allocation3], %s374
          %s376 = sand.u32 %s177, 1
          %s377 = smul.addr %s376, 3072
          %s378 = scalar_lea.vmem [#allocation12], %s377
          %380 = vsyncadd %s375, 0
          %s381 = smul.addr %s20, 384
          %s382 = smul.addr %s381, 8
          %s383 = scalar_lea.hbm %s7, %s382
          %s384 = sshll.u32 %s383, 4
          %s385 = int_to_ptr.hbm [resolvable:$true] %s384
          %s386 = sshll.u32 %s378, 4
          %s387 = int_to_ptr.vmem [resolvable:$true] %s386
          %392 = dma.hbm_to_vmem [thread:$0]  %s385, 49152, %s387, %s375, 1536, 1536, 96
        $region48: #{cifar_generator_forward.1} parent=43 // pred_fallthru
          _
        // Predicated region
        $region49: #{cifar_generator_forward.1} parent=43 // pred_check
          %p393 = pneg %p213
        $region50: #{cifar_generator_forward.1} parent=43 // pred_check_branch
          %395 = sbr.rel (%p393) target = $region52
        $region51: #{cifar_generator_forward.1} parent=43 // pred_region
          %s396 = sand.u32 %s20, 1
          %s397 = scalar_lea.sflag [#allocation3], %s396
          %s398 = sand.u32 %s203, 1
          %s399 = smul.addr %s398, 12
          %s400 = scalar_lea.vmem [#allocation13], %s399
          %s401 = smul.u32 12, %s20
          %403 = vsyncadd %s397, 0
          %s404 = scalar_lea.hbm %s8, %s401
          %s406 = sshll.u32 %s404, 4
          %s407 = int_to_ptr.hbm [resolvable:$true] %s406
          %s408 = sshll.u32 %s400, 4
          %s409 = int_to_ptr.vmem [resolvable:$true] %s408
          %411 = dma.hbm_to_vmem [thread:$0]  %s407, 192, %s409, %s397
        $region52: #{cifar_generator_forward.1} parent=43 // pred_fallthru
          _
        // Predicated region
        $region53: #{cifar_generator_forward.1} parent=43 // pred_check
          %p412 = pneg %p239
        $region54: #{cifar_generator_forward.1} parent=43 // pred_check_branch
          %414 = sbr.rel (%p412) target = $region56
        $region55: #{cifar_generator_forward.1} parent=43 // pred_region
          %s415 = sand.u32 %s20, 1
          %s416 = scalar_lea.sflag [#allocation3], %s415
          %s417 = sand.u32 %s229, 1
          %s418 = smul.addr %s417, 12
          %s419 = scalar_lea.vmem [#allocation14], %s418
          %s420 = smul.u32 12, %s20
          %422 = vsyncadd %s416, 0
          %s423 = scalar_lea.hbm %s9, %s420
          %s425 = sshll.u32 %s423, 4
          %s426 = int_to_ptr.hbm [resolvable:$true] %s425
          %s427 = sshll.u32 %s419, 4
          %s428 = int_to_ptr.vmem [resolvable:$true] %s427
          %430 = dma.hbm_to_vmem [thread:$0]  %s426, 192, %s428, %s416
        $region56: #{cifar_generator_forward.1} parent=43 // pred_fallthru
          _
      $region44: #{cifar_generator_forward.1} parent=5 // pred_fallthru
        _
      %p431 = scmp.le.s32.totalorder 1, %s20
      %p432 = scmp.lt.s32.totalorder %s20, 3
      %p433 = pnand %p431, %p432
      %p434 = pneg %p433
      // Predicated region
      $region57: #{cifar_generator_forward.1} parent=5 // pred_check
        _
      $region58: #{cifar_generator_forward.1} parent=5 // pred_check_branch
        %436 = sbr.rel (%p433) target = $region60
      $region59: #{cifar_generator_forward.1} parent=5 // pred_region
        %s437 = ssub.s32 %s20, 1
        // Predicated region
        $region61: #{cifar_generator_forward.1} parent=59 // pred_check
          %p438 = pneg %p62
        $region62: #{cifar_generator_forward.1} parent=59 // pred_check_branch
          %440 = sbr.rel (%p438) target = $region64
        $region63: #{cifar_generator_forward.1} parent=59 // pred_region
          %442 = dma.done [#allocation3], 2048
        $region64: #{cifar_generator_forward.1} parent=59 // pred_fallthru
          _
        // Predicated region
        $region65: #{cifar_generator_forward.1} parent=59 // pred_check
          %p443 = pneg %p83
        $region66: #{cifar_generator_forward.1} parent=59 // pred_check_branch
          %445 = sbr.rel (%p443) target = $region68
        $region67: #{cifar_generator_forward.1} parent=59 // pred_region
          %447 = dma.done [#allocation5], 32
        $region68: #{cifar_generator_forward.1} parent=59 // pred_fallthru
          _
        // Predicated region
        $region69: #{cifar_generator_forward.1} parent=59 // pred_check
          %p448 = pneg %p104
        $region70: #{cifar_generator_forward.1} parent=59 // pred_check_branch
          %450 = sbr.rel (%p448) target = $region72
        $region71: #{cifar_generator_forward.1} parent=59 // pred_region
          %452 = dma.done [#allocation5], 8192
        $region72: #{cifar_generator_forward.1} parent=59 // pred_fallthru
          _
        // Predicated region
        $region73: #{cifar_generator_forward.1} parent=59 // pred_check
          %p453 = pneg %p125
        $region74: #{cifar_generator_forward.1} parent=59 // pred_check_branch
          %455 = sbr.rel (%p453) target = $region76
        $region75: #{cifar_generator_forward.1} parent=59 // pred_region
          %457 = dma.done [#allocation8], 64
        $region76: #{cifar_generator_forward.1} parent=59 // pred_fallthru
          _
        // Predicated region
        $region77: #{cifar_generator_forward.1} parent=59 // pred_check
          %p458 = pneg %p146
        $region78: #{cifar_generator_forward.1} parent=59 // pred_check_branch
          %460 = sbr.rel (%p458) target = $region80
        $region79: #{cifar_generator_forward.1} parent=59 // pred_region
          %462 = dma.done [#allocation8], 32768
        $region80: #{cifar_generator_forward.1} parent=59 // pred_fallthru
          _
        // Predicated region
        $region81: #{cifar_generator_forward.1} parent=59 // pred_check
          %p463 = pneg %p167
        $region82: #{cifar_generator_forward.1} parent=59 // pred_check_branch
          %465 = sbr.rel (%p463) target = $region84
        $region83: #{cifar_generator_forward.1} parent=59 // pred_region
          %467 = dma.done [#allocation11], 128
        $region84: #{cifar_generator_forward.1} parent=59 // pred_fallthru
          _
        %s468 = sand.u32 %s25, 1
        %s469 = scalar_lea.sflag [#allocation3], %s468
        %s470 = sand.u32 %s180, 1
        %s471 = smul.addr %s470, 3072
        %s472 = scalar_lea.vmem [#allocation12], %s471
        // Predicated region
        $region85: #{cifar_generator_forward.1} parent=59 // pred_check
          %p473 = pneg %p193
        $region86: #{cifar_generator_forward.1} parent=59 // pred_check_branch
          %475 = sbr.rel (%p473) target = $region88
        $region87: #{cifar_generator_forward.1} parent=59 // pred_region
          %477 = dma.done %s469, 49152
        $region88: #{cifar_generator_forward.1} parent=59 // pred_fallthru
          _
        %s478 = sand.u32 %s25, 1
        %s479 = scalar_lea.sflag [#allocation3], %s478
        %s480 = sand.u32 %s206, 1
        %s481 = smul.addr %s480, 12
        %s482 = scalar_lea.vmem [#allocation13], %s481
        // Predicated region
        $region89: #{cifar_generator_forward.1} parent=59 // pred_check
          %p483 = pneg %p219
        $region90: #{cifar_generator_forward.1} parent=59 // pred_check_branch
          %485 = sbr.rel (%p483) target = $region92
        $region91: #{cifar_generator_forward.1} parent=59 // pred_region
          %487 = dma.done %s479, 192
        $region92: #{cifar_generator_forward.1} parent=59 // pred_fallthru
          _
        %s488 = sand.u32 %s25, 1
        %s489 = scalar_lea.sflag [#allocation3], %s488
        %s490 = sand.u32 %s232, 1
        %s491 = smul.addr %s490, 12
        %s492 = scalar_lea.vmem [#allocation14], %s491
        // Predicated region
        $region93: #{cifar_generator_forward.1} parent=59 // pred_check
          %p493 = pneg %p245
        $region94: #{cifar_generator_forward.1} parent=59 // pred_check_branch
          %495 = sbr.rel (%p493) target = $region96
        $region95: #{cifar_generator_forward.1} parent=59 // pred_region
          %497 = dma.done %s489, 192
        $region96: #{cifar_generator_forward.1} parent=59 // pred_fallthru
          _
        %p498 = pneg %p41
        %p499 = pneg %p38
        %p500 = pneg %p62
        %p501 = pneg %p59
        %p502 = pneg %p83
        %p503 = pneg %p80
        %p504 = pneg %p104
        %p505 = pneg %p101
        %p506 = pneg %p125
        %p507 = pneg %p122
        %p508 = pneg %p146
        %p509 = pneg %p143
        %p510 = pneg %p167
        %p511 = pneg %p164
        %s512 = sand.u32 %s25, 1
        %s513 = scalar_lea.sflag [#allocation3], %s512
        %s514 = sand.u32 %s180, 1
        %s515 = smul.addr %s514, 3072
        %s516 = scalar_lea.vmem [#allocation12], %s515
        %p517 = pneg %p193
        %p518 = pneg %p190
        %s519 = sand.u32 %s25, 1
        %s520 = scalar_lea.sflag [#allocation3], %s519
        %s521 = sand.u32 %s206, 1
        %s522 = smul.addr %s521, 12
        %s523 = scalar_lea.vmem [#allocation13], %s522
        %p524 = pneg %p219
        %p525 = pneg %p216
        %s526 = sand.u32 %s25, 1
        %s527 = scalar_lea.sflag [#allocation3], %s526
        %s528 = sand.u32 %s232, 1
        %s529 = smul.addr %s528, 12
        %s530 = scalar_lea.vmem [#allocation14], %s529
        %p531 = pneg %p245
        %p532 = pneg %p242
        %p533 = pneg %p271
        %p534 = pneg %p268
        %s535 = smul.u32 12, %s25
        %p536 = scmp.lt.s32.totalorder %s535, 23
        %s537 = scalar_select %p536, %s535, 23
        %s538 = smul.addr %s537, 8
        %s539 = scalar_lea.vmem %s10, %s538
        %s540 = smul.u32 12, %s25
        %s541 = smul.u32 12, %s25
        %s542 = smul.u32 12, %s25
        %p543 = scmp.lt.s32.totalorder %s542, 23
        %s544 = scalar_select %p543, %s542, 23
        %s545 = smul.addr %s544, 8
        %s546 = scalar_lea.vmem %s10, %s545
        %s547 = smul.u32 12, %s25
        %v548 = vld [vmem:[%s0] sm:$0xff]
        %v549 = vpack.c.bf16 %v548, %v548
        %v550 = vld [vmem:[#allocation2] sm:$0xff]
        %v551 = vld [vmem:[#allocation2 + $0x8] sm:$0xff]
        %v552 = vld [vmem:[#allocation2 + $0x10] sm:$0xff]
        %v553 = vld [vmem:[#allocation2 + $0x18] sm:$0xff]
        %v554 = vld [vmem:[#allocation2 + $0x20] sm:$0xff]
        %v555 = vld [vmem:[#allocation2 + $0x28] sm:$0xff]
        %v556 = vld [vmem:[#allocation2 + $0x30] sm:$0xff]
        %v557 = vld [vmem:[#allocation2 + $0x38] sm:$0xff]
        %v558 = vld [vmem:[#allocation2 + $0x40] sm:$0xff]
        %v559 = vld [vmem:[#allocation2 + $0x48] sm:$0xff]
        %v560 = vld [vmem:[#allocation2 + $0x50] sm:$0xff]
        %v561 = vld [vmem:[#allocation2 + $0x58] sm:$0xff]
        %v562 = vld [vmem:[#allocation2 + $0x60] sm:$0xff]
        %v563 = vld [vmem:[#allocation2 + $0x68] sm:$0xff]
        %v564 = vld [vmem:[#allocation2 + $0x70] sm:$0xff]
        %v565 = vld [vmem:[#allocation2 + $0x78] sm:$0xff]
        %v566 = vld [vmem:[#allocation4] sm:$0x3]
        %v568 = vperm.slane %v566, 0
        %v569 = vperm.slane %v566, 1
        %v588 = vunpack.c.l.b16 %v550
        %v589 = vunpack.c.h.b16 %v550
        %v590 = vunpack.c.l.b16 %v551
        %v591 = vunpack.c.h.b16 %v551
        %v592 = vunpack.c.l.b16 %v552
        %v593 = vunpack.c.h.b16 %v552
        %v594 = vunpack.c.l.b16 %v553
        %v595 = vunpack.c.h.b16 %v553
        %v596 = vunpack.c.l.b16 %v554
        %v597 = vunpack.c.h.b16 %v554
        %v598 = vunpack.c.l.b16 %v555
        %v599 = vunpack.c.h.b16 %v555
        %v600 = vunpack.c.l.b16 %v556
        %v601 = vunpack.c.h.b16 %v556
        %v602 = vunpack.c.l.b16 %v557
        %v603 = vunpack.c.h.b16 %v557
        %v604 = vunpack.c.l.b16 %v558
        %v605 = vunpack.c.h.b16 %v558
        %v606 = vunpack.c.l.b16 %v559
        %v607 = vunpack.c.h.b16 %v559
        %v608 = vunpack.c.l.b16 %v560
        %v609 = vunpack.c.h.b16 %v560
        %v610 = vunpack.c.l.b16 %v561
        %v611 = vunpack.c.h.b16 %v561
        %v612 = vunpack.c.l.b16 %v562
        %v613 = vunpack.c.h.b16 %v562
        %v614 = vunpack.c.l.b16 %v563
        %v615 = vunpack.c.h.b16 %v563
        %v616 = vunpack.c.l.b16 %v564
        %v617 = vunpack.c.h.b16 %v564
        %v618 = vunpack.c.l.b16 %v565
        %v619 = vunpack.c.h.b16 %v565
        %v620 = vpack.c.b16 %v590, %v588
        %v621 = vpack.c.b16 %v591, %v589
        %v622 = vpack.c.b16 %v594, %v592
        %v623 = vpack.c.b16 %v595, %v593
        %v624 = vpack.c.b16 %v598, %v596
        %v625 = vpack.c.b16 %v599, %v597
        %v626 = vpack.c.b16 %v602, %v600
        %v627 = vpack.c.b16 %v603, %v601
        %v628 = vpack.c.b16 %v606, %v604
        %v629 = vpack.c.b16 %v607, %v605
        %v630 = vpack.c.b16 %v610, %v608
        %v631 = vpack.c.b16 %v611, %v609
        %v632 = vpack.c.b16 %v614, %v612
        %v633 = vpack.c.b16 %v615, %v613
        %v634 = vpack.c.b16 %v618, %v616
        %v635 = vpack.c.b16 %v619, %v617
        %652 = vmatpush.bf16.msra.mxu0 %v634
        %653 = vmatpush.bf16.msra.mxu0 %v632
        %654 = vmatpush.bf16.msra.mxu0 %v630
        %655 = vmatpush.bf16.msra.mxu0 %v628
        %656 = vmatpush.bf16.msra.mxu0 %v626
        %657 = vmatpush.bf16.msra.mxu0 %v624
        %658 = vmatpush.bf16.msra.mxu0 %v622
        %659 = vmatpush.bf16.msra.mxu0 %v620
        %660 = vmatmul.bf16.gmra.mxu0 %v549
        %v661 = vpop.f32.mrf.mxu0
        %v662 = vadd.f32 %v568, %v661
        %v663 = vpop.f32.mrf.mxu0
        %664 = vdwg.mxu0
        %665 = vmatpush.bf16.msra.mxu0 %v635
        %666 = vmatpush.bf16.msra.mxu0 %v633
        %667 = vmatpush.bf16.msra.mxu0 %v631
        %668 = vmatpush.bf16.msra.mxu0 %v629
        %669 = vmatpush.bf16.msra.mxu0 %v627
        %670 = vmatpush.bf16.msra.mxu0 %v625
        %671 = vmatpush.bf16.msra.mxu0 %v623
        %672 = vmatpush.bf16.msra.mxu0 %v621
        %673 = vmatmul.bf16.gmra.mxu0 %v549
        %v674 = vpop.f32.mrf.mxu0
        %v675 = vadd.f32 %v569, %v674
        %v676 = vpop.f32.mrf.mxu0
        %677 = vdwg.mxu0
        %v678 = vmax.f32 %v662, 0.0
        %v679 = vmax.f32 %v675, 0.0
        %v680 = vpack.c.bf16 %v678, %v678
        %v681 = vpack.c.bf16 %v679, %v679
        %v682 = vld [vmem:[#allocation6] sm:$0xff]
        %v683 = vld [vmem:[#allocation6 + $0x8] sm:$0xff]
        %v684 = vld [vmem:[#allocation6 + $0x10] sm:$0xff]
        %v685 = vld [vmem:[#allocation6 + $0x18] sm:$0xff]
        %v686 = vld [vmem:[#allocation6 + $0x20] sm:$0xff]
        %v687 = vld [vmem:[#allocation6 + $0x28] sm:$0xff]
        %v688 = vld [vmem:[#allocation6 + $0x30] sm:$0xff]
        %v689 = vld [vmem:[#allocation6 + $0x38] sm:$0xff]
        %v690 = vld [vmem:[#allocation6 + $0x40] sm:$0xff]
        %v691 = vld [vmem:[#allocation6 + $0x48] sm:$0xff]
        %v692 = vld [vmem:[#allocation6 + $0x50] sm:$0xff]
        %v693 = vld [vmem:[#allocation6 + $0x58] sm:$0xff]
        %v694 = vld [vmem:[#allocation6 + $0x60] sm:$0xff]
        %v695 = vld [vmem:[#allocation6 + $0x68] sm:$0xff]
        %v696 = vld [vmem:[#allocation6 + $0x70] sm:$0xff]
        %v697 = vld [vmem:[#allocation6 + $0x78] sm:$0xff]
        %v698 = vld [vmem:[#allocation6 + $0x80] sm:$0xff]
        %v699 = vld [vmem:[#allocation6 + $0x88] sm:$0xff]
        %v700 = vld [vmem:[#allocation6 + $0x90] sm:$0xff]
        %v701 = vld [vmem:[#allocation6 + $0x98] sm:$0xff]
        %v702 = vld [vmem:[#allocation6 + $0xa0] sm:$0xff]
        %v703 = vld [vmem:[#allocation6 + $0xa8] sm:$0xff]
        %v704 = vld [vmem:[#allocation6 + $0xb0] sm:$0xff]
        %v705 = vld [vmem:[#allocation6 + $0xb8] sm:$0xff]
        %v706 = vld [vmem:[#allocation6 + $0xc0] sm:$0xff]
        %v707 = vld [vmem:[#allocation6 + $0xc8] sm:$0xff]
        %v708 = vld [vmem:[#allocation6 + $0xd0] sm:$0xff]
        %v709 = vld [vmem:[#allocation6 + $0xd8] sm:$0xff]
        %v710 = vld [vmem:[#allocation6 + $0xe0] sm:$0xff]
        %v711 = vld [vmem:[#allocation6 + $0xe8] sm:$0xff]
        %v712 = vld [vmem:[#allocation6 + $0xf0] sm:$0xff]
        %v713 = vld [vmem:[#allocation6 + $0xf8] sm:$0xff]
        %v714 = vld [vmem:[#allocation6 + $0x100] sm:$0xff]
        %v715 = vld [vmem:[#allocation6 + $0x108] sm:$0xff]
        %v716 = vld [vmem:[#allocation6 + $0x110] sm:$0xff]
        %v717 = vld [vmem:[#allocation6 + $0x118] sm:$0xff]
        %v718 = vld [vmem:[#allocation6 + $0x120] sm:$0xff]
        %v719 = vld [vmem:[#allocation6 + $0x128] sm:$0xff]
        %v720 = vld [vmem:[#allocation6 + $0x130] sm:$0xff]
        %v721 = vld [vmem:[#allocation6 + $0x138] sm:$0xff]
        %v722 = vld [vmem:[#allocation6 + $0x140] sm:$0xff]
        %v723 = vld [vmem:[#allocation6 + $0x148] sm:$0xff]
        %v724 = vld [vmem:[#allocation6 + $0x150] sm:$0xff]
        %v725 = vld [vmem:[#allocation6 + $0x158] sm:$0xff]
        %v726 = vld [vmem:[#allocation6 + $0x160] sm:$0xff]
        %v727 = vld [vmem:[#allocation6 + $0x168] sm:$0xff]
        %v728 = vld [vmem:[#allocation6 + $0x170] sm:$0xff]
        %v729 = vld [vmem:[#allocation6 + $0x178] sm:$0xff]
        %v730 = vld [vmem:[#allocation6 + $0x180] sm:$0xff]
        %v731 = vld [vmem:[#allocation6 + $0x188] sm:$0xff]
        %v732 = vld [vmem:[#allocation6 + $0x190] sm:$0xff]
        %v733 = vld [vmem:[#allocation6 + $0x198] sm:$0xff]
        %v734 = vld [vmem:[#allocation6 + $0x1a0] sm:$0xff]
        %v735 = vld [vmem:[#allocation6 + $0x1a8] sm:$0xff]
        %v736 = vld [vmem:[#allocation6 + $0x1b0] sm:$0xff]
        %v737 = vld [vmem:[#allocation6 + $0x1b8] sm:$0xff]
        %v738 = vld [vmem:[#allocation6 + $0x1c0] sm:$0xff]
        %v739 = vld [vmem:[#allocation6 + $0x1c8] sm:$0xff]
        %v740 = vld [vmem:[#allocation6 + $0x1d0] sm:$0xff]
        %v741 = vld [vmem:[#allocation6 + $0x1d8] sm:$0xff]
        %v742 = vld [vmem:[#allocation6 + $0x1e0] sm:$0xff]
        %v743 = vld [vmem:[#allocation6 + $0x1e8] sm:$0xff]
        %v744 = vld [vmem:[#allocation6 + $0x1f0] sm:$0xff]
        %v745 = vld [vmem:[#allocation6 + $0x1f8] sm:$0xff]
        %v746 = vld [vmem:[#allocation7] sm:$0xf]
        %v748 = vperm.slane %v746, 0
        %v749 = vperm.slane %v746, 1
        %v750 = vperm.slane %v746, 2
        %v751 = vperm.slane %v746, 3
        %v820 = vunpack.c.l.b16 %v682
        %v821 = vunpack.c.h.b16 %v682
        %v822 = vunpack.c.l.b16 %v683
        %v823 = vunpack.c.h.b16 %v683
        %v824 = vunpack.c.l.b16 %v684
        %v825 = vunpack.c.h.b16 %v684
        %v826 = vunpack.c.l.b16 %v685
        %v827 = vunpack.c.h.b16 %v685
        %v828 = vunpack.c.l.b16 %v686
        %v829 = vunpack.c.h.b16 %v686
        %v830 = vunpack.c.l.b16 %v687
        %v831 = vunpack.c.h.b16 %v687
        %v832 = vunpack.c.l.b16 %v688
        %v833 = vunpack.c.h.b16 %v688
        %v834 = vunpack.c.l.b16 %v689
        %v835 = vunpack.c.h.b16 %v689
        %v836 = vunpack.c.l.b16 %v690
        %v837 = vunpack.c.h.b16 %v690
        %v838 = vunpack.c.l.b16 %v691
        %v839 = vunpack.c.h.b16 %v691
        %v840 = vunpack.c.l.b16 %v692
        %v841 = vunpack.c.h.b16 %v692
        %v842 = vunpack.c.l.b16 %v693
        %v843 = vunpack.c.h.b16 %v693
        %v844 = vunpack.c.l.b16 %v694
        %v845 = vunpack.c.h.b16 %v694
        %v846 = vunpack.c.l.b16 %v695
        %v847 = vunpack.c.h.b16 %v695
        %v848 = vunpack.c.l.b16 %v696
        %v849 = vunpack.c.h.b16 %v696
        %v850 = vunpack.c.l.b16 %v697
        %v851 = vunpack.c.h.b16 %v697
        %v852 = vunpack.c.l.b16 %v698
        %v853 = vunpack.c.h.b16 %v698
        %v854 = vunpack.c.l.b16 %v699
        %v855 = vunpack.c.h.b16 %v699
        %v856 = vunpack.c.l.b16 %v700
        %v857 = vunpack.c.h.b16 %v700
        %v858 = vunpack.c.l.b16 %v701
        %v859 = vunpack.c.h.b16 %v701
        %v860 = vunpack.c.l.b16 %v702
        %v861 = vunpack.c.h.b16 %v702
        %v862 = vunpack.c.l.b16 %v703
        %v863 = vunpack.c.h.b16 %v703
        %v864 = vunpack.c.l.b16 %v704
        %v865 = vunpack.c.h.b16 %v704
        %v866 = vunpack.c.l.b16 %v705
        %v867 = vunpack.c.h.b16 %v705
        %v868 = vunpack.c.l.b16 %v706
        %v869 = vunpack.c.h.b16 %v706
        %v870 = vunpack.c.l.b16 %v707
        %v871 = vunpack.c.h.b16 %v707
        %v872 = vunpack.c.l.b16 %v708
        %v873 = vunpack.c.h.b16 %v708
        %v874 = vunpack.c.l.b16 %v709
        %v875 = vunpack.c.h.b16 %v709
        %v876 = vunpack.c.l.b16 %v710
        %v877 = vunpack.c.h.b16 %v710
        %v878 = vunpack.c.l.b16 %v711
        %v879 = vunpack.c.h.b16 %v711
        %v880 = vunpack.c.l.b16 %v712
        %v881 = vunpack.c.h.b16 %v712
        %v882 = vunpack.c.l.b16 %v713
        %v883 = vunpack.c.h.b16 %v713
        %v884 = vunpack.c.l.b16 %v714
        %v885 = vunpack.c.h.b16 %v714
        %v886 = vunpack.c.l.b16 %v715
        %v887 = vunpack.c.h.b16 %v715
        %v888 = vunpack.c.l.b16 %v716
        %v889 = vunpack.c.h.b16 %v716
        %v890 = vunpack.c.l.b16 %v717
        %v891 = vunpack.c.h.b16 %v717
        %v892 = vunpack.c.l.b16 %v718
        %v893 = vunpack.c.h.b16 %v718
        %v894 = vunpack.c.l.b16 %v719
        %v895 = vunpack.c.h.b16 %v719
        %v896 = vunpack.c.l.b16 %v720
        %v897 = vunpack.c.h.b16 %v720
        %v898 = vunpack.c.l.b16 %v721
        %v899 = vunpack.c.h.b16 %v721
        %v900 = vunpack.c.l.b16 %v722
        %v901 = vunpack.c.h.b16 %v722
        %v902 = vunpack.c.l.b16 %v723
        %v903 = vunpack.c.h.b16 %v723
        %v904 = vunpack.c.l.b16 %v724
        %v905 = vunpack.c.h.b16 %v724
        %v906 = vunpack.c.l.b16 %v725
        %v907 = vunpack.c.h.b16 %v725
        %v908 = vunpack.c.l.b16 %v726
        %v909 = vunpack.c.h.b16 %v726
        %v910 = vunpack.c.l.b16 %v727
        %v911 = vunpack.c.h.b16 %v727
        %v912 = vunpack.c.l.b16 %v728
        %v913 = vunpack.c.h.b16 %v728
        %v914 = vunpack.c.l.b16 %v729
        %v915 = vunpack.c.h.b16 %v729
        %v916 = vunpack.c.l.b16 %v730
        %v917 = vunpack.c.h.b16 %v730
        %v918 = vunpack.c.l.b16 %v731
        %v919 = vunpack.c.h.b16 %v731
        %v920 = vunpack.c.l.b16 %v732
        %v921 = vunpack.c.h.b16 %v732
        %v922 = vunpack.c.l.b16 %v733
        %v923 = vunpack.c.h.b16 %v733
        %v924 = vunpack.c.l.b16 %v734
        %v925 = vunpack.c.h.b16 %v734
        %v926 = vunpack.c.l.b16 %v735
        %v927 = vunpack.c.h.b16 %v735
        %v928 = vunpack.c.l.b16 %v736
        %v929 = vunpack.c.h.b16 %v736
        %v930 = vunpack.c.l.b16 %v737
        %v931 = vunpack.c.h.b16 %v737
        %v932 = vunpack.c.l.b16 %v738
        %v933 = vunpack.c.h.b16 %v738
        %v934 = vunpack.c.l.b16 %v739
        %v935 = vunpack.c.h.b16 %v739
        %v936 = vunpack.c.l.b16 %v740
        %v937 = vunpack.c.h.b16 %v740
        %v938 = vunpack.c.l.b16 %v741
        %v939 = vunpack.c.h.b16 %v741
        %v940 = vunpack.c.l.b16 %v742
        %v941 = vunpack.c.h.b16 %v742
        %v942 = vunpack.c.l.b16 %v743
        %v943 = vunpack.c.h.b16 %v743
        %v944 = vunpack.c.l.b16 %v744
        %v945 = vunpack.c.h.b16 %v744
        %v946 = vunpack.c.l.b16 %v745
        %v947 = vunpack.c.h.b16 %v745
        %v948 = vpack.c.b16 %v824, %v820
        %v949 = vpack.c.b16 %v825, %v821
        %v950 = vpack.c.b16 %v826, %v822
        %v951 = vpack.c.b16 %v827, %v823
        %v952 = vpack.c.b16 %v832, %v828
        %v953 = vpack.c.b16 %v833, %v829
        %v954 = vpack.c.b16 %v834, %v830
        %v955 = vpack.c.b16 %v835, %v831
        %v956 = vpack.c.b16 %v840, %v836
        %v957 = vpack.c.b16 %v841, %v837
        %v958 = vpack.c.b16 %v842, %v838
        %v959 = vpack.c.b16 %v843, %v839
        %v960 = vpack.c.b16 %v848, %v844
        %v961 = vpack.c.b16 %v849, %v845
        %v962 = vpack.c.b16 %v850, %v846
        %v963 = vpack.c.b16 %v851, %v847
        %v964 = vpack.c.b16 %v856, %v852
        %v965 = vpack.c.b16 %v857, %v853
        %v966 = vpack.c.b16 %v858, %v854
        %v967 = vpack.c.b16 %v859, %v855
        %v968 = vpack.c.b16 %v864, %v860
        %v969 = vpack.c.b16 %v865, %v861
        %v970 = vpack.c.b16 %v866, %v862
        %v971 = vpack.c.b16 %v867, %v863
        %v972 = vpack.c.b16 %v872, %v868
        %v973 = vpack.c.b16 %v873, %v869
        %v974 = vpack.c.b16 %v874, %v870
        %v975 = vpack.c.b16 %v875, %v871
        %v976 = vpack.c.b16 %v880, %v876
        %v977 = vpack.c.b16 %v881, %v877
        %v978 = vpack.c.b16 %v882, %v878
        %v979 = vpack.c.b16 %v883, %v879
        %v980 = vpack.c.b16 %v888, %v884
        %v981 = vpack.c.b16 %v889, %v885
        %v982 = vpack.c.b16 %v890, %v886
        %v983 = vpack.c.b16 %v891, %v887
        %v984 = vpack.c.b16 %v896, %v892
        %v985 = vpack.c.b16 %v897, %v893
        %v986 = vpack.c.b16 %v898, %v894
        %v987 = vpack.c.b16 %v899, %v895
        %v988 = vpack.c.b16 %v904, %v900
        %v989 = vpack.c.b16 %v905, %v901
        %v990 = vpack.c.b16 %v906, %v902
        %v991 = vpack.c.b16 %v907, %v903
        %v992 = vpack.c.b16 %v912, %v908
        %v993 = vpack.c.b16 %v913, %v909
        %v994 = vpack.c.b16 %v914, %v910
        %v995 = vpack.c.b16 %v915, %v911
        %v996 = vpack.c.b16 %v920, %v916
        %v997 = vpack.c.b16 %v921, %v917
        %v998 = vpack.c.b16 %v922, %v918
        %v999 = vpack.c.b16 %v923, %v919
        %v1000 = vpack.c.b16 %v928, %v924
        %v1001 = vpack.c.b16 %v929, %v925
        %v1002 = vpack.c.b16 %v930, %v926
        %v1003 = vpack.c.b16 %v931, %v927
        %v1004 = vpack.c.b16 %v936, %v932
        %v1005 = vpack.c.b16 %v937, %v933
        %v1006 = vpack.c.b16 %v938, %v934
        %v1007 = vpack.c.b16 %v939, %v935
        %v1008 = vpack.c.b16 %v944, %v940
        %v1009 = vpack.c.b16 %v945, %v941
        %v1010 = vpack.c.b16 %v946, %v942
        %v1011 = vpack.c.b16 %v947, %v943
        %1076 = vmatpush.bf16.msra.mxu0 %v976
        %1077 = vmatpush.bf16.msra.mxu0 %v972
        %1078 = vmatpush.bf16.msra.mxu0 %v968
        %1079 = vmatpush.bf16.msra.mxu0 %v964
        %1080 = vmatpush.bf16.msra.mxu0 %v960
        %1081 = vmatpush.bf16.msra.mxu0 %v956
        %1082 = vmatpush.bf16.msra.mxu0 %v952
        %1083 = vmatpush.bf16.msra.mxu0 %v948
        %1084 = vmatmul.bf16.gmra.mxu0 %v680
        %v1085 = vpop.f32.mrf.mxu0
        %v1086 = vadd.f32 %v748, %v1085
        %v1087 = vpop.f32.mrf.mxu0
        %1088 = vdwg.mxu0
        %1089 = vmatpush.bf16.msra.mxu0 %v1008
        %1090 = vmatpush.bf16.msra.mxu0 %v1004
        %1091 = vmatpush.bf16.msra.mxu0 %v1000
        %1092 = vmatpush.bf16.msra.mxu0 %v996
        %1093 = vmatpush.bf16.msra.mxu0 %v992
        %1094 = vmatpush.bf16.msra.mxu0 %v988
        %1095 = vmatpush.bf16.msra.mxu0 %v984
        %1096 = vmatpush.bf16.msra.mxu0 %v980
        %1097 = vmatmul.bf16.gmra.mxu0 %v681
        %v1098 = vpop.f32.mrf.mxu0
        %v1099 = vadd.f32 %v1086, %v1098
        %v1100 = vpop.f32.mrf.mxu0
        %1101 = vdwg.mxu0
        %1102 = vmatpush.bf16.msra.mxu0 %v977
        %1103 = vmatpush.bf16.msra.mxu0 %v973
        %1104 = vmatpush.bf16.msra.mxu0 %v969
        %1105 = vmatpush.bf16.msra.mxu0 %v965
        %1106 = vmatpush.bf16.msra.mxu0 %v961
        %1107 = vmatpush.bf16.msra.mxu0 %v957
        %1108 = vmatpush.bf16.msra.mxu0 %v953
        %1109 = vmatpush.bf16.msra.mxu0 %v949
        %1110 = vmatmul.bf16.gmra.mxu0 %v680
        %v1111 = vpop.f32.mrf.mxu0
        %v1112 = vadd.f32 %v749, %v1111
        %v1113 = vpop.f32.mrf.mxu0
        %1114 = vdwg.mxu0
        %1115 = vmatpush.bf16.msra.mxu0 %v1009
        %1116 = vmatpush.bf16.msra.mxu0 %v1005
        %1117 = vmatpush.bf16.msra.mxu0 %v1001
        %1118 = vmatpush.bf16.msra.mxu0 %v997
        %1119 = vmatpush.bf16.msra.mxu0 %v993
        %1120 = vmatpush.bf16.msra.mxu0 %v989
        %1121 = vmatpush.bf16.msra.mxu0 %v985
        %1122 = vmatpush.bf16.msra.mxu0 %v981
        %1123 = vmatmul.bf16.gmra.mxu0 %v681
        %v1124 = vpop.f32.mrf.mxu0
        %v1125 = vadd.f32 %v1112, %v1124
        %v1126 = vpop.f32.mrf.mxu0
        %1127 = vdwg.mxu0
        %1128 = vmatpush.bf16.msra.mxu0 %v978
        %1129 = vmatpush.bf16.msra.mxu0 %v974
        %1130 = vmatpush.bf16.msra.mxu0 %v970
        %1131 = vmatpush.bf16.msra.mxu0 %v966
        %1132 = vmatpush.bf16.msra.mxu0 %v962
        %1133 = vmatpush.bf16.msra.mxu0 %v958
        %1134 = vmatpush.bf16.msra.mxu0 %v954
        %1135 = vmatpush.bf16.msra.mxu0 %v950
        %1136 = vmatmul.bf16.gmra.mxu0 %v680
        %v1137 = vpop.f32.mrf.mxu0
        %v1138 = vadd.f32 %v750, %v1137
        %v1139 = vpop.f32.mrf.mxu0
        %1140 = vdwg.mxu0
        %1141 = vmatpush.bf16.msra.mxu0 %v1010
        %1142 = vmatpush.bf16.msra.mxu0 %v1006
        %1143 = vmatpush.bf16.msra.mxu0 %v1002
        %1144 = vmatpush.bf16.msra.mxu0 %v998
        %1145 = vmatpush.bf16.msra.mxu0 %v994
        %1146 = vmatpush.bf16.msra.mxu0 %v990
        %1147 = vmatpush.bf16.msra.mxu0 %v986
        %1148 = vmatpush.bf16.msra.mxu0 %v982
        %1149 = vmatmul.bf16.gmra.mxu0 %v681
        %v1150 = vpop.f32.mrf.mxu0
        %v1151 = vadd.f32 %v1138, %v1150
        %v1152 = vpop.f32.mrf.mxu0
        %1153 = vdwg.mxu0
        %1154 = vmatpush.bf16.msra.mxu0 %v979
        %1155 = vmatpush.bf16.msra.mxu0 %v975
        %1156 = vmatpush.bf16.msra.mxu0 %v971
        %1157 = vmatpush.bf16.msra.mxu0 %v967
        %1158 = vmatpush.bf16.msra.mxu0 %v963
        %1159 = vmatpush.bf16.msra.mxu0 %v959
        %1160 = vmatpush.bf16.msra.mxu0 %v955
        %1161 = vmatpush.bf16.msra.mxu0 %v951
        %1162 = vmatmul.bf16.gmra.mxu0 %v680
        %v1163 = vpop.f32.mrf.mxu0
        %v1164 = vadd.f32 %v751, %v1163
        %v1165 = vpop.f32.mrf.mxu0
        %1166 = vdwg.mxu0
        %1167 = vmatpush.bf16.msra.mxu0 %v1011
        %1168 = vmatpush.bf16.msra.mxu0 %v1007
        %1169 = vmatpush.bf16.msra.mxu0 %v1003
        %1170 = vmatpush.bf16.msra.mxu0 %v999
        %1171 = vmatpush.bf16.msra.mxu0 %v995
        %1172 = vmatpush.bf16.msra.mxu0 %v991
        %1173 = vmatpush.bf16.msra.mxu0 %v987
        %1174 = vmatpush.bf16.msra.mxu0 %v983
        %1175 = vmatmul.bf16.gmra.mxu0 %v681
        %v1176 = vpop.f32.mrf.mxu0
        %v1177 = vadd.f32 %v1164, %v1176
        %v1178 = vpop.f32.mrf.mxu0
        %1179 = vdwg.mxu0
        %v1180 = vmax.f32 %v1099, 0.0
        %v1181 = vmax.f32 %v1125, 0.0
        %v1182 = vmax.f32 %v1151, 0.0
        %v1183 = vmax.f32 %v1177, 0.0
        %v1184 = vpack.c.bf16 %v1180, %v1180
        %v1185 = vpack.c.bf16 %v1181, %v1181
        %v1186 = vpack.c.bf16 %v1182, %v1182
        %v1187 = vpack.c.bf16 %v1183, %v1183
        %v1188 = vld [vmem:[#allocation9] sm:$0xff]
        %v1189 = vld [vmem:[#allocation9 + $0x8] sm:$0xff]
        %v1190 = vld [vmem:[#allocation9 + $0x10] sm:$0xff]
        %v1191 = vld [vmem:[#allocation9 + $0x18] sm:$0xff]
        %v1192 = vld [vmem:[#allocation9 + $0x20] sm:$0xff]
        %v1193 = vld [vmem:[#allocation9 + $0x28] sm:$0xff]
        %v1194 = vld [vmem:[#allocation9 + $0x30] sm:$0xff]
        %v1195 = vld [vmem:[#allocation9 + $0x38] sm:$0xff]
        %v1196 = vld [vmem:[#allocation9 + $0x40] sm:$0xff]
        %v1197 = vld [vmem:[#allocation9 + $0x48] sm:$0xff]
        %v1198 = vld [vmem:[#allocation9 + $0x50] sm:$0xff]
        %v1199 = vld [vmem:[#allocation9 + $0x58] sm:$0xff]
        %v1200 = vld [vmem:[#allocation9 + $0x60] sm:$0xff]
        %v1201 = vld [vmem:[#allocation9 + $0x68] sm:$0xff]
        %v1202 = vld [vmem:[#allocation9 + $0x70] sm:$0xff]
        %v1203 = vld [vmem:[#allocation9 + $0x78] sm:$0xff]
        %v1204 = vld [vmem:[#allocation9 + $0x80] sm:$0xff]
        %v1205 = vld [vmem:[#allocation9 + $0x88] sm:$0xff]
        %v1206 = vld [vmem:[#allocation9 + $0x90] sm:$0xff]
        %v1207 = vld [vmem:[#allocation9 + $0x98] sm:$0xff]
        %v1208 = vld [vmem:[#allocation9 + $0xa0] sm:$0xff]
        %v1209 = vld [vmem:[#allocation9 + $0xa8] sm:$0xff]
        %v1210 = vld [vmem:[#allocation9 + $0xb0] sm:$0xff]
        %v1211 = vld [vmem:[#allocation9 + $0xb8] sm:$0xff]
        %v1212 = vld [vmem:[#allocation9 + $0xc0] sm:$0xff]
        %v1213 = vld [vmem:[#allocation9 + $0xc8] sm:$0xff]
        %v1214 = vld [vmem:[#allocation9 + $0xd0] sm:$0xff]
        %v1215 = vld [vmem:[#allocation9 + $0xd8] sm:$0xff]
        %v1216 = vld [vmem:[#allocation9 + $0xe0] sm:$0xff]
        %v1217 = vld [vmem:[#allocation9 + $0xe8] sm:$0xff]
        %v1218 = vld [vmem:[#allocation9 + $0xf0] sm:$0xff]
        %v1219 = vld [vmem:[#allocation9 + $0xf8] sm:$0xff]
        %v1220 = vld [vmem:[#allocation9 + $0x100] sm:$0xff]
        %v1221 = vld [vmem:[#allocation9 + $0x108] sm:$0xff]
        %v1222 = vld [vmem:[#allocation9 + $0x110] sm:$0xff]
        %v1223 = vld [vmem:[#allocation9 + $0x118] sm:$0xff]
        %v1224 = vld [vmem:[#allocation9 + $0x120] sm:$0xff]
        %v1225 = vld [vmem:[#allocation9 + $0x128] sm:$0xff]
        %v1226 = vld [vmem:[#allocation9 + $0x130] sm:$0xff]
        %v1227 = vld [vmem:[#allocation9 + $0x138] sm:$0xff]
        %v1228 = vld [vmem:[#allocation9 + $0x140] sm:$0xff]
        %v1229 = vld [vmem:[#allocation9 + $0x148] sm:$0xff]
        %v1230 = vld [vmem:[#allocation9 + $0x150] sm:$0xff]
        %v1231 = vld [vmem:[#allocation9 + $0x158] sm:$0xff]
        %v1232 = vld [vmem:[#allocation9 + $0x160] sm:$0xff]
        %v1233 = vld [vmem:[#allocation9 + $0x168] sm:$0xff]
        %v1234 = vld [vmem:[#allocation9 + $0x170] sm:$0xff]
        %v1235 = vld [vmem:[#allocation9 + $0x178] sm:$0xff]
        %v1236 = vld [vmem:[#allocation9 + $0x180] sm:$0xff]
        %v1237 = vld [vmem:[#allocation9 + $0x188] sm:$0xff]
        %v1238 = vld [vmem:[#allocation9 + $0x190] sm:$0xff]
        %v1239 = vld [vmem:[#allocation9 + $0x198] sm:$0xff]
        %v1240 = vld [vmem:[#allocation9 + $0x1a0] sm:$0xff]
        %v1241 = vld [vmem:[#allocation9 + $0x1a8] sm:$0xff]
        %v1242 = vld [vmem:[#allocation9 + $0x1b0] sm:$0xff]
        %v1243 = vld [vmem:[#allocation9 + $0x1b8] sm:$0xff]
        %v1244 = vld [vmem:[#allocation9 + $0x1c0] sm:$0xff]
        %v1245 = vld [vmem:[#allocation9 + $0x1c8] sm:$0xff]
        %v1246 = vld [vmem:[#allocation9 + $0x1d0] sm:$0xff]
        %v1247 = vld [vmem:[#allocation9 + $0x1d8] sm:$0xff]
        %v1248 = vld [vmem:[#allocation9 + $0x1e0] sm:$0xff]
        %v1249 = vld [vmem:[#allocation9 + $0x1e8] sm:$0xff]
        %v1250 = vld [vmem:[#allocation9 + $0x1f0] sm:$0xff]
        %v1251 = vld [vmem:[#allocation9 + $0x1f8] sm:$0xff]
        %v1252 = vld [vmem:[#allocation9 + $0x200] sm:$0xff]
        %v1253 = vld [vmem:[#allocation9 + $0x208] sm:$0xff]
        %v1254 = vld [vmem:[#allocation9 + $0x210] sm:$0xff]
        %v1255 = vld [vmem:[#allocation9 + $0x218] sm:$0xff]
        %v1256 = vld [vmem:[#allocation9 + $0x220] sm:$0xff]
        %v1257 = vld [vmem:[#allocation9 + $0x228] sm:$0xff]
        %v1258 = vld [vmem:[#allocation9 + $0x230] sm:$0xff]
        %v1259 = vld [vmem:[#allocation9 + $0x238] sm:$0xff]
        %v1260 = vld [vmem:[#allocation9 + $0x240] sm:$0xff]
        %v1261 = vld [vmem:[#allocation9 + $0x248] sm:$0xff]
        %v1262 = vld [vmem:[#allocation9 + $0x250] sm:$0xff]
        %v1263 = vld [vmem:[#allocation9 + $0x258] sm:$0xff]
        %v1264 = vld [vmem:[#allocation9 + $0x260] sm:$0xff]
        %v1265 = vld [vmem:[#allocation9 + $0x268] sm:$0xff]
        %v1266 = vld [vmem:[#allocation9 + $0x270] sm:$0xff]
        %v1267 = vld [vmem:[#allocation9 + $0x278] sm:$0xff]
        %v1268 = vld [vmem:[#allocation9 + $0x280] sm:$0xff]
        %v1269 = vld [vmem:[#allocation9 + $0x288] sm:$0xff]
        %v1270 = vld [vmem:[#allocation9 + $0x290] sm:$0xff]
        %v1271 = vld [vmem:[#allocation9 + $0x298] sm:$0xff]
        %v1272 = vld [vmem:[#allocation9 + $0x2a0] sm:$0xff]
        %v1273 = vld [vmem:[#allocation9 + $0x2a8] sm:$0xff]
        %v1274 = vld [vmem:[#allocation9 + $0x2b0] sm:$0xff]
        %v1275 = vld [vmem:[#allocation9 + $0x2b8] sm:$0xff]
        %v1276 = vld [vmem:[#allocation9 + $0x2c0] sm:$0xff]
        %v1277 = vld [vmem:[#allocation9 + $0x2c8] sm:$0xff]
        %v1278 = vld [vmem:[#allocation9 + $0x2d0] sm:$0xff]
        %v1279 = vld [vmem:[#allocation9 + $0x2d8] sm:$0xff]
        %v1280 = vld [vmem:[#allocation9 + $0x2e0] sm:$0xff]
        %v1281 = vld [vmem:[#allocation9 + $0x2e8] sm:$0xff]
        %v1282 = vld [vmem:[#allocation9 + $0x2f0] sm:$0xff]
        %v1283 = vld [vmem:[#allocation9 + $0x2f8] sm:$0xff]
        %v1284 = vld [vmem:[#allocation9 + $0x300] sm:$0xff]
        %v1285 = vld [vmem:[#allocation9 + $0x308] sm:$0xff]
        %v1286 = vld [vmem:[#allocation9 + $0x310] sm:$0xff]
        %v1287 = vld [vmem:[#allocation9 + $0x318] sm:$0xff]
        %v1288 = vld [vmem:[#allocation9 + $0x320] sm:$0xff]
        %v1289 = vld [vmem:[#allocation9 + $0x328] sm:$0xff]
        %v1290 = vld [vmem:[#allocation9 + $0x330] sm:$0xff]
        %v1291 = vld [vmem:[#allocation9 + $0x338] sm:$0xff]
        %v1292 = vld [vmem:[#allocation9 + $0x340] sm:$0xff]
        %v1293 = vld [vmem:[#allocation9 + $0x348] sm:$0xff]
        %v1294 = vld [vmem:[#allocation9 + $0x350] sm:$0xff]
        %v1295 = vld [vmem:[#allocation9 + $0x358] sm:$0xff]
        %v1296 = vld [vmem:[#allocation9 + $0x360] sm:$0xff]
        %v1297 = vld [vmem:[#allocation9 + $0x368] sm:$0xff]
        %v1298 = vld [vmem:[#allocation9 + $0x370] sm:$0xff]
        %v1299 = vld [vmem:[#allocation9 + $0x378] sm:$0xff]
        %v1300 = vld [vmem:[#allocation9 + $0x380] sm:$0xff]
        %v1301 = vld [vmem:[#allocation9 + $0x388] sm:$0xff]
        %v1302 = vld [vmem:[#allocation9 + $0x390] sm:$0xff]
        %v1303 = vld [vmem:[#allocation9 + $0x398] sm:$0xff]
        %v1304 = vld [vmem:[#allocation9 + $0x3a0] sm:$0xff]
        %v1305 = vld [vmem:[#allocation9 + $0x3a8] sm:$0xff]
        %v1306 = vld [vmem:[#allocation9 + $0x3b0] sm:$0xff]
        %v1307 = vld [vmem:[#allocation9 + $0x3b8] sm:$0xff]
        %v1308 = vld [vmem:[#allocation9 + $0x3c0] sm:$0xff]
        %v1309 = vld [vmem:[#allocation9 + $0x3c8] sm:$0xff]
        %v1310 = vld [vmem:[#allocation9 + $0x3d0] sm:$0xff]
        %v1311 = vld [vmem:[#allocation9 + $0x3d8] sm:$0xff]
        %v1312 = vld [vmem:[#allocation9 + $0x3e0] sm:$0xff]
        %v1313 = vld [vmem:[#allocation9 + $0x3e8] sm:$0xff]
        %v1314 = vld [vmem:[#allocation9 + $0x3f0] sm:$0xff]
        %v1315 = vld [vmem:[#allocation9 + $0x3f8] sm:$0xff]
        %v1316 = vld [vmem:[#allocation9 + $0x400] sm:$0xff]
        %v1317 = vld [vmem:[#allocation9 + $0x408] sm:$0xff]
        %v1318 = vld [vmem:[#allocation9 + $0x410] sm:$0xff]
        %v1319 = vld [vmem:[#allocation9 + $0x418] sm:$0xff]
        %v1320 = vld [vmem:[#allocation9 + $0x420] sm:$0xff]
        %v1321 = vld [vmem:[#allocation9 + $0x428] sm:$0xff]
        %v1322 = vld [vmem:[#allocation9 + $0x430] sm:$0xff]
        %v1323 = vld [vmem:[#allocation9 + $0x438] sm:$0xff]
        %v1324 = vld [vmem:[#allocation9 + $0x440] sm:$0xff]
        %v1325 = vld [vmem:[#allocation9 + $0x448] sm:$0xff]
        %v1326 = vld [vmem:[#allocation9 + $0x450] sm:$0xff]
        %v1327 = vld [vmem:[#allocation9 + $0x458] sm:$0xff]
        %v1328 = vld [vmem:[#allocation9 + $0x460] sm:$0xff]
        %v1329 = vld [vmem:[#allocation9 + $0x468] sm:$0xff]
        %v1330 = vld [vmem:[#allocation9 + $0x470] sm:$0xff]
        %v1331 = vld [vmem:[#allocation9 + $0x478] sm:$0xff]
        %v1332 = vld [vmem:[#allocation9 + $0x480] sm:$0xff]
        %v1333 = vld [vmem:[#allocation9 + $0x488] sm:$0xff]
        %v1334 = vld [vmem:[#allocation9 + $0x490] sm:$0xff]
        %v1335 = vld [vmem:[#allocation9 + $0x498] sm:$0xff]
        %v1336 = vld [vmem:[#allocation9 + $0x4a0] sm:$0xff]
        %v1337 = vld [vmem:[#allocation9 + $0x4a8] sm:$0xff]
        %v1338 = vld [vmem:[#allocation9 + $0x4b0] sm:$0xff]
        %v1339 = vld [vmem:[#allocation9 + $0x4b8] sm:$0xff]
        %v1340 = vld [vmem:[#allocation9 + $0x4c0] sm:$0xff]
        %v1341 = vld [vmem:[#allocation9 + $0x4c8] sm:$0xff]
        %v1342 = vld [vmem:[#allocation9 + $0x4d0] sm:$0xff]
        %v1343 = vld [vmem:[#allocation9 + $0x4d8] sm:$0xff]
        %v1344 = vld [vmem:[#allocation9 + $0x4e0] sm:$0xff]
        %v1345 = vld [vmem:[#allocation9 + $0x4e8] sm:$0xff]
        %v1346 = vld [vmem:[#allocation9 + $0x4f0] sm:$0xff]
        %v1347 = vld [vmem:[#allocation9 + $0x4f8] sm:$0xff]
        %v1348 = vld [vmem:[#allocation9 + $0x500] sm:$0xff]
        %v1349 = vld [vmem:[#allocation9 + $0x508] sm:$0xff]
        %v1350 = vld [vmem:[#allocation9 + $0x510] sm:$0xff]
        %v1351 = vld [vmem:[#allocation9 + $0x518] sm:$0xff]
        %v1352 = vld [vmem:[#allocation9 + $0x520] sm:$0xff]
        %v1353 = vld [vmem:[#allocation9 + $0x528] sm:$0xff]
        %v1354 = vld [vmem:[#allocation9 + $0x530] sm:$0xff]
        %v1355 = vld [vmem:[#allocation9 + $0x538] sm:$0xff]
        %v1356 = vld [vmem:[#allocation9 + $0x540] sm:$0xff]
        %v1357 = vld [vmem:[#allocation9 + $0x548] sm:$0xff]
        %v1358 = vld [vmem:[#allocation9 + $0x550] sm:$0xff]
        %v1359 = vld [vmem:[#allocation9 + $0x558] sm:$0xff]
        %v1360 = vld [vmem:[#allocation9 + $0x560] sm:$0xff]
        %v1361 = vld [vmem:[#allocation9 + $0x568] sm:$0xff]
        %v1362 = vld [vmem:[#allocation9 + $0x570] sm:$0xff]
        %v1363 = vld [vmem:[#allocation9 + $0x578] sm:$0xff]
        %v1364 = vld [vmem:[#allocation9 + $0x580] sm:$0xff]
        %v1365 = vld [vmem:[#allocation9 + $0x588] sm:$0xff]
        %v1366 = vld [vmem:[#allocation9 + $0x590] sm:$0xff]
        %v1367 = vld [vmem:[#allocation9 + $0x598] sm:$0xff]
        %v1368 = vld [vmem:[#allocation9 + $0x5a0] sm:$0xff]
        %v1369 = vld [vmem:[#allocation9 + $0x5a8] sm:$0xff]
        %v1370 = vld [vmem:[#allocation9 + $0x5b0] sm:$0xff]
        %v1371 = vld [vmem:[#allocation9 + $0x5b8] sm:$0xff]
        %v1372 = vld [vmem:[#allocation9 + $0x5c0] sm:$0xff]
        %v1373 = vld [vmem:[#allocation9 + $0x5c8] sm:$0xff]
        %v1374 = vld [vmem:[#allocation9 + $0x5d0] sm:$0xff]
        %v1375 = vld [vmem:[#allocation9 + $0x5d8] sm:$0xff]
        %v1376 = vld [vmem:[#allocation9 + $0x5e0] sm:$0xff]
        %v1377 = vld [vmem:[#allocation9 + $0x5e8] sm:$0xff]
        %v1378 = vld [vmem:[#allocation9 + $0x5f0] sm:$0xff]
        %v1379 = vld [vmem:[#allocation9 + $0x5f8] sm:$0xff]
        %v1380 = vld [vmem:[#allocation9 + $0x600] sm:$0xff]
        %v1381 = vld [vmem:[#allocation9 + $0x608] sm:$0xff]
        %v1382 = vld [vmem:[#allocation9 + $0x610] sm:$0xff]
        %v1383 = vld [vmem:[#allocation9 + $0x618] sm:$0xff]
        %v1384 = vld [vmem:[#allocation9 + $0x620] sm:$0xff]
        %v1385 = vld [vmem:[#allocation9 + $0x628] sm:$0xff]
        %v1386 = vld [vmem:[#allocation9 + $0x630] sm:$0xff]
        %v1387 = vld [vmem:[#allocation9 + $0x638] sm:$0xff]
        %v1388 = vld [vmem:[#allocation9 + $0x640] sm:$0xff]
        %v1389 = vld [vmem:[#allocation9 + $0x648] sm:$0xff]
        %v1390 = vld [vmem:[#allocation9 + $0x650] sm:$0xff]
        %v1391 = vld [vmem:[#allocation9 + $0x658] sm:$0xff]
        %v1392 = vld [vmem:[#allocation9 + $0x660] sm:$0xff]
        %v1393 = vld [vmem:[#allocation9 + $0x668] sm:$0xff]
        %v1394 = vld [vmem:[#allocation9 + $0x670] sm:$0xff]
        %v1395 = vld [vmem:[#allocation9 + $0x678] sm:$0xff]
        %v1396 = vld [vmem:[#allocation9 + $0x680] sm:$0xff]
        %v1397 = vld [vmem:[#allocation9 + $0x688] sm:$0xff]
        %v1398 = vld [vmem:[#allocation9 + $0x690] sm:$0xff]
        %v1399 = vld [vmem:[#allocation9 + $0x698] sm:$0xff]
        %v1400 = vld [vmem:[#allocation9 + $0x6a0] sm:$0xff]
        %v1401 = vld [vmem:[#allocation9 + $0x6a8] sm:$0xff]
        %v1402 = vld [vmem:[#allocation9 + $0x6b0] sm:$0xff]
        %v1403 = vld [vmem:[#allocation9 + $0x6b8] sm:$0xff]
        %v1404 = vld [vmem:[#allocation9 + $0x6c0] sm:$0xff]
        %v1405 = vld [vmem:[#allocation9 + $0x6c8] sm:$0xff]
        %v1406 = vld [vmem:[#allocation9 + $0x6d0] sm:$0xff]
        %v1407 = vld [vmem:[#allocation9 + $0x6d8] sm:$0xff]
        %v1408 = vld [vmem:[#allocation9 + $0x6e0] sm:$0xff]
        %v1409 = vld [vmem:[#allocation9 + $0x6e8] sm:$0xff]
        %v1410 = vld [vmem:[#allocation9 + $0x6f0] sm:$0xff]
        %v1411 = vld [vmem:[#allocation9 + $0x6f8] sm:$0xff]
        %v1412 = vld [vmem:[#allocation9 + $0x700] sm:$0xff]
        %v1413 = vld [vmem:[#allocation9 + $0x708] sm:$0xff]
        %v1414 = vld [vmem:[#allocation9 + $0x710] sm:$0xff]
        %v1415 = vld [vmem:[#allocation9 + $0x718] sm:$0xff]
        %v1416 = vld [vmem:[#allocation9 + $0x720] sm:$0xff]
        %v1417 = vld [vmem:[#allocation9 + $0x728] sm:$0xff]
        %v1418 = vld [vmem:[#allocation9 + $0x730] sm:$0xff]
        %v1419 = vld [vmem:[#allocation9 + $0x738] sm:$0xff]
        %v1420 = vld [vmem:[#allocation9 + $0x740] sm:$0xff]
        %v1421 = vld [vmem:[#allocation9 + $0x748] sm:$0xff]
        %v1422 = vld [vmem:[#allocation9 + $0x750] sm:$0xff]
        %v1423 = vld [vmem:[#allocation9 + $0x758] sm:$0xff]
        %v1424 = vld [vmem:[#allocation9 + $0x760] sm:$0xff]
        %v1425 = vld [vmem:[#allocation9 + $0x768] sm:$0xff]
        %v1426 = vld [vmem:[#allocation9 + $0x770] sm:$0xff]
        %v1427 = vld [vmem:[#allocation9 + $0x778] sm:$0xff]
        %v1428 = vld [vmem:[#allocation9 + $0x780] sm:$0xff]
        %v1429 = vld [vmem:[#allocation9 + $0x788] sm:$0xff]
        %v1430 = vld [vmem:[#allocation9 + $0x790] sm:$0xff]
        %v1431 = vld [vmem:[#allocation9 + $0x798] sm:$0xff]
        %v1432 = vld [vmem:[#allocation9 + $0x7a0] sm:$0xff]
        %v1433 = vld [vmem:[#allocation9 + $0x7a8] sm:$0xff]
        %v1434 = vld [vmem:[#allocation9 + $0x7b0] sm:$0xff]
        %v1435 = vld [vmem:[#allocation9 + $0x7b8] sm:$0xff]
        %v1436 = vld [vmem:[#allocation9 + $0x7c0] sm:$0xff]
        %v1437 = vld [vmem:[#allocation9 + $0x7c8] sm:$0xff]
        %v1438 = vld [vmem:[#allocation9 + $0x7d0] sm:$0xff]
        %v1439 = vld [vmem:[#allocation9 + $0x7d8] sm:$0xff]
        %v1440 = vld [vmem:[#allocation9 + $0x7e0] sm:$0xff]
        %v1441 = vld [vmem:[#allocation9 + $0x7e8] sm:$0xff]
        %v1442 = vld [vmem:[#allocation9 + $0x7f0] sm:$0xff]
        %v1443 = vld [vmem:[#allocation9 + $0x7f8] sm:$0xff]
        %v1444 = vld [vmem:[#allocation10] sm:$0xff]
        %v1446 = vperm.slane %v1444, 0
        %v1447 = vperm.slane %v1444, 1
        %v1448 = vperm.slane %v1444, 2
        %v1449 = vperm.slane %v1444, 3
        %v1450 = vperm.slane %v1444, 4
        %v1451 = vperm.slane %v1444, 5
        %v1452 = vperm.slane %v1444, 6
        %v1453 = vperm.slane %v1444, 7
        %v1718 = vunpack.c.l.b16 %v1188
        %v1719 = vunpack.c.h.b16 %v1188
        %v1720 = vunpack.c.l.b16 %v1189
        %v1721 = vunpack.c.h.b16 %v1189
        %v1722 = vunpack.c.l.b16 %v1190
        %v1723 = vunpack.c.h.b16 %v1190
        %v1724 = vunpack.c.l.b16 %v1191
        %v1725 = vunpack.c.h.b16 %v1191
        %v1726 = vunpack.c.l.b16 %v1192
        %v1727 = vunpack.c.h.b16 %v1192
        %v1728 = vunpack.c.l.b16 %v1193
        %v1729 = vunpack.c.h.b16 %v1193
        %v1730 = vunpack.c.l.b16 %v1194
        %v1731 = vunpack.c.h.b16 %v1194
        %v1732 = vunpack.c.l.b16 %v1195
        %v1733 = vunpack.c.h.b16 %v1195
        %v1734 = vunpack.c.l.b16 %v1196
        %v1735 = vunpack.c.h.b16 %v1196
        %v1736 = vunpack.c.l.b16 %v1197
        %v1737 = vunpack.c.h.b16 %v1197
        %v1738 = vunpack.c.l.b16 %v1198
        %v1739 = vunpack.c.h.b16 %v1198
        %v1740 = vunpack.c.l.b16 %v1199
        %v1741 = vunpack.c.h.b16 %v1199
        %v1742 = vunpack.c.l.b16 %v1200
        %v1743 = vunpack.c.h.b16 %v1200
        %v1744 = vunpack.c.l.b16 %v1201
        %v1745 = vunpack.c.h.b16 %v1201
        %v1746 = vunpack.c.l.b16 %v1202
        %v1747 = vunpack.c.h.b16 %v1202
        %v1748 = vunpack.c.l.b16 %v1203
        %v1749 = vunpack.c.h.b16 %v1203
        %v1750 = vunpack.c.l.b16 %v1204
        %v1751 = vunpack.c.h.b16 %v1204
        %v1752 = vunpack.c.l.b16 %v1205
        %v1753 = vunpack.c.h.b16 %v1205
        %v1754 = vunpack.c.l.b16 %v1206
        %v1755 = vunpack.c.h.b16 %v1206
        %v1756 = vunpack.c.l.b16 %v1207
        %v1757 = vunpack.c.h.b16 %v1207
        %v1758 = vunpack.c.l.b16 %v1208
        %v1759 = vunpack.c.h.b16 %v1208
        %v1760 = vunpack.c.l.b16 %v1209
        %v1761 = vunpack.c.h.b16 %v1209
        %v1762 = vunpack.c.l.b16 %v1210
        %v1763 = vunpack.c.h.b16 %v1210
        %v1764 = vunpack.c.l.b16 %v1211
        %v1765 = vunpack.c.h.b16 %v1211
        %v1766 = vunpack.c.l.b16 %v1212
        %v1767 = vunpack.c.h.b16 %v1212
        %v1768 = vunpack.c.l.b16 %v1213
        %v1769 = vunpack.c.h.b16 %v1213
        %v1770 = vunpack.c.l.b16 %v1214
        %v1771 = vunpack.c.h.b16 %v1214
        %v1772 = vunpack.c.l.b16 %v1215
        %v1773 = vunpack.c.h.b16 %v1215
        %v1774 = vunpack.c.l.b16 %v1216
        %v1775 = vunpack.c.h.b16 %v1216
        %v1776 = vunpack.c.l.b16 %v1217
        %v1777 = vunpack.c.h.b16 %v1217
        %v1778 = vunpack.c.l.b16 %v1218
        %v1779 = vunpack.c.h.b16 %v1218
        %v1780 = vunpack.c.l.b16 %v1219
        %v1781 = vunpack.c.h.b16 %v1219
        %v1782 = vunpack.c.l.b16 %v1220
        %v1783 = vunpack.c.h.b16 %v1220
        %v1784 = vunpack.c.l.b16 %v1221
        %v1785 = vunpack.c.h.b16 %v1221
        %v1786 = vunpack.c.l.b16 %v1222
        %v1787 = vunpack.c.h.b16 %v1222
        %v1788 = vunpack.c.l.b16 %v1223
        %v1789 = vunpack.c.h.b16 %v1223
        %v1790 = vunpack.c.l.b16 %v1224
        %v1791 = vunpack.c.h.b16 %v1224
        %v1792 = vunpack.c.l.b16 %v1225
        %v1793 = vunpack.c.h.b16 %v1225
        %v1794 = vunpack.c.l.b16 %v1226
        %v1795 = vunpack.c.h.b16 %v1226
        %v1796 = vunpack.c.l.b16 %v1227
        %v1797 = vunpack.c.h.b16 %v1227
        %v1798 = vunpack.c.l.b16 %v1228
        %v1799 = vunpack.c.h.b16 %v1228
        %v1800 = vunpack.c.l.b16 %v1229
        %v1801 = vunpack.c.h.b16 %v1229
        %v1802 = vunpack.c.l.b16 %v1230
        %v1803 = vunpack.c.h.b16 %v1230
        %v1804 = vunpack.c.l.b16 %v1231
        %v1805 = vunpack.c.h.b16 %v1231
        %v1806 = vunpack.c.l.b16 %v1232
        %v1807 = vunpack.c.h.b16 %v1232
        %v1808 = vunpack.c.l.b16 %v1233
        %v1809 = vunpack.c.h.b16 %v1233
        %v1810 = vunpack.c.l.b16 %v1234
        %v1811 = vunpack.c.h.b16 %v1234
        %v1812 = vunpack.c.l.b16 %v1235
        %v1813 = vunpack.c.h.b16 %v1235
        %v1814 = vunpack.c.l.b16 %v1236
        %v1815 = vunpack.c.h.b16 %v1236
        %v1816 = vunpack.c.l.b16 %v1237
        %v1817 = vunpack.c.h.b16 %v1237
        %v1818 = vunpack.c.l.b16 %v1238
        %v1819 = vunpack.c.h.b16 %v1238
        %v1820 = vunpack.c.l.b16 %v1239
        %v1821 = vunpack.c.h.b16 %v1239
        %v1822 = vunpack.c.l.b16 %v1240
        %v1823 = vunpack.c.h.b16 %v1240
        %v1824 = vunpack.c.l.b16 %v1241
        %v1825 = vunpack.c.h.b16 %v1241
        %v1826 = vunpack.c.l.b16 %v1242
        %v1827 = vunpack.c.h.b16 %v1242
        %v1828 = vunpack.c.l.b16 %v1243
        %v1829 = vunpack.c.h.b16 %v1243
        %v1830 = vunpack.c.l.b16 %v1244
        %v1831 = vunpack.c.h.b16 %v1244
        %v1832 = vunpack.c.l.b16 %v1245
        %v1833 = vunpack.c.h.b16 %v1245
        %v1834 = vunpack.c.l.b16 %v1246
        %v1835 = vunpack.c.h.b16 %v1246
        %v1836 = vunpack.c.l.b16 %v1247
        %v1837 = vunpack.c.h.b16 %v1247
        %v1838 = vunpack.c.l.b16 %v1248
        %v1839 = vunpack.c.h.b16 %v1248
        %v1840 = vunpack.c.l.b16 %v1249
        %v1841 = vunpack.c.h.b16 %v1249
        %v1842 = vunpack.c.l.b16 %v1250
        %v1843 = vunpack.c.h.b16 %v1250
        %v1844 = vunpack.c.l.b16 %v1251
        %v1845 = vunpack.c.h.b16 %v1251
        %v1846 = vunpack.c.l.b16 %v1252
        %v1847 = vunpack.c.h.b16 %v1252
        %v1848 = vunpack.c.l.b16 %v1253
        %v1849 = vunpack.c.h.b16 %v1253
        %v1850 = vunpack.c.l.b16 %v1254
        %v1851 = vunpack.c.h.b16 %v1254
        %v1852 = vunpack.c.l.b16 %v1255
        %v1853 = vunpack.c.h.b16 %v1255
        %v1854 = vunpack.c.l.b16 %v1256
        %v1855 = vunpack.c.h.b16 %v1256
        %v1856 = vunpack.c.l.b16 %v1257
        %v1857 = vunpack.c.h.b16 %v1257
        %v1858 = vunpack.c.l.b16 %v1258
        %v1859 = vunpack.c.h.b16 %v1258
        %v1860 = vunpack.c.l.b16 %v1259
        %v1861 = vunpack.c.h.b16 %v1259
        %v1862 = vunpack.c.l.b16 %v1260
        %v1863 = vunpack.c.h.b16 %v1260
        %v1864 = vunpack.c.l.b16 %v1261
        %v1865 = vunpack.c.h.b16 %v1261
        %v1866 = vunpack.c.l.b16 %v1262
        %v1867 = vunpack.c.h.b16 %v1262
        %v1868 = vunpack.c.l.b16 %v1263
        %v1869 = vunpack.c.h.b16 %v1263
        %v1870 = vunpack.c.l.b16 %v1264
        %v1871 = vunpack.c.h.b16 %v1264
        %v1872 = vunpack.c.l.b16 %v1265
        %v1873 = vunpack.c.h.b16 %v1265
        %v1874 = vunpack.c.l.b16 %v1266
        %v1875 = vunpack.c.h.b16 %v1266
        %v1876 = vunpack.c.l.b16 %v1267
        %v1877 = vunpack.c.h.b16 %v1267
        %v1878 = vunpack.c.l.b16 %v1268
        %v1879 = vunpack.c.h.b16 %v1268
        %v1880 = vunpack.c.l.b16 %v1269
        %v1881 = vunpack.c.h.b16 %v1269
        %v1882 = vunpack.c.l.b16 %v1270
        %v1883 = vunpack.c.h.b16 %v1270
        %v1884 = vunpack.c.l.b16 %v1271
        %v1885 = vunpack.c.h.b16 %v1271
        %v1886 = vunpack.c.l.b16 %v1272
        %v1887 = vunpack.c.h.b16 %v1272
        %v1888 = vunpack.c.l.b16 %v1273
        %v1889 = vunpack.c.h.b16 %v1273
        %v1890 = vunpack.c.l.b16 %v1274
        %v1891 = vunpack.c.h.b16 %v1274
        %v1892 = vunpack.c.l.b16 %v1275
        %v1893 = vunpack.c.h.b16 %v1275
        %v1894 = vunpack.c.l.b16 %v1276
        %v1895 = vunpack.c.h.b16 %v1276
        %v1896 = vunpack.c.l.b16 %v1277
        %v1897 = vunpack.c.h.b16 %v1277
        %v1898 = vunpack.c.l.b16 %v1278
        %v1899 = vunpack.c.h.b16 %v1278
        %v1900 = vunpack.c.l.b16 %v1279
        %v1901 = vunpack.c.h.b16 %v1279
        %v1902 = vunpack.c.l.b16 %v1280
        %v1903 = vunpack.c.h.b16 %v1280
        %v1904 = vunpack.c.l.b16 %v1281
        %v1905 = vunpack.c.h.b16 %v1281
        %v1906 = vunpack.c.l.b16 %v1282
        %v1907 = vunpack.c.h.b16 %v1282
        %v1908 = vunpack.c.l.b16 %v1283
        %v1909 = vunpack.c.h.b16 %v1283
        %v1910 = vunpack.c.l.b16 %v1284
        %v1911 = vunpack.c.h.b16 %v1284
        %v1912 = vunpack.c.l.b16 %v1285
        %v1913 = vunpack.c.h.b16 %v1285
        %v1914 = vunpack.c.l.b16 %v1286
        %v1915 = vunpack.c.h.b16 %v1286
        %v1916 = vunpack.c.l.b16 %v1287
        %v1917 = vunpack.c.h.b16 %v1287
        %v1918 = vunpack.c.l.b16 %v1288
        %v1919 = vunpack.c.h.b16 %v1288
        %v1920 = vunpack.c.l.b16 %v1289
        %v1921 = vunpack.c.h.b16 %v1289
        %v1922 = vunpack.c.l.b16 %v1290
        %v1923 = vunpack.c.h.b16 %v1290
        %v1924 = vunpack.c.l.b16 %v1291
        %v1925 = vunpack.c.h.b16 %v1291
        %v1926 = vunpack.c.l.b16 %v1292
        %v1927 = vunpack.c.h.b16 %v1292
        %v1928 = vunpack.c.l.b16 %v1293
        %v1929 = vunpack.c.h.b16 %v1293
        %v1930 = vunpack.c.l.b16 %v1294
        %v1931 = vunpack.c.h.b16 %v1294
        %v1932 = vunpack.c.l.b16 %v1295
        %v1933 = vunpack.c.h.b16 %v1295
        %v1934 = vunpack.c.l.b16 %v1296
        %v1935 = vunpack.c.h.b16 %v1296
        %v1936 = vunpack.c.l.b16 %v1297
        %v1937 = vunpack.c.h.b16 %v1297
        %v1938 = vunpack.c.l.b16 %v1298
        %v1939 = vunpack.c.h.b16 %v1298
        %v1940 = vunpack.c.l.b16 %v1299
        %v1941 = vunpack.c.h.b16 %v1299
        %v1942 = vunpack.c.l.b16 %v1300
        %v1943 = vunpack.c.h.b16 %v1300
        %v1944 = vunpack.c.l.b16 %v1301
        %v1945 = vunpack.c.h.b16 %v1301
        %v1946 = vunpack.c.l.b16 %v1302
        %v1947 = vunpack.c.h.b16 %v1302
        %v1948 = vunpack.c.l.b16 %v1303
        %v1949 = vunpack.c.h.b16 %v1303
        %v1950 = vunpack.c.l.b16 %v1304
        %v1951 = vunpack.c.h.b16 %v1304
        %v1952 = vunpack.c.l.b16 %v1305
        %v1953 = vunpack.c.h.b16 %v1305
        %v1954 = vunpack.c.l.b16 %v1306
        %v1955 = vunpack.c.h.b16 %v1306
        %v1956 = vunpack.c.l.b16 %v1307
        %v1957 = vunpack.c.h.b16 %v1307
        %v1958 = vunpack.c.l.b16 %v1308
        %v1959 = vunpack.c.h.b16 %v1308
        %v1960 = vunpack.c.l.b16 %v1309
        %v1961 = vunpack.c.h.b16 %v1309
        %v1962 = vunpack.c.l.b16 %v1310
        %v1963 = vunpack.c.h.b16 %v1310
        %v1964 = vunpack.c.l.b16 %v1311
        %v1965 = vunpack.c.h.b16 %v1311
        %v1966 = vunpack.c.l.b16 %v1312
        %v1967 = vunpack.c.h.b16 %v1312
        %v1968 = vunpack.c.l.b16 %v1313
        %v1969 = vunpack.c.h.b16 %v1313
        %v1970 = vunpack.c.l.b16 %v1314
        %v1971 = vunpack.c.h.b16 %v1314
        %v1972 = vunpack.c.l.b16 %v1315
        %v1973 = vunpack.c.h.b16 %v1315
        %v1974 = vunpack.c.l.b16 %v1316
        %v1975 = vunpack.c.h.b16 %v1316
        %v1976 = vunpack.c.l.b16 %v1317
        %v1977 = vunpack.c.h.b16 %v1317
        %v1978 = vunpack.c.l.b16 %v1318
        %v1979 = vunpack.c.h.b16 %v1318
        %v1980 = vunpack.c.l.b16 %v1319
        %v1981 = vunpack.c.h.b16 %v1319
        %v1982 = vunpack.c.l.b16 %v1320
        %v1983 = vunpack.c.h.b16 %v1320
        %v1984 = vunpack.c.l.b16 %v1321
        %v1985 = vunpack.c.h.b16 %v1321
        %v1986 = vunpack.c.l.b16 %v1322
        %v1987 = vunpack.c.h.b16 %v1322
        %v1988 = vunpack.c.l.b16 %v1323
        %v1989 = vunpack.c.h.b16 %v1323
        %v1990 = vunpack.c.l.b16 %v1324
        %v1991 = vunpack.c.h.b16 %v1324
        %v1992 = vunpack.c.l.b16 %v1325
        %v1993 = vunpack.c.h.b16 %v1325
        %v1994 = vunpack.c.l.b16 %v1326
        %v1995 = vunpack.c.h.b16 %v1326
        %v1996 = vunpack.c.l.b16 %v1327
        %v1997 = vunpack.c.h.b16 %v1327
        %v1998 = vunpack.c.l.b16 %v1328
        %v1999 = vunpack.c.h.b16 %v1328
        %v2000 = vunpack.c.l.b16 %v1329
        %v2001 = vunpack.c.h.b16 %v1329
        %v2002 = vunpack.c.l.b16 %v1330
        %v2003 = vunpack.c.h.b16 %v1330
        %v2004 = vunpack.c.l.b16 %v1331
        %v2005 = vunpack.c.h.b16 %v1331
        %v2006 = vunpack.c.l.b16 %v1332
        %v2007 = vunpack.c.h.b16 %v1332
        %v2008 = vunpack.c.l.b16 %v1333
        %v2009 = vunpack.c.h.b16 %v1333
        %v2010 = vunpack.c.l.b16 %v1334
        %v2011 = vunpack.c.h.b16 %v1334
        %v2012 = vunpack.c.l.b16 %v1335
        %v2013 = vunpack.c.h.b16 %v1335
        %v2014 = vunpack.c.l.b16 %v1336
        %v2015 = vunpack.c.h.b16 %v1336
        %v2016 = vunpack.c.l.b16 %v1337
        %v2017 = vunpack.c.h.b16 %v1337
        %v2018 = vunpack.c.l.b16 %v1338
        %v2019 = vunpack.c.h.b16 %v1338
        %v2020 = vunpack.c.l.b16 %v1339
        %v2021 = vunpack.c.h.b16 %v1339
        %v2022 = vunpack.c.l.b16 %v1340
        %v2023 = vunpack.c.h.b16 %v1340
        %v2024 = vunpack.c.l.b16 %v1341
        %v2025 = vunpack.c.h.b16 %v1341
        %v2026 = vunpack.c.l.b16 %v1342
        %v2027 = vunpack.c.h.b16 %v1342
        %v2028 = vunpack.c.l.b16 %v1343
        %v2029 = vunpack.c.h.b16 %v1343
        %v2030 = vunpack.c.l.b16 %v1344
        %v2031 = vunpack.c.h.b16 %v1344
        %v2032 = vunpack.c.l.b16 %v1345
        %v2033 = vunpack.c.h.b16 %v1345
        %v2034 = vunpack.c.l.b16 %v1346
        %v2035 = vunpack.c.h.b16 %v1346
        %v2036 = vunpack.c.l.b16 %v1347
        %v2037 = vunpack.c.h.b16 %v1347
        %v2038 = vunpack.c.l.b16 %v1348
        %v2039 = vunpack.c.h.b16 %v1348
        %v2040 = vunpack.c.l.b16 %v1349
        %v2041 = vunpack.c.h.b16 %v1349
        %v2042 = vunpack.c.l.b16 %v1350
        %v2043 = vunpack.c.h.b16 %v1350
        %v2044 = vunpack.c.l.b16 %v1351
        %v2045 = vunpack.c.h.b16 %v1351
        %v2046 = vunpack.c.l.b16 %v1352
        %v2047 = vunpack.c.h.b16 %v1352
        %v2048 = vunpack.c.l.b16 %v1353
        %v2049 = vunpack.c.h.b16 %v1353
        %v2050 = vunpack.c.l.b16 %v1354
        %v2051 = vunpack.c.h.b16 %v1354
        %v2052 = vunpack.c.l.b16 %v1355
        %v2053 = vunpack.c.h.b16 %v1355
        %v2054 = vunpack.c.l.b16 %v1356
        %v2055 = vunpack.c.h.b16 %v1356
        %v2056 = vunpack.c.l.b16 %v1357
        %v2057 = vunpack.c.h.b16 %v1357
        %v2058 = vunpack.c.l.b16 %v1358
        %v2059 = vunpack.c.h.b16 %v1358
        %v2060 = vunpack.c.l.b16 %v1359
        %v2061 = vunpack.c.h.b16 %v1359
        %v2062 = vunpack.c.l.b16 %v1360
        %v2063 = vunpack.c.h.b16 %v1360
        %v2064 = vunpack.c.l.b16 %v1361
        %v2065 = vunpack.c.h.b16 %v1361
        %v2066 = vunpack.c.l.b16 %v1362
        %v2067 = vunpack.c.h.b16 %v1362
        %v2068 = vunpack.c.l.b16 %v1363
        %v2069 = vunpack.c.h.b16 %v1363
        %v2070 = vunpack.c.l.b16 %v1364
        %v2071 = vunpack.c.h.b16 %v1364
        %v2072 = vunpack.c.l.b16 %v1365
        %v2073 = vunpack.c.h.b16 %v1365
        %v2074 = vunpack.c.l.b16 %v1366
        %v2075 = vunpack.c.h.b16 %v1366
        %v2076 = vunpack.c.l.b16 %v1367
        %v2077 = vunpack.c.h.b16 %v1367
        %v2078 = vunpack.c.l.b16 %v1368
        %v2079 = vunpack.c.h.b16 %v1368
        %v2080 = vunpack.c.l.b16 %v1369
        %v2081 = vunpack.c.h.b16 %v1369
        %v2082 = vunpack.c.l.b16 %v1370
        %v2083 = vunpack.c.h.b16 %v1370
        %v2084 = vunpack.c.l.b16 %v1371
        %v2085 = vunpack.c.h.b16 %v1371
        %v2086 = vunpack.c.l.b16 %v1372
        %v2087 = vunpack.c.h.b16 %v1372
        %v2088 = vunpack.c.l.b16 %v1373
        %v2089 = vunpack.c.h.b16 %v1373
        %v2090 = vunpack.c.l.b16 %v1374
        %v2091 = vunpack.c.h.b16 %v1374
        %v2092 = vunpack.c.l.b16 %v1375
        %v2093 = vunpack.c.h.b16 %v1375
        %v2094 = vunpack.c.l.b16 %v1376
        %v2095 = vunpack.c.h.b16 %v1376
        %v2096 = vunpack.c.l.b16 %v1377
        %v2097 = vunpack.c.h.b16 %v1377
        %v2098 = vunpack.c.l.b16 %v1378
        %v2099 = vunpack.c.h.b16 %v1378
        %v2100 = vunpack.c.l.b16 %v1379
        %v2101 = vunpack.c.h.b16 %v1379
        %v2102 = vunpack.c.l.b16 %v1380
        %v2103 = vunpack.c.h.b16 %v1380
        %v2104 = vunpack.c.l.b16 %v1381
        %v2105 = vunpack.c.h.b16 %v1381
        %v2106 = vunpack.c.l.b16 %v1382
        %v2107 = vunpack.c.h.b16 %v1382
        %v2108 = vunpack.c.l.b16 %v1383
        %v2109 = vunpack.c.h.b16 %v1383
        %v2110 = vunpack.c.l.b16 %v1384
        %v2111 = vunpack.c.h.b16 %v1384
        %v2112 = vunpack.c.l.b16 %v1385
        %v2113 = vunpack.c.h.b16 %v1385
        %v2114 = vunpack.c.l.b16 %v1386
        %v2115 = vunpack.c.h.b16 %v1386
        %v2116 = vunpack.c.l.b16 %v1387
        %v2117 = vunpack.c.h.b16 %v1387
        %v2118 = vunpack.c.l.b16 %v1388
        %v2119 = vunpack.c.h.b16 %v1388
        %v2120 = vunpack.c.l.b16 %v1389
        %v2121 = vunpack.c.h.b16 %v1389
        %v2122 = vunpack.c.l.b16 %v1390
        %v2123 = vunpack.c.h.b16 %v1390
        %v2124 = vunpack.c.l.b16 %v1391
        %v2125 = vunpack.c.h.b16 %v1391
        %v2126 = vunpack.c.l.b16 %v1392
        %v2127 = vunpack.c.h.b16 %v1392
        %v2128 = vunpack.c.l.b16 %v1393
        %v2129 = vunpack.c.h.b16 %v1393
        %v2130 = vunpack.c.l.b16 %v1394
        %v2131 = vunpack.c.h.b16 %v1394
        %v2132 = vunpack.c.l.b16 %v1395
        %v2133 = vunpack.c.h.b16 %v1395
        %v2134 = vunpack.c.l.b16 %v1396
        %v2135 = vunpack.c.h.b16 %v1396
        %v2136 = vunpack.c.l.b16 %v1397
        %v2137 = vunpack.c.h.b16 %v1397
        %v2138 = vunpack.c.l.b16 %v1398
        %v2139 = vunpack.c.h.b16 %v1398
        %v2140 = vunpack.c.l.b16 %v1399
        %v2141 = vunpack.c.h.b16 %v1399
        %v2142 = vunpack.c.l.b16 %v1400
        %v2143 = vunpack.c.h.b16 %v1400
        %v2144 = vunpack.c.l.b16 %v1401
        %v2145 = vunpack.c.h.b16 %v1401
        %v2146 = vunpack.c.l.b16 %v1402
        %v2147 = vunpack.c.h.b16 %v1402
        %v2148 = vunpack.c.l.b16 %v1403
        %v2149 = vunpack.c.h.b16 %v1403
        %v2150 = vunpack.c.l.b16 %v1404
        %v2151 = vunpack.c.h.b16 %v1404
        %v2152 = vunpack.c.l.b16 %v1405
        %v2153 = vunpack.c.h.b16 %v1405
        %v2154 = vunpack.c.l.b16 %v1406
        %v2155 = vunpack.c.h.b16 %v1406
        %v2156 = vunpack.c.l.b16 %v1407
        %v2157 = vunpack.c.h.b16 %v1407
        %v2158 = vunpack.c.l.b16 %v1408
        %v2159 = vunpack.c.h.b16 %v1408
        %v2160 = vunpack.c.l.b16 %v1409
        %v2161 = vunpack.c.h.b16 %v1409
        %v2162 = vunpack.c.l.b16 %v1410
        %v2163 = vunpack.c.h.b16 %v1410
        %v2164 = vunpack.c.l.b16 %v1411
        %v2165 = vunpack.c.h.b16 %v1411
        %v2166 = vunpack.c.l.b16 %v1412
        %v2167 = vunpack.c.h.b16 %v1412
        %v2168 = vunpack.c.l.b16 %v1413
        %v2169 = vunpack.c.h.b16 %v1413
        %v2170 = vunpack.c.l.b16 %v1414
        %v2171 = vunpack.c.h.b16 %v1414
        %v2172 = vunpack.c.l.b16 %v1415
        %v2173 = vunpack.c.h.b16 %v1415
        %v2174 = vunpack.c.l.b16 %v1416
        %v2175 = vunpack.c.h.b16 %v1416
        %v2176 = vunpack.c.l.b16 %v1417
        %v2177 = vunpack.c.h.b16 %v1417
        %v2178 = vunpack.c.l.b16 %v1418
        %v2179 = vunpack.c.h.b16 %v1418
        %v2180 = vunpack.c.l.b16 %v1419
        %v2181 = vunpack.c.h.b16 %v1419
        %v2182 = vunpack.c.l.b16 %v1420
        %v2183 = vunpack.c.h.b16 %v1420
        %v2184 = vunpack.c.l.b16 %v1421
        %v2185 = vunpack.c.h.b16 %v1421
        %v2186 = vunpack.c.l.b16 %v1422
        %v2187 = vunpack.c.h.b16 %v1422
        %v2188 = vunpack.c.l.b16 %v1423
        %v2189 = vunpack.c.h.b16 %v1423
        %v2190 = vunpack.c.l.b16 %v1424
        %v2191 = vunpack.c.h.b16 %v1424
        %v2192 = vunpack.c.l.b16 %v1425
        %v2193 = vunpack.c.h.b16 %v1425
        %v2194 = vunpack.c.l.b16 %v1426
        %v2195 = vunpack.c.h.b16 %v1426
        %v2196 = vunpack.c.l.b16 %v1427
        %v2197 = vunpack.c.h.b16 %v1427
        %v2198 = vunpack.c.l.b16 %v1428
        %v2199 = vunpack.c.h.b16 %v1428
        %v2200 = vunpack.c.l.b16 %v1429
        %v2201 = vunpack.c.h.b16 %v1429
        %v2202 = vunpack.c.l.b16 %v1430
        %v2203 = vunpack.c.h.b16 %v1430
        %v2204 = vunpack.c.l.b16 %v1431
        %v2205 = vunpack.c.h.b16 %v1431
        %v2206 = vunpack.c.l.b16 %v1432
        %v2207 = vunpack.c.h.b16 %v1432
        %v2208 = vunpack.c.l.b16 %v1433
        %v2209 = vunpack.c.h.b16 %v1433
        %v2210 = vunpack.c.l.b16 %v1434
        %v2211 = vunpack.c.h.b16 %v1434
        %v2212 = vunpack.c.l.b16 %v1435
        %v2213 = vunpack.c.h.b16 %v1435
        %v2214 = vunpack.c.l.b16 %v1436
        %v2215 = vunpack.c.h.b16 %v1436
        %v2216 = vunpack.c.l.b16 %v1437
        %v2217 = vunpack.c.h.b16 %v1437
        %v2218 = vunpack.c.l.b16 %v1438
        %v2219 = vunpack.c.h.b16 %v1438
        %v2220 = vunpack.c.l.b16 %v1439
        %v2221 = vunpack.c.h.b16 %v1439
        %v2222 = vunpack.c.l.b16 %v1440
        %v2223 = vunpack.c.h.b16 %v1440
        %v2224 = vunpack.c.l.b16 %v1441
        %v2225 = vunpack.c.h.b16 %v1441
        %v2226 = vunpack.c.l.b16 %v1442
        %v2227 = vunpack.c.h.b16 %v1442
        %v2228 = vunpack.c.l.b16 %v1443
        %v2229 = vunpack.c.h.b16 %v1443
        %v2230 = vpack.c.b16 %v1726, %v1718
        %v2231 = vpack.c.b16 %v1727, %v1719
        %v2232 = vpack.c.b16 %v1728, %v1720
        %v2233 = vpack.c.b16 %v1729, %v1721
        %v2234 = vpack.c.b16 %v1730, %v1722
        %v2235 = vpack.c.b16 %v1731, %v1723
        %v2236 = vpack.c.b16 %v1732, %v1724
        %v2237 = vpack.c.b16 %v1733, %v1725
        %v2238 = vpack.c.b16 %v1742, %v1734
        %v2239 = vpack.c.b16 %v1743, %v1735
        %v2240 = vpack.c.b16 %v1744, %v1736
        %v2241 = vpack.c.b16 %v1745, %v1737
        %v2242 = vpack.c.b16 %v1746, %v1738
        %v2243 = vpack.c.b16 %v1747, %v1739
        %v2244 = vpack.c.b16 %v1748, %v1740
        %v2245 = vpack.c.b16 %v1749, %v1741
        %v2246 = vpack.c.b16 %v1758, %v1750
        %v2247 = vpack.c.b16 %v1759, %v1751
        %v2248 = vpack.c.b16 %v1760, %v1752
        %v2249 = vpack.c.b16 %v1761, %v1753
        %v2250 = vpack.c.b16 %v1762, %v1754
        %v2251 = vpack.c.b16 %v1763, %v1755
        %v2252 = vpack.c.b16 %v1764, %v1756
        %v2253 = vpack.c.b16 %v1765, %v1757
        %v2254 = vpack.c.b16 %v1774, %v1766
        %v2255 = vpack.c.b16 %v1775, %v1767
        %v2256 = vpack.c.b16 %v1776, %v1768
        %v2257 = vpack.c.b16 %v1777, %v1769
        %v2258 = vpack.c.b16 %v1778, %v1770
        %v2259 = vpack.c.b16 %v1779, %v1771
        %v2260 = vpack.c.b16 %v1780, %v1772
        %v2261 = vpack.c.b16 %v1781, %v1773
        %v2262 = vpack.c.b16 %v1790, %v1782
        %v2263 = vpack.c.b16 %v1791, %v1783
        %v2264 = vpack.c.b16 %v1792, %v1784
        %v2265 = vpack.c.b16 %v1793, %v1785
        %v2266 = vpack.c.b16 %v1794, %v1786
        %v2267 = vpack.c.b16 %v1795, %v1787
        %v2268 = vpack.c.b16 %v1796, %v1788
        %v2269 = vpack.c.b16 %v1797, %v1789
        %v2270 = vpack.c.b16 %v1806, %v1798
        %v2271 = vpack.c.b16 %v1807, %v1799
        %v2272 = vpack.c.b16 %v1808, %v1800
        %v2273 = vpack.c.b16 %v1809, %v1801
        %v2274 = vpack.c.b16 %v1810, %v1802
        %v2275 = vpack.c.b16 %v1811, %v1803
        %v2276 = vpack.c.b16 %v1812, %v1804
        %v2277 = vpack.c.b16 %v1813, %v1805
        %v2278 = vpack.c.b16 %v1822, %v1814
        %v2279 = vpack.c.b16 %v1823, %v1815
        %v2280 = vpack.c.b16 %v1824, %v1816
        %v2281 = vpack.c.b16 %v1825, %v1817
        %v2282 = vpack.c.b16 %v1826, %v1818
        %v2283 = vpack.c.b16 %v1827, %v1819
        %v2284 = vpack.c.b16 %v1828, %v1820
        %v2285 = vpack.c.b16 %v1829, %v1821
        %v2286 = vpack.c.b16 %v1838, %v1830
        %v2287 = vpack.c.b16 %v1839, %v1831
        %v2288 = vpack.c.b16 %v1840, %v1832
        %v2289 = vpack.c.b16 %v1841, %v1833
        %v2290 = vpack.c.b16 %v1842, %v1834
        %v2291 = vpack.c.b16 %v1843, %v1835
        %v2292 = vpack.c.b16 %v1844, %v1836
        %v2293 = vpack.c.b16 %v1845, %v1837
        %v2294 = vpack.c.b16 %v1854, %v1846
        %v2295 = vpack.c.b16 %v1855, %v1847
        %v2296 = vpack.c.b16 %v1856, %v1848
        %v2297 = vpack.c.b16 %v1857, %v1849
        %v2298 = vpack.c.b16 %v1858, %v1850
        %v2299 = vpack.c.b16 %v1859, %v1851
        %v2300 = vpack.c.b16 %v1860, %v1852
        %v2301 = vpack.c.b16 %v1861, %v1853
        %v2302 = vpack.c.b16 %v1870, %v1862
        %v2303 = vpack.c.b16 %v1871, %v1863
        %v2304 = vpack.c.b16 %v1872, %v1864
        %v2305 = vpack.c.b16 %v1873, %v1865
        %v2306 = vpack.c.b16 %v1874, %v1866
        %v2307 = vpack.c.b16 %v1875, %v1867
        %v2308 = vpack.c.b16 %v1876, %v1868
        %v2309 = vpack.c.b16 %v1877, %v1869
        %v2310 = vpack.c.b16 %v1886, %v1878
        %v2311 = vpack.c.b16 %v1887, %v1879
        %v2312 = vpack.c.b16 %v1888, %v1880
        %v2313 = vpack.c.b16 %v1889, %v1881
        %v2314 = vpack.c.b16 %v1890, %v1882
        %v2315 = vpack.c.b16 %v1891, %v1883
        %v2316 = vpack.c.b16 %v1892, %v1884
        %v2317 = vpack.c.b16 %v1893, %v1885
        %v2318 = vpack.c.b16 %v1902, %v1894
        %v2319 = vpack.c.b16 %v1903, %v1895
        %v2320 = vpack.c.b16 %v1904, %v1896
        %v2321 = vpack.c.b16 %v1905, %v1897
        %v2322 = vpack.c.b16 %v1906, %v1898
        %v2323 = vpack.c.b16 %v1907, %v1899
        %v2324 = vpack.c.b16 %v1908, %v1900
        %v2325 = vpack.c.b16 %v1909, %v1901
        %v2326 = vpack.c.b16 %v1918, %v1910
        %v2327 = vpack.c.b16 %v1919, %v1911
        %v2328 = vpack.c.b16 %v1920, %v1912
        %v2329 = vpack.c.b16 %v1921, %v1913
        %v2330 = vpack.c.b16 %v1922, %v1914
        %v2331 = vpack.c.b16 %v1923, %v1915
        %v2332 = vpack.c.b16 %v1924, %v1916
        %v2333 = vpack.c.b16 %v1925, %v1917
        %v2334 = vpack.c.b16 %v1934, %v1926
        %v2335 = vpack.c.b16 %v1935, %v1927
        %v2336 = vpack.c.b16 %v1936, %v1928
        %v2337 = vpack.c.b16 %v1937, %v1929
        %v2338 = vpack.c.b16 %v1938, %v1930
        %v2339 = vpack.c.b16 %v1939, %v1931
        %v2340 = vpack.c.b16 %v1940, %v1932
        %v2341 = vpack.c.b16 %v1941, %v1933
        %v2342 = vpack.c.b16 %v1950, %v1942
        %v2343 = vpack.c.b16 %v1951, %v1943
        %v2344 = vpack.c.b16 %v1952, %v1944
        %v2345 = vpack.c.b16 %v1953, %v1945
        %v2346 = vpack.c.b16 %v1954, %v1946
        %v2347 = vpack.c.b16 %v1955, %v1947
        %v2348 = vpack.c.b16 %v1956, %v1948
        %v2349 = vpack.c.b16 %v1957, %v1949
        %v2350 = vpack.c.b16 %v1966, %v1958
        %v2351 = vpack.c.b16 %v1967, %v1959
        %v2352 = vpack.c.b16 %v1968, %v1960
        %v2353 = vpack.c.b16 %v1969, %v1961
        %v2354 = vpack.c.b16 %v1970, %v1962
        %v2355 = vpack.c.b16 %v1971, %v1963
        %v2356 = vpack.c.b16 %v1972, %v1964
        %v2357 = vpack.c.b16 %v1973, %v1965
        %v2358 = vpack.c.b16 %v1982, %v1974
        %v2359 = vpack.c.b16 %v1983, %v1975
        %v2360 = vpack.c.b16 %v1984, %v1976
        %v2361 = vpack.c.b16 %v1985, %v1977
        %v2362 = vpack.c.b16 %v1986, %v1978
        %v2363 = vpack.c.b16 %v1987, %v1979
        %v2364 = vpack.c.b16 %v1988, %v1980
        %v2365 = vpack.c.b16 %v1989, %v1981
        %v2366 = vpack.c.b16 %v1998, %v1990
        %v2367 = vpack.c.b16 %v1999, %v1991
        %v2368 = vpack.c.b16 %v2000, %v1992
        %v2369 = vpack.c.b16 %v2001, %v1993
        %v2370 = vpack.c.b16 %v2002, %v1994
        %v2371 = vpack.c.b16 %v2003, %v1995
        %v2372 = vpack.c.b16 %v2004, %v1996
        %v2373 = vpack.c.b16 %v2005, %v1997
        %v2374 = vpack.c.b16 %v2014, %v2006
        %v2375 = vpack.c.b16 %v2015, %v2007
        %v2376 = vpack.c.b16 %v2016, %v2008
        %v2377 = vpack.c.b16 %v2017, %v2009
        %v2378 = vpack.c.b16 %v2018, %v2010
        %v2379 = vpack.c.b16 %v2019, %v2011
        %v2380 = vpack.c.b16 %v2020, %v2012
        %v2381 = vpack.c.b16 %v2021, %v2013
        %v2382 = vpack.c.b16 %v2030, %v2022
        %v2383 = vpack.c.b16 %v2031, %v2023
        %v2384 = vpack.c.b16 %v2032, %v2024
        %v2385 = vpack.c.b16 %v2033, %v2025
        %v2386 = vpack.c.b16 %v2034, %v2026
        %v2387 = vpack.c.b16 %v2035, %v2027
        %v2388 = vpack.c.b16 %v2036, %v2028
        %v2389 = vpack.c.b16 %v2037, %v2029
        %v2390 = vpack.c.b16 %v2046, %v2038
        %v2391 = vpack.c.b16 %v2047, %v2039
        %v2392 = vpack.c.b16 %v2048, %v2040
        %v2393 = vpack.c.b16 %v2049, %v2041
        %v2394 = vpack.c.b16 %v2050, %v2042
        %v2395 = vpack.c.b16 %v2051, %v2043
        %v2396 = vpack.c.b16 %v2052, %v2044
        %v2397 = vpack.c.b16 %v2053, %v2045
        %v2398 = vpack.c.b16 %v2062, %v2054
        %v2399 = vpack.c.b16 %v2063, %v2055
        %v2400 = vpack.c.b16 %v2064, %v2056
        %v2401 = vpack.c.b16 %v2065, %v2057
        %v2402 = vpack.c.b16 %v2066, %v2058
        %v2403 = vpack.c.b16 %v2067, %v2059
        %v2404 = vpack.c.b16 %v2068, %v2060
        %v2405 = vpack.c.b16 %v2069, %v2061
        %v2406 = vpack.c.b16 %v2078, %v2070
        %v2407 = vpack.c.b16 %v2079, %v2071
        %v2408 = vpack.c.b16 %v2080, %v2072
        %v2409 = vpack.c.b16 %v2081, %v2073
        %v2410 = vpack.c.b16 %v2082, %v2074
        %v2411 = vpack.c.b16 %v2083, %v2075
        %v2412 = vpack.c.b16 %v2084, %v2076
        %v2413 = vpack.c.b16 %v2085, %v2077
        %v2414 = vpack.c.b16 %v2094, %v2086
        %v2415 = vpack.c.b16 %v2095, %v2087
        %v2416 = vpack.c.b16 %v2096, %v2088
        %v2417 = vpack.c.b16 %v2097, %v2089
        %v2418 = vpack.c.b16 %v2098, %v2090
        %v2419 = vpack.c.b16 %v2099, %v2091
        %v2420 = vpack.c.b16 %v2100, %v2092
        %v2421 = vpack.c.b16 %v2101, %v2093
        %v2422 = vpack.c.b16 %v2110, %v2102
        %v2423 = vpack.c.b16 %v2111, %v2103
        %v2424 = vpack.c.b16 %v2112, %v2104
        %v2425 = vpack.c.b16 %v2113, %v2105
        %v2426 = vpack.c.b16 %v2114, %v2106
        %v2427 = vpack.c.b16 %v2115, %v2107
        %v2428 = vpack.c.b16 %v2116, %v2108
        %v2429 = vpack.c.b16 %v2117, %v2109
        %v2430 = vpack.c.b16 %v2126, %v2118
        %v2431 = vpack.c.b16 %v2127, %v2119
        %v2432 = vpack.c.b16 %v2128, %v2120
        %v2433 = vpack.c.b16 %v2129, %v2121
        %v2434 = vpack.c.b16 %v2130, %v2122
        %v2435 = vpack.c.b16 %v2131, %v2123
        %v2436 = vpack.c.b16 %v2132, %v2124
        %v2437 = vpack.c.b16 %v2133, %v2125
        %v2438 = vpack.c.b16 %v2142, %v2134
        %v2439 = vpack.c.b16 %v2143, %v2135
        %v2440 = vpack.c.b16 %v2144, %v2136
        %v2441 = vpack.c.b16 %v2145, %v2137
        %v2442 = vpack.c.b16 %v2146, %v2138
        %v2443 = vpack.c.b16 %v2147, %v2139
        %v2444 = vpack.c.b16 %v2148, %v2140
        %v2445 = vpack.c.b16 %v2149, %v2141
        %v2446 = vpack.c.b16 %v2158, %v2150
        %v2447 = vpack.c.b16 %v2159, %v2151
        %v2448 = vpack.c.b16 %v2160, %v2152
        %v2449 = vpack.c.b16 %v2161, %v2153
        %v2450 = vpack.c.b16 %v2162, %v2154
        %v2451 = vpack.c.b16 %v2163, %v2155
        %v2452 = vpack.c.b16 %v2164, %v2156
        %v2453 = vpack.c.b16 %v2165, %v2157
        %v2454 = vpack.c.b16 %v2174, %v2166
        %v2455 = vpack.c.b16 %v2175, %v2167
        %v2456 = vpack.c.b16 %v2176, %v2168
        %v2457 = vpack.c.b16 %v2177, %v2169
        %v2458 = vpack.c.b16 %v2178, %v2170
        %v2459 = vpack.c.b16 %v2179, %v2171
        %v2460 = vpack.c.b16 %v2180, %v2172
        %v2461 = vpack.c.b16 %v2181, %v2173
        %v2462 = vpack.c.b16 %v2190, %v2182
        %v2463 = vpack.c.b16 %v2191, %v2183
        %v2464 = vpack.c.b16 %v2192, %v2184
        %v2465 = vpack.c.b16 %v2193, %v2185
        %v2466 = vpack.c.b16 %v2194, %v2186
        %v2467 = vpack.c.b16 %v2195, %v2187
        %v2468 = vpack.c.b16 %v2196, %v2188
        %v2469 = vpack.c.b16 %v2197, %v2189
        %v2470 = vpack.c.b16 %v2206, %v2198
        %v2471 = vpack.c.b16 %v2207, %v2199
        %v2472 = vpack.c.b16 %v2208, %v2200
        %v2473 = vpack.c.b16 %v2209, %v2201
        %v2474 = vpack.c.b16 %v2210, %v2202
        %v2475 = vpack.c.b16 %v2211, %v2203
        %v2476 = vpack.c.b16 %v2212, %v2204
        %v2477 = vpack.c.b16 %v2213, %v2205
        %v2478 = vpack.c.b16 %v2222, %v2214
        %v2479 = vpack.c.b16 %v2223, %v2215
        %v2480 = vpack.c.b16 %v2224, %v2216
        %v2481 = vpack.c.b16 %v2225, %v2217
        %v2482 = vpack.c.b16 %v2226, %v2218
        %v2483 = vpack.c.b16 %v2227, %v2219
        %v2484 = vpack.c.b16 %v2228, %v2220
        %v2485 = vpack.c.b16 %v2229, %v2221
        %2742 = vmatpush.bf16.msra.mxu0 %v2286
        %2743 = vmatpush.bf16.msra.mxu0 %v2278
        %2744 = vmatpush.bf16.msra.mxu0 %v2270
        %2745 = vmatpush.bf16.msra.mxu0 %v2262
        %2746 = vmatpush.bf16.msra.mxu0 %v2254
        %2747 = vmatpush.bf16.msra.mxu0 %v2246
        %2748 = vmatpush.bf16.msra.mxu0 %v2238
        %2749 = vmatpush.bf16.msra.mxu0 %v2230
        %2750 = vmatmul.bf16.gmra.mxu0 %v1184
        %v2751 = vpop.f32.mrf.mxu0
        %v2752 = vadd.f32 %v1446, %v2751
        %v2753 = vpop.f32.mrf.mxu0
        %2754 = vdwg.mxu0
        %2755 = vmatpush.bf16.msra.mxu0 %v2350
        %2756 = vmatpush.bf16.msra.mxu0 %v2342
        %2757 = vmatpush.bf16.msra.mxu0 %v2334
        %2758 = vmatpush.bf16.msra.mxu0 %v2326
        %2759 = vmatpush.bf16.msra.mxu0 %v2318
        %2760 = vmatpush.bf16.msra.mxu0 %v2310
        %2761 = vmatpush.bf16.msra.mxu0 %v2302
        %2762 = vmatpush.bf16.msra.mxu0 %v2294
        %2763 = vmatmul.bf16.gmra.mxu0 %v1185
        %v2764 = vpop.f32.mrf.mxu0
        %v2765 = vadd.f32 %v2752, %v2764
        %v2766 = vpop.f32.mrf.mxu0
        %2767 = vdwg.mxu0
        %2768 = vmatpush.bf16.msra.mxu0 %v2414
        %2769 = vmatpush.bf16.msra.mxu0 %v2406
        %2770 = vmatpush.bf16.msra.mxu0 %v2398
        %2771 = vmatpush.bf16.msra.mxu0 %v2390
        %2772 = vmatpush.bf16.msra.mxu0 %v2382
        %2773 = vmatpush.bf16.msra.mxu0 %v2374
        %2774 = vmatpush.bf16.msra.mxu0 %v2366
        %2775 = vmatpush.bf16.msra.mxu0 %v2358
        %2776 = vmatmul.bf16.gmra.mxu0 %v1186
        %v2777 = vpop.f32.mrf.mxu0
        %v2778 = vadd.f32 %v2765, %v2777
        %v2779 = vpop.f32.mrf.mxu0
        %2780 = vdwg.mxu0
        %2781 = vmatpush.bf16.msra.mxu0 %v2478
        %2782 = vmatpush.bf16.msra.mxu0 %v2470
        %2783 = vmatpush.bf16.msra.mxu0 %v2462
        %2784 = vmatpush.bf16.msra.mxu0 %v2454
        %2785 = vmatpush.bf16.msra.mxu0 %v2446
        %2786 = vmatpush.bf16.msra.mxu0 %v2438
        %2787 = vmatpush.bf16.msra.mxu0 %v2430
        %2788 = vmatpush.bf16.msra.mxu0 %v2422
        %2789 = vmatmul.bf16.gmra.mxu0 %v1187
        %v2790 = vpop.f32.mrf.mxu0
        %v2791 = vadd.f32 %v2778, %v2790
        %v2792 = vpop.f32.mrf.mxu0
        %2793 = vdwg.mxu0
        %2794 = vmatpush.bf16.msra.mxu0 %v2287
        %2795 = vmatpush.bf16.msra.mxu0 %v2279
        %2796 = vmatpush.bf16.msra.mxu0 %v2271
        %2797 = vmatpush.bf16.msra.mxu0 %v2263
        %2798 = vmatpush.bf16.msra.mxu0 %v2255
        %2799 = vmatpush.bf16.msra.mxu0 %v2247
        %2800 = vmatpush.bf16.msra.mxu0 %v2239
        %2801 = vmatpush.bf16.msra.mxu0 %v2231
        %2802 = vmatmul.bf16.gmra.mxu0 %v1184
        %v2803 = vpop.f32.mrf.mxu0
        %v2804 = vadd.f32 %v1447, %v2803
        %v2805 = vpop.f32.mrf.mxu0
        %2806 = vdwg.mxu0
        %2807 = vmatpush.bf16.msra.mxu0 %v2351
        %2808 = vmatpush.bf16.msra.mxu0 %v2343
        %2809 = vmatpush.bf16.msra.mxu0 %v2335
        %2810 = vmatpush.bf16.msra.mxu0 %v2327
        %2811 = vmatpush.bf16.msra.mxu0 %v2319
        %2812 = vmatpush.bf16.msra.mxu0 %v2311
        %2813 = vmatpush.bf16.msra.mxu0 %v2303
        %2814 = vmatpush.bf16.msra.mxu0 %v2295
        %2815 = vmatmul.bf16.gmra.mxu0 %v1185
        %v2816 = vpop.f32.mrf.mxu0
        %v2817 = vadd.f32 %v2804, %v2816
        %v2818 = vpop.f32.mrf.mxu0
        %2819 = vdwg.mxu0
        %2820 = vmatpush.bf16.msra.mxu0 %v2415
        %2821 = vmatpush.bf16.msra.mxu0 %v2407
        %2822 = vmatpush.bf16.msra.mxu0 %v2399
        %2823 = vmatpush.bf16.msra.mxu0 %v2391
        %2824 = vmatpush.bf16.msra.mxu0 %v2383
        %2825 = vmatpush.bf16.msra.mxu0 %v2375
        %2826 = vmatpush.bf16.msra.mxu0 %v2367
        %2827 = vmatpush.bf16.msra.mxu0 %v2359
        %2828 = vmatmul.bf16.gmra.mxu0 %v1186
        %v2829 = vpop.f32.mrf.mxu0
        %v2830 = vadd.f32 %v2817, %v2829
        %v2831 = vpop.f32.mrf.mxu0
        %2832 = vdwg.mxu0
        %2833 = vmatpush.bf16.msra.mxu0 %v2479
        %2834 = vmatpush.bf16.msra.mxu0 %v2471
        %2835 = vmatpush.bf16.msra.mxu0 %v2463
        %2836 = vmatpush.bf16.msra.mxu0 %v2455
        %2837 = vmatpush.bf16.msra.mxu0 %v2447
        %2838 = vmatpush.bf16.msra.mxu0 %v2439
        %2839 = vmatpush.bf16.msra.mxu0 %v2431
        %2840 = vmatpush.bf16.msra.mxu0 %v2423
        %2841 = vmatmul.bf16.gmra.mxu0 %v1187
        %v2842 = vpop.f32.mrf.mxu0
        %v2843 = vadd.f32 %v2830, %v2842
        %v2844 = vpop.f32.mrf.mxu0
        %2845 = vdwg.mxu0
        %2846 = vmatpush.bf16.msra.mxu0 %v2288
        %2847 = vmatpush.bf16.msra.mxu0 %v2280
        %2848 = vmatpush.bf16.msra.mxu0 %v2272
        %2849 = vmatpush.bf16.msra.mxu0 %v2264
        %2850 = vmatpush.bf16.msra.mxu0 %v2256
        %2851 = vmatpush.bf16.msra.mxu0 %v2248
        %2852 = vmatpush.bf16.msra.mxu0 %v2240
        %2853 = vmatpush.bf16.msra.mxu0 %v2232
        %2854 = vmatmul.bf16.gmra.mxu0 %v1184
        %v2855 = vpop.f32.mrf.mxu0
        %v2856 = vadd.f32 %v1448, %v2855
        %v2857 = vpop.f32.mrf.mxu0
        %2858 = vdwg.mxu0
        %2859 = vmatpush.bf16.msra.mxu0 %v2352
        %2860 = vmatpush.bf16.msra.mxu0 %v2344
        %2861 = vmatpush.bf16.msra.mxu0 %v2336
        %2862 = vmatpush.bf16.msra.mxu0 %v2328
        %2863 = vmatpush.bf16.msra.mxu0 %v2320
        %2864 = vmatpush.bf16.msra.mxu0 %v2312
        %2865 = vmatpush.bf16.msra.mxu0 %v2304
        %2866 = vmatpush.bf16.msra.mxu0 %v2296
        %2867 = vmatmul.bf16.gmra.mxu0 %v1185
        %v2868 = vpop.f32.mrf.mxu0
        %v2869 = vadd.f32 %v2856, %v2868
        %v2870 = vpop.f32.mrf.mxu0
        %2871 = vdwg.mxu0
        %2872 = vmatpush.bf16.msra.mxu0 %v2416
        %2873 = vmatpush.bf16.msra.mxu0 %v2408
        %2874 = vmatpush.bf16.msra.mxu0 %v2400
        %2875 = vmatpush.bf16.msra.mxu0 %v2392
        %2876 = vmatpush.bf16.msra.mxu0 %v2384
        %2877 = vmatpush.bf16.msra.mxu0 %v2376
        %2878 = vmatpush.bf16.msra.mxu0 %v2368
        %2879 = vmatpush.bf16.msra.mxu0 %v2360
        %2880 = vmatmul.bf16.gmra.mxu0 %v1186
        %v2881 = vpop.f32.mrf.mxu0
        %v2882 = vadd.f32 %v2869, %v2881
        %v2883 = vpop.f32.mrf.mxu0
        %2884 = vdwg.mxu0
        %2885 = vmatpush.bf16.msra.mxu0 %v2480
        %2886 = vmatpush.bf16.msra.mxu0 %v2472
        %2887 = vmatpush.bf16.msra.mxu0 %v2464
        %2888 = vmatpush.bf16.msra.mxu0 %v2456
        %2889 = vmatpush.bf16.msra.mxu0 %v2448
        %2890 = vmatpush.bf16.msra.mxu0 %v2440
        %2891 = vmatpush.bf16.msra.mxu0 %v2432
        %2892 = vmatpush.bf16.msra.mxu0 %v2424
        %2893 = vmatmul.bf16.gmra.mxu0 %v1187
        %v2894 = vpop.f32.mrf.mxu0
        %v2895 = vadd.f32 %v2882, %v2894
        %v2896 = vpop.f32.mrf.mxu0
        %2897 = vdwg.mxu0
        %2898 = vmatpush.bf16.msra.mxu0 %v2289
        %2899 = vmatpush.bf16.msra.mxu0 %v2281
        %2900 = vmatpush.bf16.msra.mxu0 %v2273
        %2901 = vmatpush.bf16.msra.mxu0 %v2265
        %2902 = vmatpush.bf16.msra.mxu0 %v2257
        %2903 = vmatpush.bf16.msra.mxu0 %v2249
        %2904 = vmatpush.bf16.msra.mxu0 %v2241
        %2905 = vmatpush.bf16.msra.mxu0 %v2233
        %2906 = vmatmul.bf16.gmra.mxu0 %v1184
        %v2907 = vpop.f32.mrf.mxu0
        %v2908 = vadd.f32 %v1449, %v2907
        %v2909 = vpop.f32.mrf.mxu0
        %2910 = vdwg.mxu0
        %2911 = vmatpush.bf16.msra.mxu0 %v2353
        %2912 = vmatpush.bf16.msra.mxu0 %v2345
        %2913 = vmatpush.bf16.msra.mxu0 %v2337
        %2914 = vmatpush.bf16.msra.mxu0 %v2329
        %2915 = vmatpush.bf16.msra.mxu0 %v2321
        %2916 = vmatpush.bf16.msra.mxu0 %v2313
        %2917 = vmatpush.bf16.msra.mxu0 %v2305
        %2918 = vmatpush.bf16.msra.mxu0 %v2297
        %2919 = vmatmul.bf16.gmra.mxu0 %v1185
        %v2920 = vpop.f32.mrf.mxu0
        %v2921 = vadd.f32 %v2908, %v2920
        %v2922 = vpop.f32.mrf.mxu0
        %2923 = vdwg.mxu0
        %2924 = vmatpush.bf16.msra.mxu0 %v2417
        %2925 = vmatpush.bf16.msra.mxu0 %v2409
        %2926 = vmatpush.bf16.msra.mxu0 %v2401
        %2927 = vmatpush.bf16.msra.mxu0 %v2393
        %2928 = vmatpush.bf16.msra.mxu0 %v2385
        %2929 = vmatpush.bf16.msra.mxu0 %v2377
        %2930 = vmatpush.bf16.msra.mxu0 %v2369
        %2931 = vmatpush.bf16.msra.mxu0 %v2361
        %2932 = vmatmul.bf16.gmra.mxu0 %v1186
        %v2933 = vpop.f32.mrf.mxu0
        %v2934 = vadd.f32 %v2921, %v2933
        %v2935 = vpop.f32.mrf.mxu0
        %2936 = vdwg.mxu0
        %2937 = vmatpush.bf16.msra.mxu0 %v2481
        %2938 = vmatpush.bf16.msra.mxu0 %v2473
        %2939 = vmatpush.bf16.msra.mxu0 %v2465
        %2940 = vmatpush.bf16.msra.mxu0 %v2457
        %2941 = vmatpush.bf16.msra.mxu0 %v2449
        %2942 = vmatpush.bf16.msra.mxu0 %v2441
        %2943 = vmatpush.bf16.msra.mxu0 %v2433
        %2944 = vmatpush.bf16.msra.mxu0 %v2425
        %2945 = vmatmul.bf16.gmra.mxu0 %v1187
        %v2946 = vpop.f32.mrf.mxu0
        %v2947 = vadd.f32 %v2934, %v2946
        %v2948 = vpop.f32.mrf.mxu0
        %2949 = vdwg.mxu0
        %2950 = vmatpush.bf16.msra.mxu0 %v2290
        %2951 = vmatpush.bf16.msra.mxu0 %v2282
        %2952 = vmatpush.bf16.msra.mxu0 %v2274
        %2953 = vmatpush.bf16.msra.mxu0 %v2266
        %2954 = vmatpush.bf16.msra.mxu0 %v2258
        %2955 = vmatpush.bf16.msra.mxu0 %v2250
        %2956 = vmatpush.bf16.msra.mxu0 %v2242
        %2957 = vmatpush.bf16.msra.mxu0 %v2234
        %2958 = vmatmul.bf16.gmra.mxu0 %v1184
        %v2959 = vpop.f32.mrf.mxu0
        %v2960 = vadd.f32 %v1450, %v2959
        %v2961 = vpop.f32.mrf.mxu0
        %2962 = vdwg.mxu0
        %2963 = vmatpush.bf16.msra.mxu0 %v2354
        %2964 = vmatpush.bf16.msra.mxu0 %v2346
        %2965 = vmatpush.bf16.msra.mxu0 %v2338
        %2966 = vmatpush.bf16.msra.mxu0 %v2330
        %2967 = vmatpush.bf16.msra.mxu0 %v2322
        %2968 = vmatpush.bf16.msra.mxu0 %v2314
        %2969 = vmatpush.bf16.msra.mxu0 %v2306
        %2970 = vmatpush.bf16.msra.mxu0 %v2298
        %2971 = vmatmul.bf16.gmra.mxu0 %v1185
        %v2972 = vpop.f32.mrf.mxu0
        %v2973 = vadd.f32 %v2960, %v2972
        %v2974 = vpop.f32.mrf.mxu0
        %2975 = vdwg.mxu0
        %2976 = vmatpush.bf16.msra.mxu0 %v2418
        %2977 = vmatpush.bf16.msra.mxu0 %v2410
        %2978 = vmatpush.bf16.msra.mxu0 %v2402
        %2979 = vmatpush.bf16.msra.mxu0 %v2394
        %2980 = vmatpush.bf16.msra.mxu0 %v2386
        %2981 = vmatpush.bf16.msra.mxu0 %v2378
        %2982 = vmatpush.bf16.msra.mxu0 %v2370
        %2983 = vmatpush.bf16.msra.mxu0 %v2362
        %2984 = vmatmul.bf16.gmra.mxu0 %v1186
        %v2985 = vpop.f32.mrf.mxu0
        %v2986 = vadd.f32 %v2973, %v2985
        %v2987 = vpop.f32.mrf.mxu0
        %2988 = vdwg.mxu0
        %2989 = vmatpush.bf16.msra.mxu0 %v2482
        %2990 = vmatpush.bf16.msra.mxu0 %v2474
        %2991 = vmatpush.bf16.msra.mxu0 %v2466
        %2992 = vmatpush.bf16.msra.mxu0 %v2458
        %2993 = vmatpush.bf16.msra.mxu0 %v2450
        %2994 = vmatpush.bf16.msra.mxu0 %v2442
        %2995 = vmatpush.bf16.msra.mxu0 %v2434
        %2996 = vmatpush.bf16.msra.mxu0 %v2426
        %2997 = vmatmul.bf16.gmra.mxu0 %v1187
        %v2998 = vpop.f32.mrf.mxu0
        %v2999 = vadd.f32 %v2986, %v2998
        %v3000 = vpop.f32.mrf.mxu0
        %3001 = vdwg.mxu0
        %3002 = vmatpush.bf16.msra.mxu0 %v2291
        %3003 = vmatpush.bf16.msra.mxu0 %v2283
        %3004 = vmatpush.bf16.msra.mxu0 %v2275
        %3005 = vmatpush.bf16.msra.mxu0 %v2267
        %3006 = vmatpush.bf16.msra.mxu0 %v2259
        %3007 = vmatpush.bf16.msra.mxu0 %v2251
        %3008 = vmatpush.bf16.msra.mxu0 %v2243
        %3009 = vmatpush.bf16.msra.mxu0 %v2235
        %3010 = vmatmul.bf16.gmra.mxu0 %v1184
        %v3011 = vpop.f32.mrf.mxu0
        %v3012 = vadd.f32 %v1451, %v3011
        %v3013 = vpop.f32.mrf.mxu0
        %3014 = vdwg.mxu0
        %3015 = vmatpush.bf16.msra.mxu0 %v2355
        %3016 = vmatpush.bf16.msra.mxu0 %v2347
        %3017 = vmatpush.bf16.msra.mxu0 %v2339
        %3018 = vmatpush.bf16.msra.mxu0 %v2331
        %3019 = vmatpush.bf16.msra.mxu0 %v2323
        %3020 = vmatpush.bf16.msra.mxu0 %v2315
        %3021 = vmatpush.bf16.msra.mxu0 %v2307
        %3022 = vmatpush.bf16.msra.mxu0 %v2299
        %3023 = vmatmul.bf16.gmra.mxu0 %v1185
        %v3024 = vpop.f32.mrf.mxu0
        %v3025 = vadd.f32 %v3012, %v3024
        %v3026 = vpop.f32.mrf.mxu0
        %3027 = vdwg.mxu0
        %3028 = vmatpush.bf16.msra.mxu0 %v2419
        %3029 = vmatpush.bf16.msra.mxu0 %v2411
        %3030 = vmatpush.bf16.msra.mxu0 %v2403
        %3031 = vmatpush.bf16.msra.mxu0 %v2395
        %3032 = vmatpush.bf16.msra.mxu0 %v2387
        %3033 = vmatpush.bf16.msra.mxu0 %v2379
        %3034 = vmatpush.bf16.msra.mxu0 %v2371
        %3035 = vmatpush.bf16.msra.mxu0 %v2363
        %3036 = vmatmul.bf16.gmra.mxu0 %v1186
        %v3037 = vpop.f32.mrf.mxu0
        %v3038 = vadd.f32 %v3025, %v3037
        %v3039 = vpop.f32.mrf.mxu0
        %3040 = vdwg.mxu0
        %3041 = vmatpush.bf16.msra.mxu0 %v2483
        %3042 = vmatpush.bf16.msra.mxu0 %v2475
        %3043 = vmatpush.bf16.msra.mxu0 %v2467
        %3044 = vmatpush.bf16.msra.mxu0 %v2459
        %3045 = vmatpush.bf16.msra.mxu0 %v2451
        %3046 = vmatpush.bf16.msra.mxu0 %v2443
        %3047 = vmatpush.bf16.msra.mxu0 %v2435
        %3048 = vmatpush.bf16.msra.mxu0 %v2427
        %3049 = vmatmul.bf16.gmra.mxu0 %v1187
        %v3050 = vpop.f32.mrf.mxu0
        %v3051 = vadd.f32 %v3038, %v3050
        %v3052 = vpop.f32.mrf.mxu0
        %3053 = vdwg.mxu0
        %3054 = vmatpush.bf16.msra.mxu0 %v2292
        %3055 = vmatpush.bf16.msra.mxu0 %v2284
        %3056 = vmatpush.bf16.msra.mxu0 %v2276
        %3057 = vmatpush.bf16.msra.mxu0 %v2268
        %3058 = vmatpush.bf16.msra.mxu0 %v2260
        %3059 = vmatpush.bf16.msra.mxu0 %v2252
        %3060 = vmatpush.bf16.msra.mxu0 %v2244
        %3061 = vmatpush.bf16.msra.mxu0 %v2236
        %3062 = vmatmul.bf16.gmra.mxu0 %v1184
        %v3063 = vpop.f32.mrf.mxu0
        %v3064 = vadd.f32 %v1452, %v3063
        %v3065 = vpop.f32.mrf.mxu0
        %3066 = vdwg.mxu0
        %3067 = vmatpush.bf16.msra.mxu0 %v2356
        %3068 = vmatpush.bf16.msra.mxu0 %v2348
        %3069 = vmatpush.bf16.msra.mxu0 %v2340
        %3070 = vmatpush.bf16.msra.mxu0 %v2332
        %3071 = vmatpush.bf16.msra.mxu0 %v2324
        %3072 = vmatpush.bf16.msra.mxu0 %v2316
        %3073 = vmatpush.bf16.msra.mxu0 %v2308
        %3074 = vmatpush.bf16.msra.mxu0 %v2300
        %3075 = vmatmul.bf16.gmra.mxu0 %v1185
        %v3076 = vpop.f32.mrf.mxu0
        %v3077 = vadd.f32 %v3064, %v3076
        %v3078 = vpop.f32.mrf.mxu0
        %3079 = vdwg.mxu0
        %3080 = vmatpush.bf16.msra.mxu0 %v2420
        %3081 = vmatpush.bf16.msra.mxu0 %v2412
        %3082 = vmatpush.bf16.msra.mxu0 %v2404
        %3083 = vmatpush.bf16.msra.mxu0 %v2396
        %3084 = vmatpush.bf16.msra.mxu0 %v2388
        %3085 = vmatpush.bf16.msra.mxu0 %v2380
        %3086 = vmatpush.bf16.msra.mxu0 %v2372
        %3087 = vmatpush.bf16.msra.mxu0 %v2364
        %3088 = vmatmul.bf16.gmra.mxu0 %v1186
        %v3089 = vpop.f32.mrf.mxu0
        %v3090 = vadd.f32 %v3077, %v3089
        %v3091 = vpop.f32.mrf.mxu0
        %3092 = vdwg.mxu0
        %3093 = vmatpush.bf16.msra.mxu0 %v2484
        %3094 = vmatpush.bf16.msra.mxu0 %v2476
        %3095 = vmatpush.bf16.msra.mxu0 %v2468
        %3096 = vmatpush.bf16.msra.mxu0 %v2460
        %3097 = vmatpush.bf16.msra.mxu0 %v2452
        %3098 = vmatpush.bf16.msra.mxu0 %v2444
        %3099 = vmatpush.bf16.msra.mxu0 %v2436
        %3100 = vmatpush.bf16.msra.mxu0 %v2428
        %3101 = vmatmul.bf16.gmra.mxu0 %v1187
        %v3102 = vpop.f32.mrf.mxu0
        %v3103 = vadd.f32 %v3090, %v3102
        %v3104 = vpop.f32.mrf.mxu0
        %3105 = vdwg.mxu0
        %3106 = vmatpush.bf16.msra.mxu0 %v2293
        %3107 = vmatpush.bf16.msra.mxu0 %v2285
        %3108 = vmatpush.bf16.msra.mxu0 %v2277
        %3109 = vmatpush.bf16.msra.mxu0 %v2269
        %3110 = vmatpush.bf16.msra.mxu0 %v2261
        %3111 = vmatpush.bf16.msra.mxu0 %v2253
        %3112 = vmatpush.bf16.msra.mxu0 %v2245
        %3113 = vmatpush.bf16.msra.mxu0 %v2237
        %3114 = vmatmul.bf16.gmra.mxu0 %v1184
        %v3115 = vpop.f32.mrf.mxu0
        %v3116 = vadd.f32 %v1453, %v3115
        %v3117 = vpop.f32.mrf.mxu0
        %3118 = vdwg.mxu0
        %3119 = vmatpush.bf16.msra.mxu0 %v2357
        %3120 = vmatpush.bf16.msra.mxu0 %v2349
        %3121 = vmatpush.bf16.msra.mxu0 %v2341
        %3122 = vmatpush.bf16.msra.mxu0 %v2333
        %3123 = vmatpush.bf16.msra.mxu0 %v2325
        %3124 = vmatpush.bf16.msra.mxu0 %v2317
        %3125 = vmatpush.bf16.msra.mxu0 %v2309
        %3126 = vmatpush.bf16.msra.mxu0 %v2301
        %3127 = vmatmul.bf16.gmra.mxu0 %v1185
        %v3128 = vpop.f32.mrf.mxu0
        %v3129 = vadd.f32 %v3116, %v3128
        %v3130 = vpop.f32.mrf.mxu0
        %3131 = vdwg.mxu0
        %3132 = vmatpush.bf16.msra.mxu0 %v2421
        %3133 = vmatpush.bf16.msra.mxu0 %v2413
        %3134 = vmatpush.bf16.msra.mxu0 %v2405
        %3135 = vmatpush.bf16.msra.mxu0 %v2397
        %3136 = vmatpush.bf16.msra.mxu0 %v2389
        %3137 = vmatpush.bf16.msra.mxu0 %v2381
        %3138 = vmatpush.bf16.msra.mxu0 %v2373
        %3139 = vmatpush.bf16.msra.mxu0 %v2365
        %3140 = vmatmul.bf16.gmra.mxu0 %v1186
        %v3141 = vpop.f32.mrf.mxu0
        %v3142 = vadd.f32 %v3129, %v3141
        %v3143 = vpop.f32.mrf.mxu0
        %3144 = vdwg.mxu0
        %3145 = vmatpush.bf16.msra.mxu0 %v2485
        %3146 = vmatpush.bf16.msra.mxu0 %v2477
        %3147 = vmatpush.bf16.msra.mxu0 %v2469
        %3148 = vmatpush.bf16.msra.mxu0 %v2461
        %3149 = vmatpush.bf16.msra.mxu0 %v2453
        %3150 = vmatpush.bf16.msra.mxu0 %v2445
        %3151 = vmatpush.bf16.msra.mxu0 %v2437
        %3152 = vmatpush.bf16.msra.mxu0 %v2429
        %3153 = vmatmul.bf16.gmra.mxu0 %v1187
        %v3154 = vpop.f32.mrf.mxu0
        %v3155 = vadd.f32 %v3142, %v3154
        %v3156 = vpop.f32.mrf.mxu0
        %3157 = vdwg.mxu0
        %v3158 = vmax.f32 %v2791, 0.0
        %v3159 = vmax.f32 %v2843, 0.0
        %v3160 = vmax.f32 %v2895, 0.0
        %v3161 = vmax.f32 %v2947, 0.0
        %v3162 = vmax.f32 %v2999, 0.0
        %v3163 = vmax.f32 %v3051, 0.0
        %v3164 = vmax.f32 %v3103, 0.0
        %v3165 = vmax.f32 %v3155, 0.0
        %v3166 = vld [vmem:[%s472] sm:$0xff]
        %v3167 = vld [vmem:[%s472 + $0x8] sm:$0xff]
        %v3168 = vld [vmem:[%s472 + $0x10] sm:$0xff]
        %v3169 = vld [vmem:[%s472 + $0x18] sm:$0xff]
        %v3170 = vld [vmem:[%s472 + $0x20] sm:$0xff]
        %v3171 = vld [vmem:[%s472 + $0x28] sm:$0xff]
        %v3172 = vld [vmem:[%s472 + $0x30] sm:$0xff]
        %v3173 = vld [vmem:[%s472 + $0x38] sm:$0xff]
        %v3174 = vld [vmem:[%s472 + $0x40] sm:$0xff]
        %v3175 = vld [vmem:[%s472 + $0x48] sm:$0xff]
        %v3176 = vld [vmem:[%s472 + $0x50] sm:$0xff]
        %v3177 = vld [vmem:[%s472 + $0x58] sm:$0xff]
        %v3178 = vld [vmem:[%s472 + $0x60] sm:$0xff]
        %v3179 = vld [vmem:[%s472 + $0x68] sm:$0xff]
        %v3180 = vld [vmem:[%s472 + $0x70] sm:$0xff]
        %v3181 = vld [vmem:[%s472 + $0x78] sm:$0xff]
        %v3182 = vld [vmem:[%s472 + $0x80] sm:$0xff]
        %v3183 = vld [vmem:[%s472 + $0x88] sm:$0xff]
        %v3184 = vld [vmem:[%s472 + $0x90] sm:$0xff]
        %v3185 = vld [vmem:[%s472 + $0x98] sm:$0xff]
        %v3186 = vld [vmem:[%s472 + $0xa0] sm:$0xff]
        %v3187 = vld [vmem:[%s472 + $0xa8] sm:$0xff]
        %v3188 = vld [vmem:[%s472 + $0xb0] sm:$0xff]
        %v3189 = vld [vmem:[%s472 + $0xb8] sm:$0xff]
        %v3190 = vld [vmem:[%s472 + $0xc0] sm:$0xff]
        %v3191 = vld [vmem:[%s472 + $0xc8] sm:$0xff]
        %v3192 = vld [vmem:[%s472 + $0xd0] sm:$0xff]
        %v3193 = vld [vmem:[%s472 + $0xd8] sm:$0xff]
        %v3194 = vld [vmem:[%s472 + $0xe0] sm:$0xff]
        %v3195 = vld [vmem:[%s472 + $0xe8] sm:$0xff]
        %v3196 = vld [vmem:[%s472 + $0xf0] sm:$0xff]
        %v3197 = vld [vmem:[%s472 + $0xf8] sm:$0xff]
        %v3198 = vld [vmem:[%s472 + $0x100] sm:$0xff]
        %v3199 = vld [vmem:[%s472 + $0x108] sm:$0xff]
        %v3200 = vld [vmem:[%s472 + $0x110] sm:$0xff]
        %v3201 = vld [vmem:[%s472 + $0x118] sm:$0xff]
        %v3202 = vld [vmem:[%s472 + $0x120] sm:$0xff]
        %v3203 = vld [vmem:[%s472 + $0x128] sm:$0xff]
        %v3204 = vld [vmem:[%s472 + $0x130] sm:$0xff]
        %v3205 = vld [vmem:[%s472 + $0x138] sm:$0xff]
        %v3206 = vld [vmem:[%s472 + $0x140] sm:$0xff]
        %v3207 = vld [vmem:[%s472 + $0x148] sm:$0xff]
        %v3208 = vld [vmem:[%s472 + $0x150] sm:$0xff]
        %v3209 = vld [vmem:[%s472 + $0x158] sm:$0xff]
        %v3210 = vld [vmem:[%s472 + $0x160] sm:$0xff]
        %v3211 = vld [vmem:[%s472 + $0x168] sm:$0xff]
        %v3212 = vld [vmem:[%s472 + $0x170] sm:$0xff]
        %v3213 = vld [vmem:[%s472 + $0x178] sm:$0xff]
        %v3214 = vld [vmem:[%s472 + $0x180] sm:$0xff]
        %v3215 = vld [vmem:[%s472 + $0x188] sm:$0xff]
        %v3216 = vld [vmem:[%s472 + $0x190] sm:$0xff]
        %v3217 = vld [vmem:[%s472 + $0x198] sm:$0xff]
        %v3218 = vld [vmem:[%s472 + $0x1a0] sm:$0xff]
        %v3219 = vld [vmem:[%s472 + $0x1a8] sm:$0xff]
        %v3220 = vld [vmem:[%s472 + $0x1b0] sm:$0xff]
        %v3221 = vld [vmem:[%s472 + $0x1b8] sm:$0xff]
        %v3222 = vld [vmem:[%s472 + $0x1c0] sm:$0xff]
        %v3223 = vld [vmem:[%s472 + $0x1c8] sm:$0xff]
        %v3224 = vld [vmem:[%s472 + $0x1d0] sm:$0xff]
        %v3225 = vld [vmem:[%s472 + $0x1d8] sm:$0xff]
        %v3226 = vld [vmem:[%s472 + $0x1e0] sm:$0xff]
        %v3227 = vld [vmem:[%s472 + $0x1e8] sm:$0xff]
        %v3228 = vld [vmem:[%s472 + $0x1f0] sm:$0xff]
        %v3229 = vld [vmem:[%s472 + $0x1f8] sm:$0xff]
        %v3230 = vld [vmem:[%s472 + $0x200] sm:$0xff]
        %v3231 = vld [vmem:[%s472 + $0x208] sm:$0xff]
        %v3232 = vld [vmem:[%s472 + $0x210] sm:$0xff]
        %v3233 = vld [vmem:[%s472 + $0x218] sm:$0xff]
        %v3234 = vld [vmem:[%s472 + $0x220] sm:$0xff]
        %v3235 = vld [vmem:[%s472 + $0x228] sm:$0xff]
        %v3236 = vld [vmem:[%s472 + $0x230] sm:$0xff]
        %v3237 = vld [vmem:[%s472 + $0x238] sm:$0xff]
        %v3238 = vld [vmem:[%s472 + $0x240] sm:$0xff]
        %v3239 = vld [vmem:[%s472 + $0x248] sm:$0xff]
        %v3240 = vld [vmem:[%s472 + $0x250] sm:$0xff]
        %v3241 = vld [vmem:[%s472 + $0x258] sm:$0xff]
        %v3242 = vld [vmem:[%s472 + $0x260] sm:$0xff]
        %v3243 = vld [vmem:[%s472 + $0x268] sm:$0xff]
        %v3244 = vld [vmem:[%s472 + $0x270] sm:$0xff]
        %v3245 = vld [vmem:[%s472 + $0x278] sm:$0xff]
        %v3246 = vld [vmem:[%s472 + $0x280] sm:$0xff]
        %v3247 = vld [vmem:[%s472 + $0x288] sm:$0xff]
        %v3248 = vld [vmem:[%s472 + $0x290] sm:$0xff]
        %v3249 = vld [vmem:[%s472 + $0x298] sm:$0xff]
        %v3250 = vld [vmem:[%s472 + $0x2a0] sm:$0xff]
        %v3251 = vld [vmem:[%s472 + $0x2a8] sm:$0xff]
        %v3252 = vld [vmem:[%s472 + $0x2b0] sm:$0xff]
        %v3253 = vld [vmem:[%s472 + $0x2b8] sm:$0xff]
        %v3254 = vld [vmem:[%s472 + $0x2c0] sm:$0xff]
        %v3255 = vld [vmem:[%s472 + $0x2c8] sm:$0xff]
        %v3256 = vld [vmem:[%s472 + $0x2d0] sm:$0xff]
        %v3257 = vld [vmem:[%s472 + $0x2d8] sm:$0xff]
        %v3258 = vld [vmem:[%s472 + $0x2e0] sm:$0xff]
        %v3259 = vld [vmem:[%s472 + $0x2e8] sm:$0xff]
        %v3260 = vld [vmem:[%s472 + $0x2f0] sm:$0xff]
        %v3261 = vld [vmem:[%s472 + $0x2f8] sm:$0xff]
        %v3262 = vld [vmem:[%s472 + $0x300] sm:$0xff]
        %v3263 = vld [vmem:[%s472 + $0x308] sm:$0xff]
        %v3264 = vld [vmem:[%s472 + $0x310] sm:$0xff]
        %v3265 = vld [vmem:[%s472 + $0x318] sm:$0xff]
        %v3266 = vld [vmem:[%s472 + $0x320] sm:$0xff]
        %v3267 = vld [vmem:[%s472 + $0x328] sm:$0xff]
        %v3268 = vld [vmem:[%s472 + $0x330] sm:$0xff]
        %v3269 = vld [vmem:[%s472 + $0x338] sm:$0xff]
        %v3270 = vld [vmem:[%s472 + $0x340] sm:$0xff]
        %v3271 = vld [vmem:[%s472 + $0x348] sm:$0xff]
        %v3272 = vld [vmem:[%s472 + $0x350] sm:$0xff]
        %v3273 = vld [vmem:[%s472 + $0x358] sm:$0xff]
        %v3274 = vld [vmem:[%s472 + $0x360] sm:$0xff]
        %v3275 = vld [vmem:[%s472 + $0x368] sm:$0xff]
        %v3276 = vld [vmem:[%s472 + $0x370] sm:$0xff]
        %v3277 = vld [vmem:[%s472 + $0x378] sm:$0xff]
        %v3278 = vld [vmem:[%s472 + $0x380] sm:$0xff]
        %v3279 = vld [vmem:[%s472 + $0x388] sm:$0xff]
        %v3280 = vld [vmem:[%s472 + $0x390] sm:$0xff]
        %v3281 = vld [vmem:[%s472 + $0x398] sm:$0xff]
        %v3282 = vld [vmem:[%s472 + $0x3a0] sm:$0xff]
        %v3283 = vld [vmem:[%s472 + $0x3a8] sm:$0xff]
        %v3284 = vld [vmem:[%s472 + $0x3b0] sm:$0xff]
        %v3285 = vld [vmem:[%s472 + $0x3b8] sm:$0xff]
        %v3286 = vld [vmem:[%s472 + $0x3c0] sm:$0xff]
        %v3287 = vld [vmem:[%s472 + $0x3c8] sm:$0xff]
        %v3288 = vld [vmem:[%s472 + $0x3d0] sm:$0xff]
        %v3289 = vld [vmem:[%s472 + $0x3d8] sm:$0xff]
        %v3290 = vld [vmem:[%s472 + $0x3e0] sm:$0xff]
        %v3291 = vld [vmem:[%s472 + $0x3e8] sm:$0xff]
        %v3292 = vld [vmem:[%s472 + $0x3f0] sm:$0xff]
        %v3293 = vld [vmem:[%s472 + $0x3f8] sm:$0xff]
        %v3294 = vld [vmem:[%s472 + $0x400] sm:$0xff]
        %v3295 = vld [vmem:[%s472 + $0x408] sm:$0xff]
        %v3296 = vld [vmem:[%s472 + $0x410] sm:$0xff]
        %v3297 = vld [vmem:[%s472 + $0x418] sm:$0xff]
        %v3298 = vld [vmem:[%s472 + $0x420] sm:$0xff]
        %v3299 = vld [vmem:[%s472 + $0x428] sm:$0xff]
        %v3300 = vld [vmem:[%s472 + $0x430] sm:$0xff]
        %v3301 = vld [vmem:[%s472 + $0x438] sm:$0xff]
        %v3302 = vld [vmem:[%s472 + $0x440] sm:$0xff]
        %v3303 = vld [vmem:[%s472 + $0x448] sm:$0xff]
        %v3304 = vld [vmem:[%s472 + $0x450] sm:$0xff]
        %v3305 = vld [vmem:[%s472 + $0x458] sm:$0xff]
        %v3306 = vld [vmem:[%s472 + $0x460] sm:$0xff]
        %v3307 = vld [vmem:[%s472 + $0x468] sm:$0xff]
        %v3308 = vld [vmem:[%s472 + $0x470] sm:$0xff]
        %v3309 = vld [vmem:[%s472 + $0x478] sm:$0xff]
        %v3310 = vld [vmem:[%s472 + $0x480] sm:$0xff]
        %v3311 = vld [vmem:[%s472 + $0x488] sm:$0xff]
        %v3312 = vld [vmem:[%s472 + $0x490] sm:$0xff]
        %v3313 = vld [vmem:[%s472 + $0x498] sm:$0xff]
        %v3314 = vld [vmem:[%s472 + $0x4a0] sm:$0xff]
        %v3315 = vld [vmem:[%s472 + $0x4a8] sm:$0xff]
        %v3316 = vld [vmem:[%s472 + $0x4b0] sm:$0xff]
        %v3317 = vld [vmem:[%s472 + $0x4b8] sm:$0xff]
        %v3318 = vld [vmem:[%s472 + $0x4c0] sm:$0xff]
        %v3319 = vld [vmem:[%s472 + $0x4c8] sm:$0xff]
        %v3320 = vld [vmem:[%s472 + $0x4d0] sm:$0xff]
        %v3321 = vld [vmem:[%s472 + $0x4d8] sm:$0xff]
        %v3322 = vld [vmem:[%s472 + $0x4e0] sm:$0xff]
        %v3323 = vld [vmem:[%s472 + $0x4e8] sm:$0xff]
        %v3324 = vld [vmem:[%s472 + $0x4f0] sm:$0xff]
        %v3325 = vld [vmem:[%s472 + $0x4f8] sm:$0xff]
        %v3326 = vld [vmem:[%s472 + $0x500] sm:$0xff]
        %v3327 = vld [vmem:[%s472 + $0x508] sm:$0xff]
        %v3328 = vld [vmem:[%s472 + $0x510] sm:$0xff]
        %v3329 = vld [vmem:[%s472 + $0x518] sm:$0xff]
        %v3330 = vld [vmem:[%s472 + $0x520] sm:$0xff]
        %v3331 = vld [vmem:[%s472 + $0x528] sm:$0xff]
        %v3332 = vld [vmem:[%s472 + $0x530] sm:$0xff]
        %v3333 = vld [vmem:[%s472 + $0x538] sm:$0xff]
        %v3334 = vld [vmem:[%s472 + $0x540] sm:$0xff]
        %v3335 = vld [vmem:[%s472 + $0x548] sm:$0xff]
        %v3336 = vld [vmem:[%s472 + $0x550] sm:$0xff]
        %v3337 = vld [vmem:[%s472 + $0x558] sm:$0xff]
        %v3338 = vld [vmem:[%s472 + $0x560] sm:$0xff]
        %v3339 = vld [vmem:[%s472 + $0x568] sm:$0xff]
        %v3340 = vld [vmem:[%s472 + $0x570] sm:$0xff]
        %v3341 = vld [vmem:[%s472 + $0x578] sm:$0xff]
        %v3342 = vld [vmem:[%s472 + $0x580] sm:$0xff]
        %v3343 = vld [vmem:[%s472 + $0x588] sm:$0xff]
        %v3344 = vld [vmem:[%s472 + $0x590] sm:$0xff]
        %v3345 = vld [vmem:[%s472 + $0x598] sm:$0xff]
        %v3346 = vld [vmem:[%s472 + $0x5a0] sm:$0xff]
        %v3347 = vld [vmem:[%s472 + $0x5a8] sm:$0xff]
        %v3348 = vld [vmem:[%s472 + $0x5b0] sm:$0xff]
        %v3349 = vld [vmem:[%s472 + $0x5b8] sm:$0xff]
        %v3350 = vld [vmem:[%s472 + $0x5c0] sm:$0xff]
        %v3351 = vld [vmem:[%s472 + $0x5c8] sm:$0xff]
        %v3352 = vld [vmem:[%s472 + $0x5d0] sm:$0xff]
        %v3353 = vld [vmem:[%s472 + $0x5d8] sm:$0xff]
        %v3354 = vld [vmem:[%s472 + $0x5e0] sm:$0xff]
        %v3355 = vld [vmem:[%s472 + $0x5e8] sm:$0xff]
        %v3356 = vld [vmem:[%s472 + $0x5f0] sm:$0xff]
        %v3357 = vld [vmem:[%s472 + $0x5f8] sm:$0xff]
        %v3358 = vld [vmem:[%s472 + $0x600] sm:$0xff]
        %v3359 = vld [vmem:[%s472 + $0x608] sm:$0xff]
        %v3360 = vld [vmem:[%s472 + $0x610] sm:$0xff]
        %v3361 = vld [vmem:[%s472 + $0x618] sm:$0xff]
        %v3362 = vld [vmem:[%s472 + $0x620] sm:$0xff]
        %v3363 = vld [vmem:[%s472 + $0x628] sm:$0xff]
        %v3364 = vld [vmem:[%s472 + $0x630] sm:$0xff]
        %v3365 = vld [vmem:[%s472 + $0x638] sm:$0xff]
        %v3366 = vld [vmem:[%s472 + $0x640] sm:$0xff]
        %v3367 = vld [vmem:[%s472 + $0x648] sm:$0xff]
        %v3368 = vld [vmem:[%s472 + $0x650] sm:$0xff]
        %v3369 = vld [vmem:[%s472 + $0x658] sm:$0xff]
        %v3370 = vld [vmem:[%s472 + $0x660] sm:$0xff]
        %v3371 = vld [vmem:[%s472 + $0x668] sm:$0xff]
        %v3372 = vld [vmem:[%s472 + $0x670] sm:$0xff]
        %v3373 = vld [vmem:[%s472 + $0x678] sm:$0xff]
        %v3374 = vld [vmem:[%s472 + $0x680] sm:$0xff]
        %v3375 = vld [vmem:[%s472 + $0x688] sm:$0xff]
        %v3376 = vld [vmem:[%s472 + $0x690] sm:$0xff]
        %v3377 = vld [vmem:[%s472 + $0x698] sm:$0xff]
        %v3378 = vld [vmem:[%s472 + $0x6a0] sm:$0xff]
        %v3379 = vld [vmem:[%s472 + $0x6a8] sm:$0xff]
        %v3380 = vld [vmem:[%s472 + $0x6b0] sm:$0xff]
        %v3381 = vld [vmem:[%s472 + $0x6b8] sm:$0xff]
        %v3382 = vld [vmem:[%s472 + $0x6c0] sm:$0xff]
        %v3383 = vld [vmem:[%s472 + $0x6c8] sm:$0xff]
        %v3384 = vld [vmem:[%s472 + $0x6d0] sm:$0xff]
        %v3385 = vld [vmem:[%s472 + $0x6d8] sm:$0xff]
        %v3386 = vld [vmem:[%s472 + $0x6e0] sm:$0xff]
        %v3387 = vld [vmem:[%s472 + $0x6e8] sm:$0xff]
        %v3388 = vld [vmem:[%s472 + $0x6f0] sm:$0xff]
        %v3389 = vld [vmem:[%s472 + $0x6f8] sm:$0xff]
        %v3390 = vld [vmem:[%s472 + $0x700] sm:$0xff]
        %v3391 = vld [vmem:[%s472 + $0x708] sm:$0xff]
        %v3392 = vld [vmem:[%s472 + $0x710] sm:$0xff]
        %v3393 = vld [vmem:[%s472 + $0x718] sm:$0xff]
        %v3394 = vld [vmem:[%s472 + $0x720] sm:$0xff]
        %v3395 = vld [vmem:[%s472 + $0x728] sm:$0xff]
        %v3396 = vld [vmem:[%s472 + $0x730] sm:$0xff]
        %v3397 = vld [vmem:[%s472 + $0x738] sm:$0xff]
        %v3398 = vld [vmem:[%s472 + $0x740] sm:$0xff]
        %v3399 = vld [vmem:[%s472 + $0x748] sm:$0xff]
        %v3400 = vld [vmem:[%s472 + $0x750] sm:$0xff]
        %v3401 = vld [vmem:[%s472 + $0x758] sm:$0xff]
        %v3402 = vld [vmem:[%s472 + $0x760] sm:$0xff]
        %v3403 = vld [vmem:[%s472 + $0x768] sm:$0xff]
        %v3404 = vld [vmem:[%s472 + $0x770] sm:$0xff]
        %v3405 = vld [vmem:[%s472 + $0x778] sm:$0xff]
        %v3406 = vld [vmem:[%s472 + $0x780] sm:$0xff]
        %v3407 = vld [vmem:[%s472 + $0x788] sm:$0xff]
        %v3408 = vld [vmem:[%s472 + $0x790] sm:$0xff]
        %v3409 = vld [vmem:[%s472 + $0x798] sm:$0xff]
        %v3410 = vld [vmem:[%s472 + $0x7a0] sm:$0xff]
        %v3411 = vld [vmem:[%s472 + $0x7a8] sm:$0xff]
        %v3412 = vld [vmem:[%s472 + $0x7b0] sm:$0xff]
        %v3413 = vld [vmem:[%s472 + $0x7b8] sm:$0xff]
        %v3414 = vld [vmem:[%s472 + $0x7c0] sm:$0xff]
        %v3415 = vld [vmem:[%s472 + $0x7c8] sm:$0xff]
        %v3416 = vld [vmem:[%s472 + $0x7d0] sm:$0xff]
        %v3417 = vld [vmem:[%s472 + $0x7d8] sm:$0xff]
        %v3418 = vld [vmem:[%s472 + $0x7e0] sm:$0xff]
        %v3419 = vld [vmem:[%s472 + $0x7e8] sm:$0xff]
        %v3420 = vld [vmem:[%s472 + $0x7f0] sm:$0xff]
        %v3421 = vld [vmem:[%s472 + $0x7f8] sm:$0xff]
        %v3422 = vld [vmem:[%s472 + $0x800] sm:$0xff]
        %v3423 = vld [vmem:[%s472 + $0x808] sm:$0xff]
        %v3424 = vld [vmem:[%s472 + $0x810] sm:$0xff]
        %v3425 = vld [vmem:[%s472 + $0x818] sm:$0xff]
        %v3426 = vld [vmem:[%s472 + $0x820] sm:$0xff]
        %v3427 = vld [vmem:[%s472 + $0x828] sm:$0xff]
        %v3428 = vld [vmem:[%s472 + $0x830] sm:$0xff]
        %v3429 = vld [vmem:[%s472 + $0x838] sm:$0xff]
        %v3430 = vld [vmem:[%s472 + $0x840] sm:$0xff]
        %v3431 = vld [vmem:[%s472 + $0x848] sm:$0xff]
        %v3432 = vld [vmem:[%s472 + $0x850] sm:$0xff]
        %v3433 = vld [vmem:[%s472 + $0x858] sm:$0xff]
        %v3434 = vld [vmem:[%s472 + $0x860] sm:$0xff]
        %v3435 = vld [vmem:[%s472 + $0x868] sm:$0xff]
        %v3436 = vld [vmem:[%s472 + $0x870] sm:$0xff]
        %v3437 = vld [vmem:[%s472 + $0x878] sm:$0xff]
        %v3438 = vld [vmem:[%s472 + $0x880] sm:$0xff]
        %v3439 = vld [vmem:[%s472 + $0x888] sm:$0xff]
        %v3440 = vld [vmem:[%s472 + $0x890] sm:$0xff]
        %v3441 = vld [vmem:[%s472 + $0x898] sm:$0xff]
        %v3442 = vld [vmem:[%s472 + $0x8a0] sm:$0xff]
        %v3443 = vld [vmem:[%s472 + $0x8a8] sm:$0xff]
        %v3444 = vld [vmem:[%s472 + $0x8b0] sm:$0xff]
        %v3445 = vld [vmem:[%s472 + $0x8b8] sm:$0xff]
        %v3446 = vld [vmem:[%s472 + $0x8c0] sm:$0xff]
        %v3447 = vld [vmem:[%s472 + $0x8c8] sm:$0xff]
        %v3448 = vld [vmem:[%s472 + $0x8d0] sm:$0xff]
        %v3449 = vld [vmem:[%s472 + $0x8d8] sm:$0xff]
        %v3450 = vld [vmem:[%s472 + $0x8e0] sm:$0xff]
        %v3451 = vld [vmem:[%s472 + $0x8e8] sm:$0xff]
        %v3452 = vld [vmem:[%s472 + $0x8f0] sm:$0xff]
        %v3453 = vld [vmem:[%s472 + $0x8f8] sm:$0xff]
        %v3454 = vld [vmem:[%s472 + $0x900] sm:$0xff]
        %v3455 = vld [vmem:[%s472 + $0x908] sm:$0xff]
        %v3456 = vld [vmem:[%s472 + $0x910] sm:$0xff]
        %v3457 = vld [vmem:[%s472 + $0x918] sm:$0xff]
        %v3458 = vld [vmem:[%s472 + $0x920] sm:$0xff]
        %v3459 = vld [vmem:[%s472 + $0x928] sm:$0xff]
        %v3460 = vld [vmem:[%s472 + $0x930] sm:$0xff]
        %v3461 = vld [vmem:[%s472 + $0x938] sm:$0xff]
        %v3462 = vld [vmem:[%s472 + $0x940] sm:$0xff]
        %v3463 = vld [vmem:[%s472 + $0x948] sm:$0xff]
        %v3464 = vld [vmem:[%s472 + $0x950] sm:$0xff]
        %v3465 = vld [vmem:[%s472 + $0x958] sm:$0xff]
        %v3466 = vld [vmem:[%s472 + $0x960] sm:$0xff]
        %v3467 = vld [vmem:[%s472 + $0x968] sm:$0xff]
        %v3468 = vld [vmem:[%s472 + $0x970] sm:$0xff]
        %v3469 = vld [vmem:[%s472 + $0x978] sm:$0xff]
        %v3470 = vld [vmem:[%s472 + $0x980] sm:$0xff]
        %v3471 = vld [vmem:[%s472 + $0x988] sm:$0xff]
        %v3472 = vld [vmem:[%s472 + $0x990] sm:$0xff]
        %v3473 = vld [vmem:[%s472 + $0x998] sm:$0xff]
        %v3474 = vld [vmem:[%s472 + $0x9a0] sm:$0xff]
        %v3475 = vld [vmem:[%s472 + $0x9a8] sm:$0xff]
        %v3476 = vld [vmem:[%s472 + $0x9b0] sm:$0xff]
        %v3477 = vld [vmem:[%s472 + $0x9b8] sm:$0xff]
        %v3478 = vld [vmem:[%s472 + $0x9c0] sm:$0xff]
        %v3479 = vld [vmem:[%s472 + $0x9c8] sm:$0xff]
        %v3480 = vld [vmem:[%s472 + $0x9d0] sm:$0xff]
        %v3481 = vld [vmem:[%s472 + $0x9d8] sm:$0xff]
        %v3482 = vld [vmem:[%s472 + $0x9e0] sm:$0xff]
        %v3483 = vld [vmem:[%s472 + $0x9e8] sm:$0xff]
        %v3484 = vld [vmem:[%s472 + $0x9f0] sm:$0xff]
        %v3485 = vld [vmem:[%s472 + $0x9f8] sm:$0xff]
        %v3486 = vld [vmem:[%s472 + $0xa00] sm:$0xff]
        %v3487 = vld [vmem:[%s472 + $0xa08] sm:$0xff]
        %v3488 = vld [vmem:[%s472 + $0xa10] sm:$0xff]
        %v3489 = vld [vmem:[%s472 + $0xa18] sm:$0xff]
        %v3490 = vld [vmem:[%s472 + $0xa20] sm:$0xff]
        %v3491 = vld [vmem:[%s472 + $0xa28] sm:$0xff]
        %v3492 = vld [vmem:[%s472 + $0xa30] sm:$0xff]
        %v3493 = vld [vmem:[%s472 + $0xa38] sm:$0xff]
        %v3494 = vld [vmem:[%s472 + $0xa40] sm:$0xff]
        %v3495 = vld [vmem:[%s472 + $0xa48] sm:$0xff]
        %v3496 = vld [vmem:[%s472 + $0xa50] sm:$0xff]
        %v3497 = vld [vmem:[%s472 + $0xa58] sm:$0xff]
        %v3498 = vld [vmem:[%s472 + $0xa60] sm:$0xff]
        %v3499 = vld [vmem:[%s472 + $0xa68] sm:$0xff]
        %v3500 = vld [vmem:[%s472 + $0xa70] sm:$0xff]
        %v3501 = vld [vmem:[%s472 + $0xa78] sm:$0xff]
        %v3502 = vld [vmem:[%s472 + $0xa80] sm:$0xff]
        %v3503 = vld [vmem:[%s472 + $0xa88] sm:$0xff]
        %v3504 = vld [vmem:[%s472 + $0xa90] sm:$0xff]
        %v3505 = vld [vmem:[%s472 + $0xa98] sm:$0xff]
        %v3506 = vld [vmem:[%s472 + $0xaa0] sm:$0xff]
        %v3507 = vld [vmem:[%s472 + $0xaa8] sm:$0xff]
        %v3508 = vld [vmem:[%s472 + $0xab0] sm:$0xff]
        %v3509 = vld [vmem:[%s472 + $0xab8] sm:$0xff]
        %v3510 = vld [vmem:[%s472 + $0xac0] sm:$0xff]
        %v3511 = vld [vmem:[%s472 + $0xac8] sm:$0xff]
        %v3512 = vld [vmem:[%s472 + $0xad0] sm:$0xff]
        %v3513 = vld [vmem:[%s472 + $0xad8] sm:$0xff]
        %v3514 = vld [vmem:[%s472 + $0xae0] sm:$0xff]
        %v3515 = vld [vmem:[%s472 + $0xae8] sm:$0xff]
        %v3516 = vld [vmem:[%s472 + $0xaf0] sm:$0xff]
        %v3517 = vld [vmem:[%s472 + $0xaf8] sm:$0xff]
        %v3518 = vld [vmem:[%s472 + $0xb00] sm:$0xff]
        %v3519 = vld [vmem:[%s472 + $0xb08] sm:$0xff]
        %v3520 = vld [vmem:[%s472 + $0xb10] sm:$0xff]
        %v3521 = vld [vmem:[%s472 + $0xb18] sm:$0xff]
        %v3522 = vld [vmem:[%s472 + $0xb20] sm:$0xff]
        %v3523 = vld [vmem:[%s472 + $0xb28] sm:$0xff]
        %v3524 = vld [vmem:[%s472 + $0xb30] sm:$0xff]
        %v3525 = vld [vmem:[%s472 + $0xb38] sm:$0xff]
        %v3526 = vld [vmem:[%s472 + $0xb40] sm:$0xff]
        %v3527 = vld [vmem:[%s472 + $0xb48] sm:$0xff]
        %v3528 = vld [vmem:[%s472 + $0xb50] sm:$0xff]
        %v3529 = vld [vmem:[%s472 + $0xb58] sm:$0xff]
        %v3530 = vld [vmem:[%s472 + $0xb60] sm:$0xff]
        %v3531 = vld [vmem:[%s472 + $0xb68] sm:$0xff]
        %v3532 = vld [vmem:[%s472 + $0xb70] sm:$0xff]
        %v3533 = vld [vmem:[%s472 + $0xb78] sm:$0xff]
        %v3534 = vld [vmem:[%s472 + $0xb80] sm:$0xff]
        %v3535 = vld [vmem:[%s472 + $0xb88] sm:$0xff]
        %v3536 = vld [vmem:[%s472 + $0xb90] sm:$0xff]
        %v3537 = vld [vmem:[%s472 + $0xb98] sm:$0xff]
        %v3538 = vld [vmem:[%s472 + $0xba0] sm:$0xff]
        %v3539 = vld [vmem:[%s472 + $0xba8] sm:$0xff]
        %v3540 = vld [vmem:[%s472 + $0xbb0] sm:$0xff]
        %v3541 = vld [vmem:[%s472 + $0xbb8] sm:$0xff]
        %v3542 = vld [vmem:[%s472 + $0xbc0] sm:$0xff]
        %v3543 = vld [vmem:[%s472 + $0xbc8] sm:$0xff]
        %v3544 = vld [vmem:[%s472 + $0xbd0] sm:$0xff]
        %v3545 = vld [vmem:[%s472 + $0xbd8] sm:$0xff]
        %v3546 = vld [vmem:[%s472 + $0xbe0] sm:$0xff]
        %v3547 = vld [vmem:[%s472 + $0xbe8] sm:$0xff]
        %v3548 = vld [vmem:[%s472 + $0xbf0] sm:$0xff]
        %v3549 = vld [vmem:[%s472 + $0xbf8] sm:$0xff]
        %v3550 = vunpack.c.0.s8 %v3166
        %v3551 = vunpack.c.0.s8 %v3167
        %v3552 = vunpack.c.0.s8 %v3168
        %v3553 = vunpack.c.0.s8 %v3169
        %v3554 = vunpack.c.0.s8 %v3170
        %v3555 = vunpack.c.0.s8 %v3171
        %v3556 = vunpack.c.0.s8 %v3172
        %v3557 = vunpack.c.0.s8 %v3173
        %v3558 = vunpack.c.0.s8 %v3174
        %v3559 = vunpack.c.0.s8 %v3175
        %v3560 = vunpack.c.0.s8 %v3176
        %v3561 = vunpack.c.0.s8 %v3177
        %v3562 = vunpack.c.1.s8 %v3166
        %v3563 = vunpack.c.1.s8 %v3167
        %v3564 = vunpack.c.1.s8 %v3168
        %v3565 = vunpack.c.1.s8 %v3169
        %v3566 = vunpack.c.1.s8 %v3170
        %v3567 = vunpack.c.1.s8 %v3171
        %v3568 = vunpack.c.1.s8 %v3172
        %v3569 = vunpack.c.1.s8 %v3173
        %v3570 = vunpack.c.1.s8 %v3174
        %v3571 = vunpack.c.1.s8 %v3175
        %v3572 = vunpack.c.1.s8 %v3176
        %v3573 = vunpack.c.1.s8 %v3177
        %v3574 = vunpack.c.2.s8 %v3166
        %v3575 = vunpack.c.2.s8 %v3167
        %v3576 = vunpack.c.2.s8 %v3168
        %v3577 = vunpack.c.2.s8 %v3169
        %v3578 = vunpack.c.2.s8 %v3170
        %v3579 = vunpack.c.2.s8 %v3171
        %v3580 = vunpack.c.2.s8 %v3172
        %v3581 = vunpack.c.2.s8 %v3173
        %v3582 = vunpack.c.2.s8 %v3174
        %v3583 = vunpack.c.2.s8 %v3175
        %v3584 = vunpack.c.2.s8 %v3176
        %v3585 = vunpack.c.2.s8 %v3177
        %v3586 = vunpack.c.3.s8 %v3166
        %v3587 = vunpack.c.3.s8 %v3167
        %v3588 = vunpack.c.3.s8 %v3168
        %v3589 = vunpack.c.3.s8 %v3169
        %v3590 = vunpack.c.3.s8 %v3170
        %v3591 = vunpack.c.3.s8 %v3171
        %v3592 = vunpack.c.3.s8 %v3172
        %v3593 = vunpack.c.3.s8 %v3173
        %v3594 = vunpack.c.3.s8 %v3174
        %v3595 = vunpack.c.3.s8 %v3175
        %v3596 = vunpack.c.3.s8 %v3176
        %v3597 = vunpack.c.3.s8 %v3177
        %v3598 = vunpack.c.0.s8 %v3178
        %v3599 = vunpack.c.0.s8 %v3179
        %v3600 = vunpack.c.0.s8 %v3180
        %v3601 = vunpack.c.0.s8 %v3181
        %v3602 = vunpack.c.0.s8 %v3182
        %v3603 = vunpack.c.0.s8 %v3183
        %v3604 = vunpack.c.0.s8 %v3184
        %v3605 = vunpack.c.0.s8 %v3185
        %v3606 = vunpack.c.0.s8 %v3186
        %v3607 = vunpack.c.0.s8 %v3187
        %v3608 = vunpack.c.0.s8 %v3188
        %v3609 = vunpack.c.0.s8 %v3189
        %v3610 = vunpack.c.1.s8 %v3178
        %v3611 = vunpack.c.1.s8 %v3179
        %v3612 = vunpack.c.1.s8 %v3180
        %v3613 = vunpack.c.1.s8 %v3181
        %v3614 = vunpack.c.1.s8 %v3182
        %v3615 = vunpack.c.1.s8 %v3183
        %v3616 = vunpack.c.1.s8 %v3184
        %v3617 = vunpack.c.1.s8 %v3185
        %v3618 = vunpack.c.1.s8 %v3186
        %v3619 = vunpack.c.1.s8 %v3187
        %v3620 = vunpack.c.1.s8 %v3188
        %v3621 = vunpack.c.1.s8 %v3189
        %v3622 = vunpack.c.2.s8 %v3178
        %v3623 = vunpack.c.2.s8 %v3179
        %v3624 = vunpack.c.2.s8 %v3180
        %v3625 = vunpack.c.2.s8 %v3181
        %v3626 = vunpack.c.2.s8 %v3182
        %v3627 = vunpack.c.2.s8 %v3183
        %v3628 = vunpack.c.2.s8 %v3184
        %v3629 = vunpack.c.2.s8 %v3185
        %v3630 = vunpack.c.2.s8 %v3186
        %v3631 = vunpack.c.2.s8 %v3187
        %v3632 = vunpack.c.2.s8 %v3188
        %v3633 = vunpack.c.2.s8 %v3189
        %v3634 = vunpack.c.3.s8 %v3178
        %v3635 = vunpack.c.3.s8 %v3179
        %v3636 = vunpack.c.3.s8 %v3180
        %v3637 = vunpack.c.3.s8 %v3181
        %v3638 = vunpack.c.3.s8 %v3182
        %v3639 = vunpack.c.3.s8 %v3183
        %v3640 = vunpack.c.3.s8 %v3184
        %v3641 = vunpack.c.3.s8 %v3185
        %v3642 = vunpack.c.3.s8 %v3186
        %v3643 = vunpack.c.3.s8 %v3187
        %v3644 = vunpack.c.3.s8 %v3188
        %v3645 = vunpack.c.3.s8 %v3189
        %v3646 = vunpack.c.0.s8 %v3190
        %v3647 = vunpack.c.0.s8 %v3191
        %v3648 = vunpack.c.0.s8 %v3192
        %v3649 = vunpack.c.0.s8 %v3193
        %v3650 = vunpack.c.0.s8 %v3194
        %v3651 = vunpack.c.0.s8 %v3195
        %v3652 = vunpack.c.0.s8 %v3196
        %v3653 = vunpack.c.0.s8 %v3197
        %v3654 = vunpack.c.0.s8 %v3198
        %v3655 = vunpack.c.0.s8 %v3199
        %v3656 = vunpack.c.0.s8 %v3200
        %v3657 = vunpack.c.0.s8 %v3201
        %v3658 = vunpack.c.1.s8 %v3190
        %v3659 = vunpack.c.1.s8 %v3191
        %v3660 = vunpack.c.1.s8 %v3192
        %v3661 = vunpack.c.1.s8 %v3193
        %v3662 = vunpack.c.1.s8 %v3194
        %v3663 = vunpack.c.1.s8 %v3195
        %v3664 = vunpack.c.1.s8 %v3196
        %v3665 = vunpack.c.1.s8 %v3197
        %v3666 = vunpack.c.1.s8 %v3198
        %v3667 = vunpack.c.1.s8 %v3199
        %v3668 = vunpack.c.1.s8 %v3200
        %v3669 = vunpack.c.1.s8 %v3201
        %v3670 = vunpack.c.2.s8 %v3190
        %v3671 = vunpack.c.2.s8 %v3191
        %v3672 = vunpack.c.2.s8 %v3192
        %v3673 = vunpack.c.2.s8 %v3193
        %v3674 = vunpack.c.2.s8 %v3194
        %v3675 = vunpack.c.2.s8 %v3195
        %v3676 = vunpack.c.2.s8 %v3196
        %v3677 = vunpack.c.2.s8 %v3197
        %v3678 = vunpack.c.2.s8 %v3198
        %v3679 = vunpack.c.2.s8 %v3199
        %v3680 = vunpack.c.2.s8 %v3200
        %v3681 = vunpack.c.2.s8 %v3201
        %v3682 = vunpack.c.3.s8 %v3190
        %v3683 = vunpack.c.3.s8 %v3191
        %v3684 = vunpack.c.3.s8 %v3192
        %v3685 = vunpack.c.3.s8 %v3193
        %v3686 = vunpack.c.3.s8 %v3194
        %v3687 = vunpack.c.3.s8 %v3195
        %v3688 = vunpack.c.3.s8 %v3196
        %v3689 = vunpack.c.3.s8 %v3197
        %v3690 = vunpack.c.3.s8 %v3198
        %v3691 = vunpack.c.3.s8 %v3199
        %v3692 = vunpack.c.3.s8 %v3200
        %v3693 = vunpack.c.3.s8 %v3201
        %v3694 = vunpack.c.0.s8 %v3202
        %v3695 = vunpack.c.0.s8 %v3203
        %v3696 = vunpack.c.0.s8 %v3204
        %v3697 = vunpack.c.0.s8 %v3205
        %v3698 = vunpack.c.0.s8 %v3206
        %v3699 = vunpack.c.0.s8 %v3207
        %v3700 = vunpack.c.0.s8 %v3208
        %v3701 = vunpack.c.0.s8 %v3209
        %v3702 = vunpack.c.0.s8 %v3210
        %v3703 = vunpack.c.0.s8 %v3211
        %v3704 = vunpack.c.0.s8 %v3212
        %v3705 = vunpack.c.0.s8 %v3213
        %v3706 = vunpack.c.1.s8 %v3202
        %v3707 = vunpack.c.1.s8 %v3203
        %v3708 = vunpack.c.1.s8 %v3204
        %v3709 = vunpack.c.1.s8 %v3205
        %v3710 = vunpack.c.1.s8 %v3206
        %v3711 = vunpack.c.1.s8 %v3207
        %v3712 = vunpack.c.1.s8 %v3208
        %v3713 = vunpack.c.1.s8 %v3209
        %v3714 = vunpack.c.1.s8 %v3210
        %v3715 = vunpack.c.1.s8 %v3211
        %v3716 = vunpack.c.1.s8 %v3212
        %v3717 = vunpack.c.1.s8 %v3213
        %v3718 = vunpack.c.2.s8 %v3202
        %v3719 = vunpack.c.2.s8 %v3203
        %v3720 = vunpack.c.2.s8 %v3204
        %v3721 = vunpack.c.2.s8 %v3205
        %v3722 = vunpack.c.2.s8 %v3206
        %v3723 = vunpack.c.2.s8 %v3207
        %v3724 = vunpack.c.2.s8 %v3208
        %v3725 = vunpack.c.2.s8 %v3209
        %v3726 = vunpack.c.2.s8 %v3210
        %v3727 = vunpack.c.2.s8 %v3211
        %v3728 = vunpack.c.2.s8 %v3212
        %v3729 = vunpack.c.2.s8 %v3213
        %v3730 = vunpack.c.3.s8 %v3202
        %v3731 = vunpack.c.3.s8 %v3203
        %v3732 = vunpack.c.3.s8 %v3204
        %v3733 = vunpack.c.3.s8 %v3205
        %v3734 = vunpack.c.3.s8 %v3206
        %v3735 = vunpack.c.3.s8 %v3207
        %v3736 = vunpack.c.3.s8 %v3208
        %v3737 = vunpack.c.3.s8 %v3209
        %v3738 = vunpack.c.3.s8 %v3210
        %v3739 = vunpack.c.3.s8 %v3211
        %v3740 = vunpack.c.3.s8 %v3212
        %v3741 = vunpack.c.3.s8 %v3213
        %v3742 = vunpack.c.0.s8 %v3214
        %v3743 = vunpack.c.0.s8 %v3215
        %v3744 = vunpack.c.0.s8 %v3216
        %v3745 = vunpack.c.0.s8 %v3217
        %v3746 = vunpack.c.0.s8 %v3218
        %v3747 = vunpack.c.0.s8 %v3219
        %v3748 = vunpack.c.0.s8 %v3220
        %v3749 = vunpack.c.0.s8 %v3221
        %v3750 = vunpack.c.0.s8 %v3222
        %v3751 = vunpack.c.0.s8 %v3223
        %v3752 = vunpack.c.0.s8 %v3224
        %v3753 = vunpack.c.0.s8 %v3225
        %v3754 = vunpack.c.1.s8 %v3214
        %v3755 = vunpack.c.1.s8 %v3215
        %v3756 = vunpack.c.1.s8 %v3216
        %v3757 = vunpack.c.1.s8 %v3217
        %v3758 = vunpack.c.1.s8 %v3218
        %v3759 = vunpack.c.1.s8 %v3219
        %v3760 = vunpack.c.1.s8 %v3220
        %v3761 = vunpack.c.1.s8 %v3221
        %v3762 = vunpack.c.1.s8 %v3222
        %v3763 = vunpack.c.1.s8 %v3223
        %v3764 = vunpack.c.1.s8 %v3224
        %v3765 = vunpack.c.1.s8 %v3225
        %v3766 = vunpack.c.2.s8 %v3214
        %v3767 = vunpack.c.2.s8 %v3215
        %v3768 = vunpack.c.2.s8 %v3216
        %v3769 = vunpack.c.2.s8 %v3217
        %v3770 = vunpack.c.2.s8 %v3218
        %v3771 = vunpack.c.2.s8 %v3219
        %v3772 = vunpack.c.2.s8 %v3220
        %v3773 = vunpack.c.2.s8 %v3221
        %v3774 = vunpack.c.2.s8 %v3222
        %v3775 = vunpack.c.2.s8 %v3223
        %v3776 = vunpack.c.2.s8 %v3224
        %v3777 = vunpack.c.2.s8 %v3225
        %v3778 = vunpack.c.3.s8 %v3214
        %v3779 = vunpack.c.3.s8 %v3215
        %v3780 = vunpack.c.3.s8 %v3216
        %v3781 = vunpack.c.3.s8 %v3217
        %v3782 = vunpack.c.3.s8 %v3218
        %v3783 = vunpack.c.3.s8 %v3219
        %v3784 = vunpack.c.3.s8 %v3220
        %v3785 = vunpack.c.3.s8 %v3221
        %v3786 = vunpack.c.3.s8 %v3222
        %v3787 = vunpack.c.3.s8 %v3223
        %v3788 = vunpack.c.3.s8 %v3224
        %v3789 = vunpack.c.3.s8 %v3225
        %v3790 = vunpack.c.0.s8 %v3226
        %v3791 = vunpack.c.0.s8 %v3227
        %v3792 = vunpack.c.0.s8 %v3228
        %v3793 = vunpack.c.0.s8 %v3229
        %v3794 = vunpack.c.0.s8 %v3230
        %v3795 = vunpack.c.0.s8 %v3231
        %v3796 = vunpack.c.0.s8 %v3232
        %v3797 = vunpack.c.0.s8 %v3233
        %v3798 = vunpack.c.0.s8 %v3234
        %v3799 = vunpack.c.0.s8 %v3235
        %v3800 = vunpack.c.0.s8 %v3236
        %v3801 = vunpack.c.0.s8 %v3237
        %v3802 = vunpack.c.1.s8 %v3226
        %v3803 = vunpack.c.1.s8 %v3227
        %v3804 = vunpack.c.1.s8 %v3228
        %v3805 = vunpack.c.1.s8 %v3229
        %v3806 = vunpack.c.1.s8 %v3230
        %v3807 = vunpack.c.1.s8 %v3231
        %v3808 = vunpack.c.1.s8 %v3232
        %v3809 = vunpack.c.1.s8 %v3233
        %v3810 = vunpack.c.1.s8 %v3234
        %v3811 = vunpack.c.1.s8 %v3235
        %v3812 = vunpack.c.1.s8 %v3236
        %v3813 = vunpack.c.1.s8 %v3237
        %v3814 = vunpack.c.2.s8 %v3226
        %v3815 = vunpack.c.2.s8 %v3227
        %v3816 = vunpack.c.2.s8 %v3228
        %v3817 = vunpack.c.2.s8 %v3229
        %v3818 = vunpack.c.2.s8 %v3230
        %v3819 = vunpack.c.2.s8 %v3231
        %v3820 = vunpack.c.2.s8 %v3232
        %v3821 = vunpack.c.2.s8 %v3233
        %v3822 = vunpack.c.2.s8 %v3234
        %v3823 = vunpack.c.2.s8 %v3235
        %v3824 = vunpack.c.2.s8 %v3236
        %v3825 = vunpack.c.2.s8 %v3237
        %v3826 = vunpack.c.3.s8 %v3226
        %v3827 = vunpack.c.3.s8 %v3227
        %v3828 = vunpack.c.3.s8 %v3228
        %v3829 = vunpack.c.3.s8 %v3229
        %v3830 = vunpack.c.3.s8 %v3230
        %v3831 = vunpack.c.3.s8 %v3231
        %v3832 = vunpack.c.3.s8 %v3232
        %v3833 = vunpack.c.3.s8 %v3233
        %v3834 = vunpack.c.3.s8 %v3234
        %v3835 = vunpack.c.3.s8 %v3235
        %v3836 = vunpack.c.3.s8 %v3236
        %v3837 = vunpack.c.3.s8 %v3237
        %v3838 = vunpack.c.0.s8 %v3238
        %v3839 = vunpack.c.0.s8 %v3239
        %v3840 = vunpack.c.0.s8 %v3240
        %v3841 = vunpack.c.0.s8 %v3241
        %v3842 = vunpack.c.0.s8 %v3242
        %v3843 = vunpack.c.0.s8 %v3243
        %v3844 = vunpack.c.0.s8 %v3244
        %v3845 = vunpack.c.0.s8 %v3245
        %v3846 = vunpack.c.0.s8 %v3246
        %v3847 = vunpack.c.0.s8 %v3247
        %v3848 = vunpack.c.0.s8 %v3248
        %v3849 = vunpack.c.0.s8 %v3249
        %v3850 = vunpack.c.1.s8 %v3238
        %v3851 = vunpack.c.1.s8 %v3239
        %v3852 = vunpack.c.1.s8 %v3240
        %v3853 = vunpack.c.1.s8 %v3241
        %v3854 = vunpack.c.1.s8 %v3242
        %v3855 = vunpack.c.1.s8 %v3243
        %v3856 = vunpack.c.1.s8 %v3244
        %v3857 = vunpack.c.1.s8 %v3245
        %v3858 = vunpack.c.1.s8 %v3246
        %v3859 = vunpack.c.1.s8 %v3247
        %v3860 = vunpack.c.1.s8 %v3248
        %v3861 = vunpack.c.1.s8 %v3249
        %v3862 = vunpack.c.2.s8 %v3238
        %v3863 = vunpack.c.2.s8 %v3239
        %v3864 = vunpack.c.2.s8 %v3240
        %v3865 = vunpack.c.2.s8 %v3241
        %v3866 = vunpack.c.2.s8 %v3242
        %v3867 = vunpack.c.2.s8 %v3243
        %v3868 = vunpack.c.2.s8 %v3244
        %v3869 = vunpack.c.2.s8 %v3245
        %v3870 = vunpack.c.2.s8 %v3246
        %v3871 = vunpack.c.2.s8 %v3247
        %v3872 = vunpack.c.2.s8 %v3248
        %v3873 = vunpack.c.2.s8 %v3249
        %v3874 = vunpack.c.3.s8 %v3238
        %v3875 = vunpack.c.3.s8 %v3239
        %v3876 = vunpack.c.3.s8 %v3240
        %v3877 = vunpack.c.3.s8 %v3241
        %v3878 = vunpack.c.3.s8 %v3242
        %v3879 = vunpack.c.3.s8 %v3243
        %v3880 = vunpack.c.3.s8 %v3244
        %v3881 = vunpack.c.3.s8 %v3245
        %v3882 = vunpack.c.3.s8 %v3246
        %v3883 = vunpack.c.3.s8 %v3247
        %v3884 = vunpack.c.3.s8 %v3248
        %v3885 = vunpack.c.3.s8 %v3249
        %v3886 = vunpack.c.0.s8 %v3250
        %v3887 = vunpack.c.0.s8 %v3251
        %v3888 = vunpack.c.0.s8 %v3252
        %v3889 = vunpack.c.0.s8 %v3253
        %v3890 = vunpack.c.0.s8 %v3254
        %v3891 = vunpack.c.0.s8 %v3255
        %v3892 = vunpack.c.0.s8 %v3256
        %v3893 = vunpack.c.0.s8 %v3257
        %v3894 = vunpack.c.0.s8 %v3258
        %v3895 = vunpack.c.0.s8 %v3259
        %v3896 = vunpack.c.0.s8 %v3260
        %v3897 = vunpack.c.0.s8 %v3261
        %v3898 = vunpack.c.1.s8 %v3250
        %v3899 = vunpack.c.1.s8 %v3251
        %v3900 = vunpack.c.1.s8 %v3252
        %v3901 = vunpack.c.1.s8 %v3253
        %v3902 = vunpack.c.1.s8 %v3254
        %v3903 = vunpack.c.1.s8 %v3255
        %v3904 = vunpack.c.1.s8 %v3256
        %v3905 = vunpack.c.1.s8 %v3257
        %v3906 = vunpack.c.1.s8 %v3258
        %v3907 = vunpack.c.1.s8 %v3259
        %v3908 = vunpack.c.1.s8 %v3260
        %v3909 = vunpack.c.1.s8 %v3261
        %v3910 = vunpack.c.2.s8 %v3250
        %v3911 = vunpack.c.2.s8 %v3251
        %v3912 = vunpack.c.2.s8 %v3252
        %v3913 = vunpack.c.2.s8 %v3253
        %v3914 = vunpack.c.2.s8 %v3254
        %v3915 = vunpack.c.2.s8 %v3255
        %v3916 = vunpack.c.2.s8 %v3256
        %v3917 = vunpack.c.2.s8 %v3257
        %v3918 = vunpack.c.2.s8 %v3258
        %v3919 = vunpack.c.2.s8 %v3259
        %v3920 = vunpack.c.2.s8 %v3260
        %v3921 = vunpack.c.2.s8 %v3261
        %v3922 = vunpack.c.3.s8 %v3250
        %v3923 = vunpack.c.3.s8 %v3251
        %v3924 = vunpack.c.3.s8 %v3252
        %v3925 = vunpack.c.3.s8 %v3253
        %v3926 = vunpack.c.3.s8 %v3254
        %v3927 = vunpack.c.3.s8 %v3255
        %v3928 = vunpack.c.3.s8 %v3256
        %v3929 = vunpack.c.3.s8 %v3257
        %v3930 = vunpack.c.3.s8 %v3258
        %v3931 = vunpack.c.3.s8 %v3259
        %v3932 = vunpack.c.3.s8 %v3260
        %v3933 = vunpack.c.3.s8 %v3261
        %v3934 = vunpack.c.0.s8 %v3262
        %v3935 = vunpack.c.0.s8 %v3263
        %v3936 = vunpack.c.0.s8 %v3264
        %v3937 = vunpack.c.0.s8 %v3265
        %v3938 = vunpack.c.0.s8 %v3266
        %v3939 = vunpack.c.0.s8 %v3267
        %v3940 = vunpack.c.0.s8 %v3268
        %v3941 = vunpack.c.0.s8 %v3269
        %v3942 = vunpack.c.0.s8 %v3270
        %v3943 = vunpack.c.0.s8 %v3271
        %v3944 = vunpack.c.0.s8 %v3272
        %v3945 = vunpack.c.0.s8 %v3273
        %v3946 = vunpack.c.1.s8 %v3262
        %v3947 = vunpack.c.1.s8 %v3263
        %v3948 = vunpack.c.1.s8 %v3264
        %v3949 = vunpack.c.1.s8 %v3265
        %v3950 = vunpack.c.1.s8 %v3266
        %v3951 = vunpack.c.1.s8 %v3267
        %v3952 = vunpack.c.1.s8 %v3268
        %v3953 = vunpack.c.1.s8 %v3269
        %v3954 = vunpack.c.1.s8 %v3270
        %v3955 = vunpack.c.1.s8 %v3271
        %v3956 = vunpack.c.1.s8 %v3272
        %v3957 = vunpack.c.1.s8 %v3273
        %v3958 = vunpack.c.2.s8 %v3262
        %v3959 = vunpack.c.2.s8 %v3263
        %v3960 = vunpack.c.2.s8 %v3264
        %v3961 = vunpack.c.2.s8 %v3265
        %v3962 = vunpack.c.2.s8 %v3266
        %v3963 = vunpack.c.2.s8 %v3267
        %v3964 = vunpack.c.2.s8 %v3268
        %v3965 = vunpack.c.2.s8 %v3269
        %v3966 = vunpack.c.2.s8 %v3270
        %v3967 = vunpack.c.2.s8 %v3271
        %v3968 = vunpack.c.2.s8 %v3272
        %v3969 = vunpack.c.2.s8 %v3273
        %v3970 = vunpack.c.3.s8 %v3262
        %v3971 = vunpack.c.3.s8 %v3263
        %v3972 = vunpack.c.3.s8 %v3264
        %v3973 = vunpack.c.3.s8 %v3265
        %v3974 = vunpack.c.3.s8 %v3266
        %v3975 = vunpack.c.3.s8 %v3267
        %v3976 = vunpack.c.3.s8 %v3268
        %v3977 = vunpack.c.3.s8 %v3269
        %v3978 = vunpack.c.3.s8 %v3270
        %v3979 = vunpack.c.3.s8 %v3271
        %v3980 = vunpack.c.3.s8 %v3272
        %v3981 = vunpack.c.3.s8 %v3273
        %v3982 = vunpack.c.0.s8 %v3274
        %v3983 = vunpack.c.0.s8 %v3275
        %v3984 = vunpack.c.0.s8 %v3276
        %v3985 = vunpack.c.0.s8 %v3277
        %v3986 = vunpack.c.0.s8 %v3278
        %v3987 = vunpack.c.0.s8 %v3279
        %v3988 = vunpack.c.0.s8 %v3280
        %v3989 = vunpack.c.0.s8 %v3281
        %v3990 = vunpack.c.0.s8 %v3282
        %v3991 = vunpack.c.0.s8 %v3283
        %v3992 = vunpack.c.0.s8 %v3284
        %v3993 = vunpack.c.0.s8 %v3285
        %v3994 = vunpack.c.1.s8 %v3274
        %v3995 = vunpack.c.1.s8 %v3275
        %v3996 = vunpack.c.1.s8 %v3276
        %v3997 = vunpack.c.1.s8 %v3277
        %v3998 = vunpack.c.1.s8 %v3278
        %v3999 = vunpack.c.1.s8 %v3279
        %v4000 = vunpack.c.1.s8 %v3280
        %v4001 = vunpack.c.1.s8 %v3281
        %v4002 = vunpack.c.1.s8 %v3282
        %v4003 = vunpack.c.1.s8 %v3283
        %v4004 = vunpack.c.1.s8 %v3284
        %v4005 = vunpack.c.1.s8 %v3285
        %v4006 = vunpack.c.2.s8 %v3274
        %v4007 = vunpack.c.2.s8 %v3275
        %v4008 = vunpack.c.2.s8 %v3276
        %v4009 = vunpack.c.2.s8 %v3277
        %v4010 = vunpack.c.2.s8 %v3278
        %v4011 = vunpack.c.2.s8 %v3279
        %v4012 = vunpack.c.2.s8 %v3280
        %v4013 = vunpack.c.2.s8 %v3281
        %v4014 = vunpack.c.2.s8 %v3282
        %v4015 = vunpack.c.2.s8 %v3283
        %v4016 = vunpack.c.2.s8 %v3284
        %v4017 = vunpack.c.2.s8 %v3285
        %v4018 = vunpack.c.3.s8 %v3274
        %v4019 = vunpack.c.3.s8 %v3275
        %v4020 = vunpack.c.3.s8 %v3276
        %v4021 = vunpack.c.3.s8 %v3277
        %v4022 = vunpack.c.3.s8 %v3278
        %v4023 = vunpack.c.3.s8 %v3279
        %v4024 = vunpack.c.3.s8 %v3280
        %v4025 = vunpack.c.3.s8 %v3281
        %v4026 = vunpack.c.3.s8 %v3282
        %v4027 = vunpack.c.3.s8 %v3283
        %v4028 = vunpack.c.3.s8 %v3284
        %v4029 = vunpack.c.3.s8 %v3285
        %v4030 = vunpack.c.0.s8 %v3286
        %v4031 = vunpack.c.0.s8 %v3287
        %v4032 = vunpack.c.0.s8 %v3288
        %v4033 = vunpack.c.0.s8 %v3289
        %v4034 = vunpack.c.0.s8 %v3290
        %v4035 = vunpack.c.0.s8 %v3291
        %v4036 = vunpack.c.0.s8 %v3292
        %v4037 = vunpack.c.0.s8 %v3293
        %v4038 = vunpack.c.0.s8 %v3294
        %v4039 = vunpack.c.0.s8 %v3295
        %v4040 = vunpack.c.0.s8 %v3296
        %v4041 = vunpack.c.0.s8 %v3297
        %v4042 = vunpack.c.1.s8 %v3286
        %v4043 = vunpack.c.1.s8 %v3287
        %v4044 = vunpack.c.1.s8 %v3288
        %v4045 = vunpack.c.1.s8 %v3289
        %v4046 = vunpack.c.1.s8 %v3290
        %v4047 = vunpack.c.1.s8 %v3291
        %v4048 = vunpack.c.1.s8 %v3292
        %v4049 = vunpack.c.1.s8 %v3293
        %v4050 = vunpack.c.1.s8 %v3294
        %v4051 = vunpack.c.1.s8 %v3295
        %v4052 = vunpack.c.1.s8 %v3296
        %v4053 = vunpack.c.1.s8 %v3297
        %v4054 = vunpack.c.2.s8 %v3286
        %v4055 = vunpack.c.2.s8 %v3287
        %v4056 = vunpack.c.2.s8 %v3288
        %v4057 = vunpack.c.2.s8 %v3289
        %v4058 = vunpack.c.2.s8 %v3290
        %v4059 = vunpack.c.2.s8 %v3291
        %v4060 = vunpack.c.2.s8 %v3292
        %v4061 = vunpack.c.2.s8 %v3293
        %v4062 = vunpack.c.2.s8 %v3294
        %v4063 = vunpack.c.2.s8 %v3295
        %v4064 = vunpack.c.2.s8 %v3296
        %v4065 = vunpack.c.2.s8 %v3297
        %v4066 = vunpack.c.3.s8 %v3286
        %v4067 = vunpack.c.3.s8 %v3287
        %v4068 = vunpack.c.3.s8 %v3288
        %v4069 = vunpack.c.3.s8 %v3289
        %v4070 = vunpack.c.3.s8 %v3290
        %v4071 = vunpack.c.3.s8 %v3291
        %v4072 = vunpack.c.3.s8 %v3292
        %v4073 = vunpack.c.3.s8 %v3293
        %v4074 = vunpack.c.3.s8 %v3294
        %v4075 = vunpack.c.3.s8 %v3295
        %v4076 = vunpack.c.3.s8 %v3296
        %v4077 = vunpack.c.3.s8 %v3297
        %v4078 = vunpack.c.0.s8 %v3298
        %v4079 = vunpack.c.0.s8 %v3299
        %v4080 = vunpack.c.0.s8 %v3300
        %v4081 = vunpack.c.0.s8 %v3301
        %v4082 = vunpack.c.0.s8 %v3302
        %v4083 = vunpack.c.0.s8 %v3303
        %v4084 = vunpack.c.0.s8 %v3304
        %v4085 = vunpack.c.0.s8 %v3305
        %v4086 = vunpack.c.0.s8 %v3306
        %v4087 = vunpack.c.0.s8 %v3307
        %v4088 = vunpack.c.0.s8 %v3308
        %v4089 = vunpack.c.0.s8 %v3309
        %v4090 = vunpack.c.1.s8 %v3298
        %v4091 = vunpack.c.1.s8 %v3299
        %v4092 = vunpack.c.1.s8 %v3300
        %v4093 = vunpack.c.1.s8 %v3301
        %v4094 = vunpack.c.1.s8 %v3302
        %v4095 = vunpack.c.1.s8 %v3303
        %v4096 = vunpack.c.1.s8 %v3304
        %v4097 = vunpack.c.1.s8 %v3305
        %v4098 = vunpack.c.1.s8 %v3306
        %v4099 = vunpack.c.1.s8 %v3307
        %v4100 = vunpack.c.1.s8 %v3308
        %v4101 = vunpack.c.1.s8 %v3309
        %v4102 = vunpack.c.2.s8 %v3298
        %v4103 = vunpack.c.2.s8 %v3299
        %v4104 = vunpack.c.2.s8 %v3300
        %v4105 = vunpack.c.2.s8 %v3301
        %v4106 = vunpack.c.2.s8 %v3302
        %v4107 = vunpack.c.2.s8 %v3303
        %v4108 = vunpack.c.2.s8 %v3304
        %v4109 = vunpack.c.2.s8 %v3305
        %v4110 = vunpack.c.2.s8 %v3306
        %v4111 = vunpack.c.2.s8 %v3307
        %v4112 = vunpack.c.2.s8 %v3308
        %v4113 = vunpack.c.2.s8 %v3309
        %v4114 = vunpack.c.3.s8 %v3298
        %v4115 = vunpack.c.3.s8 %v3299
        %v4116 = vunpack.c.3.s8 %v3300
        %v4117 = vunpack.c.3.s8 %v3301
        %v4118 = vunpack.c.3.s8 %v3302
        %v4119 = vunpack.c.3.s8 %v3303
        %v4120 = vunpack.c.3.s8 %v3304
        %v4121 = vunpack.c.3.s8 %v3305
        %v4122 = vunpack.c.3.s8 %v3306
        %v4123 = vunpack.c.3.s8 %v3307
        %v4124 = vunpack.c.3.s8 %v3308
        %v4125 = vunpack.c.3.s8 %v3309
        %v4126 = vunpack.c.0.s8 %v3310
        %v4127 = vunpack.c.0.s8 %v3311
        %v4128 = vunpack.c.0.s8 %v3312
        %v4129 = vunpack.c.0.s8 %v3313
        %v4130 = vunpack.c.0.s8 %v3314
        %v4131 = vunpack.c.0.s8 %v3315
        %v4132 = vunpack.c.0.s8 %v3316
        %v4133 = vunpack.c.0.s8 %v3317
        %v4134 = vunpack.c.0.s8 %v3318
        %v4135 = vunpack.c.0.s8 %v3319
        %v4136 = vunpack.c.0.s8 %v3320
        %v4137 = vunpack.c.0.s8 %v3321
        %v4138 = vunpack.c.1.s8 %v3310
        %v4139 = vunpack.c.1.s8 %v3311
        %v4140 = vunpack.c.1.s8 %v3312
        %v4141 = vunpack.c.1.s8 %v3313
        %v4142 = vunpack.c.1.s8 %v3314
        %v4143 = vunpack.c.1.s8 %v3315
        %v4144 = vunpack.c.1.s8 %v3316
        %v4145 = vunpack.c.1.s8 %v3317
        %v4146 = vunpack.c.1.s8 %v3318
        %v4147 = vunpack.c.1.s8 %v3319
        %v4148 = vunpack.c.1.s8 %v3320
        %v4149 = vunpack.c.1.s8 %v3321
        %v4150 = vunpack.c.2.s8 %v3310
        %v4151 = vunpack.c.2.s8 %v3311
        %v4152 = vunpack.c.2.s8 %v3312
        %v4153 = vunpack.c.2.s8 %v3313
        %v4154 = vunpack.c.2.s8 %v3314
        %v4155 = vunpack.c.2.s8 %v3315
        %v4156 = vunpack.c.2.s8 %v3316
        %v4157 = vunpack.c.2.s8 %v3317
        %v4158 = vunpack.c.2.s8 %v3318
        %v4159 = vunpack.c.2.s8 %v3319
        %v4160 = vunpack.c.2.s8 %v3320
        %v4161 = vunpack.c.2.s8 %v3321
        %v4162 = vunpack.c.3.s8 %v3310
        %v4163 = vunpack.c.3.s8 %v3311
        %v4164 = vunpack.c.3.s8 %v3312
        %v4165 = vunpack.c.3.s8 %v3313
        %v4166 = vunpack.c.3.s8 %v3314
        %v4167 = vunpack.c.3.s8 %v3315
        %v4168 = vunpack.c.3.s8 %v3316
        %v4169 = vunpack.c.3.s8 %v3317
        %v4170 = vunpack.c.3.s8 %v3318
        %v4171 = vunpack.c.3.s8 %v3319
        %v4172 = vunpack.c.3.s8 %v3320
        %v4173 = vunpack.c.3.s8 %v3321
        %v4174 = vunpack.c.0.s8 %v3322
        %v4175 = vunpack.c.0.s8 %v3323
        %v4176 = vunpack.c.0.s8 %v3324
        %v4177 = vunpack.c.0.s8 %v3325
        %v4178 = vunpack.c.0.s8 %v3326
        %v4179 = vunpack.c.0.s8 %v3327
        %v4180 = vunpack.c.0.s8 %v3328
        %v4181 = vunpack.c.0.s8 %v3329
        %v4182 = vunpack.c.0.s8 %v3330
        %v4183 = vunpack.c.0.s8 %v3331
        %v4184 = vunpack.c.0.s8 %v3332
        %v4185 = vunpack.c.0.s8 %v3333
        %v4186 = vunpack.c.1.s8 %v3322
        %v4187 = vunpack.c.1.s8 %v3323
        %v4188 = vunpack.c.1.s8 %v3324
        %v4189 = vunpack.c.1.s8 %v3325
        %v4190 = vunpack.c.1.s8 %v3326
        %v4191 = vunpack.c.1.s8 %v3327
        %v4192 = vunpack.c.1.s8 %v3328
        %v4193 = vunpack.c.1.s8 %v3329
        %v4194 = vunpack.c.1.s8 %v3330
        %v4195 = vunpack.c.1.s8 %v3331
        %v4196 = vunpack.c.1.s8 %v3332
        %v4197 = vunpack.c.1.s8 %v3333
        %v4198 = vunpack.c.2.s8 %v3322
        %v4199 = vunpack.c.2.s8 %v3323
        %v4200 = vunpack.c.2.s8 %v3324
        %v4201 = vunpack.c.2.s8 %v3325
        %v4202 = vunpack.c.2.s8 %v3326
        %v4203 = vunpack.c.2.s8 %v3327
        %v4204 = vunpack.c.2.s8 %v3328
        %v4205 = vunpack.c.2.s8 %v3329
        %v4206 = vunpack.c.2.s8 %v3330
        %v4207 = vunpack.c.2.s8 %v3331
        %v4208 = vunpack.c.2.s8 %v3332
        %v4209 = vunpack.c.2.s8 %v3333
        %v4210 = vunpack.c.3.s8 %v3322
        %v4211 = vunpack.c.3.s8 %v3323
        %v4212 = vunpack.c.3.s8 %v3324
        %v4213 = vunpack.c.3.s8 %v3325
        %v4214 = vunpack.c.3.s8 %v3326
        %v4215 = vunpack.c.3.s8 %v3327
        %v4216 = vunpack.c.3.s8 %v3328
        %v4217 = vunpack.c.3.s8 %v3329
        %v4218 = vunpack.c.3.s8 %v3330
        %v4219 = vunpack.c.3.s8 %v3331
        %v4220 = vunpack.c.3.s8 %v3332
        %v4221 = vunpack.c.3.s8 %v3333
        %v4222 = vunpack.c.0.s8 %v3334
        %v4223 = vunpack.c.0.s8 %v3335
        %v4224 = vunpack.c.0.s8 %v3336
        %v4225 = vunpack.c.0.s8 %v3337
        %v4226 = vunpack.c.0.s8 %v3338
        %v4227 = vunpack.c.0.s8 %v3339
        %v4228 = vunpack.c.0.s8 %v3340
        %v4229 = vunpack.c.0.s8 %v3341
        %v4230 = vunpack.c.0.s8 %v3342
        %v4231 = vunpack.c.0.s8 %v3343
        %v4232 = vunpack.c.0.s8 %v3344
        %v4233 = vunpack.c.0.s8 %v3345
        %v4234 = vunpack.c.1.s8 %v3334
        %v4235 = vunpack.c.1.s8 %v3335
        %v4236 = vunpack.c.1.s8 %v3336
        %v4237 = vunpack.c.1.s8 %v3337
        %v4238 = vunpack.c.1.s8 %v3338
        %v4239 = vunpack.c.1.s8 %v3339
        %v4240 = vunpack.c.1.s8 %v3340
        %v4241 = vunpack.c.1.s8 %v3341
        %v4242 = vunpack.c.1.s8 %v3342
        %v4243 = vunpack.c.1.s8 %v3343
        %v4244 = vunpack.c.1.s8 %v3344
        %v4245 = vunpack.c.1.s8 %v3345
        %v4246 = vunpack.c.2.s8 %v3334
        %v4247 = vunpack.c.2.s8 %v3335
        %v4248 = vunpack.c.2.s8 %v3336
        %v4249 = vunpack.c.2.s8 %v3337
        %v4250 = vunpack.c.2.s8 %v3338
        %v4251 = vunpack.c.2.s8 %v3339
        %v4252 = vunpack.c.2.s8 %v3340
        %v4253 = vunpack.c.2.s8 %v3341
        %v4254 = vunpack.c.2.s8 %v3342
        %v4255 = vunpack.c.2.s8 %v3343
        %v4256 = vunpack.c.2.s8 %v3344
        %v4257 = vunpack.c.2.s8 %v3345
        %v4258 = vunpack.c.3.s8 %v3334
        %v4259 = vunpack.c.3.s8 %v3335
        %v4260 = vunpack.c.3.s8 %v3336
        %v4261 = vunpack.c.3.s8 %v3337
        %v4262 = vunpack.c.3.s8 %v3338
        %v4263 = vunpack.c.3.s8 %v3339
        %v4264 = vunpack.c.3.s8 %v3340
        %v4265 = vunpack.c.3.s8 %v3341
        %v4266 = vunpack.c.3.s8 %v3342
        %v4267 = vunpack.c.3.s8 %v3343
        %v4268 = vunpack.c.3.s8 %v3344
        %v4269 = vunpack.c.3.s8 %v3345
        %v4270 = vunpack.c.0.s8 %v3346
        %v4271 = vunpack.c.0.s8 %v3347
        %v4272 = vunpack.c.0.s8 %v3348
        %v4273 = vunpack.c.0.s8 %v3349
        %v4274 = vunpack.c.0.s8 %v3350
        %v4275 = vunpack.c.0.s8 %v3351
        %v4276 = vunpack.c.0.s8 %v3352
        %v4277 = vunpack.c.0.s8 %v3353
        %v4278 = vunpack.c.0.s8 %v3354
        %v4279 = vunpack.c.0.s8 %v3355
        %v4280 = vunpack.c.0.s8 %v3356
        %v4281 = vunpack.c.0.s8 %v3357
        %v4282 = vunpack.c.1.s8 %v3346
        %v4283 = vunpack.c.1.s8 %v3347
        %v4284 = vunpack.c.1.s8 %v3348
        %v4285 = vunpack.c.1.s8 %v3349
        %v4286 = vunpack.c.1.s8 %v3350
        %v4287 = vunpack.c.1.s8 %v3351
        %v4288 = vunpack.c.1.s8 %v3352
        %v4289 = vunpack.c.1.s8 %v3353
        %v4290 = vunpack.c.1.s8 %v3354
        %v4291 = vunpack.c.1.s8 %v3355
        %v4292 = vunpack.c.1.s8 %v3356
        %v4293 = vunpack.c.1.s8 %v3357
        %v4294 = vunpack.c.2.s8 %v3346
        %v4295 = vunpack.c.2.s8 %v3347
        %v4296 = vunpack.c.2.s8 %v3348
        %v4297 = vunpack.c.2.s8 %v3349
        %v4298 = vunpack.c.2.s8 %v3350
        %v4299 = vunpack.c.2.s8 %v3351
        %v4300 = vunpack.c.2.s8 %v3352
        %v4301 = vunpack.c.2.s8 %v3353
        %v4302 = vunpack.c.2.s8 %v3354
        %v4303 = vunpack.c.2.s8 %v3355
        %v4304 = vunpack.c.2.s8 %v3356
        %v4305 = vunpack.c.2.s8 %v3357
        %v4306 = vunpack.c.3.s8 %v3346
        %v4307 = vunpack.c.3.s8 %v3347
        %v4308 = vunpack.c.3.s8 %v3348
        %v4309 = vunpack.c.3.s8 %v3349
        %v4310 = vunpack.c.3.s8 %v3350
        %v4311 = vunpack.c.3.s8 %v3351
        %v4312 = vunpack.c.3.s8 %v3352
        %v4313 = vunpack.c.3.s8 %v3353
        %v4314 = vunpack.c.3.s8 %v3354
        %v4315 = vunpack.c.3.s8 %v3355
        %v4316 = vunpack.c.3.s8 %v3356
        %v4317 = vunpack.c.3.s8 %v3357
        %v4318 = vunpack.c.0.s8 %v3358
        %v4319 = vunpack.c.0.s8 %v3359
        %v4320 = vunpack.c.0.s8 %v3360
        %v4321 = vunpack.c.0.s8 %v3361
        %v4322 = vunpack.c.0.s8 %v3362
        %v4323 = vunpack.c.0.s8 %v3363
        %v4324 = vunpack.c.0.s8 %v3364
        %v4325 = vunpack.c.0.s8 %v3365
        %v4326 = vunpack.c.0.s8 %v3366
        %v4327 = vunpack.c.0.s8 %v3367
        %v4328 = vunpack.c.0.s8 %v3368
        %v4329 = vunpack.c.0.s8 %v3369
        %v4330 = vunpack.c.1.s8 %v3358
        %v4331 = vunpack.c.1.s8 %v3359
        %v4332 = vunpack.c.1.s8 %v3360
        %v4333 = vunpack.c.1.s8 %v3361
        %v4334 = vunpack.c.1.s8 %v3362
        %v4335 = vunpack.c.1.s8 %v3363
        %v4336 = vunpack.c.1.s8 %v3364
        %v4337 = vunpack.c.1.s8 %v3365
        %v4338 = vunpack.c.1.s8 %v3366
        %v4339 = vunpack.c.1.s8 %v3367
        %v4340 = vunpack.c.1.s8 %v3368
        %v4341 = vunpack.c.1.s8 %v3369
        %v4342 = vunpack.c.2.s8 %v3358
        %v4343 = vunpack.c.2.s8 %v3359
        %v4344 = vunpack.c.2.s8 %v3360
        %v4345 = vunpack.c.2.s8 %v3361
        %v4346 = vunpack.c.2.s8 %v3362
        %v4347 = vunpack.c.2.s8 %v3363
        %v4348 = vunpack.c.2.s8 %v3364
        %v4349 = vunpack.c.2.s8 %v3365
        %v4350 = vunpack.c.2.s8 %v3366
        %v4351 = vunpack.c.2.s8 %v3367
        %v4352 = vunpack.c.2.s8 %v3368
        %v4353 = vunpack.c.2.s8 %v3369
        %v4354 = vunpack.c.3.s8 %v3358
        %v4355 = vunpack.c.3.s8 %v3359
        %v4356 = vunpack.c.3.s8 %v3360
        %v4357 = vunpack.c.3.s8 %v3361
        %v4358 = vunpack.c.3.s8 %v3362
        %v4359 = vunpack.c.3.s8 %v3363
        %v4360 = vunpack.c.3.s8 %v3364
        %v4361 = vunpack.c.3.s8 %v3365
        %v4362 = vunpack.c.3.s8 %v3366
        %v4363 = vunpack.c.3.s8 %v3367
        %v4364 = vunpack.c.3.s8 %v3368
        %v4365 = vunpack.c.3.s8 %v3369
        %v4366 = vunpack.c.0.s8 %v3370
        %v4367 = vunpack.c.0.s8 %v3371
        %v4368 = vunpack.c.0.s8 %v3372
        %v4369 = vunpack.c.0.s8 %v3373
        %v4370 = vunpack.c.0.s8 %v3374
        %v4371 = vunpack.c.0.s8 %v3375
        %v4372 = vunpack.c.0.s8 %v3376
        %v4373 = vunpack.c.0.s8 %v3377
        %v4374 = vunpack.c.0.s8 %v3378
        %v4375 = vunpack.c.0.s8 %v3379
        %v4376 = vunpack.c.0.s8 %v3380
        %v4377 = vunpack.c.0.s8 %v3381
        %v4378 = vunpack.c.1.s8 %v3370
        %v4379 = vunpack.c.1.s8 %v3371
        %v4380 = vunpack.c.1.s8 %v3372
        %v4381 = vunpack.c.1.s8 %v3373
        %v4382 = vunpack.c.1.s8 %v3374
        %v4383 = vunpack.c.1.s8 %v3375
        %v4384 = vunpack.c.1.s8 %v3376
        %v4385 = vunpack.c.1.s8 %v3377
        %v4386 = vunpack.c.1.s8 %v3378
        %v4387 = vunpack.c.1.s8 %v3379
        %v4388 = vunpack.c.1.s8 %v3380
        %v4389 = vunpack.c.1.s8 %v3381
        %v4390 = vunpack.c.2.s8 %v3370
        %v4391 = vunpack.c.2.s8 %v3371
        %v4392 = vunpack.c.2.s8 %v3372
        %v4393 = vunpack.c.2.s8 %v3373
        %v4394 = vunpack.c.2.s8 %v3374
        %v4395 = vunpack.c.2.s8 %v3375
        %v4396 = vunpack.c.2.s8 %v3376
        %v4397 = vunpack.c.2.s8 %v3377
        %v4398 = vunpack.c.2.s8 %v3378
        %v4399 = vunpack.c.2.s8 %v3379
        %v4400 = vunpack.c.2.s8 %v3380
        %v4401 = vunpack.c.2.s8 %v3381
        %v4402 = vunpack.c.3.s8 %v3370
        %v4403 = vunpack.c.3.s8 %v3371
        %v4404 = vunpack.c.3.s8 %v3372
        %v4405 = vunpack.c.3.s8 %v3373
        %v4406 = vunpack.c.3.s8 %v3374
        %v4407 = vunpack.c.3.s8 %v3375
        %v4408 = vunpack.c.3.s8 %v3376
        %v4409 = vunpack.c.3.s8 %v3377
        %v4410 = vunpack.c.3.s8 %v3378
        %v4411 = vunpack.c.3.s8 %v3379
        %v4412 = vunpack.c.3.s8 %v3380
        %v4413 = vunpack.c.3.s8 %v3381
        %v4414 = vunpack.c.0.s8 %v3382
        %v4415 = vunpack.c.0.s8 %v3383
        %v4416 = vunpack.c.0.s8 %v3384
        %v4417 = vunpack.c.0.s8 %v3385
        %v4418 = vunpack.c.0.s8 %v3386
        %v4419 = vunpack.c.0.s8 %v3387
        %v4420 = vunpack.c.0.s8 %v3388
        %v4421 = vunpack.c.0.s8 %v3389
        %v4422 = vunpack.c.0.s8 %v3390
        %v4423 = vunpack.c.0.s8 %v3391
        %v4424 = vunpack.c.0.s8 %v3392
        %v4425 = vunpack.c.0.s8 %v3393
        %v4426 = vunpack.c.1.s8 %v3382
        %v4427 = vunpack.c.1.s8 %v3383
        %v4428 = vunpack.c.1.s8 %v3384
        %v4429 = vunpack.c.1.s8 %v3385
        %v4430 = vunpack.c.1.s8 %v3386
        %v4431 = vunpack.c.1.s8 %v3387
        %v4432 = vunpack.c.1.s8 %v3388
        %v4433 = vunpack.c.1.s8 %v3389
        %v4434 = vunpack.c.1.s8 %v3390
        %v4435 = vunpack.c.1.s8 %v3391
        %v4436 = vunpack.c.1.s8 %v3392
        %v4437 = vunpack.c.1.s8 %v3393
        %v4438 = vunpack.c.2.s8 %v3382
        %v4439 = vunpack.c.2.s8 %v3383
        %v4440 = vunpack.c.2.s8 %v3384
        %v4441 = vunpack.c.2.s8 %v3385
        %v4442 = vunpack.c.2.s8 %v3386
        %v4443 = vunpack.c.2.s8 %v3387
        %v4444 = vunpack.c.2.s8 %v3388
        %v4445 = vunpack.c.2.s8 %v3389
        %v4446 = vunpack.c.2.s8 %v3390
        %v4447 = vunpack.c.2.s8 %v3391
        %v4448 = vunpack.c.2.s8 %v3392
        %v4449 = vunpack.c.2.s8 %v3393
        %v4450 = vunpack.c.3.s8 %v3382
        %v4451 = vunpack.c.3.s8 %v3383
        %v4452 = vunpack.c.3.s8 %v3384
        %v4453 = vunpack.c.3.s8 %v3385
        %v4454 = vunpack.c.3.s8 %v3386
        %v4455 = vunpack.c.3.s8 %v3387
        %v4456 = vunpack.c.3.s8 %v3388
        %v4457 = vunpack.c.3.s8 %v3389
        %v4458 = vunpack.c.3.s8 %v3390
        %v4459 = vunpack.c.3.s8 %v3391
        %v4460 = vunpack.c.3.s8 %v3392
        %v4461 = vunpack.c.3.s8 %v3393
        %v4462 = vunpack.c.0.s8 %v3394
        %v4463 = vunpack.c.0.s8 %v3395
        %v4464 = vunpack.c.0.s8 %v3396
        %v4465 = vunpack.c.0.s8 %v3397
        %v4466 = vunpack.c.0.s8 %v3398
        %v4467 = vunpack.c.0.s8 %v3399
        %v4468 = vunpack.c.0.s8 %v3400
        %v4469 = vunpack.c.0.s8 %v3401
        %v4470 = vunpack.c.0.s8 %v3402
        %v4471 = vunpack.c.0.s8 %v3403
        %v4472 = vunpack.c.0.s8 %v3404
        %v4473 = vunpack.c.0.s8 %v3405
        %v4474 = vunpack.c.1.s8 %v3394
        %v4475 = vunpack.c.1.s8 %v3395
        %v4476 = vunpack.c.1.s8 %v3396
        %v4477 = vunpack.c.1.s8 %v3397
        %v4478 = vunpack.c.1.s8 %v3398
        %v4479 = vunpack.c.1.s8 %v3399
        %v4480 = vunpack.c.1.s8 %v3400
        %v4481 = vunpack.c.1.s8 %v3401
        %v4482 = vunpack.c.1.s8 %v3402
        %v4483 = vunpack.c.1.s8 %v3403
        %v4484 = vunpack.c.1.s8 %v3404
        %v4485 = vunpack.c.1.s8 %v3405
        %v4486 = vunpack.c.2.s8 %v3394
        %v4487 = vunpack.c.2.s8 %v3395
        %v4488 = vunpack.c.2.s8 %v3396
        %v4489 = vunpack.c.2.s8 %v3397
        %v4490 = vunpack.c.2.s8 %v3398
        %v4491 = vunpack.c.2.s8 %v3399
        %v4492 = vunpack.c.2.s8 %v3400
        %v4493 = vunpack.c.2.s8 %v3401
        %v4494 = vunpack.c.2.s8 %v3402
        %v4495 = vunpack.c.2.s8 %v3403
        %v4496 = vunpack.c.2.s8 %v3404
        %v4497 = vunpack.c.2.s8 %v3405
        %v4498 = vunpack.c.3.s8 %v3394
        %v4499 = vunpack.c.3.s8 %v3395
        %v4500 = vunpack.c.3.s8 %v3396
        %v4501 = vunpack.c.3.s8 %v3397
        %v4502 = vunpack.c.3.s8 %v3398
        %v4503 = vunpack.c.3.s8 %v3399
        %v4504 = vunpack.c.3.s8 %v3400
        %v4505 = vunpack.c.3.s8 %v3401
        %v4506 = vunpack.c.3.s8 %v3402
        %v4507 = vunpack.c.3.s8 %v3403
        %v4508 = vunpack.c.3.s8 %v3404
        %v4509 = vunpack.c.3.s8 %v3405
        %v4510 = vunpack.c.0.s8 %v3406
        %v4511 = vunpack.c.0.s8 %v3407
        %v4512 = vunpack.c.0.s8 %v3408
        %v4513 = vunpack.c.0.s8 %v3409
        %v4514 = vunpack.c.0.s8 %v3410
        %v4515 = vunpack.c.0.s8 %v3411
        %v4516 = vunpack.c.0.s8 %v3412
        %v4517 = vunpack.c.0.s8 %v3413
        %v4518 = vunpack.c.0.s8 %v3414
        %v4519 = vunpack.c.0.s8 %v3415
        %v4520 = vunpack.c.0.s8 %v3416
        %v4521 = vunpack.c.0.s8 %v3417
        %v4522 = vunpack.c.1.s8 %v3406
        %v4523 = vunpack.c.1.s8 %v3407
        %v4524 = vunpack.c.1.s8 %v3408
        %v4525 = vunpack.c.1.s8 %v3409
        %v4526 = vunpack.c.1.s8 %v3410
        %v4527 = vunpack.c.1.s8 %v3411
        %v4528 = vunpack.c.1.s8 %v3412
        %v4529 = vunpack.c.1.s8 %v3413
        %v4530 = vunpack.c.1.s8 %v3414
        %v4531 = vunpack.c.1.s8 %v3415
        %v4532 = vunpack.c.1.s8 %v3416
        %v4533 = vunpack.c.1.s8 %v3417
        %v4534 = vunpack.c.2.s8 %v3406
        %v4535 = vunpack.c.2.s8 %v3407
        %v4536 = vunpack.c.2.s8 %v3408
        %v4537 = vunpack.c.2.s8 %v3409
        %v4538 = vunpack.c.2.s8 %v3410
        %v4539 = vunpack.c.2.s8 %v3411
        %v4540 = vunpack.c.2.s8 %v3412
        %v4541 = vunpack.c.2.s8 %v3413
        %v4542 = vunpack.c.2.s8 %v3414
        %v4543 = vunpack.c.2.s8 %v3415
        %v4544 = vunpack.c.2.s8 %v3416
        %v4545 = vunpack.c.2.s8 %v3417
        %v4546 = vunpack.c.3.s8 %v3406
        %v4547 = vunpack.c.3.s8 %v3407
        %v4548 = vunpack.c.3.s8 %v3408
        %v4549 = vunpack.c.3.s8 %v3409
        %v4550 = vunpack.c.3.s8 %v3410
        %v4551 = vunpack.c.3.s8 %v3411
        %v4552 = vunpack.c.3.s8 %v3412
        %v4553 = vunpack.c.3.s8 %v3413
        %v4554 = vunpack.c.3.s8 %v3414
        %v4555 = vunpack.c.3.s8 %v3415
        %v4556 = vunpack.c.3.s8 %v3416
        %v4557 = vunpack.c.3.s8 %v3417
        %v4558 = vunpack.c.0.s8 %v3418
        %v4559 = vunpack.c.0.s8 %v3419
        %v4560 = vunpack.c.0.s8 %v3420
        %v4561 = vunpack.c.0.s8 %v3421
        %v4562 = vunpack.c.0.s8 %v3422
        %v4563 = vunpack.c.0.s8 %v3423
        %v4564 = vunpack.c.0.s8 %v3424
        %v4565 = vunpack.c.0.s8 %v3425
        %v4566 = vunpack.c.0.s8 %v3426
        %v4567 = vunpack.c.0.s8 %v3427
        %v4568 = vunpack.c.0.s8 %v3428
        %v4569 = vunpack.c.0.s8 %v3429
        %v4570 = vunpack.c.1.s8 %v3418
        %v4571 = vunpack.c.1.s8 %v3419
        %v4572 = vunpack.c.1.s8 %v3420
        %v4573 = vunpack.c.1.s8 %v3421
        %v4574 = vunpack.c.1.s8 %v3422
        %v4575 = vunpack.c.1.s8 %v3423
        %v4576 = vunpack.c.1.s8 %v3424
        %v4577 = vunpack.c.1.s8 %v3425
        %v4578 = vunpack.c.1.s8 %v3426
        %v4579 = vunpack.c.1.s8 %v3427
        %v4580 = vunpack.c.1.s8 %v3428
        %v4581 = vunpack.c.1.s8 %v3429
        %v4582 = vunpack.c.2.s8 %v3418
        %v4583 = vunpack.c.2.s8 %v3419
        %v4584 = vunpack.c.2.s8 %v3420
        %v4585 = vunpack.c.2.s8 %v3421
        %v4586 = vunpack.c.2.s8 %v3422
        %v4587 = vunpack.c.2.s8 %v3423
        %v4588 = vunpack.c.2.s8 %v3424
        %v4589 = vunpack.c.2.s8 %v3425
        %v4590 = vunpack.c.2.s8 %v3426
        %v4591 = vunpack.c.2.s8 %v3427
        %v4592 = vunpack.c.2.s8 %v3428
        %v4593 = vunpack.c.2.s8 %v3429
        %v4594 = vunpack.c.3.s8 %v3418
        %v4595 = vunpack.c.3.s8 %v3419
        %v4596 = vunpack.c.3.s8 %v3420
        %v4597 = vunpack.c.3.s8 %v3421
        %v4598 = vunpack.c.3.s8 %v3422
        %v4599 = vunpack.c.3.s8 %v3423
        %v4600 = vunpack.c.3.s8 %v3424
        %v4601 = vunpack.c.3.s8 %v3425
        %v4602 = vunpack.c.3.s8 %v3426
        %v4603 = vunpack.c.3.s8 %v3427
        %v4604 = vunpack.c.3.s8 %v3428
        %v4605 = vunpack.c.3.s8 %v3429
        %v4606 = vunpack.c.0.s8 %v3430
        %v4607 = vunpack.c.0.s8 %v3431
        %v4608 = vunpack.c.0.s8 %v3432
        %v4609 = vunpack.c.0.s8 %v3433
        %v4610 = vunpack.c.0.s8 %v3434
        %v4611 = vunpack.c.0.s8 %v3435
        %v4612 = vunpack.c.0.s8 %v3436
        %v4613 = vunpack.c.0.s8 %v3437
        %v4614 = vunpack.c.0.s8 %v3438
        %v4615 = vunpack.c.0.s8 %v3439
        %v4616 = vunpack.c.0.s8 %v3440
        %v4617 = vunpack.c.0.s8 %v3441
        %v4618 = vunpack.c.1.s8 %v3430
        %v4619 = vunpack.c.1.s8 %v3431
        %v4620 = vunpack.c.1.s8 %v3432
        %v4621 = vunpack.c.1.s8 %v3433
        %v4622 = vunpack.c.1.s8 %v3434
        %v4623 = vunpack.c.1.s8 %v3435
        %v4624 = vunpack.c.1.s8 %v3436
        %v4625 = vunpack.c.1.s8 %v3437
        %v4626 = vunpack.c.1.s8 %v3438
        %v4627 = vunpack.c.1.s8 %v3439
        %v4628 = vunpack.c.1.s8 %v3440
        %v4629 = vunpack.c.1.s8 %v3441
        %v4630 = vunpack.c.2.s8 %v3430
        %v4631 = vunpack.c.2.s8 %v3431
        %v4632 = vunpack.c.2.s8 %v3432
        %v4633 = vunpack.c.2.s8 %v3433
        %v4634 = vunpack.c.2.s8 %v3434
        %v4635 = vunpack.c.2.s8 %v3435
        %v4636 = vunpack.c.2.s8 %v3436
        %v4637 = vunpack.c.2.s8 %v3437
        %v4638 = vunpack.c.2.s8 %v3438
        %v4639 = vunpack.c.2.s8 %v3439
        %v4640 = vunpack.c.2.s8 %v3440
        %v4641 = vunpack.c.2.s8 %v3441
        %v4642 = vunpack.c.3.s8 %v3430
        %v4643 = vunpack.c.3.s8 %v3431
        %v4644 = vunpack.c.3.s8 %v3432
        %v4645 = vunpack.c.3.s8 %v3433
        %v4646 = vunpack.c.3.s8 %v3434
        %v4647 = vunpack.c.3.s8 %v3435
        %v4648 = vunpack.c.3.s8 %v3436
        %v4649 = vunpack.c.3.s8 %v3437
        %v4650 = vunpack.c.3.s8 %v3438
        %v4651 = vunpack.c.3.s8 %v3439
        %v4652 = vunpack.c.3.s8 %v3440
        %v4653 = vunpack.c.3.s8 %v3441
        %v4654 = vunpack.c.0.s8 %v3442
        %v4655 = vunpack.c.0.s8 %v3443
        %v4656 = vunpack.c.0.s8 %v3444
        %v4657 = vunpack.c.0.s8 %v3445
        %v4658 = vunpack.c.0.s8 %v3446
        %v4659 = vunpack.c.0.s8 %v3447
        %v4660 = vunpack.c.0.s8 %v3448
        %v4661 = vunpack.c.0.s8 %v3449
        %v4662 = vunpack.c.0.s8 %v3450
        %v4663 = vunpack.c.0.s8 %v3451
        %v4664 = vunpack.c.0.s8 %v3452
        %v4665 = vunpack.c.0.s8 %v3453
        %v4666 = vunpack.c.1.s8 %v3442
        %v4667 = vunpack.c.1.s8 %v3443
        %v4668 = vunpack.c.1.s8 %v3444
        %v4669 = vunpack.c.1.s8 %v3445
        %v4670 = vunpack.c.1.s8 %v3446
        %v4671 = vunpack.c.1.s8 %v3447
        %v4672 = vunpack.c.1.s8 %v3448
        %v4673 = vunpack.c.1.s8 %v3449
        %v4674 = vunpack.c.1.s8 %v3450
        %v4675 = vunpack.c.1.s8 %v3451
        %v4676 = vunpack.c.1.s8 %v3452
        %v4677 = vunpack.c.1.s8 %v3453
        %v4678 = vunpack.c.2.s8 %v3442
        %v4679 = vunpack.c.2.s8 %v3443
        %v4680 = vunpack.c.2.s8 %v3444
        %v4681 = vunpack.c.2.s8 %v3445
        %v4682 = vunpack.c.2.s8 %v3446
        %v4683 = vunpack.c.2.s8 %v3447
        %v4684 = vunpack.c.2.s8 %v3448
        %v4685 = vunpack.c.2.s8 %v3449
        %v4686 = vunpack.c.2.s8 %v3450
        %v4687 = vunpack.c.2.s8 %v3451
        %v4688 = vunpack.c.2.s8 %v3452
        %v4689 = vunpack.c.2.s8 %v3453
        %v4690 = vunpack.c.3.s8 %v3442
        %v4691 = vunpack.c.3.s8 %v3443
        %v4692 = vunpack.c.3.s8 %v3444
        %v4693 = vunpack.c.3.s8 %v3445
        %v4694 = vunpack.c.3.s8 %v3446
        %v4695 = vunpack.c.3.s8 %v3447
        %v4696 = vunpack.c.3.s8 %v3448
        %v4697 = vunpack.c.3.s8 %v3449
        %v4698 = vunpack.c.3.s8 %v3450
        %v4699 = vunpack.c.3.s8 %v3451
        %v4700 = vunpack.c.3.s8 %v3452
        %v4701 = vunpack.c.3.s8 %v3453
        %v4702 = vunpack.c.0.s8 %v3454
        %v4703 = vunpack.c.0.s8 %v3455
        %v4704 = vunpack.c.0.s8 %v3456
        %v4705 = vunpack.c.0.s8 %v3457
        %v4706 = vunpack.c.0.s8 %v3458
        %v4707 = vunpack.c.0.s8 %v3459
        %v4708 = vunpack.c.0.s8 %v3460
        %v4709 = vunpack.c.0.s8 %v3461
        %v4710 = vunpack.c.0.s8 %v3462
        %v4711 = vunpack.c.0.s8 %v3463
        %v4712 = vunpack.c.0.s8 %v3464
        %v4713 = vunpack.c.0.s8 %v3465
        %v4714 = vunpack.c.1.s8 %v3454
        %v4715 = vunpack.c.1.s8 %v3455
        %v4716 = vunpack.c.1.s8 %v3456
        %v4717 = vunpack.c.1.s8 %v3457
        %v4718 = vunpack.c.1.s8 %v3458
        %v4719 = vunpack.c.1.s8 %v3459
        %v4720 = vunpack.c.1.s8 %v3460
        %v4721 = vunpack.c.1.s8 %v3461
        %v4722 = vunpack.c.1.s8 %v3462
        %v4723 = vunpack.c.1.s8 %v3463
        %v4724 = vunpack.c.1.s8 %v3464
        %v4725 = vunpack.c.1.s8 %v3465
        %v4726 = vunpack.c.2.s8 %v3454
        %v4727 = vunpack.c.2.s8 %v3455
        %v4728 = vunpack.c.2.s8 %v3456
        %v4729 = vunpack.c.2.s8 %v3457
        %v4730 = vunpack.c.2.s8 %v3458
        %v4731 = vunpack.c.2.s8 %v3459
        %v4732 = vunpack.c.2.s8 %v3460
        %v4733 = vunpack.c.2.s8 %v3461
        %v4734 = vunpack.c.2.s8 %v3462
        %v4735 = vunpack.c.2.s8 %v3463
        %v4736 = vunpack.c.2.s8 %v3464
        %v4737 = vunpack.c.2.s8 %v3465
        %v4738 = vunpack.c.3.s8 %v3454
        %v4739 = vunpack.c.3.s8 %v3455
        %v4740 = vunpack.c.3.s8 %v3456
        %v4741 = vunpack.c.3.s8 %v3457
        %v4742 = vunpack.c.3.s8 %v3458
        %v4743 = vunpack.c.3.s8 %v3459
        %v4744 = vunpack.c.3.s8 %v3460
        %v4745 = vunpack.c.3.s8 %v3461
        %v4746 = vunpack.c.3.s8 %v3462
        %v4747 = vunpack.c.3.s8 %v3463
        %v4748 = vunpack.c.3.s8 %v3464
        %v4749 = vunpack.c.3.s8 %v3465
        %v4750 = vunpack.c.0.s8 %v3466
        %v4751 = vunpack.c.0.s8 %v3467
        %v4752 = vunpack.c.0.s8 %v3468
        %v4753 = vunpack.c.0.s8 %v3469
        %v4754 = vunpack.c.0.s8 %v3470
        %v4755 = vunpack.c.0.s8 %v3471
        %v4756 = vunpack.c.0.s8 %v3472
        %v4757 = vunpack.c.0.s8 %v3473
        %v4758 = vunpack.c.0.s8 %v3474
        %v4759 = vunpack.c.0.s8 %v3475
        %v4760 = vunpack.c.0.s8 %v3476
        %v4761 = vunpack.c.0.s8 %v3477
        %v4762 = vunpack.c.1.s8 %v3466
        %v4763 = vunpack.c.1.s8 %v3467
        %v4764 = vunpack.c.1.s8 %v3468
        %v4765 = vunpack.c.1.s8 %v3469
        %v4766 = vunpack.c.1.s8 %v3470
        %v4767 = vunpack.c.1.s8 %v3471
        %v4768 = vunpack.c.1.s8 %v3472
        %v4769 = vunpack.c.1.s8 %v3473
        %v4770 = vunpack.c.1.s8 %v3474
        %v4771 = vunpack.c.1.s8 %v3475
        %v4772 = vunpack.c.1.s8 %v3476
        %v4773 = vunpack.c.1.s8 %v3477
        %v4774 = vunpack.c.2.s8 %v3466
        %v4775 = vunpack.c.2.s8 %v3467
        %v4776 = vunpack.c.2.s8 %v3468
        %v4777 = vunpack.c.2.s8 %v3469
        %v4778 = vunpack.c.2.s8 %v3470
        %v4779 = vunpack.c.2.s8 %v3471
        %v4780 = vunpack.c.2.s8 %v3472
        %v4781 = vunpack.c.2.s8 %v3473
        %v4782 = vunpack.c.2.s8 %v3474
        %v4783 = vunpack.c.2.s8 %v3475
        %v4784 = vunpack.c.2.s8 %v3476
        %v4785 = vunpack.c.2.s8 %v3477
        %v4786 = vunpack.c.3.s8 %v3466
        %v4787 = vunpack.c.3.s8 %v3467
        %v4788 = vunpack.c.3.s8 %v3468
        %v4789 = vunpack.c.3.s8 %v3469
        %v4790 = vunpack.c.3.s8 %v3470
        %v4791 = vunpack.c.3.s8 %v3471
        %v4792 = vunpack.c.3.s8 %v3472
        %v4793 = vunpack.c.3.s8 %v3473
        %v4794 = vunpack.c.3.s8 %v3474
        %v4795 = vunpack.c.3.s8 %v3475
        %v4796 = vunpack.c.3.s8 %v3476
        %v4797 = vunpack.c.3.s8 %v3477
        %v4798 = vunpack.c.0.s8 %v3478
        %v4799 = vunpack.c.0.s8 %v3479
        %v4800 = vunpack.c.0.s8 %v3480
        %v4801 = vunpack.c.0.s8 %v3481
        %v4802 = vunpack.c.0.s8 %v3482
        %v4803 = vunpack.c.0.s8 %v3483
        %v4804 = vunpack.c.0.s8 %v3484
        %v4805 = vunpack.c.0.s8 %v3485
        %v4806 = vunpack.c.0.s8 %v3486
        %v4807 = vunpack.c.0.s8 %v3487
        %v4808 = vunpack.c.0.s8 %v3488
        %v4809 = vunpack.c.0.s8 %v3489
        %v4810 = vunpack.c.1.s8 %v3478
        %v4811 = vunpack.c.1.s8 %v3479
        %v4812 = vunpack.c.1.s8 %v3480
        %v4813 = vunpack.c.1.s8 %v3481
        %v4814 = vunpack.c.1.s8 %v3482
        %v4815 = vunpack.c.1.s8 %v3483
        %v4816 = vunpack.c.1.s8 %v3484
        %v4817 = vunpack.c.1.s8 %v3485
        %v4818 = vunpack.c.1.s8 %v3486
        %v4819 = vunpack.c.1.s8 %v3487
        %v4820 = vunpack.c.1.s8 %v3488
        %v4821 = vunpack.c.1.s8 %v3489
        %v4822 = vunpack.c.2.s8 %v3478
        %v4823 = vunpack.c.2.s8 %v3479
        %v4824 = vunpack.c.2.s8 %v3480
        %v4825 = vunpack.c.2.s8 %v3481
        %v4826 = vunpack.c.2.s8 %v3482
        %v4827 = vunpack.c.2.s8 %v3483
        %v4828 = vunpack.c.2.s8 %v3484
        %v4829 = vunpack.c.2.s8 %v3485
        %v4830 = vunpack.c.2.s8 %v3486
        %v4831 = vunpack.c.2.s8 %v3487
        %v4832 = vunpack.c.2.s8 %v3488
        %v4833 = vunpack.c.2.s8 %v3489
        %v4834 = vunpack.c.3.s8 %v3478
        %v4835 = vunpack.c.3.s8 %v3479
        %v4836 = vunpack.c.3.s8 %v3480
        %v4837 = vunpack.c.3.s8 %v3481
        %v4838 = vunpack.c.3.s8 %v3482
        %v4839 = vunpack.c.3.s8 %v3483
        %v4840 = vunpack.c.3.s8 %v3484
        %v4841 = vunpack.c.3.s8 %v3485
        %v4842 = vunpack.c.3.s8 %v3486
        %v4843 = vunpack.c.3.s8 %v3487
        %v4844 = vunpack.c.3.s8 %v3488
        %v4845 = vunpack.c.3.s8 %v3489
        %v4846 = vunpack.c.0.s8 %v3490
        %v4847 = vunpack.c.0.s8 %v3491
        %v4848 = vunpack.c.0.s8 %v3492
        %v4849 = vunpack.c.0.s8 %v3493
        %v4850 = vunpack.c.0.s8 %v3494
        %v4851 = vunpack.c.0.s8 %v3495
        %v4852 = vunpack.c.0.s8 %v3496
        %v4853 = vunpack.c.0.s8 %v3497
        %v4854 = vunpack.c.0.s8 %v3498
        %v4855 = vunpack.c.0.s8 %v3499
        %v4856 = vunpack.c.0.s8 %v3500
        %v4857 = vunpack.c.0.s8 %v3501
        %v4858 = vunpack.c.1.s8 %v3490
        %v4859 = vunpack.c.1.s8 %v3491
        %v4860 = vunpack.c.1.s8 %v3492
        %v4861 = vunpack.c.1.s8 %v3493
        %v4862 = vunpack.c.1.s8 %v3494
        %v4863 = vunpack.c.1.s8 %v3495
        %v4864 = vunpack.c.1.s8 %v3496
        %v4865 = vunpack.c.1.s8 %v3497
        %v4866 = vunpack.c.1.s8 %v3498
        %v4867 = vunpack.c.1.s8 %v3499
        %v4868 = vunpack.c.1.s8 %v3500
        %v4869 = vunpack.c.1.s8 %v3501
        %v4870 = vunpack.c.2.s8 %v3490
        %v4871 = vunpack.c.2.s8 %v3491
        %v4872 = vunpack.c.2.s8 %v3492
        %v4873 = vunpack.c.2.s8 %v3493
        %v4874 = vunpack.c.2.s8 %v3494
        %v4875 = vunpack.c.2.s8 %v3495
        %v4876 = vunpack.c.2.s8 %v3496
        %v4877 = vunpack.c.2.s8 %v3497
        %v4878 = vunpack.c.2.s8 %v3498
        %v4879 = vunpack.c.2.s8 %v3499
        %v4880 = vunpack.c.2.s8 %v3500
        %v4881 = vunpack.c.2.s8 %v3501
        %v4882 = vunpack.c.3.s8 %v3490
        %v4883 = vunpack.c.3.s8 %v3491
        %v4884 = vunpack.c.3.s8 %v3492
        %v4885 = vunpack.c.3.s8 %v3493
        %v4886 = vunpack.c.3.s8 %v3494
        %v4887 = vunpack.c.3.s8 %v3495
        %v4888 = vunpack.c.3.s8 %v3496
        %v4889 = vunpack.c.3.s8 %v3497
        %v4890 = vunpack.c.3.s8 %v3498
        %v4891 = vunpack.c.3.s8 %v3499
        %v4892 = vunpack.c.3.s8 %v3500
        %v4893 = vunpack.c.3.s8 %v3501
        %v4894 = vunpack.c.0.s8 %v3502
        %v4895 = vunpack.c.0.s8 %v3503
        %v4896 = vunpack.c.0.s8 %v3504
        %v4897 = vunpack.c.0.s8 %v3505
        %v4898 = vunpack.c.0.s8 %v3506
        %v4899 = vunpack.c.0.s8 %v3507
        %v4900 = vunpack.c.0.s8 %v3508
        %v4901 = vunpack.c.0.s8 %v3509
        %v4902 = vunpack.c.0.s8 %v3510
        %v4903 = vunpack.c.0.s8 %v3511
        %v4904 = vunpack.c.0.s8 %v3512
        %v4905 = vunpack.c.0.s8 %v3513
        %v4906 = vunpack.c.1.s8 %v3502
        %v4907 = vunpack.c.1.s8 %v3503
        %v4908 = vunpack.c.1.s8 %v3504
        %v4909 = vunpack.c.1.s8 %v3505
        %v4910 = vunpack.c.1.s8 %v3506
        %v4911 = vunpack.c.1.s8 %v3507
        %v4912 = vunpack.c.1.s8 %v3508
        %v4913 = vunpack.c.1.s8 %v3509
        %v4914 = vunpack.c.1.s8 %v3510
        %v4915 = vunpack.c.1.s8 %v3511
        %v4916 = vunpack.c.1.s8 %v3512
        %v4917 = vunpack.c.1.s8 %v3513
        %v4918 = vunpack.c.2.s8 %v3502
        %v4919 = vunpack.c.2.s8 %v3503
        %v4920 = vunpack.c.2.s8 %v3504
        %v4921 = vunpack.c.2.s8 %v3505
        %v4922 = vunpack.c.2.s8 %v3506
        %v4923 = vunpack.c.2.s8 %v3507
        %v4924 = vunpack.c.2.s8 %v3508
        %v4925 = vunpack.c.2.s8 %v3509
        %v4926 = vunpack.c.2.s8 %v3510
        %v4927 = vunpack.c.2.s8 %v3511
        %v4928 = vunpack.c.2.s8 %v3512
        %v4929 = vunpack.c.2.s8 %v3513
        %v4930 = vunpack.c.3.s8 %v3502
        %v4931 = vunpack.c.3.s8 %v3503
        %v4932 = vunpack.c.3.s8 %v3504
        %v4933 = vunpack.c.3.s8 %v3505
        %v4934 = vunpack.c.3.s8 %v3506
        %v4935 = vunpack.c.3.s8 %v3507
        %v4936 = vunpack.c.3.s8 %v3508
        %v4937 = vunpack.c.3.s8 %v3509
        %v4938 = vunpack.c.3.s8 %v3510
        %v4939 = vunpack.c.3.s8 %v3511
        %v4940 = vunpack.c.3.s8 %v3512
        %v4941 = vunpack.c.3.s8 %v3513
        %v4942 = vunpack.c.0.s8 %v3514
        %v4943 = vunpack.c.0.s8 %v3515
        %v4944 = vunpack.c.0.s8 %v3516
        %v4945 = vunpack.c.0.s8 %v3517
        %v4946 = vunpack.c.0.s8 %v3518
        %v4947 = vunpack.c.0.s8 %v3519
        %v4948 = vunpack.c.0.s8 %v3520
        %v4949 = vunpack.c.0.s8 %v3521
        %v4950 = vunpack.c.0.s8 %v3522
        %v4951 = vunpack.c.0.s8 %v3523
        %v4952 = vunpack.c.0.s8 %v3524
        %v4953 = vunpack.c.0.s8 %v3525
        %v4954 = vunpack.c.1.s8 %v3514
        %v4955 = vunpack.c.1.s8 %v3515
        %v4956 = vunpack.c.1.s8 %v3516
        %v4957 = vunpack.c.1.s8 %v3517
        %v4958 = vunpack.c.1.s8 %v3518
        %v4959 = vunpack.c.1.s8 %v3519
        %v4960 = vunpack.c.1.s8 %v3520
        %v4961 = vunpack.c.1.s8 %v3521
        %v4962 = vunpack.c.1.s8 %v3522
        %v4963 = vunpack.c.1.s8 %v3523
        %v4964 = vunpack.c.1.s8 %v3524
        %v4965 = vunpack.c.1.s8 %v3525
        %v4966 = vunpack.c.2.s8 %v3514
        %v4967 = vunpack.c.2.s8 %v3515
        %v4968 = vunpack.c.2.s8 %v3516
        %v4969 = vunpack.c.2.s8 %v3517
        %v4970 = vunpack.c.2.s8 %v3518
        %v4971 = vunpack.c.2.s8 %v3519
        %v4972 = vunpack.c.2.s8 %v3520
        %v4973 = vunpack.c.2.s8 %v3521
        %v4974 = vunpack.c.2.s8 %v3522
        %v4975 = vunpack.c.2.s8 %v3523
        %v4976 = vunpack.c.2.s8 %v3524
        %v4977 = vunpack.c.2.s8 %v3525
        %v4978 = vunpack.c.3.s8 %v3514
        %v4979 = vunpack.c.3.s8 %v3515
        %v4980 = vunpack.c.3.s8 %v3516
        %v4981 = vunpack.c.3.s8 %v3517
        %v4982 = vunpack.c.3.s8 %v3518
        %v4983 = vunpack.c.3.s8 %v3519
        %v4984 = vunpack.c.3.s8 %v3520
        %v4985 = vunpack.c.3.s8 %v3521
        %v4986 = vunpack.c.3.s8 %v3522
        %v4987 = vunpack.c.3.s8 %v3523
        %v4988 = vunpack.c.3.s8 %v3524
        %v4989 = vunpack.c.3.s8 %v3525
        %v4990 = vunpack.c.0.s8 %v3526
        %v4991 = vunpack.c.0.s8 %v3527
        %v4992 = vunpack.c.0.s8 %v3528
        %v4993 = vunpack.c.0.s8 %v3529
        %v4994 = vunpack.c.0.s8 %v3530
        %v4995 = vunpack.c.0.s8 %v3531
        %v4996 = vunpack.c.0.s8 %v3532
        %v4997 = vunpack.c.0.s8 %v3533
        %v4998 = vunpack.c.0.s8 %v3534
        %v4999 = vunpack.c.0.s8 %v3535
        %v5000 = vunpack.c.0.s8 %v3536
        %v5001 = vunpack.c.0.s8 %v3537
        %v5002 = vunpack.c.1.s8 %v3526
        %v5003 = vunpack.c.1.s8 %v3527
        %v5004 = vunpack.c.1.s8 %v3528
        %v5005 = vunpack.c.1.s8 %v3529
        %v5006 = vunpack.c.1.s8 %v3530
        %v5007 = vunpack.c.1.s8 %v3531
        %v5008 = vunpack.c.1.s8 %v3532
        %v5009 = vunpack.c.1.s8 %v3533
        %v5010 = vunpack.c.1.s8 %v3534
        %v5011 = vunpack.c.1.s8 %v3535
        %v5012 = vunpack.c.1.s8 %v3536
        %v5013 = vunpack.c.1.s8 %v3537
        %v5014 = vunpack.c.2.s8 %v3526
        %v5015 = vunpack.c.2.s8 %v3527
        %v5016 = vunpack.c.2.s8 %v3528
        %v5017 = vunpack.c.2.s8 %v3529
        %v5018 = vunpack.c.2.s8 %v3530
        %v5019 = vunpack.c.2.s8 %v3531
        %v5020 = vunpack.c.2.s8 %v3532
        %v5021 = vunpack.c.2.s8 %v3533
        %v5022 = vunpack.c.2.s8 %v3534
        %v5023 = vunpack.c.2.s8 %v3535
        %v5024 = vunpack.c.2.s8 %v3536
        %v5025 = vunpack.c.2.s8 %v3537
        %v5026 = vunpack.c.3.s8 %v3526
        %v5027 = vunpack.c.3.s8 %v3527
        %v5028 = vunpack.c.3.s8 %v3528
        %v5029 = vunpack.c.3.s8 %v3529
        %v5030 = vunpack.c.3.s8 %v3530
        %v5031 = vunpack.c.3.s8 %v3531
        %v5032 = vunpack.c.3.s8 %v3532
        %v5033 = vunpack.c.3.s8 %v3533
        %v5034 = vunpack.c.3.s8 %v3534
        %v5035 = vunpack.c.3.s8 %v3535
        %v5036 = vunpack.c.3.s8 %v3536
        %v5037 = vunpack.c.3.s8 %v3537
        %v5038 = vunpack.c.0.s8 %v3538
        %v5039 = vunpack.c.0.s8 %v3539
        %v5040 = vunpack.c.0.s8 %v3540
        %v5041 = vunpack.c.0.s8 %v3541
        %v5042 = vunpack.c.0.s8 %v3542
        %v5043 = vunpack.c.0.s8 %v3543
        %v5044 = vunpack.c.0.s8 %v3544
        %v5045 = vunpack.c.0.s8 %v3545
        %v5046 = vunpack.c.0.s8 %v3546
        %v5047 = vunpack.c.0.s8 %v3547
        %v5048 = vunpack.c.0.s8 %v3548
        %v5049 = vunpack.c.0.s8 %v3549
        %v5050 = vunpack.c.1.s8 %v3538
        %v5051 = vunpack.c.1.s8 %v3539
        %v5052 = vunpack.c.1.s8 %v3540
        %v5053 = vunpack.c.1.s8 %v3541
        %v5054 = vunpack.c.1.s8 %v3542
        %v5055 = vunpack.c.1.s8 %v3543
        %v5056 = vunpack.c.1.s8 %v3544
        %v5057 = vunpack.c.1.s8 %v3545
        %v5058 = vunpack.c.1.s8 %v3546
        %v5059 = vunpack.c.1.s8 %v3547
        %v5060 = vunpack.c.1.s8 %v3548
        %v5061 = vunpack.c.1.s8 %v3549
        %v5062 = vunpack.c.2.s8 %v3538
        %v5063 = vunpack.c.2.s8 %v3539
        %v5064 = vunpack.c.2.s8 %v3540
        %v5065 = vunpack.c.2.s8 %v3541
        %v5066 = vunpack.c.2.s8 %v3542
        %v5067 = vunpack.c.2.s8 %v3543
        %v5068 = vunpack.c.2.s8 %v3544
        %v5069 = vunpack.c.2.s8 %v3545
        %v5070 = vunpack.c.2.s8 %v3546
        %v5071 = vunpack.c.2.s8 %v3547
        %v5072 = vunpack.c.2.s8 %v3548
        %v5073 = vunpack.c.2.s8 %v3549
        %v5074 = vunpack.c.3.s8 %v3538
        %v5075 = vunpack.c.3.s8 %v3539
        %v5076 = vunpack.c.3.s8 %v3540
        %v5077 = vunpack.c.3.s8 %v3541
        %v5078 = vunpack.c.3.s8 %v3542
        %v5079 = vunpack.c.3.s8 %v3543
        %v5080 = vunpack.c.3.s8 %v3544
        %v5081 = vunpack.c.3.s8 %v3545
        %v5082 = vunpack.c.3.s8 %v3546
        %v5083 = vunpack.c.3.s8 %v3547
        %v5084 = vunpack.c.3.s8 %v3548
        %v5085 = vunpack.c.3.s8 %v3549
        %v5086 = vcvt.s32.f32 %v3550
        %v5087 = vcvt.s32.f32 %v3551
        %v5088 = vcvt.s32.f32 %v3552
        %v5089 = vcvt.s32.f32 %v3553
        %v5090 = vcvt.s32.f32 %v3554
        %v5091 = vcvt.s32.f32 %v3555
        %v5092 = vcvt.s32.f32 %v3556
        %v5093 = vcvt.s32.f32 %v3557
        %v5094 = vcvt.s32.f32 %v3558
        %v5095 = vcvt.s32.f32 %v3559
        %v5096 = vcvt.s32.f32 %v3560
        %v5097 = vcvt.s32.f32 %v3561
        %v5098 = vcvt.s32.f32 %v3562
        %v5099 = vcvt.s32.f32 %v3563
        %v5100 = vcvt.s32.f32 %v3564
        %v5101 = vcvt.s32.f32 %v3565
        %v5102 = vcvt.s32.f32 %v3566
        %v5103 = vcvt.s32.f32 %v3567
        %v5104 = vcvt.s32.f32 %v3568
        %v5105 = vcvt.s32.f32 %v3569
        %v5106 = vcvt.s32.f32 %v3570
        %v5107 = vcvt.s32.f32 %v3571
        %v5108 = vcvt.s32.f32 %v3572
        %v5109 = vcvt.s32.f32 %v3573
        %v5110 = vcvt.s32.f32 %v3574
        %v5111 = vcvt.s32.f32 %v3575
        %v5112 = vcvt.s32.f32 %v3576
        %v5113 = vcvt.s32.f32 %v3577
        %v5114 = vcvt.s32.f32 %v3578
        %v5115 = vcvt.s32.f32 %v3579
        %v5116 = vcvt.s32.f32 %v3580
        %v5117 = vcvt.s32.f32 %v3581
        %v5118 = vcvt.s32.f32 %v3582
        %v5119 = vcvt.s32.f32 %v3583
        %v5120 = vcvt.s32.f32 %v3584
        %v5121 = vcvt.s32.f32 %v3585
        %v5122 = vcvt.s32.f32 %v3586
        %v5123 = vcvt.s32.f32 %v3587
        %v5124 = vcvt.s32.f32 %v3588
        %v5125 = vcvt.s32.f32 %v3589
        %v5126 = vcvt.s32.f32 %v3590
        %v5127 = vcvt.s32.f32 %v3591
        %v5128 = vcvt.s32.f32 %v3592
        %v5129 = vcvt.s32.f32 %v3593
        %v5130 = vcvt.s32.f32 %v3594
        %v5131 = vcvt.s32.f32 %v3595
        %v5132 = vcvt.s32.f32 %v3596
        %v5133 = vcvt.s32.f32 %v3597
        %v5134 = vcvt.s32.f32 %v3598
        %v5135 = vcvt.s32.f32 %v3599
        %v5136 = vcvt.s32.f32 %v3600
        %v5137 = vcvt.s32.f32 %v3601
        %v5138 = vcvt.s32.f32 %v3602
        %v5139 = vcvt.s32.f32 %v3603
        %v5140 = vcvt.s32.f32 %v3604
        %v5141 = vcvt.s32.f32 %v3605
        %v5142 = vcvt.s32.f32 %v3606
        %v5143 = vcvt.s32.f32 %v3607
        %v5144 = vcvt.s32.f32 %v3608
        %v5145 = vcvt.s32.f32 %v3609
        %v5146 = vcvt.s32.f32 %v3610
        %v5147 = vcvt.s32.f32 %v3611
        %v5148 = vcvt.s32.f32 %v3612
        %v5149 = vcvt.s32.f32 %v3613
        %v5150 = vcvt.s32.f32 %v3614
        %v5151 = vcvt.s32.f32 %v3615
        %v5152 = vcvt.s32.f32 %v3616
        %v5153 = vcvt.s32.f32 %v3617
        %v5154 = vcvt.s32.f32 %v3618
        %v5155 = vcvt.s32.f32 %v3619
        %v5156 = vcvt.s32.f32 %v3620
        %v5157 = vcvt.s32.f32 %v3621
        %v5158 = vcvt.s32.f32 %v3622
        %v5159 = vcvt.s32.f32 %v3623
        %v5160 = vcvt.s32.f32 %v3624
        %v5161 = vcvt.s32.f32 %v3625
        %v5162 = vcvt.s32.f32 %v3626
        %v5163 = vcvt.s32.f32 %v3627
        %v5164 = vcvt.s32.f32 %v3628
        %v5165 = vcvt.s32.f32 %v3629
        %v5166 = vcvt.s32.f32 %v3630
        %v5167 = vcvt.s32.f32 %v3631
        %v5168 = vcvt.s32.f32 %v3632
        %v5169 = vcvt.s32.f32 %v3633
        %v5170 = vcvt.s32.f32 %v3634
        %v5171 = vcvt.s32.f32 %v3635
        %v5172 = vcvt.s32.f32 %v3636
        %v5173 = vcvt.s32.f32 %v3637
        %v5174 = vcvt.s32.f32 %v3638
        %v5175 = vcvt.s32.f32 %v3639
        %v5176 = vcvt.s32.f32 %v3640
        %v5177 = vcvt.s32.f32 %v3641
        %v5178 = vcvt.s32.f32 %v3642
        %v5179 = vcvt.s32.f32 %v3643
        %v5180 = vcvt.s32.f32 %v3644
        %v5181 = vcvt.s32.f32 %v3645
        %v5182 = vcvt.s32.f32 %v3646
        %v5183 = vcvt.s32.f32 %v3647
        %v5184 = vcvt.s32.f32 %v3648
        %v5185 = vcvt.s32.f32 %v3649
        %v5186 = vcvt.s32.f32 %v3650
        %v5187 = vcvt.s32.f32 %v3651
        %v5188 = vcvt.s32.f32 %v3652
        %v5189 = vcvt.s32.f32 %v3653
        %v5190 = vcvt.s32.f32 %v3654
        %v5191 = vcvt.s32.f32 %v3655
        %v5192 = vcvt.s32.f32 %v3656
        %v5193 = vcvt.s32.f32 %v3657
        %v5194 = vcvt.s32.f32 %v3658
        %v5195 = vcvt.s32.f32 %v3659
        %v5196 = vcvt.s32.f32 %v3660
        %v5197 = vcvt.s32.f32 %v3661
        %v5198 = vcvt.s32.f32 %v3662
        %v5199 = vcvt.s32.f32 %v3663
        %v5200 = vcvt.s32.f32 %v3664
        %v5201 = vcvt.s32.f32 %v3665
        %v5202 = vcvt.s32.f32 %v3666
        %v5203 = vcvt.s32.f32 %v3667
        %v5204 = vcvt.s32.f32 %v3668
        %v5205 = vcvt.s32.f32 %v3669
        %v5206 = vcvt.s32.f32 %v3670
        %v5207 = vcvt.s32.f32 %v3671
        %v5208 = vcvt.s32.f32 %v3672
        %v5209 = vcvt.s32.f32 %v3673
        %v5210 = vcvt.s32.f32 %v3674
        %v5211 = vcvt.s32.f32 %v3675
        %v5212 = vcvt.s32.f32 %v3676
        %v5213 = vcvt.s32.f32 %v3677
        %v5214 = vcvt.s32.f32 %v3678
        %v5215 = vcvt.s32.f32 %v3679
        %v5216 = vcvt.s32.f32 %v3680
        %v5217 = vcvt.s32.f32 %v3681
        %v5218 = vcvt.s32.f32 %v3682
        %v5219 = vcvt.s32.f32 %v3683
        %v5220 = vcvt.s32.f32 %v3684
        %v5221 = vcvt.s32.f32 %v3685
        %v5222 = vcvt.s32.f32 %v3686
        %v5223 = vcvt.s32.f32 %v3687
        %v5224 = vcvt.s32.f32 %v3688
        %v5225 = vcvt.s32.f32 %v3689
        %v5226 = vcvt.s32.f32 %v3690
        %v5227 = vcvt.s32.f32 %v3691
        %v5228 = vcvt.s32.f32 %v3692
        %v5229 = vcvt.s32.f32 %v3693
        %v5230 = vcvt.s32.f32 %v3694
        %v5231 = vcvt.s32.f32 %v3695
        %v5232 = vcvt.s32.f32 %v3696
        %v5233 = vcvt.s32.f32 %v3697
        %v5234 = vcvt.s32.f32 %v3698
        %v5235 = vcvt.s32.f32 %v3699
        %v5236 = vcvt.s32.f32 %v3700
        %v5237 = vcvt.s32.f32 %v3701
        %v5238 = vcvt.s32.f32 %v3702
        %v5239 = vcvt.s32.f32 %v3703
        %v5240 = vcvt.s32.f32 %v3704
        %v5241 = vcvt.s32.f32 %v3705
        %v5242 = vcvt.s32.f32 %v3706
        %v5243 = vcvt.s32.f32 %v3707
        %v5244 = vcvt.s32.f32 %v3708
        %v5245 = vcvt.s32.f32 %v3709
        %v5246 = vcvt.s32.f32 %v3710
        %v5247 = vcvt.s32.f32 %v3711
        %v5248 = vcvt.s32.f32 %v3712
        %v5249 = vcvt.s32.f32 %v3713
        %v5250 = vcvt.s32.f32 %v3714
        %v5251 = vcvt.s32.f32 %v3715
        %v5252 = vcvt.s32.f32 %v3716
        %v5253 = vcvt.s32.f32 %v3717
        %v5254 = vcvt.s32.f32 %v3718
        %v5255 = vcvt.s32.f32 %v3719
        %v5256 = vcvt.s32.f32 %v3720
        %v5257 = vcvt.s32.f32 %v3721
        %v5258 = vcvt.s32.f32 %v3722
        %v5259 = vcvt.s32.f32 %v3723
        %v5260 = vcvt.s32.f32 %v3724
        %v5261 = vcvt.s32.f32 %v3725
        %v5262 = vcvt.s32.f32 %v3726
        %v5263 = vcvt.s32.f32 %v3727
        %v5264 = vcvt.s32.f32 %v3728
        %v5265 = vcvt.s32.f32 %v3729
        %v5266 = vcvt.s32.f32 %v3730
        %v5267 = vcvt.s32.f32 %v3731
        %v5268 = vcvt.s32.f32 %v3732
        %v5269 = vcvt.s32.f32 %v3733
        %v5270 = vcvt.s32.f32 %v3734
        %v5271 = vcvt.s32.f32 %v3735
        %v5272 = vcvt.s32.f32 %v3736
        %v5273 = vcvt.s32.f32 %v3737
        %v5274 = vcvt.s32.f32 %v3738
        %v5275 = vcvt.s32.f32 %v3739
        %v5276 = vcvt.s32.f32 %v3740
        %v5277 = vcvt.s32.f32 %v3741
        %v5278 = vcvt.s32.f32 %v3742
        %v5279 = vcvt.s32.f32 %v3743
        %v5280 = vcvt.s32.f32 %v3744
        %v5281 = vcvt.s32.f32 %v3745
        %v5282 = vcvt.s32.f32 %v3746
        %v5283 = vcvt.s32.f32 %v3747
        %v5284 = vcvt.s32.f32 %v3748
        %v5285 = vcvt.s32.f32 %v3749
        %v5286 = vcvt.s32.f32 %v3750
        %v5287 = vcvt.s32.f32 %v3751
        %v5288 = vcvt.s32.f32 %v3752
        %v5289 = vcvt.s32.f32 %v3753
        %v5290 = vcvt.s32.f32 %v3754
        %v5291 = vcvt.s32.f32 %v3755
        %v5292 = vcvt.s32.f32 %v3756
        %v5293 = vcvt.s32.f32 %v3757
        %v5294 = vcvt.s32.f32 %v3758
        %v5295 = vcvt.s32.f32 %v3759
        %v5296 = vcvt.s32.f32 %v3760
        %v5297 = vcvt.s32.f32 %v3761
        %v5298 = vcvt.s32.f32 %v3762
        %v5299 = vcvt.s32.f32 %v3763
        %v5300 = vcvt.s32.f32 %v3764
        %v5301 = vcvt.s32.f32 %v3765
        %v5302 = vcvt.s32.f32 %v3766
        %v5303 = vcvt.s32.f32 %v3767
        %v5304 = vcvt.s32.f32 %v3768
        %v5305 = vcvt.s32.f32 %v3769
        %v5306 = vcvt.s32.f32 %v3770
        %v5307 = vcvt.s32.f32 %v3771
        %v5308 = vcvt.s32.f32 %v3772
        %v5309 = vcvt.s32.f32 %v3773
        %v5310 = vcvt.s32.f32 %v3774
        %v5311 = vcvt.s32.f32 %v3775
        %v5312 = vcvt.s32.f32 %v3776
        %v5313 = vcvt.s32.f32 %v3777
        %v5314 = vcvt.s32.f32 %v3778
        %v5315 = vcvt.s32.f32 %v3779
        %v5316 = vcvt.s32.f32 %v3780
        %v5317 = vcvt.s32.f32 %v3781
        %v5318 = vcvt.s32.f32 %v3782
        %v5319 = vcvt.s32.f32 %v3783
        %v5320 = vcvt.s32.f32 %v3784
        %v5321 = vcvt.s32.f32 %v3785
        %v5322 = vcvt.s32.f32 %v3786
        %v5323 = vcvt.s32.f32 %v3787
        %v5324 = vcvt.s32.f32 %v3788
        %v5325 = vcvt.s32.f32 %v3789
        %v5326 = vcvt.s32.f32 %v3790
        %v5327 = vcvt.s32.f32 %v3791
        %v5328 = vcvt.s32.f32 %v3792
        %v5329 = vcvt.s32.f32 %v3793
        %v5330 = vcvt.s32.f32 %v3794
        %v5331 = vcvt.s32.f32 %v3795
        %v5332 = vcvt.s32.f32 %v3796
        %v5333 = vcvt.s32.f32 %v3797
        %v5334 = vcvt.s32.f32 %v3798
        %v5335 = vcvt.s32.f32 %v3799
        %v5336 = vcvt.s32.f32 %v3800
        %v5337 = vcvt.s32.f32 %v3801
        %v5338 = vcvt.s32.f32 %v3802
        %v5339 = vcvt.s32.f32 %v3803
        %v5340 = vcvt.s32.f32 %v3804
        %v5341 = vcvt.s32.f32 %v3805
        %v5342 = vcvt.s32.f32 %v3806
        %v5343 = vcvt.s32.f32 %v3807
        %v5344 = vcvt.s32.f32 %v3808
        %v5345 = vcvt.s32.f32 %v3809
        %v5346 = vcvt.s32.f32 %v3810
        %v5347 = vcvt.s32.f32 %v3811
        %v5348 = vcvt.s32.f32 %v3812
        %v5349 = vcvt.s32.f32 %v3813
        %v5350 = vcvt.s32.f32 %v3814
        %v5351 = vcvt.s32.f32 %v3815
        %v5352 = vcvt.s32.f32 %v3816
        %v5353 = vcvt.s32.f32 %v3817
        %v5354 = vcvt.s32.f32 %v3818
        %v5355 = vcvt.s32.f32 %v3819
        %v5356 = vcvt.s32.f32 %v3820
        %v5357 = vcvt.s32.f32 %v3821
        %v5358 = vcvt.s32.f32 %v3822
        %v5359 = vcvt.s32.f32 %v3823
        %v5360 = vcvt.s32.f32 %v3824
        %v5361 = vcvt.s32.f32 %v3825
        %v5362 = vcvt.s32.f32 %v3826
        %v5363 = vcvt.s32.f32 %v3827
        %v5364 = vcvt.s32.f32 %v3828
        %v5365 = vcvt.s32.f32 %v3829
        %v5366 = vcvt.s32.f32 %v3830
        %v5367 = vcvt.s32.f32 %v3831
        %v5368 = vcvt.s32.f32 %v3832
        %v5369 = vcvt.s32.f32 %v3833
        %v5370 = vcvt.s32.f32 %v3834
        %v5371 = vcvt.s32.f32 %v3835
        %v5372 = vcvt.s32.f32 %v3836
        %v5373 = vcvt.s32.f32 %v3837
        %v5374 = vcvt.s32.f32 %v3838
        %v5375 = vcvt.s32.f32 %v3839
        %v5376 = vcvt.s32.f32 %v3840
        %v5377 = vcvt.s32.f32 %v3841
        %v5378 = vcvt.s32.f32 %v3842
        %v5379 = vcvt.s32.f32 %v3843
        %v5380 = vcvt.s32.f32 %v3844
        %v5381 = vcvt.s32.f32 %v3845
        %v5382 = vcvt.s32.f32 %v3846
        %v5383 = vcvt.s32.f32 %v3847
        %v5384 = vcvt.s32.f32 %v3848
        %v5385 = vcvt.s32.f32 %v3849
        %v5386 = vcvt.s32.f32 %v3850
        %v5387 = vcvt.s32.f32 %v3851
        %v5388 = vcvt.s32.f32 %v3852
        %v5389 = vcvt.s32.f32 %v3853
        %v5390 = vcvt.s32.f32 %v3854
        %v5391 = vcvt.s32.f32 %v3855
        %v5392 = vcvt.s32.f32 %v3856
        %v5393 = vcvt.s32.f32 %v3857
        %v5394 = vcvt.s32.f32 %v3858
        %v5395 = vcvt.s32.f32 %v3859
        %v5396 = vcvt.s32.f32 %v3860
        %v5397 = vcvt.s32.f32 %v3861
        %v5398 = vcvt.s32.f32 %v3862
        %v5399 = vcvt.s32.f32 %v3863
        %v5400 = vcvt.s32.f32 %v3864
        %v5401 = vcvt.s32.f32 %v3865
        %v5402 = vcvt.s32.f32 %v3866
        %v5403 = vcvt.s32.f32 %v3867
        %v5404 = vcvt.s32.f32 %v3868
        %v5405 = vcvt.s32.f32 %v3869
        %v5406 = vcvt.s32.f32 %v3870
        %v5407 = vcvt.s32.f32 %v3871
        %v5408 = vcvt.s32.f32 %v3872
        %v5409 = vcvt.s32.f32 %v3873
        %v5410 = vcvt.s32.f32 %v3874
        %v5411 = vcvt.s32.f32 %v3875
        %v5412 = vcvt.s32.f32 %v3876
        %v5413 = vcvt.s32.f32 %v3877
        %v5414 = vcvt.s32.f32 %v3878
        %v5415 = vcvt.s32.f32 %v3879
        %v5416 = vcvt.s32.f32 %v3880
        %v5417 = vcvt.s32.f32 %v3881
        %v5418 = vcvt.s32.f32 %v3882
        %v5419 = vcvt.s32.f32 %v3883
        %v5420 = vcvt.s32.f32 %v3884
        %v5421 = vcvt.s32.f32 %v3885
        %v5422 = vcvt.s32.f32 %v3886
        %v5423 = vcvt.s32.f32 %v3887
        %v5424 = vcvt.s32.f32 %v3888
        %v5425 = vcvt.s32.f32 %v3889
        %v5426 = vcvt.s32.f32 %v3890
        %v5427 = vcvt.s32.f32 %v3891
        %v5428 = vcvt.s32.f32 %v3892
        %v5429 = vcvt.s32.f32 %v3893
        %v5430 = vcvt.s32.f32 %v3894
        %v5431 = vcvt.s32.f32 %v3895
        %v5432 = vcvt.s32.f32 %v3896
        %v5433 = vcvt.s32.f32 %v3897
        %v5434 = vcvt.s32.f32 %v3898
        %v5435 = vcvt.s32.f32 %v3899
        %v5436 = vcvt.s32.f32 %v3900
        %v5437 = vcvt.s32.f32 %v3901
        %v5438 = vcvt.s32.f32 %v3902
        %v5439 = vcvt.s32.f32 %v3903
        %v5440 = vcvt.s32.f32 %v3904
        %v5441 = vcvt.s32.f32 %v3905
        %v5442 = vcvt.s32.f32 %v3906
        %v5443 = vcvt.s32.f32 %v3907
        %v5444 = vcvt.s32.f32 %v3908
        %v5445 = vcvt.s32.f32 %v3909
        %v5446 = vcvt.s32.f32 %v3910
        %v5447 = vcvt.s32.f32 %v3911
        %v5448 = vcvt.s32.f32 %v3912
        %v5449 = vcvt.s32.f32 %v3913
        %v5450 = vcvt.s32.f32 %v3914
        %v5451 = vcvt.s32.f32 %v3915
        %v5452 = vcvt.s32.f32 %v3916
        %v5453 = vcvt.s32.f32 %v3917
        %v5454 = vcvt.s32.f32 %v3918
        %v5455 = vcvt.s32.f32 %v3919
        %v5456 = vcvt.s32.f32 %v3920
        %v5457 = vcvt.s32.f32 %v3921
        %v5458 = vcvt.s32.f32 %v3922
        %v5459 = vcvt.s32.f32 %v3923
        %v5460 = vcvt.s32.f32 %v3924
        %v5461 = vcvt.s32.f32 %v3925
        %v5462 = vcvt.s32.f32 %v3926
        %v5463 = vcvt.s32.f32 %v3927
        %v5464 = vcvt.s32.f32 %v3928
        %v5465 = vcvt.s32.f32 %v3929
        %v5466 = vcvt.s32.f32 %v3930
        %v5467 = vcvt.s32.f32 %v3931
        %v5468 = vcvt.s32.f32 %v3932
        %v5469 = vcvt.s32.f32 %v3933
        %v5470 = vcvt.s32.f32 %v3934
        %v5471 = vcvt.s32.f32 %v3935
        %v5472 = vcvt.s32.f32 %v3936
        %v5473 = vcvt.s32.f32 %v3937
        %v5474 = vcvt.s32.f32 %v3938
        %v5475 = vcvt.s32.f32 %v3939
        %v5476 = vcvt.s32.f32 %v3940
        %v5477 = vcvt.s32.f32 %v3941
        %v5478 = vcvt.s32.f32 %v3942
        %v5479 = vcvt.s32.f32 %v3943
        %v5480 = vcvt.s32.f32 %v3944
        %v5481 = vcvt.s32.f32 %v3945
        %v5482 = vcvt.s32.f32 %v3946
        %v5483 = vcvt.s32.f32 %v3947
        %v5484 = vcvt.s32.f32 %v3948
        %v5485 = vcvt.s32.f32 %v3949
        %v5486 = vcvt.s32.f32 %v3950
        %v5487 = vcvt.s32.f32 %v3951
        %v5488 = vcvt.s32.f32 %v3952
        %v5489 = vcvt.s32.f32 %v3953
        %v5490 = vcvt.s32.f32 %v3954
        %v5491 = vcvt.s32.f32 %v3955
        %v5492 = vcvt.s32.f32 %v3956
        %v5493 = vcvt.s32.f32 %v3957
        %v5494 = vcvt.s32.f32 %v3958
        %v5495 = vcvt.s32.f32 %v3959
        %v5496 = vcvt.s32.f32 %v3960
        %v5497 = vcvt.s32.f32 %v3961
        %v5498 = vcvt.s32.f32 %v3962
        %v5499 = vcvt.s32.f32 %v3963
        %v5500 = vcvt.s32.f32 %v3964
        %v5501 = vcvt.s32.f32 %v3965
        %v5502 = vcvt.s32.f32 %v3966
        %v5503 = vcvt.s32.f32 %v3967
        %v5504 = vcvt.s32.f32 %v3968
        %v5505 = vcvt.s32.f32 %v3969
        %v5506 = vcvt.s32.f32 %v3970
        %v5507 = vcvt.s32.f32 %v3971
        %v5508 = vcvt.s32.f32 %v3972
        %v5509 = vcvt.s32.f32 %v3973
        %v5510 = vcvt.s32.f32 %v3974
        %v5511 = vcvt.s32.f32 %v3975
        %v5512 = vcvt.s32.f32 %v3976
        %v5513 = vcvt.s32.f32 %v3977
        %v5514 = vcvt.s32.f32 %v3978
        %v5515 = vcvt.s32.f32 %v3979
        %v5516 = vcvt.s32.f32 %v3980
        %v5517 = vcvt.s32.f32 %v3981
        %v5518 = vcvt.s32.f32 %v3982
        %v5519 = vcvt.s32.f32 %v3983
        %v5520 = vcvt.s32.f32 %v3984
        %v5521 = vcvt.s32.f32 %v3985
        %v5522 = vcvt.s32.f32 %v3986
        %v5523 = vcvt.s32.f32 %v3987
        %v5524 = vcvt.s32.f32 %v3988
        %v5525 = vcvt.s32.f32 %v3989
        %v5526 = vcvt.s32.f32 %v3990
        %v5527 = vcvt.s32.f32 %v3991
        %v5528 = vcvt.s32.f32 %v3992
        %v5529 = vcvt.s32.f32 %v3993
        %v5530 = vcvt.s32.f32 %v3994
        %v5531 = vcvt.s32.f32 %v3995
        %v5532 = vcvt.s32.f32 %v3996
        %v5533 = vcvt.s32.f32 %v3997
        %v5534 = vcvt.s32.f32 %v3998
        %v5535 = vcvt.s32.f32 %v3999
        %v5536 = vcvt.s32.f32 %v4000
        %v5537 = vcvt.s32.f32 %v4001
        %v5538 = vcvt.s32.f32 %v4002
        %v5539 = vcvt.s32.f32 %v4003
        %v5540 = vcvt.s32.f32 %v4004
        %v5541 = vcvt.s32.f32 %v4005
        %v5542 = vcvt.s32.f32 %v4006
        %v5543 = vcvt.s32.f32 %v4007
        %v5544 = vcvt.s32.f32 %v4008
        %v5545 = vcvt.s32.f32 %v4009
        %v5546 = vcvt.s32.f32 %v4010
        %v5547 = vcvt.s32.f32 %v4011
        %v5548 = vcvt.s32.f32 %v4012
        %v5549 = vcvt.s32.f32 %v4013
        %v5550 = vcvt.s32.f32 %v4014
        %v5551 = vcvt.s32.f32 %v4015
        %v5552 = vcvt.s32.f32 %v4016
        %v5553 = vcvt.s32.f32 %v4017
        %v5554 = vcvt.s32.f32 %v4018
        %v5555 = vcvt.s32.f32 %v4019
        %v5556 = vcvt.s32.f32 %v4020
        %v5557 = vcvt.s32.f32 %v4021
        %v5558 = vcvt.s32.f32 %v4022
        %v5559 = vcvt.s32.f32 %v4023
        %v5560 = vcvt.s32.f32 %v4024
        %v5561 = vcvt.s32.f32 %v4025
        %v5562 = vcvt.s32.f32 %v4026
        %v5563 = vcvt.s32.f32 %v4027
        %v5564 = vcvt.s32.f32 %v4028
        %v5565 = vcvt.s32.f32 %v4029
        %v5566 = vcvt.s32.f32 %v4030
        %v5567 = vcvt.s32.f32 %v4031
        %v5568 = vcvt.s32.f32 %v4032
        %v5569 = vcvt.s32.f32 %v4033
        %v5570 = vcvt.s32.f32 %v4034
        %v5571 = vcvt.s32.f32 %v4035
        %v5572 = vcvt.s32.f32 %v4036
        %v5573 = vcvt.s32.f32 %v4037
        %v5574 = vcvt.s32.f32 %v4038
        %v5575 = vcvt.s32.f32 %v4039
        %v5576 = vcvt.s32.f32 %v4040
        %v5577 = vcvt.s32.f32 %v4041
        %v5578 = vcvt.s32.f32 %v4042
        %v5579 = vcvt.s32.f32 %v4043
        %v5580 = vcvt.s32.f32 %v4044
        %v5581 = vcvt.s32.f32 %v4045
        %v5582 = vcvt.s32.f32 %v4046
        %v5583 = vcvt.s32.f32 %v4047
        %v5584 = vcvt.s32.f32 %v4048
        %v5585 = vcvt.s32.f32 %v4049
        %v5586 = vcvt.s32.f32 %v4050
        %v5587 = vcvt.s32.f32 %v4051
        %v5588 = vcvt.s32.f32 %v4052
        %v5589 = vcvt.s32.f32 %v4053
        %v5590 = vcvt.s32.f32 %v4054
        %v5591 = vcvt.s32.f32 %v4055
        %v5592 = vcvt.s32.f32 %v4056
        %v5593 = vcvt.s32.f32 %v4057
        %v5594 = vcvt.s32.f32 %v4058
        %v5595 = vcvt.s32.f32 %v4059
        %v5596 = vcvt.s32.f32 %v4060
        %v5597 = vcvt.s32.f32 %v4061
        %v5598 = vcvt.s32.f32 %v4062
        %v5599 = vcvt.s32.f32 %v4063
        %v5600 = vcvt.s32.f32 %v4064
        %v5601 = vcvt.s32.f32 %v4065
        %v5602 = vcvt.s32.f32 %v4066
        %v5603 = vcvt.s32.f32 %v4067
        %v5604 = vcvt.s32.f32 %v4068
        %v5605 = vcvt.s32.f32 %v4069
        %v5606 = vcvt.s32.f32 %v4070
        %v5607 = vcvt.s32.f32 %v4071
        %v5608 = vcvt.s32.f32 %v4072
        %v5609 = vcvt.s32.f32 %v4073
        %v5610 = vcvt.s32.f32 %v4074
        %v5611 = vcvt.s32.f32 %v4075
        %v5612 = vcvt.s32.f32 %v4076
        %v5613 = vcvt.s32.f32 %v4077
        %v5614 = vcvt.s32.f32 %v4078
        %v5615 = vcvt.s32.f32 %v4079
        %v5616 = vcvt.s32.f32 %v4080
        %v5617 = vcvt.s32.f32 %v4081
        %v5618 = vcvt.s32.f32 %v4082
        %v5619 = vcvt.s32.f32 %v4083
        %v5620 = vcvt.s32.f32 %v4084
        %v5621 = vcvt.s32.f32 %v4085
        %v5622 = vcvt.s32.f32 %v4086
        %v5623 = vcvt.s32.f32 %v4087
        %v5624 = vcvt.s32.f32 %v4088
        %v5625 = vcvt.s32.f32 %v4089
        %v5626 = vcvt.s32.f32 %v4090
        %v5627 = vcvt.s32.f32 %v4091
        %v5628 = vcvt.s32.f32 %v4092
        %v5629 = vcvt.s32.f32 %v4093
        %v5630 = vcvt.s32.f32 %v4094
        %v5631 = vcvt.s32.f32 %v4095
        %v5632 = vcvt.s32.f32 %v4096
        %v5633 = vcvt.s32.f32 %v4097
        %v5634 = vcvt.s32.f32 %v4098
        %v5635 = vcvt.s32.f32 %v4099
        %v5636 = vcvt.s32.f32 %v4100
        %v5637 = vcvt.s32.f32 %v4101
        %v5638 = vcvt.s32.f32 %v4102
        %v5639 = vcvt.s32.f32 %v4103
        %v5640 = vcvt.s32.f32 %v4104
        %v5641 = vcvt.s32.f32 %v4105
        %v5642 = vcvt.s32.f32 %v4106
        %v5643 = vcvt.s32.f32 %v4107
        %v5644 = vcvt.s32.f32 %v4108
        %v5645 = vcvt.s32.f32 %v4109
        %v5646 = vcvt.s32.f32 %v4110
        %v5647 = vcvt.s32.f32 %v4111
        %v5648 = vcvt.s32.f32 %v4112
        %v5649 = vcvt.s32.f32 %v4113
        %v5650 = vcvt.s32.f32 %v4114
        %v5651 = vcvt.s32.f32 %v4115
        %v5652 = vcvt.s32.f32 %v4116
        %v5653 = vcvt.s32.f32 %v4117
        %v5654 = vcvt.s32.f32 %v4118
        %v5655 = vcvt.s32.f32 %v4119
        %v5656 = vcvt.s32.f32 %v4120
        %v5657 = vcvt.s32.f32 %v4121
        %v5658 = vcvt.s32.f32 %v4122
        %v5659 = vcvt.s32.f32 %v4123
        %v5660 = vcvt.s32.f32 %v4124
        %v5661 = vcvt.s32.f32 %v4125
        %v5662 = vcvt.s32.f32 %v4126
        %v5663 = vcvt.s32.f32 %v4127
        %v5664 = vcvt.s32.f32 %v4128
        %v5665 = vcvt.s32.f32 %v4129
        %v5666 = vcvt.s32.f32 %v4130
        %v5667 = vcvt.s32.f32 %v4131
        %v5668 = vcvt.s32.f32 %v4132
        %v5669 = vcvt.s32.f32 %v4133
        %v5670 = vcvt.s32.f32 %v4134
        %v5671 = vcvt.s32.f32 %v4135
        %v5672 = vcvt.s32.f32 %v4136
        %v5673 = vcvt.s32.f32 %v4137
        %v5674 = vcvt.s32.f32 %v4138
        %v5675 = vcvt.s32.f32 %v4139
        %v5676 = vcvt.s32.f32 %v4140
        %v5677 = vcvt.s32.f32 %v4141
        %v5678 = vcvt.s32.f32 %v4142
        %v5679 = vcvt.s32.f32 %v4143
        %v5680 = vcvt.s32.f32 %v4144
        %v5681 = vcvt.s32.f32 %v4145
        %v5682 = vcvt.s32.f32 %v4146
        %v5683 = vcvt.s32.f32 %v4147
        %v5684 = vcvt.s32.f32 %v4148
        %v5685 = vcvt.s32.f32 %v4149
        %v5686 = vcvt.s32.f32 %v4150
        %v5687 = vcvt.s32.f32 %v4151
        %v5688 = vcvt.s32.f32 %v4152
        %v5689 = vcvt.s32.f32 %v4153
        %v5690 = vcvt.s32.f32 %v4154
        %v5691 = vcvt.s32.f32 %v4155
        %v5692 = vcvt.s32.f32 %v4156
        %v5693 = vcvt.s32.f32 %v4157
        %v5694 = vcvt.s32.f32 %v4158
        %v5695 = vcvt.s32.f32 %v4159
        %v5696 = vcvt.s32.f32 %v4160
        %v5697 = vcvt.s32.f32 %v4161
        %v5698 = vcvt.s32.f32 %v4162
        %v5699 = vcvt.s32.f32 %v4163
        %v5700 = vcvt.s32.f32 %v4164
        %v5701 = vcvt.s32.f32 %v4165
        %v5702 = vcvt.s32.f32 %v4166
        %v5703 = vcvt.s32.f32 %v4167
        %v5704 = vcvt.s32.f32 %v4168
        %v5705 = vcvt.s32.f32 %v4169
        %v5706 = vcvt.s32.f32 %v4170
        %v5707 = vcvt.s32.f32 %v4171
        %v5708 = vcvt.s32.f32 %v4172
        %v5709 = vcvt.s32.f32 %v4173
        %v5710 = vcvt.s32.f32 %v4174
        %v5711 = vcvt.s32.f32 %v4175
        %v5712 = vcvt.s32.f32 %v4176
        %v5713 = vcvt.s32.f32 %v4177
        %v5714 = vcvt.s32.f32 %v4178
        %v5715 = vcvt.s32.f32 %v4179
        %v5716 = vcvt.s32.f32 %v4180
        %v5717 = vcvt.s32.f32 %v4181
        %v5718 = vcvt.s32.f32 %v4182
        %v5719 = vcvt.s32.f32 %v4183
        %v5720 = vcvt.s32.f32 %v4184
        %v5721 = vcvt.s32.f32 %v4185
        %v5722 = vcvt.s32.f32 %v4186
        %v5723 = vcvt.s32.f32 %v4187
        %v5724 = vcvt.s32.f32 %v4188
        %v5725 = vcvt.s32.f32 %v4189
        %v5726 = vcvt.s32.f32 %v4190
        %v5727 = vcvt.s32.f32 %v4191
        %v5728 = vcvt.s32.f32 %v4192
        %v5729 = vcvt.s32.f32 %v4193
        %v5730 = vcvt.s32.f32 %v4194
        %v5731 = vcvt.s32.f32 %v4195
        %v5732 = vcvt.s32.f32 %v4196
        %v5733 = vcvt.s32.f32 %v4197
        %v5734 = vcvt.s32.f32 %v4198
        %v5735 = vcvt.s32.f32 %v4199
        %v5736 = vcvt.s32.f32 %v4200
        %v5737 = vcvt.s32.f32 %v4201
        %v5738 = vcvt.s32.f32 %v4202
        %v5739 = vcvt.s32.f32 %v4203
        %v5740 = vcvt.s32.f32 %v4204
        %v5741 = vcvt.s32.f32 %v4205
        %v5742 = vcvt.s32.f32 %v4206
        %v5743 = vcvt.s32.f32 %v4207
        %v5744 = vcvt.s32.f32 %v4208
        %v5745 = vcvt.s32.f32 %v4209
        %v5746 = vcvt.s32.f32 %v4210
        %v5747 = vcvt.s32.f32 %v4211
        %v5748 = vcvt.s32.f32 %v4212
        %v5749 = vcvt.s32.f32 %v4213
        %v5750 = vcvt.s32.f32 %v4214
        %v5751 = vcvt.s32.f32 %v4215
        %v5752 = vcvt.s32.f32 %v4216
        %v5753 = vcvt.s32.f32 %v4217
        %v5754 = vcvt.s32.f32 %v4218
        %v5755 = vcvt.s32.f32 %v4219
        %v5756 = vcvt.s32.f32 %v4220
        %v5757 = vcvt.s32.f32 %v4221
        %v5758 = vcvt.s32.f32 %v4222
        %v5759 = vcvt.s32.f32 %v4223
        %v5760 = vcvt.s32.f32 %v4224
        %v5761 = vcvt.s32.f32 %v4225
        %v5762 = vcvt.s32.f32 %v4226
        %v5763 = vcvt.s32.f32 %v4227
        %v5764 = vcvt.s32.f32 %v4228
        %v5765 = vcvt.s32.f32 %v4229
        %v5766 = vcvt.s32.f32 %v4230
        %v5767 = vcvt.s32.f32 %v4231
        %v5768 = vcvt.s32.f32 %v4232
        %v5769 = vcvt.s32.f32 %v4233
        %v5770 = vcvt.s32.f32 %v4234
        %v5771 = vcvt.s32.f32 %v4235
        %v5772 = vcvt.s32.f32 %v4236
        %v5773 = vcvt.s32.f32 %v4237
        %v5774 = vcvt.s32.f32 %v4238
        %v5775 = vcvt.s32.f32 %v4239
        %v5776 = vcvt.s32.f32 %v4240
        %v5777 = vcvt.s32.f32 %v4241
        %v5778 = vcvt.s32.f32 %v4242
        %v5779 = vcvt.s32.f32 %v4243
        %v5780 = vcvt.s32.f32 %v4244
        %v5781 = vcvt.s32.f32 %v4245
        %v5782 = vcvt.s32.f32 %v4246
        %v5783 = vcvt.s32.f32 %v4247
        %v5784 = vcvt.s32.f32 %v4248
        %v5785 = vcvt.s32.f32 %v4249
        %v5786 = vcvt.s32.f32 %v4250
        %v5787 = vcvt.s32.f32 %v4251
        %v5788 = vcvt.s32.f32 %v4252
        %v5789 = vcvt.s32.f32 %v4253
        %v5790 = vcvt.s32.f32 %v4254
        %v5791 = vcvt.s32.f32 %v4255
        %v5792 = vcvt.s32.f32 %v4256
        %v5793 = vcvt.s32.f32 %v4257
        %v5794 = vcvt.s32.f32 %v4258
        %v5795 = vcvt.s32.f32 %v4259
        %v5796 = vcvt.s32.f32 %v4260
        %v5797 = vcvt.s32.f32 %v4261
        %v5798 = vcvt.s32.f32 %v4262
        %v5799 = vcvt.s32.f32 %v4263
        %v5800 = vcvt.s32.f32 %v4264
        %v5801 = vcvt.s32.f32 %v4265
        %v5802 = vcvt.s32.f32 %v4266
        %v5803 = vcvt.s32.f32 %v4267
        %v5804 = vcvt.s32.f32 %v4268
        %v5805 = vcvt.s32.f32 %v4269
        %v5806 = vcvt.s32.f32 %v4270
        %v5807 = vcvt.s32.f32 %v4271
        %v5808 = vcvt.s32.f32 %v4272
        %v5809 = vcvt.s32.f32 %v4273
        %v5810 = vcvt.s32.f32 %v4274
        %v5811 = vcvt.s32.f32 %v4275
        %v5812 = vcvt.s32.f32 %v4276
        %v5813 = vcvt.s32.f32 %v4277
        %v5814 = vcvt.s32.f32 %v4278
        %v5815 = vcvt.s32.f32 %v4279
        %v5816 = vcvt.s32.f32 %v4280
        %v5817 = vcvt.s32.f32 %v4281
        %v5818 = vcvt.s32.f32 %v4282
        %v5819 = vcvt.s32.f32 %v4283
        %v5820 = vcvt.s32.f32 %v4284
        %v5821 = vcvt.s32.f32 %v4285
        %v5822 = vcvt.s32.f32 %v4286
        %v5823 = vcvt.s32.f32 %v4287
        %v5824 = vcvt.s32.f32 %v4288
        %v5825 = vcvt.s32.f32 %v4289
        %v5826 = vcvt.s32.f32 %v4290
        %v5827 = vcvt.s32.f32 %v4291
        %v5828 = vcvt.s32.f32 %v4292
        %v5829 = vcvt.s32.f32 %v4293
        %v5830 = vcvt.s32.f32 %v4294
        %v5831 = vcvt.s32.f32 %v4295
        %v5832 = vcvt.s32.f32 %v4296
        %v5833 = vcvt.s32.f32 %v4297
        %v5834 = vcvt.s32.f32 %v4298
        %v5835 = vcvt.s32.f32 %v4299
        %v5836 = vcvt.s32.f32 %v4300
        %v5837 = vcvt.s32.f32 %v4301
        %v5838 = vcvt.s32.f32 %v4302
        %v5839 = vcvt.s32.f32 %v4303
        %v5840 = vcvt.s32.f32 %v4304
        %v5841 = vcvt.s32.f32 %v4305
        %v5842 = vcvt.s32.f32 %v4306
        %v5843 = vcvt.s32.f32 %v4307
        %v5844 = vcvt.s32.f32 %v4308
        %v5845 = vcvt.s32.f32 %v4309
        %v5846 = vcvt.s32.f32 %v4310
        %v5847 = vcvt.s32.f32 %v4311
        %v5848 = vcvt.s32.f32 %v4312
        %v5849 = vcvt.s32.f32 %v4313
        %v5850 = vcvt.s32.f32 %v4314
        %v5851 = vcvt.s32.f32 %v4315
        %v5852 = vcvt.s32.f32 %v4316
        %v5853 = vcvt.s32.f32 %v4317
        %v5854 = vcvt.s32.f32 %v4318
        %v5855 = vcvt.s32.f32 %v4319
        %v5856 = vcvt.s32.f32 %v4320
        %v5857 = vcvt.s32.f32 %v4321
        %v5858 = vcvt.s32.f32 %v4322
        %v5859 = vcvt.s32.f32 %v4323
        %v5860 = vcvt.s32.f32 %v4324
        %v5861 = vcvt.s32.f32 %v4325
        %v5862 = vcvt.s32.f32 %v4326
        %v5863 = vcvt.s32.f32 %v4327
        %v5864 = vcvt.s32.f32 %v4328
        %v5865 = vcvt.s32.f32 %v4329
        %v5866 = vcvt.s32.f32 %v4330
        %v5867 = vcvt.s32.f32 %v4331
        %v5868 = vcvt.s32.f32 %v4332
        %v5869 = vcvt.s32.f32 %v4333
        %v5870 = vcvt.s32.f32 %v4334
        %v5871 = vcvt.s32.f32 %v4335
        %v5872 = vcvt.s32.f32 %v4336
        %v5873 = vcvt.s32.f32 %v4337
        %v5874 = vcvt.s32.f32 %v4338
        %v5875 = vcvt.s32.f32 %v4339
        %v5876 = vcvt.s32.f32 %v4340
        %v5877 = vcvt.s32.f32 %v4341
        %v5878 = vcvt.s32.f32 %v4342
        %v5879 = vcvt.s32.f32 %v4343
        %v5880 = vcvt.s32.f32 %v4344
        %v5881 = vcvt.s32.f32 %v4345
        %v5882 = vcvt.s32.f32 %v4346
        %v5883 = vcvt.s32.f32 %v4347
        %v5884 = vcvt.s32.f32 %v4348
        %v5885 = vcvt.s32.f32 %v4349
        %v5886 = vcvt.s32.f32 %v4350
        %v5887 = vcvt.s32.f32 %v4351
        %v5888 = vcvt.s32.f32 %v4352
        %v5889 = vcvt.s32.f32 %v4353
        %v5890 = vcvt.s32.f32 %v4354
        %v5891 = vcvt.s32.f32 %v4355
        %v5892 = vcvt.s32.f32 %v4356
        %v5893 = vcvt.s32.f32 %v4357
        %v5894 = vcvt.s32.f32 %v4358
        %v5895 = vcvt.s32.f32 %v4359
        %v5896 = vcvt.s32.f32 %v4360
        %v5897 = vcvt.s32.f32 %v4361
        %v5898 = vcvt.s32.f32 %v4362
        %v5899 = vcvt.s32.f32 %v4363
        %v5900 = vcvt.s32.f32 %v4364
        %v5901 = vcvt.s32.f32 %v4365
        %v5902 = vcvt.s32.f32 %v4366
        %v5903 = vcvt.s32.f32 %v4367
        %v5904 = vcvt.s32.f32 %v4368
        %v5905 = vcvt.s32.f32 %v4369
        %v5906 = vcvt.s32.f32 %v4370
        %v5907 = vcvt.s32.f32 %v4371
        %v5908 = vcvt.s32.f32 %v4372
        %v5909 = vcvt.s32.f32 %v4373
        %v5910 = vcvt.s32.f32 %v4374
        %v5911 = vcvt.s32.f32 %v4375
        %v5912 = vcvt.s32.f32 %v4376
        %v5913 = vcvt.s32.f32 %v4377
        %v5914 = vcvt.s32.f32 %v4378
        %v5915 = vcvt.s32.f32 %v4379
        %v5916 = vcvt.s32.f32 %v4380
        %v5917 = vcvt.s32.f32 %v4381
        %v5918 = vcvt.s32.f32 %v4382
        %v5919 = vcvt.s32.f32 %v4383
        %v5920 = vcvt.s32.f32 %v4384
        %v5921 = vcvt.s32.f32 %v4385
        %v5922 = vcvt.s32.f32 %v4386
        %v5923 = vcvt.s32.f32 %v4387
        %v5924 = vcvt.s32.f32 %v4388
        %v5925 = vcvt.s32.f32 %v4389
        %v5926 = vcvt.s32.f32 %v4390
        %v5927 = vcvt.s32.f32 %v4391
        %v5928 = vcvt.s32.f32 %v4392
        %v5929 = vcvt.s32.f32 %v4393
        %v5930 = vcvt.s32.f32 %v4394
        %v5931 = vcvt.s32.f32 %v4395
        %v5932 = vcvt.s32.f32 %v4396
        %v5933 = vcvt.s32.f32 %v4397
        %v5934 = vcvt.s32.f32 %v4398
        %v5935 = vcvt.s32.f32 %v4399
        %v5936 = vcvt.s32.f32 %v4400
        %v5937 = vcvt.s32.f32 %v4401
        %v5938 = vcvt.s32.f32 %v4402
        %v5939 = vcvt.s32.f32 %v4403
        %v5940 = vcvt.s32.f32 %v4404
        %v5941 = vcvt.s32.f32 %v4405
        %v5942 = vcvt.s32.f32 %v4406
        %v5943 = vcvt.s32.f32 %v4407
        %v5944 = vcvt.s32.f32 %v4408
        %v5945 = vcvt.s32.f32 %v4409
        %v5946 = vcvt.s32.f32 %v4410
        %v5947 = vcvt.s32.f32 %v4411
        %v5948 = vcvt.s32.f32 %v4412
        %v5949 = vcvt.s32.f32 %v4413
        %v5950 = vcvt.s32.f32 %v4414
        %v5951 = vcvt.s32.f32 %v4415
        %v5952 = vcvt.s32.f32 %v4416
        %v5953 = vcvt.s32.f32 %v4417
        %v5954 = vcvt.s32.f32 %v4418
        %v5955 = vcvt.s32.f32 %v4419
        %v5956 = vcvt.s32.f32 %v4420
        %v5957 = vcvt.s32.f32 %v4421
        %v5958 = vcvt.s32.f32 %v4422
        %v5959 = vcvt.s32.f32 %v4423
        %v5960 = vcvt.s32.f32 %v4424
        %v5961 = vcvt.s32.f32 %v4425
        %v5962 = vcvt.s32.f32 %v4426
        %v5963 = vcvt.s32.f32 %v4427
        %v5964 = vcvt.s32.f32 %v4428
        %v5965 = vcvt.s32.f32 %v4429
        %v5966 = vcvt.s32.f32 %v4430
        %v5967 = vcvt.s32.f32 %v4431
        %v5968 = vcvt.s32.f32 %v4432
        %v5969 = vcvt.s32.f32 %v4433
        %v5970 = vcvt.s32.f32 %v4434
        %v5971 = vcvt.s32.f32 %v4435
        %v5972 = vcvt.s32.f32 %v4436
        %v5973 = vcvt.s32.f32 %v4437
        %v5974 = vcvt.s32.f32 %v4438
        %v5975 = vcvt.s32.f32 %v4439
        %v5976 = vcvt.s32.f32 %v4440
        %v5977 = vcvt.s32.f32 %v4441
        %v5978 = vcvt.s32.f32 %v4442
        %v5979 = vcvt.s32.f32 %v4443
        %v5980 = vcvt.s32.f32 %v4444
        %v5981 = vcvt.s32.f32 %v4445
        %v5982 = vcvt.s32.f32 %v4446
        %v5983 = vcvt.s32.f32 %v4447
        %v5984 = vcvt.s32.f32 %v4448
        %v5985 = vcvt.s32.f32 %v4449
        %v5986 = vcvt.s32.f32 %v4450
        %v5987 = vcvt.s32.f32 %v4451
        %v5988 = vcvt.s32.f32 %v4452
        %v5989 = vcvt.s32.f32 %v4453
        %v5990 = vcvt.s32.f32 %v4454
        %v5991 = vcvt.s32.f32 %v4455
        %v5992 = vcvt.s32.f32 %v4456
        %v5993 = vcvt.s32.f32 %v4457
        %v5994 = vcvt.s32.f32 %v4458
        %v5995 = vcvt.s32.f32 %v4459
        %v5996 = vcvt.s32.f32 %v4460
        %v5997 = vcvt.s32.f32 %v4461
        %v5998 = vcvt.s32.f32 %v4462
        %v5999 = vcvt.s32.f32 %v4463
        %v6000 = vcvt.s32.f32 %v4464
        %v6001 = vcvt.s32.f32 %v4465
        %v6002 = vcvt.s32.f32 %v4466
        %v6003 = vcvt.s32.f32 %v4467
        %v6004 = vcvt.s32.f32 %v4468
        %v6005 = vcvt.s32.f32 %v4469
        %v6006 = vcvt.s32.f32 %v4470
        %v6007 = vcvt.s32.f32 %v4471
        %v6008 = vcvt.s32.f32 %v4472
        %v6009 = vcvt.s32.f32 %v4473
        %v6010 = vcvt.s32.f32 %v4474
        %v6011 = vcvt.s32.f32 %v4475
        %v6012 = vcvt.s32.f32 %v4476
        %v6013 = vcvt.s32.f32 %v4477
        %v6014 = vcvt.s32.f32 %v4478
        %v6015 = vcvt.s32.f32 %v4479
        %v6016 = vcvt.s32.f32 %v4480
        %v6017 = vcvt.s32.f32 %v4481
        %v6018 = vcvt.s32.f32 %v4482
        %v6019 = vcvt.s32.f32 %v4483
        %v6020 = vcvt.s32.f32 %v4484
        %v6021 = vcvt.s32.f32 %v4485
        %v6022 = vcvt.s32.f32 %v4486
        %v6023 = vcvt.s32.f32 %v4487
        %v6024 = vcvt.s32.f32 %v4488
        %v6025 = vcvt.s32.f32 %v4489
        %v6026 = vcvt.s32.f32 %v4490
        %v6027 = vcvt.s32.f32 %v4491
        %v6028 = vcvt.s32.f32 %v4492
        %v6029 = vcvt.s32.f32 %v4493
        %v6030 = vcvt.s32.f32 %v4494
        %v6031 = vcvt.s32.f32 %v4495
        %v6032 = vcvt.s32.f32 %v4496
        %v6033 = vcvt.s32.f32 %v4497
        %v6034 = vcvt.s32.f32 %v4498
        %v6035 = vcvt.s32.f32 %v4499
        %v6036 = vcvt.s32.f32 %v4500
        %v6037 = vcvt.s32.f32 %v4501
        %v6038 = vcvt.s32.f32 %v4502
        %v6039 = vcvt.s32.f32 %v4503
        %v6040 = vcvt.s32.f32 %v4504
        %v6041 = vcvt.s32.f32 %v4505
        %v6042 = vcvt.s32.f32 %v4506
        %v6043 = vcvt.s32.f32 %v4507
        %v6044 = vcvt.s32.f32 %v4508
        %v6045 = vcvt.s32.f32 %v4509
        %v6046 = vcvt.s32.f32 %v4510
        %v6047 = vcvt.s32.f32 %v4511
        %v6048 = vcvt.s32.f32 %v4512
        %v6049 = vcvt.s32.f32 %v4513
        %v6050 = vcvt.s32.f32 %v4514
        %v6051 = vcvt.s32.f32 %v4515
        %v6052 = vcvt.s32.f32 %v4516
        %v6053 = vcvt.s32.f32 %v4517
        %v6054 = vcvt.s32.f32 %v4518
        %v6055 = vcvt.s32.f32 %v4519
        %v6056 = vcvt.s32.f32 %v4520
        %v6057 = vcvt.s32.f32 %v4521
        %v6058 = vcvt.s32.f32 %v4522
        %v6059 = vcvt.s32.f32 %v4523
        %v6060 = vcvt.s32.f32 %v4524
        %v6061 = vcvt.s32.f32 %v4525
        %v6062 = vcvt.s32.f32 %v4526
        %v6063 = vcvt.s32.f32 %v4527
        %v6064 = vcvt.s32.f32 %v4528
        %v6065 = vcvt.s32.f32 %v4529
        %v6066 = vcvt.s32.f32 %v4530
        %v6067 = vcvt.s32.f32 %v4531
        %v6068 = vcvt.s32.f32 %v4532
        %v6069 = vcvt.s32.f32 %v4533
        %v6070 = vcvt.s32.f32 %v4534
        %v6071 = vcvt.s32.f32 %v4535
        %v6072 = vcvt.s32.f32 %v4536
        %v6073 = vcvt.s32.f32 %v4537
        %v6074 = vcvt.s32.f32 %v4538
        %v6075 = vcvt.s32.f32 %v4539
        %v6076 = vcvt.s32.f32 %v4540
        %v6077 = vcvt.s32.f32 %v4541
        %v6078 = vcvt.s32.f32 %v4542
        %v6079 = vcvt.s32.f32 %v4543
        %v6080 = vcvt.s32.f32 %v4544
        %v6081 = vcvt.s32.f32 %v4545
        %v6082 = vcvt.s32.f32 %v4546
        %v6083 = vcvt.s32.f32 %v4547
        %v6084 = vcvt.s32.f32 %v4548
        %v6085 = vcvt.s32.f32 %v4549
        %v6086 = vcvt.s32.f32 %v4550
        %v6087 = vcvt.s32.f32 %v4551
        %v6088 = vcvt.s32.f32 %v4552
        %v6089 = vcvt.s32.f32 %v4553
        %v6090 = vcvt.s32.f32 %v4554
        %v6091 = vcvt.s32.f32 %v4555
        %v6092 = vcvt.s32.f32 %v4556
        %v6093 = vcvt.s32.f32 %v4557
        %v6094 = vcvt.s32.f32 %v4558
        %v6095 = vcvt.s32.f32 %v4559
        %v6096 = vcvt.s32.f32 %v4560
        %v6097 = vcvt.s32.f32 %v4561
        %v6098 = vcvt.s32.f32 %v4562
        %v6099 = vcvt.s32.f32 %v4563
        %v6100 = vcvt.s32.f32 %v4564
        %v6101 = vcvt.s32.f32 %v4565
        %v6102 = vcvt.s32.f32 %v4566
        %v6103 = vcvt.s32.f32 %v4567
        %v6104 = vcvt.s32.f32 %v4568
        %v6105 = vcvt.s32.f32 %v4569
        %v6106 = vcvt.s32.f32 %v4570
        %v6107 = vcvt.s32.f32 %v4571
        %v6108 = vcvt.s32.f32 %v4572
        %v6109 = vcvt.s32.f32 %v4573
        %v6110 = vcvt.s32.f32 %v4574
        %v6111 = vcvt.s32.f32 %v4575
        %v6112 = vcvt.s32.f32 %v4576
        %v6113 = vcvt.s32.f32 %v4577
        %v6114 = vcvt.s32.f32 %v4578
        %v6115 = vcvt.s32.f32 %v4579
        %v6116 = vcvt.s32.f32 %v4580
        %v6117 = vcvt.s32.f32 %v4581
        %v6118 = vcvt.s32.f32 %v4582
        %v6119 = vcvt.s32.f32 %v4583
        %v6120 = vcvt.s32.f32 %v4584
        %v6121 = vcvt.s32.f32 %v4585
        %v6122 = vcvt.s32.f32 %v4586
        %v6123 = vcvt.s32.f32 %v4587
        %v6124 = vcvt.s32.f32 %v4588
        %v6125 = vcvt.s32.f32 %v4589
        %v6126 = vcvt.s32.f32 %v4590
        %v6127 = vcvt.s32.f32 %v4591
        %v6128 = vcvt.s32.f32 %v4592
        %v6129 = vcvt.s32.f32 %v4593
        %v6130 = vcvt.s32.f32 %v4594
        %v6131 = vcvt.s32.f32 %v4595
        %v6132 = vcvt.s32.f32 %v4596
        %v6133 = vcvt.s32.f32 %v4597
        %v6134 = vcvt.s32.f32 %v4598
        %v6135 = vcvt.s32.f32 %v4599
        %v6136 = vcvt.s32.f32 %v4600
        %v6137 = vcvt.s32.f32 %v4601
        %v6138 = vcvt.s32.f32 %v4602
        %v6139 = vcvt.s32.f32 %v4603
        %v6140 = vcvt.s32.f32 %v4604
        %v6141 = vcvt.s32.f32 %v4605
        %v6142 = vcvt.s32.f32 %v4606
        %v6143 = vcvt.s32.f32 %v4607
        %v6144 = vcvt.s32.f32 %v4608
        %v6145 = vcvt.s32.f32 %v4609
        %v6146 = vcvt.s32.f32 %v4610
        %v6147 = vcvt.s32.f32 %v4611
        %v6148 = vcvt.s32.f32 %v4612
        %v6149 = vcvt.s32.f32 %v4613
        %v6150 = vcvt.s32.f32 %v4614
        %v6151 = vcvt.s32.f32 %v4615
        %v6152 = vcvt.s32.f32 %v4616
        %v6153 = vcvt.s32.f32 %v4617
        %v6154 = vcvt.s32.f32 %v4618
        %v6155 = vcvt.s32.f32 %v4619
        %v6156 = vcvt.s32.f32 %v4620
        %v6157 = vcvt.s32.f32 %v4621
        %v6158 = vcvt.s32.f32 %v4622
        %v6159 = vcvt.s32.f32 %v4623
        %v6160 = vcvt.s32.f32 %v4624
        %v6161 = vcvt.s32.f32 %v4625
        %v6162 = vcvt.s32.f32 %v4626
        %v6163 = vcvt.s32.f32 %v4627
        %v6164 = vcvt.s32.f32 %v4628
        %v6165 = vcvt.s32.f32 %v4629
        %v6166 = vcvt.s32.f32 %v4630
        %v6167 = vcvt.s32.f32 %v4631
        %v6168 = vcvt.s32.f32 %v4632
        %v6169 = vcvt.s32.f32 %v4633
        %v6170 = vcvt.s32.f32 %v4634
        %v6171 = vcvt.s32.f32 %v4635
        %v6172 = vcvt.s32.f32 %v4636
        %v6173 = vcvt.s32.f32 %v4637
        %v6174 = vcvt.s32.f32 %v4638
        %v6175 = vcvt.s32.f32 %v4639
        %v6176 = vcvt.s32.f32 %v4640
        %v6177 = vcvt.s32.f32 %v4641
        %v6178 = vcvt.s32.f32 %v4642
        %v6179 = vcvt.s32.f32 %v4643
        %v6180 = vcvt.s32.f32 %v4644
        %v6181 = vcvt.s32.f32 %v4645
        %v6182 = vcvt.s32.f32 %v4646
        %v6183 = vcvt.s32.f32 %v4647
        %v6184 = vcvt.s32.f32 %v4648
        %v6185 = vcvt.s32.f32 %v4649
        %v6186 = vcvt.s32.f32 %v4650
        %v6187 = vcvt.s32.f32 %v4651
        %v6188 = vcvt.s32.f32 %v4652
        %v6189 = vcvt.s32.f32 %v4653
        %v6190 = vcvt.s32.f32 %v4654
        %v6191 = vcvt.s32.f32 %v4655
        %v6192 = vcvt.s32.f32 %v4656
        %v6193 = vcvt.s32.f32 %v4657
        %v6194 = vcvt.s32.f32 %v4658
        %v6195 = vcvt.s32.f32 %v4659
        %v6196 = vcvt.s32.f32 %v4660
        %v6197 = vcvt.s32.f32 %v4661
        %v6198 = vcvt.s32.f32 %v4662
        %v6199 = vcvt.s32.f32 %v4663
        %v6200 = vcvt.s32.f32 %v4664
        %v6201 = vcvt.s32.f32 %v4665
        %v6202 = vcvt.s32.f32 %v4666
        %v6203 = vcvt.s32.f32 %v4667
        %v6204 = vcvt.s32.f32 %v4668
        %v6205 = vcvt.s32.f32 %v4669
        %v6206 = vcvt.s32.f32 %v4670
        %v6207 = vcvt.s32.f32 %v4671
        %v6208 = vcvt.s32.f32 %v4672
        %v6209 = vcvt.s32.f32 %v4673
        %v6210 = vcvt.s32.f32 %v4674
        %v6211 = vcvt.s32.f32 %v4675
        %v6212 = vcvt.s32.f32 %v4676
        %v6213 = vcvt.s32.f32 %v4677
        %v6214 = vcvt.s32.f32 %v4678
        %v6215 = vcvt.s32.f32 %v4679
        %v6216 = vcvt.s32.f32 %v4680
        %v6217 = vcvt.s32.f32 %v4681
        %v6218 = vcvt.s32.f32 %v4682
        %v6219 = vcvt.s32.f32 %v4683
        %v6220 = vcvt.s32.f32 %v4684
        %v6221 = vcvt.s32.f32 %v4685
        %v6222 = vcvt.s32.f32 %v4686
        %v6223 = vcvt.s32.f32 %v4687
        %v6224 = vcvt.s32.f32 %v4688
        %v6225 = vcvt.s32.f32 %v4689
        %v6226 = vcvt.s32.f32 %v4690
        %v6227 = vcvt.s32.f32 %v4691
        %v6228 = vcvt.s32.f32 %v4692
        %v6229 = vcvt.s32.f32 %v4693
        %v6230 = vcvt.s32.f32 %v4694
        %v6231 = vcvt.s32.f32 %v4695
        %v6232 = vcvt.s32.f32 %v4696
        %v6233 = vcvt.s32.f32 %v4697
        %v6234 = vcvt.s32.f32 %v4698
        %v6235 = vcvt.s32.f32 %v4699
        %v6236 = vcvt.s32.f32 %v4700
        %v6237 = vcvt.s32.f32 %v4701
        %v6238 = vcvt.s32.f32 %v4702
        %v6239 = vcvt.s32.f32 %v4703
        %v6240 = vcvt.s32.f32 %v4704
        %v6241 = vcvt.s32.f32 %v4705
        %v6242 = vcvt.s32.f32 %v4706
        %v6243 = vcvt.s32.f32 %v4707
        %v6244 = vcvt.s32.f32 %v4708
        %v6245 = vcvt.s32.f32 %v4709
        %v6246 = vcvt.s32.f32 %v4710
        %v6247 = vcvt.s32.f32 %v4711
        %v6248 = vcvt.s32.f32 %v4712
        %v6249 = vcvt.s32.f32 %v4713
        %v6250 = vcvt.s32.f32 %v4714
        %v6251 = vcvt.s32.f32 %v4715
        %v6252 = vcvt.s32.f32 %v4716
        %v6253 = vcvt.s32.f32 %v4717
        %v6254 = vcvt.s32.f32 %v4718
        %v6255 = vcvt.s32.f32 %v4719
        %v6256 = vcvt.s32.f32 %v4720
        %v6257 = vcvt.s32.f32 %v4721
        %v6258 = vcvt.s32.f32 %v4722
        %v6259 = vcvt.s32.f32 %v4723
        %v6260 = vcvt.s32.f32 %v4724
        %v6261 = vcvt.s32.f32 %v4725
        %v6262 = vcvt.s32.f32 %v4726
        %v6263 = vcvt.s32.f32 %v4727
        %v6264 = vcvt.s32.f32 %v4728
        %v6265 = vcvt.s32.f32 %v4729
        %v6266 = vcvt.s32.f32 %v4730
        %v6267 = vcvt.s32.f32 %v4731
        %v6268 = vcvt.s32.f32 %v4732
        %v6269 = vcvt.s32.f32 %v4733
        %v6270 = vcvt.s32.f32 %v4734
        %v6271 = vcvt.s32.f32 %v4735
        %v6272 = vcvt.s32.f32 %v4736
        %v6273 = vcvt.s32.f32 %v4737
        %v6274 = vcvt.s32.f32 %v4738
        %v6275 = vcvt.s32.f32 %v4739
        %v6276 = vcvt.s32.f32 %v4740
        %v6277 = vcvt.s32.f32 %v4741
        %v6278 = vcvt.s32.f32 %v4742
        %v6279 = vcvt.s32.f32 %v4743
        %v6280 = vcvt.s32.f32 %v4744
        %v6281 = vcvt.s32.f32 %v4745
        %v6282 = vcvt.s32.f32 %v4746
        %v6283 = vcvt.s32.f32 %v4747
        %v6284 = vcvt.s32.f32 %v4748
        %v6285 = vcvt.s32.f32 %v4749
        %v6286 = vcvt.s32.f32 %v4750
        %v6287 = vcvt.s32.f32 %v4751
        %v6288 = vcvt.s32.f32 %v4752
        %v6289 = vcvt.s32.f32 %v4753
        %v6290 = vcvt.s32.f32 %v4754
        %v6291 = vcvt.s32.f32 %v4755
        %v6292 = vcvt.s32.f32 %v4756
        %v6293 = vcvt.s32.f32 %v4757
        %v6294 = vcvt.s32.f32 %v4758
        %v6295 = vcvt.s32.f32 %v4759
        %v6296 = vcvt.s32.f32 %v4760
        %v6297 = vcvt.s32.f32 %v4761
        %v6298 = vcvt.s32.f32 %v4762
        %v6299 = vcvt.s32.f32 %v4763
        %v6300 = vcvt.s32.f32 %v4764
        %v6301 = vcvt.s32.f32 %v4765
        %v6302 = vcvt.s32.f32 %v4766
        %v6303 = vcvt.s32.f32 %v4767
        %v6304 = vcvt.s32.f32 %v4768
        %v6305 = vcvt.s32.f32 %v4769
        %v6306 = vcvt.s32.f32 %v4770
        %v6307 = vcvt.s32.f32 %v4771
        %v6308 = vcvt.s32.f32 %v4772
        %v6309 = vcvt.s32.f32 %v4773
        %v6310 = vcvt.s32.f32 %v4774
        %v6311 = vcvt.s32.f32 %v4775
        %v6312 = vcvt.s32.f32 %v4776
        %v6313 = vcvt.s32.f32 %v4777
        %v6314 = vcvt.s32.f32 %v4778
        %v6315 = vcvt.s32.f32 %v4779
        %v6316 = vcvt.s32.f32 %v4780
        %v6317 = vcvt.s32.f32 %v4781
        %v6318 = vcvt.s32.f32 %v4782
        %v6319 = vcvt.s32.f32 %v4783
        %v6320 = vcvt.s32.f32 %v4784
        %v6321 = vcvt.s32.f32 %v4785
        %v6322 = vcvt.s32.f32 %v4786
        %v6323 = vcvt.s32.f32 %v4787
        %v6324 = vcvt.s32.f32 %v4788
        %v6325 = vcvt.s32.f32 %v4789
        %v6326 = vcvt.s32.f32 %v4790
        %v6327 = vcvt.s32.f32 %v4791
        %v6328 = vcvt.s32.f32 %v4792
        %v6329 = vcvt.s32.f32 %v4793
        %v6330 = vcvt.s32.f32 %v4794
        %v6331 = vcvt.s32.f32 %v4795
        %v6332 = vcvt.s32.f32 %v4796
        %v6333 = vcvt.s32.f32 %v4797
        %v6334 = vcvt.s32.f32 %v4798
        %v6335 = vcvt.s32.f32 %v4799
        %v6336 = vcvt.s32.f32 %v4800
        %v6337 = vcvt.s32.f32 %v4801
        %v6338 = vcvt.s32.f32 %v4802
        %v6339 = vcvt.s32.f32 %v4803
        %v6340 = vcvt.s32.f32 %v4804
        %v6341 = vcvt.s32.f32 %v4805
        %v6342 = vcvt.s32.f32 %v4806
        %v6343 = vcvt.s32.f32 %v4807
        %v6344 = vcvt.s32.f32 %v4808
        %v6345 = vcvt.s32.f32 %v4809
        %v6346 = vcvt.s32.f32 %v4810
        %v6347 = vcvt.s32.f32 %v4811
        %v6348 = vcvt.s32.f32 %v4812
        %v6349 = vcvt.s32.f32 %v4813
        %v6350 = vcvt.s32.f32 %v4814
        %v6351 = vcvt.s32.f32 %v4815
        %v6352 = vcvt.s32.f32 %v4816
        %v6353 = vcvt.s32.f32 %v4817
        %v6354 = vcvt.s32.f32 %v4818
        %v6355 = vcvt.s32.f32 %v4819
        %v6356 = vcvt.s32.f32 %v4820
        %v6357 = vcvt.s32.f32 %v4821
        %v6358 = vcvt.s32.f32 %v4822
        %v6359 = vcvt.s32.f32 %v4823
        %v6360 = vcvt.s32.f32 %v4824
        %v6361 = vcvt.s32.f32 %v4825
        %v6362 = vcvt.s32.f32 %v4826
        %v6363 = vcvt.s32.f32 %v4827
        %v6364 = vcvt.s32.f32 %v4828
        %v6365 = vcvt.s32.f32 %v4829
        %v6366 = vcvt.s32.f32 %v4830
        %v6367 = vcvt.s32.f32 %v4831
        %v6368 = vcvt.s32.f32 %v4832
        %v6369 = vcvt.s32.f32 %v4833
        %v6370 = vcvt.s32.f32 %v4834
        %v6371 = vcvt.s32.f32 %v4835
        %v6372 = vcvt.s32.f32 %v4836
        %v6373 = vcvt.s32.f32 %v4837
        %v6374 = vcvt.s32.f32 %v4838
        %v6375 = vcvt.s32.f32 %v4839
        %v6376 = vcvt.s32.f32 %v4840
        %v6377 = vcvt.s32.f32 %v4841
        %v6378 = vcvt.s32.f32 %v4842
        %v6379 = vcvt.s32.f32 %v4843
        %v6380 = vcvt.s32.f32 %v4844
        %v6381 = vcvt.s32.f32 %v4845
        %v6382 = vcvt.s32.f32 %v4846
        %v6383 = vcvt.s32.f32 %v4847
        %v6384 = vcvt.s32.f32 %v4848
        %v6385 = vcvt.s32.f32 %v4849
        %v6386 = vcvt.s32.f32 %v4850
        %v6387 = vcvt.s32.f32 %v4851
        %v6388 = vcvt.s32.f32 %v4852
        %v6389 = vcvt.s32.f32 %v4853
        %v6390 = vcvt.s32.f32 %v4854
        %v6391 = vcvt.s32.f32 %v4855
        %v6392 = vcvt.s32.f32 %v4856
        %v6393 = vcvt.s32.f32 %v4857
        %v6394 = vcvt.s32.f32 %v4858
        %v6395 = vcvt.s32.f32 %v4859
        %v6396 = vcvt.s32.f32 %v4860
        %v6397 = vcvt.s32.f32 %v4861
        %v6398 = vcvt.s32.f32 %v4862
        %v6399 = vcvt.s32.f32 %v4863
        %v6400 = vcvt.s32.f32 %v4864
        %v6401 = vcvt.s32.f32 %v4865
        %v6402 = vcvt.s32.f32 %v4866
        %v6403 = vcvt.s32.f32 %v4867
        %v6404 = vcvt.s32.f32 %v4868
        %v6405 = vcvt.s32.f32 %v4869
        %v6406 = vcvt.s32.f32 %v4870
        %v6407 = vcvt.s32.f32 %v4871
        %v6408 = vcvt.s32.f32 %v4872
        %v6409 = vcvt.s32.f32 %v4873
        %v6410 = vcvt.s32.f32 %v4874
        %v6411 = vcvt.s32.f32 %v4875
        %v6412 = vcvt.s32.f32 %v4876
        %v6413 = vcvt.s32.f32 %v4877
        %v6414 = vcvt.s32.f32 %v4878
        %v6415 = vcvt.s32.f32 %v4879
        %v6416 = vcvt.s32.f32 %v4880
        %v6417 = vcvt.s32.f32 %v4881
        %v6418 = vcvt.s32.f32 %v4882
        %v6419 = vcvt.s32.f32 %v4883
        %v6420 = vcvt.s32.f32 %v4884
        %v6421 = vcvt.s32.f32 %v4885
        %v6422 = vcvt.s32.f32 %v4886
        %v6423 = vcvt.s32.f32 %v4887
        %v6424 = vcvt.s32.f32 %v4888
        %v6425 = vcvt.s32.f32 %v4889
        %v6426 = vcvt.s32.f32 %v4890
        %v6427 = vcvt.s32.f32 %v4891
        %v6428 = vcvt.s32.f32 %v4892
        %v6429 = vcvt.s32.f32 %v4893
        %v6430 = vcvt.s32.f32 %v4894
        %v6431 = vcvt.s32.f32 %v4895
        %v6432 = vcvt.s32.f32 %v4896
        %v6433 = vcvt.s32.f32 %v4897
        %v6434 = vcvt.s32.f32 %v4898
        %v6435 = vcvt.s32.f32 %v4899
        %v6436 = vcvt.s32.f32 %v4900
        %v6437 = vcvt.s32.f32 %v4901
        %v6438 = vcvt.s32.f32 %v4902
        %v6439 = vcvt.s32.f32 %v4903
        %v6440 = vcvt.s32.f32 %v4904
        %v6441 = vcvt.s32.f32 %v4905
        %v6442 = vcvt.s32.f32 %v4906
        %v6443 = vcvt.s32.f32 %v4907
        %v6444 = vcvt.s32.f32 %v4908
        %v6445 = vcvt.s32.f32 %v4909
        %v6446 = vcvt.s32.f32 %v4910
        %v6447 = vcvt.s32.f32 %v4911
        %v6448 = vcvt.s32.f32 %v4912
        %v6449 = vcvt.s32.f32 %v4913
        %v6450 = vcvt.s32.f32 %v4914
        %v6451 = vcvt.s32.f32 %v4915
        %v6452 = vcvt.s32.f32 %v4916
        %v6453 = vcvt.s32.f32 %v4917
        %v6454 = vcvt.s32.f32 %v4918
        %v6455 = vcvt.s32.f32 %v4919
        %v6456 = vcvt.s32.f32 %v4920
        %v6457 = vcvt.s32.f32 %v4921
        %v6458 = vcvt.s32.f32 %v4922
        %v6459 = vcvt.s32.f32 %v4923
        %v6460 = vcvt.s32.f32 %v4924
        %v6461 = vcvt.s32.f32 %v4925
        %v6462 = vcvt.s32.f32 %v4926
        %v6463 = vcvt.s32.f32 %v4927
        %v6464 = vcvt.s32.f32 %v4928
        %v6465 = vcvt.s32.f32 %v4929
        %v6466 = vcvt.s32.f32 %v4930
        %v6467 = vcvt.s32.f32 %v4931
        %v6468 = vcvt.s32.f32 %v4932
        %v6469 = vcvt.s32.f32 %v4933
        %v6470 = vcvt.s32.f32 %v4934
        %v6471 = vcvt.s32.f32 %v4935
        %v6472 = vcvt.s32.f32 %v4936
        %v6473 = vcvt.s32.f32 %v4937
        %v6474 = vcvt.s32.f32 %v4938
        %v6475 = vcvt.s32.f32 %v4939
        %v6476 = vcvt.s32.f32 %v4940
        %v6477 = vcvt.s32.f32 %v4941
        %v6478 = vcvt.s32.f32 %v4942
        %v6479 = vcvt.s32.f32 %v4943
        %v6480 = vcvt.s32.f32 %v4944
        %v6481 = vcvt.s32.f32 %v4945
        %v6482 = vcvt.s32.f32 %v4946
        %v6483 = vcvt.s32.f32 %v4947
        %v6484 = vcvt.s32.f32 %v4948
        %v6485 = vcvt.s32.f32 %v4949
        %v6486 = vcvt.s32.f32 %v4950
        %v6487 = vcvt.s32.f32 %v4951
        %v6488 = vcvt.s32.f32 %v4952
        %v6489 = vcvt.s32.f32 %v4953
        %v6490 = vcvt.s32.f32 %v4954
        %v6491 = vcvt.s32.f32 %v4955
        %v6492 = vcvt.s32.f32 %v4956
        %v6493 = vcvt.s32.f32 %v4957
        %v6494 = vcvt.s32.f32 %v4958
        %v6495 = vcvt.s32.f32 %v4959
        %v6496 = vcvt.s32.f32 %v4960
        %v6497 = vcvt.s32.f32 %v4961
        %v6498 = vcvt.s32.f32 %v4962
        %v6499 = vcvt.s32.f32 %v4963
        %v6500 = vcvt.s32.f32 %v4964
        %v6501 = vcvt.s32.f32 %v4965
        %v6502 = vcvt.s32.f32 %v4966
        %v6503 = vcvt.s32.f32 %v4967
        %v6504 = vcvt.s32.f32 %v4968
        %v6505 = vcvt.s32.f32 %v4969
        %v6506 = vcvt.s32.f32 %v4970
        %v6507 = vcvt.s32.f32 %v4971
        %v6508 = vcvt.s32.f32 %v4972
        %v6509 = vcvt.s32.f32 %v4973
        %v6510 = vcvt.s32.f32 %v4974
        %v6511 = vcvt.s32.f32 %v4975
        %v6512 = vcvt.s32.f32 %v4976
        %v6513 = vcvt.s32.f32 %v4977
        %v6514 = vcvt.s32.f32 %v4978
        %v6515 = vcvt.s32.f32 %v4979
        %v6516 = vcvt.s32.f32 %v4980
        %v6517 = vcvt.s32.f32 %v4981
        %v6518 = vcvt.s32.f32 %v4982
        %v6519 = vcvt.s32.f32 %v4983
        %v6520 = vcvt.s32.f32 %v4984
        %v6521 = vcvt.s32.f32 %v4985
        %v6522 = vcvt.s32.f32 %v4986
        %v6523 = vcvt.s32.f32 %v4987
        %v6524 = vcvt.s32.f32 %v4988
        %v6525 = vcvt.s32.f32 %v4989
        %v6526 = vcvt.s32.f32 %v4990
        %v6527 = vcvt.s32.f32 %v4991
        %v6528 = vcvt.s32.f32 %v4992
        %v6529 = vcvt.s32.f32 %v4993
        %v6530 = vcvt.s32.f32 %v4994
        %v6531 = vcvt.s32.f32 %v4995
        %v6532 = vcvt.s32.f32 %v4996
        %v6533 = vcvt.s32.f32 %v4997
        %v6534 = vcvt.s32.f32 %v4998
        %v6535 = vcvt.s32.f32 %v4999
        %v6536 = vcvt.s32.f32 %v5000
        %v6537 = vcvt.s32.f32 %v5001
        %v6538 = vcvt.s32.f32 %v5002
        %v6539 = vcvt.s32.f32 %v5003
        %v6540 = vcvt.s32.f32 %v5004
        %v6541 = vcvt.s32.f32 %v5005
        %v6542 = vcvt.s32.f32 %v5006
        %v6543 = vcvt.s32.f32 %v5007
        %v6544 = vcvt.s32.f32 %v5008
        %v6545 = vcvt.s32.f32 %v5009
        %v6546 = vcvt.s32.f32 %v5010
        %v6547 = vcvt.s32.f32 %v5011
        %v6548 = vcvt.s32.f32 %v5012
        %v6549 = vcvt.s32.f32 %v5013
        %v6550 = vcvt.s32.f32 %v5014
        %v6551 = vcvt.s32.f32 %v5015
        %v6552 = vcvt.s32.f32 %v5016
        %v6553 = vcvt.s32.f32 %v5017
        %v6554 = vcvt.s32.f32 %v5018
        %v6555 = vcvt.s32.f32 %v5019
        %v6556 = vcvt.s32.f32 %v5020
        %v6557 = vcvt.s32.f32 %v5021
        %v6558 = vcvt.s32.f32 %v5022
        %v6559 = vcvt.s32.f32 %v5023
        %v6560 = vcvt.s32.f32 %v5024
        %v6561 = vcvt.s32.f32 %v5025
        %v6562 = vcvt.s32.f32 %v5026
        %v6563 = vcvt.s32.f32 %v5027
        %v6564 = vcvt.s32.f32 %v5028
        %v6565 = vcvt.s32.f32 %v5029
        %v6566 = vcvt.s32.f32 %v5030
        %v6567 = vcvt.s32.f32 %v5031
        %v6568 = vcvt.s32.f32 %v5032
        %v6569 = vcvt.s32.f32 %v5033
        %v6570 = vcvt.s32.f32 %v5034
        %v6571 = vcvt.s32.f32 %v5035
        %v6572 = vcvt.s32.f32 %v5036
        %v6573 = vcvt.s32.f32 %v5037
        %v6574 = vcvt.s32.f32 %v5038
        %v6575 = vcvt.s32.f32 %v5039
        %v6576 = vcvt.s32.f32 %v5040
        %v6577 = vcvt.s32.f32 %v5041
        %v6578 = vcvt.s32.f32 %v5042
        %v6579 = vcvt.s32.f32 %v5043
        %v6580 = vcvt.s32.f32 %v5044
        %v6581 = vcvt.s32.f32 %v5045
        %v6582 = vcvt.s32.f32 %v5046
        %v6583 = vcvt.s32.f32 %v5047
        %v6584 = vcvt.s32.f32 %v5048
        %v6585 = vcvt.s32.f32 %v5049
        %v6586 = vcvt.s32.f32 %v5050
        %v6587 = vcvt.s32.f32 %v5051
        %v6588 = vcvt.s32.f32 %v5052
        %v6589 = vcvt.s32.f32 %v5053
        %v6590 = vcvt.s32.f32 %v5054
        %v6591 = vcvt.s32.f32 %v5055
        %v6592 = vcvt.s32.f32 %v5056
        %v6593 = vcvt.s32.f32 %v5057
        %v6594 = vcvt.s32.f32 %v5058
        %v6595 = vcvt.s32.f32 %v5059
        %v6596 = vcvt.s32.f32 %v5060
        %v6597 = vcvt.s32.f32 %v5061
        %v6598 = vcvt.s32.f32 %v5062
        %v6599 = vcvt.s32.f32 %v5063
        %v6600 = vcvt.s32.f32 %v5064
        %v6601 = vcvt.s32.f32 %v5065
        %v6602 = vcvt.s32.f32 %v5066
        %v6603 = vcvt.s32.f32 %v5067
        %v6604 = vcvt.s32.f32 %v5068
        %v6605 = vcvt.s32.f32 %v5069
        %v6606 = vcvt.s32.f32 %v5070
        %v6607 = vcvt.s32.f32 %v5071
        %v6608 = vcvt.s32.f32 %v5072
        %v6609 = vcvt.s32.f32 %v5073
        %v6610 = vcvt.s32.f32 %v5074
        %v6611 = vcvt.s32.f32 %v5075
        %v6612 = vcvt.s32.f32 %v5076
        %v6613 = vcvt.s32.f32 %v5077
        %v6614 = vcvt.s32.f32 %v5078
        %v6615 = vcvt.s32.f32 %v5079
        %v6616 = vcvt.s32.f32 %v5080
        %v6617 = vcvt.s32.f32 %v5081
        %v6618 = vcvt.s32.f32 %v5082
        %v6619 = vcvt.s32.f32 %v5083
        %v6620 = vcvt.s32.f32 %v5084
        %v6621 = vcvt.s32.f32 %v5085
        %v6622 = vpack.c.bf16 %v5098, %v5086
        %v6623 = vpack.c.bf16 %v5099, %v5087
        %v6624 = vpack.c.bf16 %v5100, %v5088
        %v6625 = vpack.c.bf16 %v5101, %v5089
        %v6626 = vpack.c.bf16 %v5102, %v5090
        %v6627 = vpack.c.bf16 %v5103, %v5091
        %v6628 = vpack.c.bf16 %v5104, %v5092
        %v6629 = vpack.c.bf16 %v5105, %v5093
        %v6630 = vpack.c.bf16 %v5106, %v5094
        %v6631 = vpack.c.bf16 %v5107, %v5095
        %v6632 = vpack.c.bf16 %v5108, %v5096
        %v6633 = vpack.c.bf16 %v5109, %v5097
        %v6634 = vpack.c.bf16 %v5122, %v5110
        %v6635 = vpack.c.bf16 %v5123, %v5111
        %v6636 = vpack.c.bf16 %v5124, %v5112
        %v6637 = vpack.c.bf16 %v5125, %v5113
        %v6638 = vpack.c.bf16 %v5126, %v5114
        %v6639 = vpack.c.bf16 %v5127, %v5115
        %v6640 = vpack.c.bf16 %v5128, %v5116
        %v6641 = vpack.c.bf16 %v5129, %v5117
        %v6642 = vpack.c.bf16 %v5130, %v5118
        %v6643 = vpack.c.bf16 %v5131, %v5119
        %v6644 = vpack.c.bf16 %v5132, %v5120
        %v6645 = vpack.c.bf16 %v5133, %v5121
        %v6646 = vpack.c.bf16 %v5146, %v5134
        %v6647 = vpack.c.bf16 %v5147, %v5135
        %v6648 = vpack.c.bf16 %v5148, %v5136
        %v6649 = vpack.c.bf16 %v5149, %v5137
        %v6650 = vpack.c.bf16 %v5150, %v5138
        %v6651 = vpack.c.bf16 %v5151, %v5139
        %v6652 = vpack.c.bf16 %v5152, %v5140
        %v6653 = vpack.c.bf16 %v5153, %v5141
        %v6654 = vpack.c.bf16 %v5154, %v5142
        %v6655 = vpack.c.bf16 %v5155, %v5143
        %v6656 = vpack.c.bf16 %v5156, %v5144
        %v6657 = vpack.c.bf16 %v5157, %v5145
        %v6658 = vpack.c.bf16 %v5170, %v5158
        %v6659 = vpack.c.bf16 %v5171, %v5159
        %v6660 = vpack.c.bf16 %v5172, %v5160
        %v6661 = vpack.c.bf16 %v5173, %v5161
        %v6662 = vpack.c.bf16 %v5174, %v5162
        %v6663 = vpack.c.bf16 %v5175, %v5163
        %v6664 = vpack.c.bf16 %v5176, %v5164
        %v6665 = vpack.c.bf16 %v5177, %v5165
        %v6666 = vpack.c.bf16 %v5178, %v5166
        %v6667 = vpack.c.bf16 %v5179, %v5167
        %v6668 = vpack.c.bf16 %v5180, %v5168
        %v6669 = vpack.c.bf16 %v5181, %v5169
        %v6670 = vpack.c.bf16 %v5194, %v5182
        %v6671 = vpack.c.bf16 %v5195, %v5183
        %v6672 = vpack.c.bf16 %v5196, %v5184
        %v6673 = vpack.c.bf16 %v5197, %v5185
        %v6674 = vpack.c.bf16 %v5198, %v5186
        %v6675 = vpack.c.bf16 %v5199, %v5187
        %v6676 = vpack.c.bf16 %v5200, %v5188
        %v6677 = vpack.c.bf16 %v5201, %v5189
        %v6678 = vpack.c.bf16 %v5202, %v5190
        %v6679 = vpack.c.bf16 %v5203, %v5191
        %v6680 = vpack.c.bf16 %v5204, %v5192
        %v6681 = vpack.c.bf16 %v5205, %v5193
        %v6682 = vpack.c.bf16 %v5218, %v5206
        %v6683 = vpack.c.bf16 %v5219, %v5207
        %v6684 = vpack.c.bf16 %v5220, %v5208
        %v6685 = vpack.c.bf16 %v5221, %v5209
        %v6686 = vpack.c.bf16 %v5222, %v5210
        %v6687 = vpack.c.bf16 %v5223, %v5211
        %v6688 = vpack.c.bf16 %v5224, %v5212
        %v6689 = vpack.c.bf16 %v5225, %v5213
        %v6690 = vpack.c.bf16 %v5226, %v5214
        %v6691 = vpack.c.bf16 %v5227, %v5215
        %v6692 = vpack.c.bf16 %v5228, %v5216
        %v6693 = vpack.c.bf16 %v5229, %v5217
        %v6694 = vpack.c.bf16 %v5242, %v5230
        %v6695 = vpack.c.bf16 %v5243, %v5231
        %v6696 = vpack.c.bf16 %v5244, %v5232
        %v6697 = vpack.c.bf16 %v5245, %v5233
        %v6698 = vpack.c.bf16 %v5246, %v5234
        %v6699 = vpack.c.bf16 %v5247, %v5235
        %v6700 = vpack.c.bf16 %v5248, %v5236
        %v6701 = vpack.c.bf16 %v5249, %v5237
        %v6702 = vpack.c.bf16 %v5250, %v5238
        %v6703 = vpack.c.bf16 %v5251, %v5239
        %v6704 = vpack.c.bf16 %v5252, %v5240
        %v6705 = vpack.c.bf16 %v5253, %v5241
        %v6706 = vpack.c.bf16 %v5266, %v5254
        %v6707 = vpack.c.bf16 %v5267, %v5255
        %v6708 = vpack.c.bf16 %v5268, %v5256
        %v6709 = vpack.c.bf16 %v5269, %v5257
        %v6710 = vpack.c.bf16 %v5270, %v5258
        %v6711 = vpack.c.bf16 %v5271, %v5259
        %v6712 = vpack.c.bf16 %v5272, %v5260
        %v6713 = vpack.c.bf16 %v5273, %v5261
        %v6714 = vpack.c.bf16 %v5274, %v5262
        %v6715 = vpack.c.bf16 %v5275, %v5263
        %v6716 = vpack.c.bf16 %v5276, %v5264
        %v6717 = vpack.c.bf16 %v5277, %v5265
        %v6718 = vpack.c.bf16 %v5290, %v5278
        %v6719 = vpack.c.bf16 %v5291, %v5279
        %v6720 = vpack.c.bf16 %v5292, %v5280
        %v6721 = vpack.c.bf16 %v5293, %v5281
        %v6722 = vpack.c.bf16 %v5294, %v5282
        %v6723 = vpack.c.bf16 %v5295, %v5283
        %v6724 = vpack.c.bf16 %v5296, %v5284
        %v6725 = vpack.c.bf16 %v5297, %v5285
        %v6726 = vpack.c.bf16 %v5298, %v5286
        %v6727 = vpack.c.bf16 %v5299, %v5287
        %v6728 = vpack.c.bf16 %v5300, %v5288
        %v6729 = vpack.c.bf16 %v5301, %v5289
        %v6730 = vpack.c.bf16 %v5314, %v5302
        %v6731 = vpack.c.bf16 %v5315, %v5303
        %v6732 = vpack.c.bf16 %v5316, %v5304
        %v6733 = vpack.c.bf16 %v5317, %v5305
        %v6734 = vpack.c.bf16 %v5318, %v5306
        %v6735 = vpack.c.bf16 %v5319, %v5307
        %v6736 = vpack.c.bf16 %v5320, %v5308
        %v6737 = vpack.c.bf16 %v5321, %v5309
        %v6738 = vpack.c.bf16 %v5322, %v5310
        %v6739 = vpack.c.bf16 %v5323, %v5311
        %v6740 = vpack.c.bf16 %v5324, %v5312
        %v6741 = vpack.c.bf16 %v5325, %v5313
        %v6742 = vpack.c.bf16 %v5338, %v5326
        %v6743 = vpack.c.bf16 %v5339, %v5327
        %v6744 = vpack.c.bf16 %v5340, %v5328
        %v6745 = vpack.c.bf16 %v5341, %v5329
        %v6746 = vpack.c.bf16 %v5342, %v5330
        %v6747 = vpack.c.bf16 %v5343, %v5331
        %v6748 = vpack.c.bf16 %v5344, %v5332
        %v6749 = vpack.c.bf16 %v5345, %v5333
        %v6750 = vpack.c.bf16 %v5346, %v5334
        %v6751 = vpack.c.bf16 %v5347, %v5335
        %v6752 = vpack.c.bf16 %v5348, %v5336
        %v6753 = vpack.c.bf16 %v5349, %v5337
        %v6754 = vpack.c.bf16 %v5362, %v5350
        %v6755 = vpack.c.bf16 %v5363, %v5351
        %v6756 = vpack.c.bf16 %v5364, %v5352
        %v6757 = vpack.c.bf16 %v5365, %v5353
        %v6758 = vpack.c.bf16 %v5366, %v5354
        %v6759 = vpack.c.bf16 %v5367, %v5355
        %v6760 = vpack.c.bf16 %v5368, %v5356
        %v6761 = vpack.c.bf16 %v5369, %v5357
        %v6762 = vpack.c.bf16 %v5370, %v5358
        %v6763 = vpack.c.bf16 %v5371, %v5359
        %v6764 = vpack.c.bf16 %v5372, %v5360
        %v6765 = vpack.c.bf16 %v5373, %v5361
        %v6766 = vpack.c.bf16 %v5386, %v5374
        %v6767 = vpack.c.bf16 %v5387, %v5375
        %v6768 = vpack.c.bf16 %v5388, %v5376
        %v6769 = vpack.c.bf16 %v5389, %v5377
        %v6770 = vpack.c.bf16 %v5390, %v5378
        %v6771 = vpack.c.bf16 %v5391, %v5379
        %v6772 = vpack.c.bf16 %v5392, %v5380
        %v6773 = vpack.c.bf16 %v5393, %v5381
        %v6774 = vpack.c.bf16 %v5394, %v5382
        %v6775 = vpack.c.bf16 %v5395, %v5383
        %v6776 = vpack.c.bf16 %v5396, %v5384
        %v6777 = vpack.c.bf16 %v5397, %v5385
        %v6778 = vpack.c.bf16 %v5410, %v5398
        %v6779 = vpack.c.bf16 %v5411, %v5399
        %v6780 = vpack.c.bf16 %v5412, %v5400
        %v6781 = vpack.c.bf16 %v5413, %v5401
        %v6782 = vpack.c.bf16 %v5414, %v5402
        %v6783 = vpack.c.bf16 %v5415, %v5403
        %v6784 = vpack.c.bf16 %v5416, %v5404
        %v6785 = vpack.c.bf16 %v5417, %v5405
        %v6786 = vpack.c.bf16 %v5418, %v5406
        %v6787 = vpack.c.bf16 %v5419, %v5407
        %v6788 = vpack.c.bf16 %v5420, %v5408
        %v6789 = vpack.c.bf16 %v5421, %v5409
        %v6790 = vpack.c.bf16 %v5434, %v5422
        %v6791 = vpack.c.bf16 %v5435, %v5423
        %v6792 = vpack.c.bf16 %v5436, %v5424
        %v6793 = vpack.c.bf16 %v5437, %v5425
        %v6794 = vpack.c.bf16 %v5438, %v5426
        %v6795 = vpack.c.bf16 %v5439, %v5427
        %v6796 = vpack.c.bf16 %v5440, %v5428
        %v6797 = vpack.c.bf16 %v5441, %v5429
        %v6798 = vpack.c.bf16 %v5442, %v5430
        %v6799 = vpack.c.bf16 %v5443, %v5431
        %v6800 = vpack.c.bf16 %v5444, %v5432
        %v6801 = vpack.c.bf16 %v5445, %v5433
        %v6802 = vpack.c.bf16 %v5458, %v5446
        %v6803 = vpack.c.bf16 %v5459, %v5447
        %v6804 = vpack.c.bf16 %v5460, %v5448
        %v6805 = vpack.c.bf16 %v5461, %v5449
        %v6806 = vpack.c.bf16 %v5462, %v5450
        %v6807 = vpack.c.bf16 %v5463, %v5451
        %v6808 = vpack.c.bf16 %v5464, %v5452
        %v6809 = vpack.c.bf16 %v5465, %v5453
        %v6810 = vpack.c.bf16 %v5466, %v5454
        %v6811 = vpack.c.bf16 %v5467, %v5455
        %v6812 = vpack.c.bf16 %v5468, %v5456
        %v6813 = vpack.c.bf16 %v5469, %v5457
        %v6814 = vpack.c.bf16 %v5482, %v5470
        %v6815 = vpack.c.bf16 %v5483, %v5471
        %v6816 = vpack.c.bf16 %v5484, %v5472
        %v6817 = vpack.c.bf16 %v5485, %v5473
        %v6818 = vpack.c.bf16 %v5486, %v5474
        %v6819 = vpack.c.bf16 %v5487, %v5475
        %v6820 = vpack.c.bf16 %v5488, %v5476
        %v6821 = vpack.c.bf16 %v5489, %v5477
        %v6822 = vpack.c.bf16 %v5490, %v5478
        %v6823 = vpack.c.bf16 %v5491, %v5479
        %v6824 = vpack.c.bf16 %v5492, %v5480
        %v6825 = vpack.c.bf16 %v5493, %v5481
        %v6826 = vpack.c.bf16 %v5506, %v5494
        %v6827 = vpack.c.bf16 %v5507, %v5495
        %v6828 = vpack.c.bf16 %v5508, %v5496
        %v6829 = vpack.c.bf16 %v5509, %v5497
        %v6830 = vpack.c.bf16 %v5510, %v5498
        %v6831 = vpack.c.bf16 %v5511, %v5499
        %v6832 = vpack.c.bf16 %v5512, %v5500
        %v6833 = vpack.c.bf16 %v5513, %v5501
        %v6834 = vpack.c.bf16 %v5514, %v5502
        %v6835 = vpack.c.bf16 %v5515, %v5503
        %v6836 = vpack.c.bf16 %v5516, %v5504
        %v6837 = vpack.c.bf16 %v5517, %v5505
        %v6838 = vpack.c.bf16 %v5530, %v5518
        %v6839 = vpack.c.bf16 %v5531, %v5519
        %v6840 = vpack.c.bf16 %v5532, %v5520
        %v6841 = vpack.c.bf16 %v5533, %v5521
        %v6842 = vpack.c.bf16 %v5534, %v5522
        %v6843 = vpack.c.bf16 %v5535, %v5523
        %v6844 = vpack.c.bf16 %v5536, %v5524
        %v6845 = vpack.c.bf16 %v5537, %v5525
        %v6846 = vpack.c.bf16 %v5538, %v5526
        %v6847 = vpack.c.bf16 %v5539, %v5527
        %v6848 = vpack.c.bf16 %v5540, %v5528
        %v6849 = vpack.c.bf16 %v5541, %v5529
        %v6850 = vpack.c.bf16 %v5554, %v5542
        %v6851 = vpack.c.bf16 %v5555, %v5543
        %v6852 = vpack.c.bf16 %v5556, %v5544
        %v6853 = vpack.c.bf16 %v5557, %v5545
        %v6854 = vpack.c.bf16 %v5558, %v5546
        %v6855 = vpack.c.bf16 %v5559, %v5547
        %v6856 = vpack.c.bf16 %v5560, %v5548
        %v6857 = vpack.c.bf16 %v5561, %v5549
        %v6858 = vpack.c.bf16 %v5562, %v5550
        %v6859 = vpack.c.bf16 %v5563, %v5551
        %v6860 = vpack.c.bf16 %v5564, %v5552
        %v6861 = vpack.c.bf16 %v5565, %v5553
        %v6862 = vpack.c.bf16 %v5578, %v5566
        %v6863 = vpack.c.bf16 %v5579, %v5567
        %v6864 = vpack.c.bf16 %v5580, %v5568
        %v6865 = vpack.c.bf16 %v5581, %v5569
        %v6866 = vpack.c.bf16 %v5582, %v5570
        %v6867 = vpack.c.bf16 %v5583, %v5571
        %v6868 = vpack.c.bf16 %v5584, %v5572
        %v6869 = vpack.c.bf16 %v5585, %v5573
        %v6870 = vpack.c.bf16 %v5586, %v5574
        %v6871 = vpack.c.bf16 %v5587, %v5575
        %v6872 = vpack.c.bf16 %v5588, %v5576
        %v6873 = vpack.c.bf16 %v5589, %v5577
        %v6874 = vpack.c.bf16 %v5602, %v5590
        %v6875 = vpack.c.bf16 %v5603, %v5591
        %v6876 = vpack.c.bf16 %v5604, %v5592
        %v6877 = vpack.c.bf16 %v5605, %v5593
        %v6878 = vpack.c.bf16 %v5606, %v5594
        %v6879 = vpack.c.bf16 %v5607, %v5595
        %v6880 = vpack.c.bf16 %v5608, %v5596
        %v6881 = vpack.c.bf16 %v5609, %v5597
        %v6882 = vpack.c.bf16 %v5610, %v5598
        %v6883 = vpack.c.bf16 %v5611, %v5599
        %v6884 = vpack.c.bf16 %v5612, %v5600
        %v6885 = vpack.c.bf16 %v5613, %v5601
        %v6886 = vpack.c.bf16 %v5626, %v5614
        %v6887 = vpack.c.bf16 %v5627, %v5615
        %v6888 = vpack.c.bf16 %v5628, %v5616
        %v6889 = vpack.c.bf16 %v5629, %v5617
        %v6890 = vpack.c.bf16 %v5630, %v5618
        %v6891 = vpack.c.bf16 %v5631, %v5619
        %v6892 = vpack.c.bf16 %v5632, %v5620
        %v6893 = vpack.c.bf16 %v5633, %v5621
        %v6894 = vpack.c.bf16 %v5634, %v5622
        %v6895 = vpack.c.bf16 %v5635, %v5623
        %v6896 = vpack.c.bf16 %v5636, %v5624
        %v6897 = vpack.c.bf16 %v5637, %v5625
        %v6898 = vpack.c.bf16 %v5650, %v5638
        %v6899 = vpack.c.bf16 %v5651, %v5639
        %v6900 = vpack.c.bf16 %v5652, %v5640
        %v6901 = vpack.c.bf16 %v5653, %v5641
        %v6902 = vpack.c.bf16 %v5654, %v5642
        %v6903 = vpack.c.bf16 %v5655, %v5643
        %v6904 = vpack.c.bf16 %v5656, %v5644
        %v6905 = vpack.c.bf16 %v5657, %v5645
        %v6906 = vpack.c.bf16 %v5658, %v5646
        %v6907 = vpack.c.bf16 %v5659, %v5647
        %v6908 = vpack.c.bf16 %v5660, %v5648
        %v6909 = vpack.c.bf16 %v5661, %v5649
        %v6910 = vpack.c.bf16 %v5674, %v5662
        %v6911 = vpack.c.bf16 %v5675, %v5663
        %v6912 = vpack.c.bf16 %v5676, %v5664
        %v6913 = vpack.c.bf16 %v5677, %v5665
        %v6914 = vpack.c.bf16 %v5678, %v5666
        %v6915 = vpack.c.bf16 %v5679, %v5667
        %v6916 = vpack.c.bf16 %v5680, %v5668
        %v6917 = vpack.c.bf16 %v5681, %v5669
        %v6918 = vpack.c.bf16 %v5682, %v5670
        %v6919 = vpack.c.bf16 %v5683, %v5671
        %v6920 = vpack.c.bf16 %v5684, %v5672
        %v6921 = vpack.c.bf16 %v5685, %v5673
        %v6922 = vpack.c.bf16 %v5698, %v5686
        %v6923 = vpack.c.bf16 %v5699, %v5687
        %v6924 = vpack.c.bf16 %v5700, %v5688
        %v6925 = vpack.c.bf16 %v5701, %v5689
        %v6926 = vpack.c.bf16 %v5702, %v5690
        %v6927 = vpack.c.bf16 %v5703, %v5691
        %v6928 = vpack.c.bf16 %v5704, %v5692
        %v6929 = vpack.c.bf16 %v5705, %v5693
        %v6930 = vpack.c.bf16 %v5706, %v5694
        %v6931 = vpack.c.bf16 %v5707, %v5695
        %v6932 = vpack.c.bf16 %v5708, %v5696
        %v6933 = vpack.c.bf16 %v5709, %v5697
        %v6934 = vpack.c.bf16 %v5722, %v5710
        %v6935 = vpack.c.bf16 %v5723, %v5711
        %v6936 = vpack.c.bf16 %v5724, %v5712
        %v6937 = vpack.c.bf16 %v5725, %v5713
        %v6938 = vpack.c.bf16 %v5726, %v5714
        %v6939 = vpack.c.bf16 %v5727, %v5715
        %v6940 = vpack.c.bf16 %v5728, %v5716
        %v6941 = vpack.c.bf16 %v5729, %v5717
        %v6942 = vpack.c.bf16 %v5730, %v5718
        %v6943 = vpack.c.bf16 %v5731, %v5719
        %v6944 = vpack.c.bf16 %v5732, %v5720
        %v6945 = vpack.c.bf16 %v5733, %v5721
        %v6946 = vpack.c.bf16 %v5746, %v5734
        %v6947 = vpack.c.bf16 %v5747, %v5735
        %v6948 = vpack.c.bf16 %v5748, %v5736
        %v6949 = vpack.c.bf16 %v5749, %v5737
        %v6950 = vpack.c.bf16 %v5750, %v5738
        %v6951 = vpack.c.bf16 %v5751, %v5739
        %v6952 = vpack.c.bf16 %v5752, %v5740
        %v6953 = vpack.c.bf16 %v5753, %v5741
        %v6954 = vpack.c.bf16 %v5754, %v5742
        %v6955 = vpack.c.bf16 %v5755, %v5743
        %v6956 = vpack.c.bf16 %v5756, %v5744
        %v6957 = vpack.c.bf16 %v5757, %v5745
        %v6958 = vpack.c.bf16 %v5770, %v5758
        %v6959 = vpack.c.bf16 %v5771, %v5759
        %v6960 = vpack.c.bf16 %v5772, %v5760
        %v6961 = vpack.c.bf16 %v5773, %v5761
        %v6962 = vpack.c.bf16 %v5774, %v5762
        %v6963 = vpack.c.bf16 %v5775, %v5763
        %v6964 = vpack.c.bf16 %v5776, %v5764
        %v6965 = vpack.c.bf16 %v5777, %v5765
        %v6966 = vpack.c.bf16 %v5778, %v5766
        %v6967 = vpack.c.bf16 %v5779, %v5767
        %v6968 = vpack.c.bf16 %v5780, %v5768
        %v6969 = vpack.c.bf16 %v5781, %v5769
        %v6970 = vpack.c.bf16 %v5794, %v5782
        %v6971 = vpack.c.bf16 %v5795, %v5783
        %v6972 = vpack.c.bf16 %v5796, %v5784
        %v6973 = vpack.c.bf16 %v5797, %v5785
        %v6974 = vpack.c.bf16 %v5798, %v5786
        %v6975 = vpack.c.bf16 %v5799, %v5787
        %v6976 = vpack.c.bf16 %v5800, %v5788
        %v6977 = vpack.c.bf16 %v5801, %v5789
        %v6978 = vpack.c.bf16 %v5802, %v5790
        %v6979 = vpack.c.bf16 %v5803, %v5791
        %v6980 = vpack.c.bf16 %v5804, %v5792
        %v6981 = vpack.c.bf16 %v5805, %v5793
        %v6982 = vpack.c.bf16 %v5818, %v5806
        %v6983 = vpack.c.bf16 %v5819, %v5807
        %v6984 = vpack.c.bf16 %v5820, %v5808
        %v6985 = vpack.c.bf16 %v5821, %v5809
        %v6986 = vpack.c.bf16 %v5822, %v5810
        %v6987 = vpack.c.bf16 %v5823, %v5811
        %v6988 = vpack.c.bf16 %v5824, %v5812
        %v6989 = vpack.c.bf16 %v5825, %v5813
        %v6990 = vpack.c.bf16 %v5826, %v5814
        %v6991 = vpack.c.bf16 %v5827, %v5815
        %v6992 = vpack.c.bf16 %v5828, %v5816
        %v6993 = vpack.c.bf16 %v5829, %v5817
        %v6994 = vpack.c.bf16 %v5842, %v5830
        %v6995 = vpack.c.bf16 %v5843, %v5831
        %v6996 = vpack.c.bf16 %v5844, %v5832
        %v6997 = vpack.c.bf16 %v5845, %v5833
        %v6998 = vpack.c.bf16 %v5846, %v5834
        %v6999 = vpack.c.bf16 %v5847, %v5835
        %v7000 = vpack.c.bf16 %v5848, %v5836
        %v7001 = vpack.c.bf16 %v5849, %v5837
        %v7002 = vpack.c.bf16 %v5850, %v5838
        %v7003 = vpack.c.bf16 %v5851, %v5839
        %v7004 = vpack.c.bf16 %v5852, %v5840
        %v7005 = vpack.c.bf16 %v5853, %v5841
        %v7006 = vpack.c.bf16 %v5866, %v5854
        %v7007 = vpack.c.bf16 %v5867, %v5855
        %v7008 = vpack.c.bf16 %v5868, %v5856
        %v7009 = vpack.c.bf16 %v5869, %v5857
        %v7010 = vpack.c.bf16 %v5870, %v5858
        %v7011 = vpack.c.bf16 %v5871, %v5859
        %v7012 = vpack.c.bf16 %v5872, %v5860
        %v7013 = vpack.c.bf16 %v5873, %v5861
        %v7014 = vpack.c.bf16 %v5874, %v5862
        %v7015 = vpack.c.bf16 %v5875, %v5863
        %v7016 = vpack.c.bf16 %v5876, %v5864
        %v7017 = vpack.c.bf16 %v5877, %v5865
        %v7018 = vpack.c.bf16 %v5890, %v5878
        %v7019 = vpack.c.bf16 %v5891, %v5879
        %v7020 = vpack.c.bf16 %v5892, %v5880
        %v7021 = vpack.c.bf16 %v5893, %v5881
        %v7022 = vpack.c.bf16 %v5894, %v5882
        %v7023 = vpack.c.bf16 %v5895, %v5883
        %v7024 = vpack.c.bf16 %v5896, %v5884
        %v7025 = vpack.c.bf16 %v5897, %v5885
        %v7026 = vpack.c.bf16 %v5898, %v5886
        %v7027 = vpack.c.bf16 %v5899, %v5887
        %v7028 = vpack.c.bf16 %v5900, %v5888
        %v7029 = vpack.c.bf16 %v5901, %v5889
        %v7030 = vpack.c.bf16 %v5914, %v5902
        %v7031 = vpack.c.bf16 %v5915, %v5903
        %v7032 = vpack.c.bf16 %v5916, %v5904
        %v7033 = vpack.c.bf16 %v5917, %v5905
        %v7034 = vpack.c.bf16 %v5918, %v5906
        %v7035 = vpack.c.bf16 %v5919, %v5907
        %v7036 = vpack.c.bf16 %v5920, %v5908
        %v7037 = vpack.c.bf16 %v5921, %v5909
        %v7038 = vpack.c.bf16 %v5922, %v5910
        %v7039 = vpack.c.bf16 %v5923, %v5911
        %v7040 = vpack.c.bf16 %v5924, %v5912
        %v7041 = vpack.c.bf16 %v5925, %v5913
        %v7042 = vpack.c.bf16 %v5938, %v5926
        %v7043 = vpack.c.bf16 %v5939, %v5927
        %v7044 = vpack.c.bf16 %v5940, %v5928
        %v7045 = vpack.c.bf16 %v5941, %v5929
        %v7046 = vpack.c.bf16 %v5942, %v5930
        %v7047 = vpack.c.bf16 %v5943, %v5931
        %v7048 = vpack.c.bf16 %v5944, %v5932
        %v7049 = vpack.c.bf16 %v5945, %v5933
        %v7050 = vpack.c.bf16 %v5946, %v5934
        %v7051 = vpack.c.bf16 %v5947, %v5935
        %v7052 = vpack.c.bf16 %v5948, %v5936
        %v7053 = vpack.c.bf16 %v5949, %v5937
        %v7054 = vpack.c.bf16 %v5962, %v5950
        %v7055 = vpack.c.bf16 %v5963, %v5951
        %v7056 = vpack.c.bf16 %v5964, %v5952
        %v7057 = vpack.c.bf16 %v5965, %v5953
        %v7058 = vpack.c.bf16 %v5966, %v5954
        %v7059 = vpack.c.bf16 %v5967, %v5955
        %v7060 = vpack.c.bf16 %v5968, %v5956
        %v7061 = vpack.c.bf16 %v5969, %v5957
        %v7062 = vpack.c.bf16 %v5970, %v5958
        %v7063 = vpack.c.bf16 %v5971, %v5959
        %v7064 = vpack.c.bf16 %v5972, %v5960
        %v7065 = vpack.c.bf16 %v5973, %v5961
        %v7066 = vpack.c.bf16 %v5986, %v5974
        %v7067 = vpack.c.bf16 %v5987, %v5975
        %v7068 = vpack.c.bf16 %v5988, %v5976
        %v7069 = vpack.c.bf16 %v5989, %v5977
        %v7070 = vpack.c.bf16 %v5990, %v5978
        %v7071 = vpack.c.bf16 %v5991, %v5979
        %v7072 = vpack.c.bf16 %v5992, %v5980
        %v7073 = vpack.c.bf16 %v5993, %v5981
        %v7074 = vpack.c.bf16 %v5994, %v5982
        %v7075 = vpack.c.bf16 %v5995, %v5983
        %v7076 = vpack.c.bf16 %v5996, %v5984
        %v7077 = vpack.c.bf16 %v5997, %v5985
        %v7078 = vpack.c.bf16 %v6010, %v5998
        %v7079 = vpack.c.bf16 %v6011, %v5999
        %v7080 = vpack.c.bf16 %v6012, %v6000
        %v7081 = vpack.c.bf16 %v6013, %v6001
        %v7082 = vpack.c.bf16 %v6014, %v6002
        %v7083 = vpack.c.bf16 %v6015, %v6003
        %v7084 = vpack.c.bf16 %v6016, %v6004
        %v7085 = vpack.c.bf16 %v6017, %v6005
        %v7086 = vpack.c.bf16 %v6018, %v6006
        %v7087 = vpack.c.bf16 %v6019, %v6007
        %v7088 = vpack.c.bf16 %v6020, %v6008
        %v7089 = vpack.c.bf16 %v6021, %v6009
        %v7090 = vpack.c.bf16 %v6034, %v6022
        %v7091 = vpack.c.bf16 %v6035, %v6023
        %v7092 = vpack.c.bf16 %v6036, %v6024
        %v7093 = vpack.c.bf16 %v6037, %v6025
        %v7094 = vpack.c.bf16 %v6038, %v6026
        %v7095 = vpack.c.bf16 %v6039, %v6027
        %v7096 = vpack.c.bf16 %v6040, %v6028
        %v7097 = vpack.c.bf16 %v6041, %v6029
        %v7098 = vpack.c.bf16 %v6042, %v6030
        %v7099 = vpack.c.bf16 %v6043, %v6031
        %v7100 = vpack.c.bf16 %v6044, %v6032
        %v7101 = vpack.c.bf16 %v6045, %v6033
        %v7102 = vpack.c.bf16 %v6058, %v6046
        %v7103 = vpack.c.bf16 %v6059, %v6047
        %v7104 = vpack.c.bf16 %v6060, %v6048
        %v7105 = vpack.c.bf16 %v6061, %v6049
        %v7106 = vpack.c.bf16 %v6062, %v6050
        %v7107 = vpack.c.bf16 %v6063, %v6051
        %v7108 = vpack.c.bf16 %v6064, %v6052
        %v7109 = vpack.c.bf16 %v6065, %v6053
        %v7110 = vpack.c.bf16 %v6066, %v6054
        %v7111 = vpack.c.bf16 %v6067, %v6055
        %v7112 = vpack.c.bf16 %v6068, %v6056
        %v7113 = vpack.c.bf16 %v6069, %v6057
        %v7114 = vpack.c.bf16 %v6082, %v6070
        %v7115 = vpack.c.bf16 %v6083, %v6071
        %v7116 = vpack.c.bf16 %v6084, %v6072
        %v7117 = vpack.c.bf16 %v6085, %v6073
        %v7118 = vpack.c.bf16 %v6086, %v6074
        %v7119 = vpack.c.bf16 %v6087, %v6075
        %v7120 = vpack.c.bf16 %v6088, %v6076
        %v7121 = vpack.c.bf16 %v6089, %v6077
        %v7122 = vpack.c.bf16 %v6090, %v6078
        %v7123 = vpack.c.bf16 %v6091, %v6079
        %v7124 = vpack.c.bf16 %v6092, %v6080
        %v7125 = vpack.c.bf16 %v6093, %v6081
        %v7126 = vpack.c.bf16 %v6106, %v6094
        %v7127 = vpack.c.bf16 %v6107, %v6095
        %v7128 = vpack.c.bf16 %v6108, %v6096
        %v7129 = vpack.c.bf16 %v6109, %v6097
        %v7130 = vpack.c.bf16 %v6110, %v6098
        %v7131 = vpack.c.bf16 %v6111, %v6099
        %v7132 = vpack.c.bf16 %v6112, %v6100
        %v7133 = vpack.c.bf16 %v6113, %v6101
        %v7134 = vpack.c.bf16 %v6114, %v6102
        %v7135 = vpack.c.bf16 %v6115, %v6103
        %v7136 = vpack.c.bf16 %v6116, %v6104
        %v7137 = vpack.c.bf16 %v6117, %v6105
        %v7138 = vpack.c.bf16 %v6130, %v6118
        %v7139 = vpack.c.bf16 %v6131, %v6119
        %v7140 = vpack.c.bf16 %v6132, %v6120
        %v7141 = vpack.c.bf16 %v6133, %v6121
        %v7142 = vpack.c.bf16 %v6134, %v6122
        %v7143 = vpack.c.bf16 %v6135, %v6123
        %v7144 = vpack.c.bf16 %v6136, %v6124
        %v7145 = vpack.c.bf16 %v6137, %v6125
        %v7146 = vpack.c.bf16 %v6138, %v6126
        %v7147 = vpack.c.bf16 %v6139, %v6127
        %v7148 = vpack.c.bf16 %v6140, %v6128
        %v7149 = vpack.c.bf16 %v6141, %v6129
        %v7150 = vpack.c.bf16 %v6154, %v6142
        %v7151 = vpack.c.bf16 %v6155, %v6143
        %v7152 = vpack.c.bf16 %v6156, %v6144
        %v7153 = vpack.c.bf16 %v6157, %v6145
        %v7154 = vpack.c.bf16 %v6158, %v6146
        %v7155 = vpack.c.bf16 %v6159, %v6147
        %v7156 = vpack.c.bf16 %v6160, %v6148
        %v7157 = vpack.c.bf16 %v6161, %v6149
        %v7158 = vpack.c.bf16 %v6162, %v6150
        %v7159 = vpack.c.bf16 %v6163, %v6151
        %v7160 = vpack.c.bf16 %v6164, %v6152
        %v7161 = vpack.c.bf16 %v6165, %v6153
        %v7162 = vpack.c.bf16 %v6178, %v6166
        %v7163 = vpack.c.bf16 %v6179, %v6167
        %v7164 = vpack.c.bf16 %v6180, %v6168
        %v7165 = vpack.c.bf16 %v6181, %v6169
        %v7166 = vpack.c.bf16 %v6182, %v6170
        %v7167 = vpack.c.bf16 %v6183, %v6171
        %v7168 = vpack.c.bf16 %v6184, %v6172
        %v7169 = vpack.c.bf16 %v6185, %v6173
        %v7170 = vpack.c.bf16 %v6186, %v6174
        %v7171 = vpack.c.bf16 %v6187, %v6175
        %v7172 = vpack.c.bf16 %v6188, %v6176
        %v7173 = vpack.c.bf16 %v6189, %v6177
        %v7174 = vpack.c.bf16 %v6202, %v6190
        %v7175 = vpack.c.bf16 %v6203, %v6191
        %v7176 = vpack.c.bf16 %v6204, %v6192
        %v7177 = vpack.c.bf16 %v6205, %v6193
        %v7178 = vpack.c.bf16 %v6206, %v6194
        %v7179 = vpack.c.bf16 %v6207, %v6195
        %v7180 = vpack.c.bf16 %v6208, %v6196
        %v7181 = vpack.c.bf16 %v6209, %v6197
        %v7182 = vpack.c.bf16 %v6210, %v6198
        %v7183 = vpack.c.bf16 %v6211, %v6199
        %v7184 = vpack.c.bf16 %v6212, %v6200
        %v7185 = vpack.c.bf16 %v6213, %v6201
        %v7186 = vpack.c.bf16 %v6226, %v6214
        %v7187 = vpack.c.bf16 %v6227, %v6215
        %v7188 = vpack.c.bf16 %v6228, %v6216
        %v7189 = vpack.c.bf16 %v6229, %v6217
        %v7190 = vpack.c.bf16 %v6230, %v6218
        %v7191 = vpack.c.bf16 %v6231, %v6219
        %v7192 = vpack.c.bf16 %v6232, %v6220
        %v7193 = vpack.c.bf16 %v6233, %v6221
        %v7194 = vpack.c.bf16 %v6234, %v6222
        %v7195 = vpack.c.bf16 %v6235, %v6223
        %v7196 = vpack.c.bf16 %v6236, %v6224
        %v7197 = vpack.c.bf16 %v6237, %v6225
        %v7198 = vpack.c.bf16 %v6250, %v6238
        %v7199 = vpack.c.bf16 %v6251, %v6239
        %v7200 = vpack.c.bf16 %v6252, %v6240
        %v7201 = vpack.c.bf16 %v6253, %v6241
        %v7202 = vpack.c.bf16 %v6254, %v6242
        %v7203 = vpack.c.bf16 %v6255, %v6243
        %v7204 = vpack.c.bf16 %v6256, %v6244
        %v7205 = vpack.c.bf16 %v6257, %v6245
        %v7206 = vpack.c.bf16 %v6258, %v6246
        %v7207 = vpack.c.bf16 %v6259, %v6247
        %v7208 = vpack.c.bf16 %v6260, %v6248
        %v7209 = vpack.c.bf16 %v6261, %v6249
        %v7210 = vpack.c.bf16 %v6274, %v6262
        %v7211 = vpack.c.bf16 %v6275, %v6263
        %v7212 = vpack.c.bf16 %v6276, %v6264
        %v7213 = vpack.c.bf16 %v6277, %v6265
        %v7214 = vpack.c.bf16 %v6278, %v6266
        %v7215 = vpack.c.bf16 %v6279, %v6267
        %v7216 = vpack.c.bf16 %v6280, %v6268
        %v7217 = vpack.c.bf16 %v6281, %v6269
        %v7218 = vpack.c.bf16 %v6282, %v6270
        %v7219 = vpack.c.bf16 %v6283, %v6271
        %v7220 = vpack.c.bf16 %v6284, %v6272
        %v7221 = vpack.c.bf16 %v6285, %v6273
        %v7222 = vpack.c.bf16 %v6298, %v6286
        %v7223 = vpack.c.bf16 %v6299, %v6287
        %v7224 = vpack.c.bf16 %v6300, %v6288
        %v7225 = vpack.c.bf16 %v6301, %v6289
        %v7226 = vpack.c.bf16 %v6302, %v6290
        %v7227 = vpack.c.bf16 %v6303, %v6291
        %v7228 = vpack.c.bf16 %v6304, %v6292
        %v7229 = vpack.c.bf16 %v6305, %v6293
        %v7230 = vpack.c.bf16 %v6306, %v6294
        %v7231 = vpack.c.bf16 %v6307, %v6295
        %v7232 = vpack.c.bf16 %v6308, %v6296
        %v7233 = vpack.c.bf16 %v6309, %v6297
        %v7234 = vpack.c.bf16 %v6322, %v6310
        %v7235 = vpack.c.bf16 %v6323, %v6311
        %v7236 = vpack.c.bf16 %v6324, %v6312
        %v7237 = vpack.c.bf16 %v6325, %v6313
        %v7238 = vpack.c.bf16 %v6326, %v6314
        %v7239 = vpack.c.bf16 %v6327, %v6315
        %v7240 = vpack.c.bf16 %v6328, %v6316
        %v7241 = vpack.c.bf16 %v6329, %v6317
        %v7242 = vpack.c.bf16 %v6330, %v6318
        %v7243 = vpack.c.bf16 %v6331, %v6319
        %v7244 = vpack.c.bf16 %v6332, %v6320
        %v7245 = vpack.c.bf16 %v6333, %v6321
        %v7246 = vpack.c.bf16 %v6346, %v6334
        %v7247 = vpack.c.bf16 %v6347, %v6335
        %v7248 = vpack.c.bf16 %v6348, %v6336
        %v7249 = vpack.c.bf16 %v6349, %v6337
        %v7250 = vpack.c.bf16 %v6350, %v6338
        %v7251 = vpack.c.bf16 %v6351, %v6339
        %v7252 = vpack.c.bf16 %v6352, %v6340
        %v7253 = vpack.c.bf16 %v6353, %v6341
        %v7254 = vpack.c.bf16 %v6354, %v6342
        %v7255 = vpack.c.bf16 %v6355, %v6343
        %v7256 = vpack.c.bf16 %v6356, %v6344
        %v7257 = vpack.c.bf16 %v6357, %v6345
        %v7258 = vpack.c.bf16 %v6370, %v6358
        %v7259 = vpack.c.bf16 %v6371, %v6359
        %v7260 = vpack.c.bf16 %v6372, %v6360
        %v7261 = vpack.c.bf16 %v6373, %v6361
        %v7262 = vpack.c.bf16 %v6374, %v6362
        %v7263 = vpack.c.bf16 %v6375, %v6363
        %v7264 = vpack.c.bf16 %v6376, %v6364
        %v7265 = vpack.c.bf16 %v6377, %v6365
        %v7266 = vpack.c.bf16 %v6378, %v6366
        %v7267 = vpack.c.bf16 %v6379, %v6367
        %v7268 = vpack.c.bf16 %v6380, %v6368
        %v7269 = vpack.c.bf16 %v6381, %v6369
        %v7270 = vpack.c.bf16 %v6394, %v6382
        %v7271 = vpack.c.bf16 %v6395, %v6383
        %v7272 = vpack.c.bf16 %v6396, %v6384
        %v7273 = vpack.c.bf16 %v6397, %v6385
        %v7274 = vpack.c.bf16 %v6398, %v6386
        %v7275 = vpack.c.bf16 %v6399, %v6387
        %v7276 = vpack.c.bf16 %v6400, %v6388
        %v7277 = vpack.c.bf16 %v6401, %v6389
        %v7278 = vpack.c.bf16 %v6402, %v6390
        %v7279 = vpack.c.bf16 %v6403, %v6391
        %v7280 = vpack.c.bf16 %v6404, %v6392
        %v7281 = vpack.c.bf16 %v6405, %v6393
        %v7282 = vpack.c.bf16 %v6418, %v6406
        %v7283 = vpack.c.bf16 %v6419, %v6407
        %v7284 = vpack.c.bf16 %v6420, %v6408
        %v7285 = vpack.c.bf16 %v6421, %v6409
        %v7286 = vpack.c.bf16 %v6422, %v6410
        %v7287 = vpack.c.bf16 %v6423, %v6411
        %v7288 = vpack.c.bf16 %v6424, %v6412
        %v7289 = vpack.c.bf16 %v6425, %v6413
        %v7290 = vpack.c.bf16 %v6426, %v6414
        %v7291 = vpack.c.bf16 %v6427, %v6415
        %v7292 = vpack.c.bf16 %v6428, %v6416
        %v7293 = vpack.c.bf16 %v6429, %v6417
        %v7294 = vpack.c.bf16 %v6442, %v6430
        %v7295 = vpack.c.bf16 %v6443, %v6431
        %v7296 = vpack.c.bf16 %v6444, %v6432
        %v7297 = vpack.c.bf16 %v6445, %v6433
        %v7298 = vpack.c.bf16 %v6446, %v6434
        %v7299 = vpack.c.bf16 %v6447, %v6435
        %v7300 = vpack.c.bf16 %v6448, %v6436
        %v7301 = vpack.c.bf16 %v6449, %v6437
        %v7302 = vpack.c.bf16 %v6450, %v6438
        %v7303 = vpack.c.bf16 %v6451, %v6439
        %v7304 = vpack.c.bf16 %v6452, %v6440
        %v7305 = vpack.c.bf16 %v6453, %v6441
        %v7306 = vpack.c.bf16 %v6466, %v6454
        %v7307 = vpack.c.bf16 %v6467, %v6455
        %v7308 = vpack.c.bf16 %v6468, %v6456
        %v7309 = vpack.c.bf16 %v6469, %v6457
        %v7310 = vpack.c.bf16 %v6470, %v6458
        %v7311 = vpack.c.bf16 %v6471, %v6459
        %v7312 = vpack.c.bf16 %v6472, %v6460
        %v7313 = vpack.c.bf16 %v6473, %v6461
        %v7314 = vpack.c.bf16 %v6474, %v6462
        %v7315 = vpack.c.bf16 %v6475, %v6463
        %v7316 = vpack.c.bf16 %v6476, %v6464
        %v7317 = vpack.c.bf16 %v6477, %v6465
        %v7318 = vpack.c.bf16 %v6490, %v6478
        %v7319 = vpack.c.bf16 %v6491, %v6479
        %v7320 = vpack.c.bf16 %v6492, %v6480
        %v7321 = vpack.c.bf16 %v6493, %v6481
        %v7322 = vpack.c.bf16 %v6494, %v6482
        %v7323 = vpack.c.bf16 %v6495, %v6483
        %v7324 = vpack.c.bf16 %v6496, %v6484
        %v7325 = vpack.c.bf16 %v6497, %v6485
        %v7326 = vpack.c.bf16 %v6498, %v6486
        %v7327 = vpack.c.bf16 %v6499, %v6487
        %v7328 = vpack.c.bf16 %v6500, %v6488
        %v7329 = vpack.c.bf16 %v6501, %v6489
        %v7330 = vpack.c.bf16 %v6514, %v6502
        %v7331 = vpack.c.bf16 %v6515, %v6503
        %v7332 = vpack.c.bf16 %v6516, %v6504
        %v7333 = vpack.c.bf16 %v6517, %v6505
        %v7334 = vpack.c.bf16 %v6518, %v6506
        %v7335 = vpack.c.bf16 %v6519, %v6507
        %v7336 = vpack.c.bf16 %v6520, %v6508
        %v7337 = vpack.c.bf16 %v6521, %v6509
        %v7338 = vpack.c.bf16 %v6522, %v6510
        %v7339 = vpack.c.bf16 %v6523, %v6511
        %v7340 = vpack.c.bf16 %v6524, %v6512
        %v7341 = vpack.c.bf16 %v6525, %v6513
        %v7342 = vpack.c.bf16 %v6538, %v6526
        %v7343 = vpack.c.bf16 %v6539, %v6527
        %v7344 = vpack.c.bf16 %v6540, %v6528
        %v7345 = vpack.c.bf16 %v6541, %v6529
        %v7346 = vpack.c.bf16 %v6542, %v6530
        %v7347 = vpack.c.bf16 %v6543, %v6531
        %v7348 = vpack.c.bf16 %v6544, %v6532
        %v7349 = vpack.c.bf16 %v6545, %v6533
        %v7350 = vpack.c.bf16 %v6546, %v6534
        %v7351 = vpack.c.bf16 %v6547, %v6535
        %v7352 = vpack.c.bf16 %v6548, %v6536
        %v7353 = vpack.c.bf16 %v6549, %v6537
        %v7354 = vpack.c.bf16 %v6562, %v6550
        %v7355 = vpack.c.bf16 %v6563, %v6551
        %v7356 = vpack.c.bf16 %v6564, %v6552
        %v7357 = vpack.c.bf16 %v6565, %v6553
        %v7358 = vpack.c.bf16 %v6566, %v6554
        %v7359 = vpack.c.bf16 %v6567, %v6555
        %v7360 = vpack.c.bf16 %v6568, %v6556
        %v7361 = vpack.c.bf16 %v6569, %v6557
        %v7362 = vpack.c.bf16 %v6570, %v6558
        %v7363 = vpack.c.bf16 %v6571, %v6559
        %v7364 = vpack.c.bf16 %v6572, %v6560
        %v7365 = vpack.c.bf16 %v6573, %v6561
        %v7366 = vpack.c.bf16 %v6586, %v6574
        %v7367 = vpack.c.bf16 %v6587, %v6575
        %v7368 = vpack.c.bf16 %v6588, %v6576
        %v7369 = vpack.c.bf16 %v6589, %v6577
        %v7370 = vpack.c.bf16 %v6590, %v6578
        %v7371 = vpack.c.bf16 %v6591, %v6579
        %v7372 = vpack.c.bf16 %v6592, %v6580
        %v7373 = vpack.c.bf16 %v6593, %v6581
        %v7374 = vpack.c.bf16 %v6594, %v6582
        %v7375 = vpack.c.bf16 %v6595, %v6583
        %v7376 = vpack.c.bf16 %v6596, %v6584
        %v7377 = vpack.c.bf16 %v6597, %v6585
        %v7378 = vpack.c.bf16 %v6610, %v6598
        %v7379 = vpack.c.bf16 %v6611, %v6599
        %v7380 = vpack.c.bf16 %v6612, %v6600
        %v7381 = vpack.c.bf16 %v6613, %v6601
        %v7382 = vpack.c.bf16 %v6614, %v6602
        %v7383 = vpack.c.bf16 %v6615, %v6603
        %v7384 = vpack.c.bf16 %v6616, %v6604
        %v7385 = vpack.c.bf16 %v6617, %v6605
        %v7386 = vpack.c.bf16 %v6618, %v6606
        %v7387 = vpack.c.bf16 %v6619, %v6607
        %v7388 = vpack.c.bf16 %v6620, %v6608
        %v7389 = vpack.c.bf16 %v6621, %v6609
        %v7390 = vpack.c.bf16 %v3158, %v3158
        %v7391 = vpack.c.bf16 %v3159, %v3159
        %v7392 = vpack.c.bf16 %v3160, %v3160
        %v7393 = vpack.c.bf16 %v3161, %v3161
        %v7394 = vpack.c.bf16 %v3162, %v3162
        %v7395 = vpack.c.bf16 %v3163, %v3163
        %v7396 = vpack.c.bf16 %v3164, %v3164
        %v7397 = vpack.c.bf16 %v3165, %v3165
        %7398 = vmatpush.bf16.msra.mxu0 %v6706
        %7399 = vmatpush.bf16.msra.mxu0 %v6694
        %7400 = vmatpush.bf16.msra.mxu0 %v6682
        %7401 = vmatpush.bf16.msra.mxu0 %v6670
        %7402 = vmatpush.bf16.msra.mxu0 %v6658
        %7403 = vmatpush.bf16.msra.mxu0 %v6646
        %7404 = vmatpush.bf16.msra.mxu0 %v6634
        %7405 = vmatpush.bf16.msra.mxu0 %v6622
        %7406 = vmatmul.bf16.gmra.mxu0 %v7390
        %v7407 = vpop.f32.mrf.mxu0
        %v7408 = vadd.f32 0.0, %v7407
        %v7409 = vpop.f32.mrf.mxu0
        %7410 = vdwg.mxu0
        %7411 = vmatpush.bf16.msra.mxu0 %v6802
        %7412 = vmatpush.bf16.msra.mxu0 %v6790
        %7413 = vmatpush.bf16.msra.mxu0 %v6778
        %7414 = vmatpush.bf16.msra.mxu0 %v6766
        %7415 = vmatpush.bf16.msra.mxu0 %v6754
        %7416 = vmatpush.bf16.msra.mxu0 %v6742
        %7417 = vmatpush.bf16.msra.mxu0 %v6730
        %7418 = vmatpush.bf16.msra.mxu0 %v6718
        %7419 = vmatmul.bf16.gmra.mxu0 %v7391
        %v7420 = vpop.f32.mrf.mxu0
        %v7421 = vadd.f32 %v7408, %v7420
        %v7422 = vpop.f32.mrf.mxu0
        %7423 = vdwg.mxu0
        %7424 = vmatpush.bf16.msra.mxu0 %v6898
        %7425 = vmatpush.bf16.msra.mxu0 %v6886
        %7426 = vmatpush.bf16.msra.mxu0 %v6874
        %7427 = vmatpush.bf16.msra.mxu0 %v6862
        %7428 = vmatpush.bf16.msra.mxu0 %v6850
        %7429 = vmatpush.bf16.msra.mxu0 %v6838
        %7430 = vmatpush.bf16.msra.mxu0 %v6826
        %7431 = vmatpush.bf16.msra.mxu0 %v6814
        %7432 = vmatmul.bf16.gmra.mxu0 %v7392
        %v7433 = vpop.f32.mrf.mxu0
        %v7434 = vadd.f32 %v7421, %v7433
        %v7435 = vpop.f32.mrf.mxu0
        %7436 = vdwg.mxu0
        %7437 = vmatpush.bf16.msra.mxu0 %v6994
        %7438 = vmatpush.bf16.msra.mxu0 %v6982
        %7439 = vmatpush.bf16.msra.mxu0 %v6970
        %7440 = vmatpush.bf16.msra.mxu0 %v6958
        %7441 = vmatpush.bf16.msra.mxu0 %v6946
        %7442 = vmatpush.bf16.msra.mxu0 %v6934
        %7443 = vmatpush.bf16.msra.mxu0 %v6922
        %7444 = vmatpush.bf16.msra.mxu0 %v6910
        %7445 = vmatmul.bf16.gmra.mxu0 %v7393
        %v7446 = vpop.f32.mrf.mxu0
        %v7447 = vadd.f32 %v7434, %v7446
        %v7448 = vpop.f32.mrf.mxu0
        %7449 = vdwg.mxu0
        %7450 = vmatpush.bf16.msra.mxu0 %v7090
        %7451 = vmatpush.bf16.msra.mxu0 %v7078
        %7452 = vmatpush.bf16.msra.mxu0 %v7066
        %7453 = vmatpush.bf16.msra.mxu0 %v7054
        %7454 = vmatpush.bf16.msra.mxu0 %v7042
        %7455 = vmatpush.bf16.msra.mxu0 %v7030
        %7456 = vmatpush.bf16.msra.mxu0 %v7018
        %7457 = vmatpush.bf16.msra.mxu0 %v7006
        %7458 = vmatmul.bf16.gmra.mxu0 %v7394
        %v7459 = vpop.f32.mrf.mxu0
        %v7460 = vadd.f32 %v7447, %v7459
        %v7461 = vpop.f32.mrf.mxu0
        %7462 = vdwg.mxu0
        %7463 = vmatpush.bf16.msra.mxu0 %v7186
        %7464 = vmatpush.bf16.msra.mxu0 %v7174
        %7465 = vmatpush.bf16.msra.mxu0 %v7162
        %7466 = vmatpush.bf16.msra.mxu0 %v7150
        %7467 = vmatpush.bf16.msra.mxu0 %v7138
        %7468 = vmatpush.bf16.msra.mxu0 %v7126
        %7469 = vmatpush.bf16.msra.mxu0 %v7114
        %7470 = vmatpush.bf16.msra.mxu0 %v7102
        %7471 = vmatmul.bf16.gmra.mxu0 %v7395
        %v7472 = vpop.f32.mrf.mxu0
        %v7473 = vadd.f32 %v7460, %v7472
        %v7474 = vpop.f32.mrf.mxu0
        %7475 = vdwg.mxu0
        %7476 = vmatpush.bf16.msra.mxu0 %v7282
        %7477 = vmatpush.bf16.msra.mxu0 %v7270
        %7478 = vmatpush.bf16.msra.mxu0 %v7258
        %7479 = vmatpush.bf16.msra.mxu0 %v7246
        %7480 = vmatpush.bf16.msra.mxu0 %v7234
        %7481 = vmatpush.bf16.msra.mxu0 %v7222
        %7482 = vmatpush.bf16.msra.mxu0 %v7210
        %7483 = vmatpush.bf16.msra.mxu0 %v7198
        %7484 = vmatmul.bf16.gmra.mxu0 %v7396
        %v7485 = vpop.f32.mrf.mxu0
        %v7486 = vadd.f32 %v7473, %v7485
        %v7487 = vpop.f32.mrf.mxu0
        %7488 = vdwg.mxu0
        %7489 = vmatpush.bf16.msra.mxu0 %v7378
        %7490 = vmatpush.bf16.msra.mxu0 %v7366
        %7491 = vmatpush.bf16.msra.mxu0 %v7354
        %7492 = vmatpush.bf16.msra.mxu0 %v7342
        %7493 = vmatpush.bf16.msra.mxu0 %v7330
        %7494 = vmatpush.bf16.msra.mxu0 %v7318
        %7495 = vmatpush.bf16.msra.mxu0 %v7306
        %7496 = vmatpush.bf16.msra.mxu0 %v7294
        %7497 = vmatmul.bf16.gmra.mxu0 %v7397
        %v7498 = vpop.f32.mrf.mxu0
        %v7499 = vadd.f32 %v7486, %v7498
        %v7500 = vpop.f32.mrf.mxu0
        %7501 = vdwg.mxu0
        %7502 = vmatpush.bf16.msra.mxu0 %v6707
        %7503 = vmatpush.bf16.msra.mxu0 %v6695
        %7504 = vmatpush.bf16.msra.mxu0 %v6683
        %7505 = vmatpush.bf16.msra.mxu0 %v6671
        %7506 = vmatpush.bf16.msra.mxu0 %v6659
        %7507 = vmatpush.bf16.msra.mxu0 %v6647
        %7508 = vmatpush.bf16.msra.mxu0 %v6635
        %7509 = vmatpush.bf16.msra.mxu0 %v6623
        %7510 = vmatmul.bf16.gmra.mxu0 %v7390
        %v7511 = vpop.f32.mrf.mxu0
        %v7512 = vadd.f32 0.0, %v7511
        %v7513 = vpop.f32.mrf.mxu0
        %7514 = vdwg.mxu0
        %7515 = vmatpush.bf16.msra.mxu0 %v6803
        %7516 = vmatpush.bf16.msra.mxu0 %v6791
        %7517 = vmatpush.bf16.msra.mxu0 %v6779
        %7518 = vmatpush.bf16.msra.mxu0 %v6767
        %7519 = vmatpush.bf16.msra.mxu0 %v6755
        %7520 = vmatpush.bf16.msra.mxu0 %v6743
        %7521 = vmatpush.bf16.msra.mxu0 %v6731
        %7522 = vmatpush.bf16.msra.mxu0 %v6719
        %7523 = vmatmul.bf16.gmra.mxu0 %v7391
        %v7524 = vpop.f32.mrf.mxu0
        %v7525 = vadd.f32 %v7512, %v7524
        %v7526 = vpop.f32.mrf.mxu0
        %7527 = vdwg.mxu0
        %7528 = vmatpush.bf16.msra.mxu0 %v6899
        %7529 = vmatpush.bf16.msra.mxu0 %v6887
        %7530 = vmatpush.bf16.msra.mxu0 %v6875
        %7531 = vmatpush.bf16.msra.mxu0 %v6863
        %7532 = vmatpush.bf16.msra.mxu0 %v6851
        %7533 = vmatpush.bf16.msra.mxu0 %v6839
        %7534 = vmatpush.bf16.msra.mxu0 %v6827
        %7535 = vmatpush.bf16.msra.mxu0 %v6815
        %7536 = vmatmul.bf16.gmra.mxu0 %v7392
        %v7537 = vpop.f32.mrf.mxu0
        %v7538 = vadd.f32 %v7525, %v7537
        %v7539 = vpop.f32.mrf.mxu0
        %7540 = vdwg.mxu0
        %7541 = vmatpush.bf16.msra.mxu0 %v6995
        %7542 = vmatpush.bf16.msra.mxu0 %v6983
        %7543 = vmatpush.bf16.msra.mxu0 %v6971
        %7544 = vmatpush.bf16.msra.mxu0 %v6959
        %7545 = vmatpush.bf16.msra.mxu0 %v6947
        %7546 = vmatpush.bf16.msra.mxu0 %v6935
        %7547 = vmatpush.bf16.msra.mxu0 %v6923
        %7548 = vmatpush.bf16.msra.mxu0 %v6911
        %7549 = vmatmul.bf16.gmra.mxu0 %v7393
        %v7550 = vpop.f32.mrf.mxu0
        %v7551 = vadd.f32 %v7538, %v7550
        %v7552 = vpop.f32.mrf.mxu0
        %7553 = vdwg.mxu0
        %7554 = vmatpush.bf16.msra.mxu0 %v7091
        %7555 = vmatpush.bf16.msra.mxu0 %v7079
        %7556 = vmatpush.bf16.msra.mxu0 %v7067
        %7557 = vmatpush.bf16.msra.mxu0 %v7055
        %7558 = vmatpush.bf16.msra.mxu0 %v7043
        %7559 = vmatpush.bf16.msra.mxu0 %v7031
        %7560 = vmatpush.bf16.msra.mxu0 %v7019
        %7561 = vmatpush.bf16.msra.mxu0 %v7007
        %7562 = vmatmul.bf16.gmra.mxu0 %v7394
        %v7563 = vpop.f32.mrf.mxu0
        %v7564 = vadd.f32 %v7551, %v7563
        %v7565 = vpop.f32.mrf.mxu0
        %7566 = vdwg.mxu0
        %7567 = vmatpush.bf16.msra.mxu0 %v7187
        %7568 = vmatpush.bf16.msra.mxu0 %v7175
        %7569 = vmatpush.bf16.msra.mxu0 %v7163
        %7570 = vmatpush.bf16.msra.mxu0 %v7151
        %7571 = vmatpush.bf16.msra.mxu0 %v7139
        %7572 = vmatpush.bf16.msra.mxu0 %v7127
        %7573 = vmatpush.bf16.msra.mxu0 %v7115
        %7574 = vmatpush.bf16.msra.mxu0 %v7103
        %7575 = vmatmul.bf16.gmra.mxu0 %v7395
        %v7576 = vpop.f32.mrf.mxu0
        %v7577 = vadd.f32 %v7564, %v7576
        %v7578 = vpop.f32.mrf.mxu0
        %7579 = vdwg.mxu0
        %7580 = vmatpush.bf16.msra.mxu0 %v7283
        %7581 = vmatpush.bf16.msra.mxu0 %v7271
        %7582 = vmatpush.bf16.msra.mxu0 %v7259
        %7583 = vmatpush.bf16.msra.mxu0 %v7247
        %7584 = vmatpush.bf16.msra.mxu0 %v7235
        %7585 = vmatpush.bf16.msra.mxu0 %v7223
        %7586 = vmatpush.bf16.msra.mxu0 %v7211
        %7587 = vmatpush.bf16.msra.mxu0 %v7199
        %7588 = vmatmul.bf16.gmra.mxu0 %v7396
        %v7589 = vpop.f32.mrf.mxu0
        %v7590 = vadd.f32 %v7577, %v7589
        %v7591 = vpop.f32.mrf.mxu0
        %7592 = vdwg.mxu0
        %7593 = vmatpush.bf16.msra.mxu0 %v7379
        %7594 = vmatpush.bf16.msra.mxu0 %v7367
        %7595 = vmatpush.bf16.msra.mxu0 %v7355
        %7596 = vmatpush.bf16.msra.mxu0 %v7343
        %7597 = vmatpush.bf16.msra.mxu0 %v7331
        %7598 = vmatpush.bf16.msra.mxu0 %v7319
        %7599 = vmatpush.bf16.msra.mxu0 %v7307
        %7600 = vmatpush.bf16.msra.mxu0 %v7295
        %7601 = vmatmul.bf16.gmra.mxu0 %v7397
        %v7602 = vpop.f32.mrf.mxu0
        %v7603 = vadd.f32 %v7590, %v7602
        %v7604 = vpop.f32.mrf.mxu0
        %7605 = vdwg.mxu0
        %7606 = vmatpush.bf16.msra.mxu0 %v6708
        %7607 = vmatpush.bf16.msra.mxu0 %v6696
        %7608 = vmatpush.bf16.msra.mxu0 %v6684
        %7609 = vmatpush.bf16.msra.mxu0 %v6672
        %7610 = vmatpush.bf16.msra.mxu0 %v6660
        %7611 = vmatpush.bf16.msra.mxu0 %v6648
        %7612 = vmatpush.bf16.msra.mxu0 %v6636
        %7613 = vmatpush.bf16.msra.mxu0 %v6624
        %7614 = vmatmul.bf16.gmra.mxu0 %v7390
        %v7615 = vpop.f32.mrf.mxu0
        %v7616 = vadd.f32 0.0, %v7615
        %v7617 = vpop.f32.mrf.mxu0
        %7618 = vdwg.mxu0
        %7619 = vmatpush.bf16.msra.mxu0 %v6804
        %7620 = vmatpush.bf16.msra.mxu0 %v6792
        %7621 = vmatpush.bf16.msra.mxu0 %v6780
        %7622 = vmatpush.bf16.msra.mxu0 %v6768
        %7623 = vmatpush.bf16.msra.mxu0 %v6756
        %7624 = vmatpush.bf16.msra.mxu0 %v6744
        %7625 = vmatpush.bf16.msra.mxu0 %v6732
        %7626 = vmatpush.bf16.msra.mxu0 %v6720
        %7627 = vmatmul.bf16.gmra.mxu0 %v7391
        %v7628 = vpop.f32.mrf.mxu0
        %v7629 = vadd.f32 %v7616, %v7628
        %v7630 = vpop.f32.mrf.mxu0
        %7631 = vdwg.mxu0
        %7632 = vmatpush.bf16.msra.mxu0 %v6900
        %7633 = vmatpush.bf16.msra.mxu0 %v6888
        %7634 = vmatpush.bf16.msra.mxu0 %v6876
        %7635 = vmatpush.bf16.msra.mxu0 %v6864
        %7636 = vmatpush.bf16.msra.mxu0 %v6852
        %7637 = vmatpush.bf16.msra.mxu0 %v6840
        %7638 = vmatpush.bf16.msra.mxu0 %v6828
        %7639 = vmatpush.bf16.msra.mxu0 %v6816
        %7640 = vmatmul.bf16.gmra.mxu0 %v7392
        %v7641 = vpop.f32.mrf.mxu0
        %v7642 = vadd.f32 %v7629, %v7641
        %v7643 = vpop.f32.mrf.mxu0
        %7644 = vdwg.mxu0
        %7645 = vmatpush.bf16.msra.mxu0 %v6996
        %7646 = vmatpush.bf16.msra.mxu0 %v6984
        %7647 = vmatpush.bf16.msra.mxu0 %v6972
        %7648 = vmatpush.bf16.msra.mxu0 %v6960
        %7649 = vmatpush.bf16.msra.mxu0 %v6948
        %7650 = vmatpush.bf16.msra.mxu0 %v6936
        %7651 = vmatpush.bf16.msra.mxu0 %v6924
        %7652 = vmatpush.bf16.msra.mxu0 %v6912
        %7653 = vmatmul.bf16.gmra.mxu0 %v7393
        %v7654 = vpop.f32.mrf.mxu0
        %v7655 = vadd.f32 %v7642, %v7654
        %v7656 = vpop.f32.mrf.mxu0
        %7657 = vdwg.mxu0
        %7658 = vmatpush.bf16.msra.mxu0 %v7092
        %7659 = vmatpush.bf16.msra.mxu0 %v7080
        %7660 = vmatpush.bf16.msra.mxu0 %v7068
        %7661 = vmatpush.bf16.msra.mxu0 %v7056
        %7662 = vmatpush.bf16.msra.mxu0 %v7044
        %7663 = vmatpush.bf16.msra.mxu0 %v7032
        %7664 = vmatpush.bf16.msra.mxu0 %v7020
        %7665 = vmatpush.bf16.msra.mxu0 %v7008
        %7666 = vmatmul.bf16.gmra.mxu0 %v7394
        %v7667 = vpop.f32.mrf.mxu0
        %v7668 = vadd.f32 %v7655, %v7667
        %v7669 = vpop.f32.mrf.mxu0
        %7670 = vdwg.mxu0
        %7671 = vmatpush.bf16.msra.mxu0 %v7188
        %7672 = vmatpush.bf16.msra.mxu0 %v7176
        %7673 = vmatpush.bf16.msra.mxu0 %v7164
        %7674 = vmatpush.bf16.msra.mxu0 %v7152
        %7675 = vmatpush.bf16.msra.mxu0 %v7140
        %7676 = vmatpush.bf16.msra.mxu0 %v7128
        %7677 = vmatpush.bf16.msra.mxu0 %v7116
        %7678 = vmatpush.bf16.msra.mxu0 %v7104
        %7679 = vmatmul.bf16.gmra.mxu0 %v7395
        %v7680 = vpop.f32.mrf.mxu0
        %v7681 = vadd.f32 %v7668, %v7680
        %v7682 = vpop.f32.mrf.mxu0
        %7683 = vdwg.mxu0
        %7684 = vmatpush.bf16.msra.mxu0 %v7284
        %7685 = vmatpush.bf16.msra.mxu0 %v7272
        %7686 = vmatpush.bf16.msra.mxu0 %v7260
        %7687 = vmatpush.bf16.msra.mxu0 %v7248
        %7688 = vmatpush.bf16.msra.mxu0 %v7236
        %7689 = vmatpush.bf16.msra.mxu0 %v7224
        %7690 = vmatpush.bf16.msra.mxu0 %v7212
        %7691 = vmatpush.bf16.msra.mxu0 %v7200
        %7692 = vmatmul.bf16.gmra.mxu0 %v7396
        %v7693 = vpop.f32.mrf.mxu0
        %v7694 = vadd.f32 %v7681, %v7693
        %v7695 = vpop.f32.mrf.mxu0
        %7696 = vdwg.mxu0
        %7697 = vmatpush.bf16.msra.mxu0 %v7380
        %7698 = vmatpush.bf16.msra.mxu0 %v7368
        %7699 = vmatpush.bf16.msra.mxu0 %v7356
        %7700 = vmatpush.bf16.msra.mxu0 %v7344
        %7701 = vmatpush.bf16.msra.mxu0 %v7332
        %7702 = vmatpush.bf16.msra.mxu0 %v7320
        %7703 = vmatpush.bf16.msra.mxu0 %v7308
        %7704 = vmatpush.bf16.msra.mxu0 %v7296
        %7705 = vmatmul.bf16.gmra.mxu0 %v7397
        %v7706 = vpop.f32.mrf.mxu0
        %v7707 = vadd.f32 %v7694, %v7706
        %v7708 = vpop.f32.mrf.mxu0
        %7709 = vdwg.mxu0
        %7710 = vmatpush.bf16.msra.mxu0 %v6709
        %7711 = vmatpush.bf16.msra.mxu0 %v6697
        %7712 = vmatpush.bf16.msra.mxu0 %v6685
        %7713 = vmatpush.bf16.msra.mxu0 %v6673
        %7714 = vmatpush.bf16.msra.mxu0 %v6661
        %7715 = vmatpush.bf16.msra.mxu0 %v6649
        %7716 = vmatpush.bf16.msra.mxu0 %v6637
        %7717 = vmatpush.bf16.msra.mxu0 %v6625
        %7718 = vmatmul.bf16.gmra.mxu0 %v7390
        %v7719 = vpop.f32.mrf.mxu0
        %v7720 = vadd.f32 0.0, %v7719
        %v7721 = vpop.f32.mrf.mxu0
        %7722 = vdwg.mxu0
        %7723 = vmatpush.bf16.msra.mxu0 %v6805
        %7724 = vmatpush.bf16.msra.mxu0 %v6793
        %7725 = vmatpush.bf16.msra.mxu0 %v6781
        %7726 = vmatpush.bf16.msra.mxu0 %v6769
        %7727 = vmatpush.bf16.msra.mxu0 %v6757
        %7728 = vmatpush.bf16.msra.mxu0 %v6745
        %7729 = vmatpush.bf16.msra.mxu0 %v6733
        %7730 = vmatpush.bf16.msra.mxu0 %v6721
        %7731 = vmatmul.bf16.gmra.mxu0 %v7391
        %v7732 = vpop.f32.mrf.mxu0
        %v7733 = vadd.f32 %v7720, %v7732
        %v7734 = vpop.f32.mrf.mxu0
        %7735 = vdwg.mxu0
        %7736 = vmatpush.bf16.msra.mxu0 %v6901
        %7737 = vmatpush.bf16.msra.mxu0 %v6889
        %7738 = vmatpush.bf16.msra.mxu0 %v6877
        %7739 = vmatpush.bf16.msra.mxu0 %v6865
        %7740 = vmatpush.bf16.msra.mxu0 %v6853
        %7741 = vmatpush.bf16.msra.mxu0 %v6841
        %7742 = vmatpush.bf16.msra.mxu0 %v6829
        %7743 = vmatpush.bf16.msra.mxu0 %v6817
        %7744 = vmatmul.bf16.gmra.mxu0 %v7392
        %v7745 = vpop.f32.mrf.mxu0
        %v7746 = vadd.f32 %v7733, %v7745
        %v7747 = vpop.f32.mrf.mxu0
        %7748 = vdwg.mxu0
        %7749 = vmatpush.bf16.msra.mxu0 %v6997
        %7750 = vmatpush.bf16.msra.mxu0 %v6985
        %7751 = vmatpush.bf16.msra.mxu0 %v6973
        %7752 = vmatpush.bf16.msra.mxu0 %v6961
        %7753 = vmatpush.bf16.msra.mxu0 %v6949
        %7754 = vmatpush.bf16.msra.mxu0 %v6937
        %7755 = vmatpush.bf16.msra.mxu0 %v6925
        %7756 = vmatpush.bf16.msra.mxu0 %v6913
        %7757 = vmatmul.bf16.gmra.mxu0 %v7393
        %v7758 = vpop.f32.mrf.mxu0
        %v7759 = vadd.f32 %v7746, %v7758
        %v7760 = vpop.f32.mrf.mxu0
        %7761 = vdwg.mxu0
        %7762 = vmatpush.bf16.msra.mxu0 %v7093
        %7763 = vmatpush.bf16.msra.mxu0 %v7081
        %7764 = vmatpush.bf16.msra.mxu0 %v7069
        %7765 = vmatpush.bf16.msra.mxu0 %v7057
        %7766 = vmatpush.bf16.msra.mxu0 %v7045
        %7767 = vmatpush.bf16.msra.mxu0 %v7033
        %7768 = vmatpush.bf16.msra.mxu0 %v7021
        %7769 = vmatpush.bf16.msra.mxu0 %v7009
        %7770 = vmatmul.bf16.gmra.mxu0 %v7394
        %v7771 = vpop.f32.mrf.mxu0
        %v7772 = vadd.f32 %v7759, %v7771
        %v7773 = vpop.f32.mrf.mxu0
        %7774 = vdwg.mxu0
        %7775 = vmatpush.bf16.msra.mxu0 %v7189
        %7776 = vmatpush.bf16.msra.mxu0 %v7177
        %7777 = vmatpush.bf16.msra.mxu0 %v7165
        %7778 = vmatpush.bf16.msra.mxu0 %v7153
        %7779 = vmatpush.bf16.msra.mxu0 %v7141
        %7780 = vmatpush.bf16.msra.mxu0 %v7129
        %7781 = vmatpush.bf16.msra.mxu0 %v7117
        %7782 = vmatpush.bf16.msra.mxu0 %v7105
        %7783 = vmatmul.bf16.gmra.mxu0 %v7395
        %v7784 = vpop.f32.mrf.mxu0
        %v7785 = vadd.f32 %v7772, %v7784
        %v7786 = vpop.f32.mrf.mxu0
        %7787 = vdwg.mxu0
        %7788 = vmatpush.bf16.msra.mxu0 %v7285
        %7789 = vmatpush.bf16.msra.mxu0 %v7273
        %7790 = vmatpush.bf16.msra.mxu0 %v7261
        %7791 = vmatpush.bf16.msra.mxu0 %v7249
        %7792 = vmatpush.bf16.msra.mxu0 %v7237
        %7793 = vmatpush.bf16.msra.mxu0 %v7225
        %7794 = vmatpush.bf16.msra.mxu0 %v7213
        %7795 = vmatpush.bf16.msra.mxu0 %v7201
        %7796 = vmatmul.bf16.gmra.mxu0 %v7396
        %v7797 = vpop.f32.mrf.mxu0
        %v7798 = vadd.f32 %v7785, %v7797
        %v7799 = vpop.f32.mrf.mxu0
        %7800 = vdwg.mxu0
        %7801 = vmatpush.bf16.msra.mxu0 %v7381
        %7802 = vmatpush.bf16.msra.mxu0 %v7369
        %7803 = vmatpush.bf16.msra.mxu0 %v7357
        %7804 = vmatpush.bf16.msra.mxu0 %v7345
        %7805 = vmatpush.bf16.msra.mxu0 %v7333
        %7806 = vmatpush.bf16.msra.mxu0 %v7321
        %7807 = vmatpush.bf16.msra.mxu0 %v7309
        %7808 = vmatpush.bf16.msra.mxu0 %v7297
        %7809 = vmatmul.bf16.gmra.mxu0 %v7397
        %v7810 = vpop.f32.mrf.mxu0
        %v7811 = vadd.f32 %v7798, %v7810
        %v7812 = vpop.f32.mrf.mxu0
        %7813 = vdwg.mxu0
        %7814 = vmatpush.bf16.msra.mxu0 %v6710
        %7815 = vmatpush.bf16.msra.mxu0 %v6698
        %7816 = vmatpush.bf16.msra.mxu0 %v6686
        %7817 = vmatpush.bf16.msra.mxu0 %v6674
        %7818 = vmatpush.bf16.msra.mxu0 %v6662
        %7819 = vmatpush.bf16.msra.mxu0 %v6650
        %7820 = vmatpush.bf16.msra.mxu0 %v6638
        %7821 = vmatpush.bf16.msra.mxu0 %v6626
        %7822 = vmatmul.bf16.gmra.mxu0 %v7390
        %v7823 = vpop.f32.mrf.mxu0
        %v7824 = vadd.f32 0.0, %v7823
        %v7825 = vpop.f32.mrf.mxu0
        %7826 = vdwg.mxu0
        %7827 = vmatpush.bf16.msra.mxu0 %v6806
        %7828 = vmatpush.bf16.msra.mxu0 %v6794
        %7829 = vmatpush.bf16.msra.mxu0 %v6782
        %7830 = vmatpush.bf16.msra.mxu0 %v6770
        %7831 = vmatpush.bf16.msra.mxu0 %v6758
        %7832 = vmatpush.bf16.msra.mxu0 %v6746
        %7833 = vmatpush.bf16.msra.mxu0 %v6734
        %7834 = vmatpush.bf16.msra.mxu0 %v6722
        %7835 = vmatmul.bf16.gmra.mxu0 %v7391
        %v7836 = vpop.f32.mrf.mxu0
        %v7837 = vadd.f32 %v7824, %v7836
        %v7838 = vpop.f32.mrf.mxu0
        %7839 = vdwg.mxu0
        %7840 = vmatpush.bf16.msra.mxu0 %v6902
        %7841 = vmatpush.bf16.msra.mxu0 %v6890
        %7842 = vmatpush.bf16.msra.mxu0 %v6878
        %7843 = vmatpush.bf16.msra.mxu0 %v6866
        %7844 = vmatpush.bf16.msra.mxu0 %v6854
        %7845 = vmatpush.bf16.msra.mxu0 %v6842
        %7846 = vmatpush.bf16.msra.mxu0 %v6830
        %7847 = vmatpush.bf16.msra.mxu0 %v6818
        %7848 = vmatmul.bf16.gmra.mxu0 %v7392
        %v7849 = vpop.f32.mrf.mxu0
        %v7850 = vadd.f32 %v7837, %v7849
        %v7851 = vpop.f32.mrf.mxu0
        %7852 = vdwg.mxu0
        %7853 = vmatpush.bf16.msra.mxu0 %v6998
        %7854 = vmatpush.bf16.msra.mxu0 %v6986
        %7855 = vmatpush.bf16.msra.mxu0 %v6974
        %7856 = vmatpush.bf16.msra.mxu0 %v6962
        %7857 = vmatpush.bf16.msra.mxu0 %v6950
        %7858 = vmatpush.bf16.msra.mxu0 %v6938
        %7859 = vmatpush.bf16.msra.mxu0 %v6926
        %7860 = vmatpush.bf16.msra.mxu0 %v6914
        %7861 = vmatmul.bf16.gmra.mxu0 %v7393
        %v7862 = vpop.f32.mrf.mxu0
        %v7863 = vadd.f32 %v7850, %v7862
        %v7864 = vpop.f32.mrf.mxu0
        %7865 = vdwg.mxu0
        %7866 = vmatpush.bf16.msra.mxu0 %v7094
        %7867 = vmatpush.bf16.msra.mxu0 %v7082
        %7868 = vmatpush.bf16.msra.mxu0 %v7070
        %7869 = vmatpush.bf16.msra.mxu0 %v7058
        %7870 = vmatpush.bf16.msra.mxu0 %v7046
        %7871 = vmatpush.bf16.msra.mxu0 %v7034
        %7872 = vmatpush.bf16.msra.mxu0 %v7022
        %7873 = vmatpush.bf16.msra.mxu0 %v7010
        %7874 = vmatmul.bf16.gmra.mxu0 %v7394
        %v7875 = vpop.f32.mrf.mxu0
        %v7876 = vadd.f32 %v7863, %v7875
        %v7877 = vpop.f32.mrf.mxu0
        %7878 = vdwg.mxu0
        %7879 = vmatpush.bf16.msra.mxu0 %v7190
        %7880 = vmatpush.bf16.msra.mxu0 %v7178
        %7881 = vmatpush.bf16.msra.mxu0 %v7166
        %7882 = vmatpush.bf16.msra.mxu0 %v7154
        %7883 = vmatpush.bf16.msra.mxu0 %v7142
        %7884 = vmatpush.bf16.msra.mxu0 %v7130
        %7885 = vmatpush.bf16.msra.mxu0 %v7118
        %7886 = vmatpush.bf16.msra.mxu0 %v7106
        %7887 = vmatmul.bf16.gmra.mxu0 %v7395
        %v7888 = vpop.f32.mrf.mxu0
        %v7889 = vadd.f32 %v7876, %v7888
        %v7890 = vpop.f32.mrf.mxu0
        %7891 = vdwg.mxu0
        %7892 = vmatpush.bf16.msra.mxu0 %v7286
        %7893 = vmatpush.bf16.msra.mxu0 %v7274
        %7894 = vmatpush.bf16.msra.mxu0 %v7262
        %7895 = vmatpush.bf16.msra.mxu0 %v7250
        %7896 = vmatpush.bf16.msra.mxu0 %v7238
        %7897 = vmatpush.bf16.msra.mxu0 %v7226
        %7898 = vmatpush.bf16.msra.mxu0 %v7214
        %7899 = vmatpush.bf16.msra.mxu0 %v7202
        %7900 = vmatmul.bf16.gmra.mxu0 %v7396
        %v7901 = vpop.f32.mrf.mxu0
        %v7902 = vadd.f32 %v7889, %v7901
        %v7903 = vpop.f32.mrf.mxu0
        %7904 = vdwg.mxu0
        %7905 = vmatpush.bf16.msra.mxu0 %v7382
        %7906 = vmatpush.bf16.msra.mxu0 %v7370
        %7907 = vmatpush.bf16.msra.mxu0 %v7358
        %7908 = vmatpush.bf16.msra.mxu0 %v7346
        %7909 = vmatpush.bf16.msra.mxu0 %v7334
        %7910 = vmatpush.bf16.msra.mxu0 %v7322
        %7911 = vmatpush.bf16.msra.mxu0 %v7310
        %7912 = vmatpush.bf16.msra.mxu0 %v7298
        %7913 = vmatmul.bf16.gmra.mxu0 %v7397
        %v7914 = vpop.f32.mrf.mxu0
        %v7915 = vadd.f32 %v7902, %v7914
        %v7916 = vpop.f32.mrf.mxu0
        %7917 = vdwg.mxu0
        %7918 = vmatpush.bf16.msra.mxu0 %v6711
        %7919 = vmatpush.bf16.msra.mxu0 %v6699
        %7920 = vmatpush.bf16.msra.mxu0 %v6687
        %7921 = vmatpush.bf16.msra.mxu0 %v6675
        %7922 = vmatpush.bf16.msra.mxu0 %v6663
        %7923 = vmatpush.bf16.msra.mxu0 %v6651
        %7924 = vmatpush.bf16.msra.mxu0 %v6639
        %7925 = vmatpush.bf16.msra.mxu0 %v6627
        %7926 = vmatmul.bf16.gmra.mxu0 %v7390
        %v7927 = vpop.f32.mrf.mxu0
        %v7928 = vadd.f32 0.0, %v7927
        %v7929 = vpop.f32.mrf.mxu0
        %7930 = vdwg.mxu0
        %7931 = vmatpush.bf16.msra.mxu0 %v6807
        %7932 = vmatpush.bf16.msra.mxu0 %v6795
        %7933 = vmatpush.bf16.msra.mxu0 %v6783
        %7934 = vmatpush.bf16.msra.mxu0 %v6771
        %7935 = vmatpush.bf16.msra.mxu0 %v6759
        %7936 = vmatpush.bf16.msra.mxu0 %v6747
        %7937 = vmatpush.bf16.msra.mxu0 %v6735
        %7938 = vmatpush.bf16.msra.mxu0 %v6723
        %7939 = vmatmul.bf16.gmra.mxu0 %v7391
        %v7940 = vpop.f32.mrf.mxu0
        %v7941 = vadd.f32 %v7928, %v7940
        %v7942 = vpop.f32.mrf.mxu0
        %7943 = vdwg.mxu0
        %7944 = vmatpush.bf16.msra.mxu0 %v6903
        %7945 = vmatpush.bf16.msra.mxu0 %v6891
        %7946 = vmatpush.bf16.msra.mxu0 %v6879
        %7947 = vmatpush.bf16.msra.mxu0 %v6867
        %7948 = vmatpush.bf16.msra.mxu0 %v6855
        %7949 = vmatpush.bf16.msra.mxu0 %v6843
        %7950 = vmatpush.bf16.msra.mxu0 %v6831
        %7951 = vmatpush.bf16.msra.mxu0 %v6819
        %7952 = vmatmul.bf16.gmra.mxu0 %v7392
        %v7953 = vpop.f32.mrf.mxu0
        %v7954 = vadd.f32 %v7941, %v7953
        %v7955 = vpop.f32.mrf.mxu0
        %7956 = vdwg.mxu0
        %7957 = vmatpush.bf16.msra.mxu0 %v6999
        %7958 = vmatpush.bf16.msra.mxu0 %v6987
        %7959 = vmatpush.bf16.msra.mxu0 %v6975
        %7960 = vmatpush.bf16.msra.mxu0 %v6963
        %7961 = vmatpush.bf16.msra.mxu0 %v6951
        %7962 = vmatpush.bf16.msra.mxu0 %v6939
        %7963 = vmatpush.bf16.msra.mxu0 %v6927
        %7964 = vmatpush.bf16.msra.mxu0 %v6915
        %7965 = vmatmul.bf16.gmra.mxu0 %v7393
        %v7966 = vpop.f32.mrf.mxu0
        %v7967 = vadd.f32 %v7954, %v7966
        %v7968 = vpop.f32.mrf.mxu0
        %7969 = vdwg.mxu0
        %7970 = vmatpush.bf16.msra.mxu0 %v7095
        %7971 = vmatpush.bf16.msra.mxu0 %v7083
        %7972 = vmatpush.bf16.msra.mxu0 %v7071
        %7973 = vmatpush.bf16.msra.mxu0 %v7059
        %7974 = vmatpush.bf16.msra.mxu0 %v7047
        %7975 = vmatpush.bf16.msra.mxu0 %v7035
        %7976 = vmatpush.bf16.msra.mxu0 %v7023
        %7977 = vmatpush.bf16.msra.mxu0 %v7011
        %7978 = vmatmul.bf16.gmra.mxu0 %v7394
        %v7979 = vpop.f32.mrf.mxu0
        %v7980 = vadd.f32 %v7967, %v7979
        %v7981 = vpop.f32.mrf.mxu0
        %7982 = vdwg.mxu0
        %7983 = vmatpush.bf16.msra.mxu0 %v7191
        %7984 = vmatpush.bf16.msra.mxu0 %v7179
        %7985 = vmatpush.bf16.msra.mxu0 %v7167
        %7986 = vmatpush.bf16.msra.mxu0 %v7155
        %7987 = vmatpush.bf16.msra.mxu0 %v7143
        %7988 = vmatpush.bf16.msra.mxu0 %v7131
        %7989 = vmatpush.bf16.msra.mxu0 %v7119
        %7990 = vmatpush.bf16.msra.mxu0 %v7107
        %7991 = vmatmul.bf16.gmra.mxu0 %v7395
        %v7992 = vpop.f32.mrf.mxu0
        %v7993 = vadd.f32 %v7980, %v7992
        %v7994 = vpop.f32.mrf.mxu0
        %7995 = vdwg.mxu0
        %7996 = vmatpush.bf16.msra.mxu0 %v7287
        %7997 = vmatpush.bf16.msra.mxu0 %v7275
        %7998 = vmatpush.bf16.msra.mxu0 %v7263
        %7999 = vmatpush.bf16.msra.mxu0 %v7251
        %8000 = vmatpush.bf16.msra.mxu0 %v7239
        %8001 = vmatpush.bf16.msra.mxu0 %v7227
        %8002 = vmatpush.bf16.msra.mxu0 %v7215
        %8003 = vmatpush.bf16.msra.mxu0 %v7203
        %8004 = vmatmul.bf16.gmra.mxu0 %v7396
        %v8005 = vpop.f32.mrf.mxu0
        %v8006 = vadd.f32 %v7993, %v8005
        %v8007 = vpop.f32.mrf.mxu0
        %8008 = vdwg.mxu0
        %8009 = vmatpush.bf16.msra.mxu0 %v7383
        %8010 = vmatpush.bf16.msra.mxu0 %v7371
        %8011 = vmatpush.bf16.msra.mxu0 %v7359
        %8012 = vmatpush.bf16.msra.mxu0 %v7347
        %8013 = vmatpush.bf16.msra.mxu0 %v7335
        %8014 = vmatpush.bf16.msra.mxu0 %v7323
        %8015 = vmatpush.bf16.msra.mxu0 %v7311
        %8016 = vmatpush.bf16.msra.mxu0 %v7299
        %8017 = vmatmul.bf16.gmra.mxu0 %v7397
        %v8018 = vpop.f32.mrf.mxu0
        %v8019 = vadd.f32 %v8006, %v8018
        %v8020 = vpop.f32.mrf.mxu0
        %8021 = vdwg.mxu0
        %8022 = vmatpush.bf16.msra.mxu0 %v6712
        %8023 = vmatpush.bf16.msra.mxu0 %v6700
        %8024 = vmatpush.bf16.msra.mxu0 %v6688
        %8025 = vmatpush.bf16.msra.mxu0 %v6676
        %8026 = vmatpush.bf16.msra.mxu0 %v6664
        %8027 = vmatpush.bf16.msra.mxu0 %v6652
        %8028 = vmatpush.bf16.msra.mxu0 %v6640
        %8029 = vmatpush.bf16.msra.mxu0 %v6628
        %8030 = vmatmul.bf16.gmra.mxu0 %v7390
        %v8031 = vpop.f32.mrf.mxu0
        %v8032 = vadd.f32 0.0, %v8031
        %v8033 = vpop.f32.mrf.mxu0
        %8034 = vdwg.mxu0
        %8035 = vmatpush.bf16.msra.mxu0 %v6808
        %8036 = vmatpush.bf16.msra.mxu0 %v6796
        %8037 = vmatpush.bf16.msra.mxu0 %v6784
        %8038 = vmatpush.bf16.msra.mxu0 %v6772
        %8039 = vmatpush.bf16.msra.mxu0 %v6760
        %8040 = vmatpush.bf16.msra.mxu0 %v6748
        %8041 = vmatpush.bf16.msra.mxu0 %v6736
        %8042 = vmatpush.bf16.msra.mxu0 %v6724
        %8043 = vmatmul.bf16.gmra.mxu0 %v7391
        %v8044 = vpop.f32.mrf.mxu0
        %v8045 = vadd.f32 %v8032, %v8044
        %v8046 = vpop.f32.mrf.mxu0
        %8047 = vdwg.mxu0
        %8048 = vmatpush.bf16.msra.mxu0 %v6904
        %8049 = vmatpush.bf16.msra.mxu0 %v6892
        %8050 = vmatpush.bf16.msra.mxu0 %v6880
        %8051 = vmatpush.bf16.msra.mxu0 %v6868
        %8052 = vmatpush.bf16.msra.mxu0 %v6856
        %8053 = vmatpush.bf16.msra.mxu0 %v6844
        %8054 = vmatpush.bf16.msra.mxu0 %v6832
        %8055 = vmatpush.bf16.msra.mxu0 %v6820
        %8056 = vmatmul.bf16.gmra.mxu0 %v7392
        %v8057 = vpop.f32.mrf.mxu0
        %v8058 = vadd.f32 %v8045, %v8057
        %v8059 = vpop.f32.mrf.mxu0
        %8060 = vdwg.mxu0
        %8061 = vmatpush.bf16.msra.mxu0 %v7000
        %8062 = vmatpush.bf16.msra.mxu0 %v6988
        %8063 = vmatpush.bf16.msra.mxu0 %v6976
        %8064 = vmatpush.bf16.msra.mxu0 %v6964
        %8065 = vmatpush.bf16.msra.mxu0 %v6952
        %8066 = vmatpush.bf16.msra.mxu0 %v6940
        %8067 = vmatpush.bf16.msra.mxu0 %v6928
        %8068 = vmatpush.bf16.msra.mxu0 %v6916
        %8069 = vmatmul.bf16.gmra.mxu0 %v7393
        %v8070 = vpop.f32.mrf.mxu0
        %v8071 = vadd.f32 %v8058, %v8070
        %v8072 = vpop.f32.mrf.mxu0
        %8073 = vdwg.mxu0
        %8074 = vmatpush.bf16.msra.mxu0 %v7096
        %8075 = vmatpush.bf16.msra.mxu0 %v7084
        %8076 = vmatpush.bf16.msra.mxu0 %v7072
        %8077 = vmatpush.bf16.msra.mxu0 %v7060
        %8078 = vmatpush.bf16.msra.mxu0 %v7048
        %8079 = vmatpush.bf16.msra.mxu0 %v7036
        %8080 = vmatpush.bf16.msra.mxu0 %v7024
        %8081 = vmatpush.bf16.msra.mxu0 %v7012
        %8082 = vmatmul.bf16.gmra.mxu0 %v7394
        %v8083 = vpop.f32.mrf.mxu0
        %v8084 = vadd.f32 %v8071, %v8083
        %v8085 = vpop.f32.mrf.mxu0
        %8086 = vdwg.mxu0
        %8087 = vmatpush.bf16.msra.mxu0 %v7192
        %8088 = vmatpush.bf16.msra.mxu0 %v7180
        %8089 = vmatpush.bf16.msra.mxu0 %v7168
        %8090 = vmatpush.bf16.msra.mxu0 %v7156
        %8091 = vmatpush.bf16.msra.mxu0 %v7144
        %8092 = vmatpush.bf16.msra.mxu0 %v7132
        %8093 = vmatpush.bf16.msra.mxu0 %v7120
        %8094 = vmatpush.bf16.msra.mxu0 %v7108
        %8095 = vmatmul.bf16.gmra.mxu0 %v7395
        %v8096 = vpop.f32.mrf.mxu0
        %v8097 = vadd.f32 %v8084, %v8096
        %v8098 = vpop.f32.mrf.mxu0
        %8099 = vdwg.mxu0
        %8100 = vmatpush.bf16.msra.mxu0 %v7288
        %8101 = vmatpush.bf16.msra.mxu0 %v7276
        %8102 = vmatpush.bf16.msra.mxu0 %v7264
        %8103 = vmatpush.bf16.msra.mxu0 %v7252
        %8104 = vmatpush.bf16.msra.mxu0 %v7240
        %8105 = vmatpush.bf16.msra.mxu0 %v7228
        %8106 = vmatpush.bf16.msra.mxu0 %v7216
        %8107 = vmatpush.bf16.msra.mxu0 %v7204
        %8108 = vmatmul.bf16.gmra.mxu0 %v7396
        %v8109 = vpop.f32.mrf.mxu0
        %v8110 = vadd.f32 %v8097, %v8109
        %v8111 = vpop.f32.mrf.mxu0
        %8112 = vdwg.mxu0
        %8113 = vmatpush.bf16.msra.mxu0 %v7384
        %8114 = vmatpush.bf16.msra.mxu0 %v7372
        %8115 = vmatpush.bf16.msra.mxu0 %v7360
        %8116 = vmatpush.bf16.msra.mxu0 %v7348
        %8117 = vmatpush.bf16.msra.mxu0 %v7336
        %8118 = vmatpush.bf16.msra.mxu0 %v7324
        %8119 = vmatpush.bf16.msra.mxu0 %v7312
        %8120 = vmatpush.bf16.msra.mxu0 %v7300
        %8121 = vmatmul.bf16.gmra.mxu0 %v7397
        %v8122 = vpop.f32.mrf.mxu0
        %v8123 = vadd.f32 %v8110, %v8122
        %v8124 = vpop.f32.mrf.mxu0
        %8125 = vdwg.mxu0
        %8126 = vmatpush.bf16.msra.mxu0 %v6713
        %8127 = vmatpush.bf16.msra.mxu0 %v6701
        %8128 = vmatpush.bf16.msra.mxu0 %v6689
        %8129 = vmatpush.bf16.msra.mxu0 %v6677
        %8130 = vmatpush.bf16.msra.mxu0 %v6665
        %8131 = vmatpush.bf16.msra.mxu0 %v6653
        %8132 = vmatpush.bf16.msra.mxu0 %v6641
        %8133 = vmatpush.bf16.msra.mxu0 %v6629
        %8134 = vmatmul.bf16.gmra.mxu0 %v7390
        %v8135 = vpop.f32.mrf.mxu0
        %v8136 = vadd.f32 0.0, %v8135
        %v8137 = vpop.f32.mrf.mxu0
        %8138 = vdwg.mxu0
        %8139 = vmatpush.bf16.msra.mxu0 %v6809
        %8140 = vmatpush.bf16.msra.mxu0 %v6797
        %8141 = vmatpush.bf16.msra.mxu0 %v6785
        %8142 = vmatpush.bf16.msra.mxu0 %v6773
        %8143 = vmatpush.bf16.msra.mxu0 %v6761
        %8144 = vmatpush.bf16.msra.mxu0 %v6749
        %8145 = vmatpush.bf16.msra.mxu0 %v6737
        %8146 = vmatpush.bf16.msra.mxu0 %v6725
        %8147 = vmatmul.bf16.gmra.mxu0 %v7391
        %v8148 = vpop.f32.mrf.mxu0
        %v8149 = vadd.f32 %v8136, %v8148
        %v8150 = vpop.f32.mrf.mxu0
        %8151 = vdwg.mxu0
        %8152 = vmatpush.bf16.msra.mxu0 %v6905
        %8153 = vmatpush.bf16.msra.mxu0 %v6893
        %8154 = vmatpush.bf16.msra.mxu0 %v6881
        %8155 = vmatpush.bf16.msra.mxu0 %v6869
        %8156 = vmatpush.bf16.msra.mxu0 %v6857
        %8157 = vmatpush.bf16.msra.mxu0 %v6845
        %8158 = vmatpush.bf16.msra.mxu0 %v6833
        %8159 = vmatpush.bf16.msra.mxu0 %v6821
        %8160 = vmatmul.bf16.gmra.mxu0 %v7392
        %v8161 = vpop.f32.mrf.mxu0
        %v8162 = vadd.f32 %v8149, %v8161
        %v8163 = vpop.f32.mrf.mxu0
        %8164 = vdwg.mxu0
        %8165 = vmatpush.bf16.msra.mxu0 %v7001
        %8166 = vmatpush.bf16.msra.mxu0 %v6989
        %8167 = vmatpush.bf16.msra.mxu0 %v6977
        %8168 = vmatpush.bf16.msra.mxu0 %v6965
        %8169 = vmatpush.bf16.msra.mxu0 %v6953
        %8170 = vmatpush.bf16.msra.mxu0 %v6941
        %8171 = vmatpush.bf16.msra.mxu0 %v6929
        %8172 = vmatpush.bf16.msra.mxu0 %v6917
        %8173 = vmatmul.bf16.gmra.mxu0 %v7393
        %v8174 = vpop.f32.mrf.mxu0
        %v8175 = vadd.f32 %v8162, %v8174
        %v8176 = vpop.f32.mrf.mxu0
        %8177 = vdwg.mxu0
        %8178 = vmatpush.bf16.msra.mxu0 %v7097
        %8179 = vmatpush.bf16.msra.mxu0 %v7085
        %8180 = vmatpush.bf16.msra.mxu0 %v7073
        %8181 = vmatpush.bf16.msra.mxu0 %v7061
        %8182 = vmatpush.bf16.msra.mxu0 %v7049
        %8183 = vmatpush.bf16.msra.mxu0 %v7037
        %8184 = vmatpush.bf16.msra.mxu0 %v7025
        %8185 = vmatpush.bf16.msra.mxu0 %v7013
        %8186 = vmatmul.bf16.gmra.mxu0 %v7394
        %v8187 = vpop.f32.mrf.mxu0
        %v8188 = vadd.f32 %v8175, %v8187
        %v8189 = vpop.f32.mrf.mxu0
        %8190 = vdwg.mxu0
        %8191 = vmatpush.bf16.msra.mxu0 %v7193
        %8192 = vmatpush.bf16.msra.mxu0 %v7181
        %8193 = vmatpush.bf16.msra.mxu0 %v7169
        %8194 = vmatpush.bf16.msra.mxu0 %v7157
        %8195 = vmatpush.bf16.msra.mxu0 %v7145
        %8196 = vmatpush.bf16.msra.mxu0 %v7133
        %8197 = vmatpush.bf16.msra.mxu0 %v7121
        %8198 = vmatpush.bf16.msra.mxu0 %v7109
        %8199 = vmatmul.bf16.gmra.mxu0 %v7395
        %v8200 = vpop.f32.mrf.mxu0
        %v8201 = vadd.f32 %v8188, %v8200
        %v8202 = vpop.f32.mrf.mxu0
        %8203 = vdwg.mxu0
        %8204 = vmatpush.bf16.msra.mxu0 %v7289
        %8205 = vmatpush.bf16.msra.mxu0 %v7277
        %8206 = vmatpush.bf16.msra.mxu0 %v7265
        %8207 = vmatpush.bf16.msra.mxu0 %v7253
        %8208 = vmatpush.bf16.msra.mxu0 %v7241
        %8209 = vmatpush.bf16.msra.mxu0 %v7229
        %8210 = vmatpush.bf16.msra.mxu0 %v7217
        %8211 = vmatpush.bf16.msra.mxu0 %v7205
        %8212 = vmatmul.bf16.gmra.mxu0 %v7396
        %v8213 = vpop.f32.mrf.mxu0
        %v8214 = vadd.f32 %v8201, %v8213
        %v8215 = vpop.f32.mrf.mxu0
        %8216 = vdwg.mxu0
        %8217 = vmatpush.bf16.msra.mxu0 %v7385
        %8218 = vmatpush.bf16.msra.mxu0 %v7373
        %8219 = vmatpush.bf16.msra.mxu0 %v7361
        %8220 = vmatpush.bf16.msra.mxu0 %v7349
        %8221 = vmatpush.bf16.msra.mxu0 %v7337
        %8222 = vmatpush.bf16.msra.mxu0 %v7325
        %8223 = vmatpush.bf16.msra.mxu0 %v7313
        %8224 = vmatpush.bf16.msra.mxu0 %v7301
        %8225 = vmatmul.bf16.gmra.mxu0 %v7397
        %v8226 = vpop.f32.mrf.mxu0
        %v8227 = vadd.f32 %v8214, %v8226
        %v8228 = vpop.f32.mrf.mxu0
        %8229 = vdwg.mxu0
        %8230 = vmatpush.bf16.msra.mxu0 %v6714
        %8231 = vmatpush.bf16.msra.mxu0 %v6702
        %8232 = vmatpush.bf16.msra.mxu0 %v6690
        %8233 = vmatpush.bf16.msra.mxu0 %v6678
        %8234 = vmatpush.bf16.msra.mxu0 %v6666
        %8235 = vmatpush.bf16.msra.mxu0 %v6654
        %8236 = vmatpush.bf16.msra.mxu0 %v6642
        %8237 = vmatpush.bf16.msra.mxu0 %v6630
        %8238 = vmatmul.bf16.gmra.mxu0 %v7390
        %v8239 = vpop.f32.mrf.mxu0
        %v8240 = vadd.f32 0.0, %v8239
        %v8241 = vpop.f32.mrf.mxu0
        %8242 = vdwg.mxu0
        %8243 = vmatpush.bf16.msra.mxu0 %v6810
        %8244 = vmatpush.bf16.msra.mxu0 %v6798
        %8245 = vmatpush.bf16.msra.mxu0 %v6786
        %8246 = vmatpush.bf16.msra.mxu0 %v6774
        %8247 = vmatpush.bf16.msra.mxu0 %v6762
        %8248 = vmatpush.bf16.msra.mxu0 %v6750
        %8249 = vmatpush.bf16.msra.mxu0 %v6738
        %8250 = vmatpush.bf16.msra.mxu0 %v6726
        %8251 = vmatmul.bf16.gmra.mxu0 %v7391
        %v8252 = vpop.f32.mrf.mxu0
        %v8253 = vadd.f32 %v8240, %v8252
        %v8254 = vpop.f32.mrf.mxu0
        %8255 = vdwg.mxu0
        %8256 = vmatpush.bf16.msra.mxu0 %v6906
        %8257 = vmatpush.bf16.msra.mxu0 %v6894
        %8258 = vmatpush.bf16.msra.mxu0 %v6882
        %8259 = vmatpush.bf16.msra.mxu0 %v6870
        %8260 = vmatpush.bf16.msra.mxu0 %v6858
        %8261 = vmatpush.bf16.msra.mxu0 %v6846
        %8262 = vmatpush.bf16.msra.mxu0 %v6834
        %8263 = vmatpush.bf16.msra.mxu0 %v6822
        %8264 = vmatmul.bf16.gmra.mxu0 %v7392
        %v8265 = vpop.f32.mrf.mxu0
        %v8266 = vadd.f32 %v8253, %v8265
        %v8267 = vpop.f32.mrf.mxu0
        %8268 = vdwg.mxu0
        %8269 = vmatpush.bf16.msra.mxu0 %v7002
        %8270 = vmatpush.bf16.msra.mxu0 %v6990
        %8271 = vmatpush.bf16.msra.mxu0 %v6978
        %8272 = vmatpush.bf16.msra.mxu0 %v6966
        %8273 = vmatpush.bf16.msra.mxu0 %v6954
        %8274 = vmatpush.bf16.msra.mxu0 %v6942
        %8275 = vmatpush.bf16.msra.mxu0 %v6930
        %8276 = vmatpush.bf16.msra.mxu0 %v6918
        %8277 = vmatmul.bf16.gmra.mxu0 %v7393
        %v8278 = vpop.f32.mrf.mxu0
        %v8279 = vadd.f32 %v8266, %v8278
        %v8280 = vpop.f32.mrf.mxu0
        %8281 = vdwg.mxu0
        %8282 = vmatpush.bf16.msra.mxu0 %v7098
        %8283 = vmatpush.bf16.msra.mxu0 %v7086
        %8284 = vmatpush.bf16.msra.mxu0 %v7074
        %8285 = vmatpush.bf16.msra.mxu0 %v7062
        %8286 = vmatpush.bf16.msra.mxu0 %v7050
        %8287 = vmatpush.bf16.msra.mxu0 %v7038
        %8288 = vmatpush.bf16.msra.mxu0 %v7026
        %8289 = vmatpush.bf16.msra.mxu0 %v7014
        %8290 = vmatmul.bf16.gmra.mxu0 %v7394
        %v8291 = vpop.f32.mrf.mxu0
        %v8292 = vadd.f32 %v8279, %v8291
        %v8293 = vpop.f32.mrf.mxu0
        %8294 = vdwg.mxu0
        %8295 = vmatpush.bf16.msra.mxu0 %v7194
        %8296 = vmatpush.bf16.msra.mxu0 %v7182
        %8297 = vmatpush.bf16.msra.mxu0 %v7170
        %8298 = vmatpush.bf16.msra.mxu0 %v7158
        %8299 = vmatpush.bf16.msra.mxu0 %v7146
        %8300 = vmatpush.bf16.msra.mxu0 %v7134
        %8301 = vmatpush.bf16.msra.mxu0 %v7122
        %8302 = vmatpush.bf16.msra.mxu0 %v7110
        %8303 = vmatmul.bf16.gmra.mxu0 %v7395
        %v8304 = vpop.f32.mrf.mxu0
        %v8305 = vadd.f32 %v8292, %v8304
        %v8306 = vpop.f32.mrf.mxu0
        %8307 = vdwg.mxu0
        %8308 = vmatpush.bf16.msra.mxu0 %v7290
        %8309 = vmatpush.bf16.msra.mxu0 %v7278
        %8310 = vmatpush.bf16.msra.mxu0 %v7266
        %8311 = vmatpush.bf16.msra.mxu0 %v7254
        %8312 = vmatpush.bf16.msra.mxu0 %v7242
        %8313 = vmatpush.bf16.msra.mxu0 %v7230
        %8314 = vmatpush.bf16.msra.mxu0 %v7218
        %8315 = vmatpush.bf16.msra.mxu0 %v7206
        %8316 = vmatmul.bf16.gmra.mxu0 %v7396
        %v8317 = vpop.f32.mrf.mxu0
        %v8318 = vadd.f32 %v8305, %v8317
        %v8319 = vpop.f32.mrf.mxu0
        %8320 = vdwg.mxu0
        %8321 = vmatpush.bf16.msra.mxu0 %v7386
        %8322 = vmatpush.bf16.msra.mxu0 %v7374
        %8323 = vmatpush.bf16.msra.mxu0 %v7362
        %8324 = vmatpush.bf16.msra.mxu0 %v7350
        %8325 = vmatpush.bf16.msra.mxu0 %v7338
        %8326 = vmatpush.bf16.msra.mxu0 %v7326
        %8327 = vmatpush.bf16.msra.mxu0 %v7314
        %8328 = vmatpush.bf16.msra.mxu0 %v7302
        %8329 = vmatmul.bf16.gmra.mxu0 %v7397
        %v8330 = vpop.f32.mrf.mxu0
        %v8331 = vadd.f32 %v8318, %v8330
        %v8332 = vpop.f32.mrf.mxu0
        %8333 = vdwg.mxu0
        %8334 = vmatpush.bf16.msra.mxu0 %v6715
        %8335 = vmatpush.bf16.msra.mxu0 %v6703
        %8336 = vmatpush.bf16.msra.mxu0 %v6691
        %8337 = vmatpush.bf16.msra.mxu0 %v6679
        %8338 = vmatpush.bf16.msra.mxu0 %v6667
        %8339 = vmatpush.bf16.msra.mxu0 %v6655
        %8340 = vmatpush.bf16.msra.mxu0 %v6643
        %8341 = vmatpush.bf16.msra.mxu0 %v6631
        %8342 = vmatmul.bf16.gmra.mxu0 %v7390
        %v8343 = vpop.f32.mrf.mxu0
        %v8344 = vadd.f32 0.0, %v8343
        %v8345 = vpop.f32.mrf.mxu0
        %8346 = vdwg.mxu0
        %8347 = vmatpush.bf16.msra.mxu0 %v6811
        %8348 = vmatpush.bf16.msra.mxu0 %v6799
        %8349 = vmatpush.bf16.msra.mxu0 %v6787
        %8350 = vmatpush.bf16.msra.mxu0 %v6775
        %8351 = vmatpush.bf16.msra.mxu0 %v6763
        %8352 = vmatpush.bf16.msra.mxu0 %v6751
        %8353 = vmatpush.bf16.msra.mxu0 %v6739
        %8354 = vmatpush.bf16.msra.mxu0 %v6727
        %8355 = vmatmul.bf16.gmra.mxu0 %v7391
        %v8356 = vpop.f32.mrf.mxu0
        %v8357 = vadd.f32 %v8344, %v8356
        %v8358 = vpop.f32.mrf.mxu0
        %8359 = vdwg.mxu0
        %8360 = vmatpush.bf16.msra.mxu0 %v6907
        %8361 = vmatpush.bf16.msra.mxu0 %v6895
        %8362 = vmatpush.bf16.msra.mxu0 %v6883
        %8363 = vmatpush.bf16.msra.mxu0 %v6871
        %8364 = vmatpush.bf16.msra.mxu0 %v6859
        %8365 = vmatpush.bf16.msra.mxu0 %v6847
        %8366 = vmatpush.bf16.msra.mxu0 %v6835
        %8367 = vmatpush.bf16.msra.mxu0 %v6823
        %8368 = vmatmul.bf16.gmra.mxu0 %v7392
        %v8369 = vpop.f32.mrf.mxu0
        %v8370 = vadd.f32 %v8357, %v8369
        %v8371 = vpop.f32.mrf.mxu0
        %8372 = vdwg.mxu0
        %8373 = vmatpush.bf16.msra.mxu0 %v7003
        %8374 = vmatpush.bf16.msra.mxu0 %v6991
        %8375 = vmatpush.bf16.msra.mxu0 %v6979
        %8376 = vmatpush.bf16.msra.mxu0 %v6967
        %8377 = vmatpush.bf16.msra.mxu0 %v6955
        %8378 = vmatpush.bf16.msra.mxu0 %v6943
        %8379 = vmatpush.bf16.msra.mxu0 %v6931
        %8380 = vmatpush.bf16.msra.mxu0 %v6919
        %8381 = vmatmul.bf16.gmra.mxu0 %v7393
        %v8382 = vpop.f32.mrf.mxu0
        %v8383 = vadd.f32 %v8370, %v8382
        %v8384 = vpop.f32.mrf.mxu0
        %8385 = vdwg.mxu0
        %8386 = vmatpush.bf16.msra.mxu0 %v7099
        %8387 = vmatpush.bf16.msra.mxu0 %v7087
        %8388 = vmatpush.bf16.msra.mxu0 %v7075
        %8389 = vmatpush.bf16.msra.mxu0 %v7063
        %8390 = vmatpush.bf16.msra.mxu0 %v7051
        %8391 = vmatpush.bf16.msra.mxu0 %v7039
        %8392 = vmatpush.bf16.msra.mxu0 %v7027
        %8393 = vmatpush.bf16.msra.mxu0 %v7015
        %8394 = vmatmul.bf16.gmra.mxu0 %v7394
        %v8395 = vpop.f32.mrf.mxu0
        %v8396 = vadd.f32 %v8383, %v8395
        %v8397 = vpop.f32.mrf.mxu0
        %8398 = vdwg.mxu0
        %8399 = vmatpush.bf16.msra.mxu0 %v7195
        %8400 = vmatpush.bf16.msra.mxu0 %v7183
        %8401 = vmatpush.bf16.msra.mxu0 %v7171
        %8402 = vmatpush.bf16.msra.mxu0 %v7159
        %8403 = vmatpush.bf16.msra.mxu0 %v7147
        %8404 = vmatpush.bf16.msra.mxu0 %v7135
        %8405 = vmatpush.bf16.msra.mxu0 %v7123
        %8406 = vmatpush.bf16.msra.mxu0 %v7111
        %8407 = vmatmul.bf16.gmra.mxu0 %v7395
        %v8408 = vpop.f32.mrf.mxu0
        %v8409 = vadd.f32 %v8396, %v8408
        %v8410 = vpop.f32.mrf.mxu0
        %8411 = vdwg.mxu0
        %8412 = vmatpush.bf16.msra.mxu0 %v7291
        %8413 = vmatpush.bf16.msra.mxu0 %v7279
        %8414 = vmatpush.bf16.msra.mxu0 %v7267
        %8415 = vmatpush.bf16.msra.mxu0 %v7255
        %8416 = vmatpush.bf16.msra.mxu0 %v7243
        %8417 = vmatpush.bf16.msra.mxu0 %v7231
        %8418 = vmatpush.bf16.msra.mxu0 %v7219
        %8419 = vmatpush.bf16.msra.mxu0 %v7207
        %8420 = vmatmul.bf16.gmra.mxu0 %v7396
        %v8421 = vpop.f32.mrf.mxu0
        %v8422 = vadd.f32 %v8409, %v8421
        %v8423 = vpop.f32.mrf.mxu0
        %8424 = vdwg.mxu0
        %8425 = vmatpush.bf16.msra.mxu0 %v7387
        %8426 = vmatpush.bf16.msra.mxu0 %v7375
        %8427 = vmatpush.bf16.msra.mxu0 %v7363
        %8428 = vmatpush.bf16.msra.mxu0 %v7351
        %8429 = vmatpush.bf16.msra.mxu0 %v7339
        %8430 = vmatpush.bf16.msra.mxu0 %v7327
        %8431 = vmatpush.bf16.msra.mxu0 %v7315
        %8432 = vmatpush.bf16.msra.mxu0 %v7303
        %8433 = vmatmul.bf16.gmra.mxu0 %v7397
        %v8434 = vpop.f32.mrf.mxu0
        %v8435 = vadd.f32 %v8422, %v8434
        %v8436 = vpop.f32.mrf.mxu0
        %8437 = vdwg.mxu0
        %8438 = vmatpush.bf16.msra.mxu0 %v6716
        %8439 = vmatpush.bf16.msra.mxu0 %v6704
        %8440 = vmatpush.bf16.msra.mxu0 %v6692
        %8441 = vmatpush.bf16.msra.mxu0 %v6680
        %8442 = vmatpush.bf16.msra.mxu0 %v6668
        %8443 = vmatpush.bf16.msra.mxu0 %v6656
        %8444 = vmatpush.bf16.msra.mxu0 %v6644
        %8445 = vmatpush.bf16.msra.mxu0 %v6632
        %8446 = vmatmul.bf16.gmra.mxu0 %v7390
        %v8447 = vpop.f32.mrf.mxu0
        %v8448 = vadd.f32 0.0, %v8447
        %v8449 = vpop.f32.mrf.mxu0
        %8450 = vdwg.mxu0
        %8451 = vmatpush.bf16.msra.mxu0 %v6812
        %8452 = vmatpush.bf16.msra.mxu0 %v6800
        %8453 = vmatpush.bf16.msra.mxu0 %v6788
        %8454 = vmatpush.bf16.msra.mxu0 %v6776
        %8455 = vmatpush.bf16.msra.mxu0 %v6764
        %8456 = vmatpush.bf16.msra.mxu0 %v6752
        %8457 = vmatpush.bf16.msra.mxu0 %v6740
        %8458 = vmatpush.bf16.msra.mxu0 %v6728
        %8459 = vmatmul.bf16.gmra.mxu0 %v7391
        %v8460 = vpop.f32.mrf.mxu0
        %v8461 = vadd.f32 %v8448, %v8460
        %v8462 = vpop.f32.mrf.mxu0
        %8463 = vdwg.mxu0
        %8464 = vmatpush.bf16.msra.mxu0 %v6908
        %8465 = vmatpush.bf16.msra.mxu0 %v6896
        %8466 = vmatpush.bf16.msra.mxu0 %v6884
        %8467 = vmatpush.bf16.msra.mxu0 %v6872
        %8468 = vmatpush.bf16.msra.mxu0 %v6860
        %8469 = vmatpush.bf16.msra.mxu0 %v6848
        %8470 = vmatpush.bf16.msra.mxu0 %v6836
        %8471 = vmatpush.bf16.msra.mxu0 %v6824
        %8472 = vmatmul.bf16.gmra.mxu0 %v7392
        %v8473 = vpop.f32.mrf.mxu0
        %v8474 = vadd.f32 %v8461, %v8473
        %v8475 = vpop.f32.mrf.mxu0
        %8476 = vdwg.mxu0
        %8477 = vmatpush.bf16.msra.mxu0 %v7004
        %8478 = vmatpush.bf16.msra.mxu0 %v6992
        %8479 = vmatpush.bf16.msra.mxu0 %v6980
        %8480 = vmatpush.bf16.msra.mxu0 %v6968
        %8481 = vmatpush.bf16.msra.mxu0 %v6956
        %8482 = vmatpush.bf16.msra.mxu0 %v6944
        %8483 = vmatpush.bf16.msra.mxu0 %v6932
        %8484 = vmatpush.bf16.msra.mxu0 %v6920
        %8485 = vmatmul.bf16.gmra.mxu0 %v7393
        %v8486 = vpop.f32.mrf.mxu0
        %v8487 = vadd.f32 %v8474, %v8486
        %v8488 = vpop.f32.mrf.mxu0
        %8489 = vdwg.mxu0
        %8490 = vmatpush.bf16.msra.mxu0 %v7100
        %8491 = vmatpush.bf16.msra.mxu0 %v7088
        %8492 = vmatpush.bf16.msra.mxu0 %v7076
        %8493 = vmatpush.bf16.msra.mxu0 %v7064
        %8494 = vmatpush.bf16.msra.mxu0 %v7052
        %8495 = vmatpush.bf16.msra.mxu0 %v7040
        %8496 = vmatpush.bf16.msra.mxu0 %v7028
        %8497 = vmatpush.bf16.msra.mxu0 %v7016
        %8498 = vmatmul.bf16.gmra.mxu0 %v7394
        %v8499 = vpop.f32.mrf.mxu0
        %v8500 = vadd.f32 %v8487, %v8499
        %v8501 = vpop.f32.mrf.mxu0
        %8502 = vdwg.mxu0
        %8503 = vmatpush.bf16.msra.mxu0 %v7196
        %8504 = vmatpush.bf16.msra.mxu0 %v7184
        %8505 = vmatpush.bf16.msra.mxu0 %v7172
        %8506 = vmatpush.bf16.msra.mxu0 %v7160
        %8507 = vmatpush.bf16.msra.mxu0 %v7148
        %8508 = vmatpush.bf16.msra.mxu0 %v7136
        %8509 = vmatpush.bf16.msra.mxu0 %v7124
        %8510 = vmatpush.bf16.msra.mxu0 %v7112
        %8511 = vmatmul.bf16.gmra.mxu0 %v7395
        %v8512 = vpop.f32.mrf.mxu0
        %v8513 = vadd.f32 %v8500, %v8512
        %v8514 = vpop.f32.mrf.mxu0
        %8515 = vdwg.mxu0
        %8516 = vmatpush.bf16.msra.mxu0 %v7292
        %8517 = vmatpush.bf16.msra.mxu0 %v7280
        %8518 = vmatpush.bf16.msra.mxu0 %v7268
        %8519 = vmatpush.bf16.msra.mxu0 %v7256
        %8520 = vmatpush.bf16.msra.mxu0 %v7244
        %8521 = vmatpush.bf16.msra.mxu0 %v7232
        %8522 = vmatpush.bf16.msra.mxu0 %v7220
        %8523 = vmatpush.bf16.msra.mxu0 %v7208
        %8524 = vmatmul.bf16.gmra.mxu0 %v7396
        %v8525 = vpop.f32.mrf.mxu0
        %v8526 = vadd.f32 %v8513, %v8525
        %v8527 = vpop.f32.mrf.mxu0
        %8528 = vdwg.mxu0
        %8529 = vmatpush.bf16.msra.mxu0 %v7388
        %8530 = vmatpush.bf16.msra.mxu0 %v7376
        %8531 = vmatpush.bf16.msra.mxu0 %v7364
        %8532 = vmatpush.bf16.msra.mxu0 %v7352
        %8533 = vmatpush.bf16.msra.mxu0 %v7340
        %8534 = vmatpush.bf16.msra.mxu0 %v7328
        %8535 = vmatpush.bf16.msra.mxu0 %v7316
        %8536 = vmatpush.bf16.msra.mxu0 %v7304
        %8537 = vmatmul.bf16.gmra.mxu0 %v7397
        %v8538 = vpop.f32.mrf.mxu0
        %v8539 = vadd.f32 %v8526, %v8538
        %v8540 = vpop.f32.mrf.mxu0
        %8541 = vdwg.mxu0
        %8542 = vmatpush.bf16.msra.mxu0 %v6717
        %8543 = vmatpush.bf16.msra.mxu0 %v6705
        %8544 = vmatpush.bf16.msra.mxu0 %v6693
        %8545 = vmatpush.bf16.msra.mxu0 %v6681
        %8546 = vmatpush.bf16.msra.mxu0 %v6669
        %8547 = vmatpush.bf16.msra.mxu0 %v6657
        %8548 = vmatpush.bf16.msra.mxu0 %v6645
        %8549 = vmatpush.bf16.msra.mxu0 %v6633
        %8550 = vmatmul.bf16.gmra.mxu0 %v7390
        %v8551 = vpop.f32.mrf.mxu0
        %v8552 = vadd.f32 0.0, %v8551
        %v8553 = vpop.f32.mrf.mxu0
        %8554 = vdwg.mxu0
        %8555 = vmatpush.bf16.msra.mxu0 %v6813
        %8556 = vmatpush.bf16.msra.mxu0 %v6801
        %8557 = vmatpush.bf16.msra.mxu0 %v6789
        %8558 = vmatpush.bf16.msra.mxu0 %v6777
        %8559 = vmatpush.bf16.msra.mxu0 %v6765
        %8560 = vmatpush.bf16.msra.mxu0 %v6753
        %8561 = vmatpush.bf16.msra.mxu0 %v6741
        %8562 = vmatpush.bf16.msra.mxu0 %v6729
        %8563 = vmatmul.bf16.gmra.mxu0 %v7391
        %v8564 = vpop.f32.mrf.mxu0
        %v8565 = vadd.f32 %v8552, %v8564
        %v8566 = vpop.f32.mrf.mxu0
        %8567 = vdwg.mxu0
        %8568 = vmatpush.bf16.msra.mxu0 %v6909
        %8569 = vmatpush.bf16.msra.mxu0 %v6897
        %8570 = vmatpush.bf16.msra.mxu0 %v6885
        %8571 = vmatpush.bf16.msra.mxu0 %v6873
        %8572 = vmatpush.bf16.msra.mxu0 %v6861
        %8573 = vmatpush.bf16.msra.mxu0 %v6849
        %8574 = vmatpush.bf16.msra.mxu0 %v6837
        %8575 = vmatpush.bf16.msra.mxu0 %v6825
        %8576 = vmatmul.bf16.gmra.mxu0 %v7392
        %v8577 = vpop.f32.mrf.mxu0
        %v8578 = vadd.f32 %v8565, %v8577
        %v8579 = vpop.f32.mrf.mxu0
        %8580 = vdwg.mxu0
        %8581 = vmatpush.bf16.msra.mxu0 %v7005
        %8582 = vmatpush.bf16.msra.mxu0 %v6993
        %8583 = vmatpush.bf16.msra.mxu0 %v6981
        %8584 = vmatpush.bf16.msra.mxu0 %v6969
        %8585 = vmatpush.bf16.msra.mxu0 %v6957
        %8586 = vmatpush.bf16.msra.mxu0 %v6945
        %8587 = vmatpush.bf16.msra.mxu0 %v6933
        %8588 = vmatpush.bf16.msra.mxu0 %v6921
        %8589 = vmatmul.bf16.gmra.mxu0 %v7393
        %v8590 = vpop.f32.mrf.mxu0
        %v8591 = vadd.f32 %v8578, %v8590
        %v8592 = vpop.f32.mrf.mxu0
        %8593 = vdwg.mxu0
        %8594 = vmatpush.bf16.msra.mxu0 %v7101
        %8595 = vmatpush.bf16.msra.mxu0 %v7089
        %8596 = vmatpush.bf16.msra.mxu0 %v7077
        %8597 = vmatpush.bf16.msra.mxu0 %v7065
        %8598 = vmatpush.bf16.msra.mxu0 %v7053
        %8599 = vmatpush.bf16.msra.mxu0 %v7041
        %8600 = vmatpush.bf16.msra.mxu0 %v7029
        %8601 = vmatpush.bf16.msra.mxu0 %v7017
        %8602 = vmatmul.bf16.gmra.mxu0 %v7394
        %v8603 = vpop.f32.mrf.mxu0
        %v8604 = vadd.f32 %v8591, %v8603
        %v8605 = vpop.f32.mrf.mxu0
        %8606 = vdwg.mxu0
        %8607 = vmatpush.bf16.msra.mxu0 %v7197
        %8608 = vmatpush.bf16.msra.mxu0 %v7185
        %8609 = vmatpush.bf16.msra.mxu0 %v7173
        %8610 = vmatpush.bf16.msra.mxu0 %v7161
        %8611 = vmatpush.bf16.msra.mxu0 %v7149
        %8612 = vmatpush.bf16.msra.mxu0 %v7137
        %8613 = vmatpush.bf16.msra.mxu0 %v7125
        %8614 = vmatpush.bf16.msra.mxu0 %v7113
        %8615 = vmatmul.bf16.gmra.mxu0 %v7395
        %v8616 = vpop.f32.mrf.mxu0
        %v8617 = vadd.f32 %v8604, %v8616
        %v8618 = vpop.f32.mrf.mxu0
        %8619 = vdwg.mxu0
        %8620 = vmatpush.bf16.msra.mxu0 %v7293
        %8621 = vmatpush.bf16.msra.mxu0 %v7281
        %8622 = vmatpush.bf16.msra.mxu0 %v7269
        %8623 = vmatpush.bf16.msra.mxu0 %v7257
        %8624 = vmatpush.bf16.msra.mxu0 %v7245
        %8625 = vmatpush.bf16.msra.mxu0 %v7233
        %8626 = vmatpush.bf16.msra.mxu0 %v7221
        %8627 = vmatpush.bf16.msra.mxu0 %v7209
        %8628 = vmatmul.bf16.gmra.mxu0 %v7396
        %v8629 = vpop.f32.mrf.mxu0
        %v8630 = vadd.f32 %v8617, %v8629
        %v8631 = vpop.f32.mrf.mxu0
        %8632 = vdwg.mxu0
        %8633 = vmatpush.bf16.msra.mxu0 %v7389
        %8634 = vmatpush.bf16.msra.mxu0 %v7377
        %8635 = vmatpush.bf16.msra.mxu0 %v7365
        %8636 = vmatpush.bf16.msra.mxu0 %v7353
        %8637 = vmatpush.bf16.msra.mxu0 %v7341
        %8638 = vmatpush.bf16.msra.mxu0 %v7329
        %8639 = vmatpush.bf16.msra.mxu0 %v7317
        %8640 = vmatpush.bf16.msra.mxu0 %v7305
        %8641 = vmatmul.bf16.gmra.mxu0 %v7397
        %v8642 = vpop.f32.mrf.mxu0
        %v8643 = vadd.f32 %v8630, %v8642
        %v8644 = vpop.f32.mrf.mxu0
        %8645 = vdwg.mxu0
        %v8646 = vld [vmem:[%s482] sm:$0xff]
        %v8647 = vld [vmem:[%s482 + $0x8] sm:$0xf]
        %v8650 = vperm.slane %v8646, 0
        %v8651 = vperm.slane %v8646, 1
        %v8652 = vperm.slane %v8646, 2
        %v8653 = vperm.slane %v8646, 3
        %v8654 = vperm.slane %v8646, 4
        %v8655 = vperm.slane %v8646, 5
        %v8656 = vperm.slane %v8646, 6
        %v8657 = vperm.slane %v8646, 7
        %v8658 = vperm.slane %v8647, 0
        %v8659 = vperm.slane %v8647, 1
        %v8660 = vperm.slane %v8647, 2
        %v8661 = vperm.slane %v8647, 3
        %v8674 = vmul.f32 %v7499, %v8650
        %v8675 = vmul.f32 %v7603, %v8651
        %v8676 = vmul.f32 %v7707, %v8652
        %v8677 = vmul.f32 %v7811, %v8653
        %v8678 = vmul.f32 %v7915, %v8654
        %v8679 = vmul.f32 %v8019, %v8655
        %v8680 = vmul.f32 %v8123, %v8656
        %v8681 = vmul.f32 %v8227, %v8657
        %v8682 = vmul.f32 %v8331, %v8658
        %v8683 = vmul.f32 %v8435, %v8659
        %v8684 = vmul.f32 %v8539, %v8660
        %v8685 = vmul.f32 %v8643, %v8661
        %v8686 = vld [vmem:[%s492] sm:$0xff]
        %v8687 = vld [vmem:[%s492 + $0x8] sm:$0xf]
        %v8690 = vperm.slane %v8686, 0
        %v8691 = vperm.slane %v8686, 1
        %v8692 = vperm.slane %v8686, 2
        %v8693 = vperm.slane %v8686, 3
        %v8694 = vperm.slane %v8686, 4
        %v8695 = vperm.slane %v8686, 5
        %v8696 = vperm.slane %v8686, 6
        %v8697 = vperm.slane %v8686, 7
        %v8698 = vperm.slane %v8687, 0
        %v8699 = vperm.slane %v8687, 1
        %v8700 = vperm.slane %v8687, 2
        %v8701 = vperm.slane %v8687, 3
        %v8714 = vadd.f32 %v8674, %v8690
        %v8715 = vadd.f32 %v8675, %v8691
        %v8716 = vadd.f32 %v8676, %v8692
        %v8717 = vadd.f32 %v8677, %v8693
        %v8718 = vadd.f32 %v8678, %v8694
        %v8719 = vadd.f32 %v8679, %v8695
        %v8720 = vadd.f32 %v8680, %v8696
        %v8721 = vadd.f32 %v8681, %v8697
        %v8722 = vadd.f32 %v8682, %v8698
        %v8723 = vadd.f32 %v8683, %v8699
        %v8724 = vadd.f32 %v8684, %v8700
        %v8725 = vadd.f32 %v8685, %v8701
        %v8726 = vtanh.pop %v8714
        %v8727 = vtanh.pop %v8715
        %v8728 = vtanh.pop %v8716
        %v8729 = vtanh.pop %v8717
        %v8730 = vtanh.pop %v8718
        %v8731 = vtanh.pop %v8719
        %v8732 = vtanh.pop %v8720
        %v8733 = vtanh.pop %v8721
        %v8734 = vtanh.pop %v8722
        %v8735 = vtanh.pop %v8723
        %v8736 = vtanh.pop %v8724
        %v8737 = vtanh.pop %v8725
        %8738 = vst [vmem:[%s546] sm:$0xff] %v8726
        %8739 = vst [vmem:[%s546 + $0x8] sm:$0xff] %v8727
        %8740 = vst [vmem:[%s546 + $0x10] sm:$0xff] %v8728
        %8741 = vst [vmem:[%s546 + $0x18] sm:$0xff] %v8729
        %8742 = vst [vmem:[%s546 + $0x20] sm:$0xff] %v8730
        %8743 = vst [vmem:[%s546 + $0x28] sm:$0xff] %v8731
        %8744 = vst [vmem:[%s546 + $0x30] sm:$0xff] %v8732
        %8745 = vst [vmem:[%s546 + $0x38] sm:$0xff] %v8733
        %8746 = vst [vmem:[%s546 + $0x40] sm:$0xff] %v8734
        %8747 = vst [vmem:[%s546 + $0x48] sm:$0xff] %v8735
        %8748 = vst [vmem:[%s546 + $0x50] sm:$0xff] %v8736
        %8749 = vst [vmem:[%s546 + $0x58] sm:$0xff] %v8737
        %s8750 = smul.u32 12, %s25
        %p8751 = scmp.lt.s32.totalorder %s8750, 23
        %s8752 = scalar_select %p8751, %s8750, 23
        %s8753 = smul.addr %s8752, 8
        %s8754 = scalar_lea.vmem %s10, %s8753
        // Predicated region
        $region97: #{cifar_generator_forward.1} parent=59 // pred_check
          %p8755 = pneg %p268
        $region98: #{cifar_generator_forward.1} parent=59 // pred_check_branch
          %8757 = sbr.rel (%p8755) target = $region100
        $region99: #{cifar_generator_forward.1} parent=59 // pred_region
          %s8758 = smul.u32 12, %s25
        $region100: #{cifar_generator_forward.1} parent=59 // pred_fallthru
          _
      $region60: #{cifar_generator_forward.1} parent=5 // pred_fallthru
        _
      %p8759 = scmp.le.s32.totalorder 2, %s20
      // Predicated region
      $region101: #{cifar_generator_forward.1} parent=5 // pred_check
        %p8760 = pneg %p8759
      $region102: #{cifar_generator_forward.1} parent=5 // pred_check_branch
        %8762 = sbr.rel (%p8760) target = $region104
      $region103: #{cifar_generator_forward.1} parent=5 // pred_region
        %s8763 = ssub.s32 %s20, 2
        // Predicated region
        $region105: #{cifar_generator_forward.1} parent=103 // pred_check
          %p8764 = pneg %p274
        $region106: #{cifar_generator_forward.1} parent=103 // pred_check_branch
          %8766 = sbr.rel (%p8764) target = $region108
        $region107: #{cifar_generator_forward.1} parent=103 // pred_region
          %s8767 = smul.u32 12, %s26
          %p8768 = scmp.lt.s32.totalorder %s8767, 23
          %s8769 = scalar_select %p8768, %s8767, 23
          %s8770 = smul.addr %s8769, 8
          %s8771 = scalar_lea.vmem %s10, %s8770
        $region108: #{cifar_generator_forward.1} parent=103 // pred_fallthru
          _
      $region104: #{cifar_generator_forward.1} parent=5 // pred_fallthru
        _
    $region6: #{cifar_generator_forward.1} parent=1 // loop_footer
      %s24 = sadd.s32 1, %s20
    $region7: #{cifar_generator_forward.1} parent=1 // loop_footer_branch
      %19 = sbr.rel target = $region3
    $region8: #{cifar_generator_forward.1} parent=1 // loop_exit
      _
    %8772 = vsyncpa [#allocation3], 1
    %s8773 = scalar_lea.sflag [#allocation3], 1
    %8774 = vsyncpa %s8773, 1
    %8775 = vsyncpa [#allocation5], 1
    %8776 = vsyncpa [#allocation8], 1
    %8777 = vsyncpa [#allocation11], 1

</llo_original>
